<compile_context>
chip_gen: v6e
topology: v6e:2x2x1
jax: 0.10.0
libtpu: 0.0.40
codegen_flags: <defaults>
</compile_context>

<pallas_src>
import functools

import numpy as np
import jax
import jax.numpy as jnp
from jax.experimental import pallas as pl
from jax.experimental.pallas import tpu as pltpu

TAPS = [(0, 0), (0, 1), (1, 0), (1, 1)]   # ConvTranspose2d 2x2 kernel tap order


def _pad8(n):
    return max(8, ((n + 7) // 8) * 8)


# ----------------------------- fused kernel --------------------------------

def make_fused_kernel(num_levels):
    L = num_levels

    def gcn3(h, st, w_ref, b_ref):
        """Chebyshev K=3 GCN layer on one batch element.
        h: (Np, Cin); st: (2*Np, Np) stacked [S; T2]; w: (3*Cin, Cout); b: (1, Cout)."""
        npad = st.shape[1]
        d = jnp.dot(st, h, preferred_element_type=jnp.float32)        # [S@h ; T2@h]
        z = jnp.concatenate([h, d[:npad], d[npad:]], axis=1)          # (Np, 3*Cin)
        return jnp.dot(z, w_ref[...], preferred_element_type=jnp.float32) + b_ref[...]

    def kernel(*refs):
        o_ref = refs[-1]
        it = iter(refs[:-1])
        x_ref = next(it)
        st_refs = [next(it) for _ in range(L)]
        down = [[next(it) for _ in range(4)] for _ in range(L)]        # w1, b1, w2, b2
        pool = [next(it) for _ in range(L - 1)]                        # (4*Ncp, Nfp)
        up = [[next(it) for _ in range(7)] for _ in range(L - 1)]      # g, ctw, ctb, w1, b1, w2, b2
        lw_ref = next(it)
        lb_ref = next(it)

        h = x_ref[0]                                                   # (N0p, Cin)
        skips = []

        # ---------------- encoder ----------------
        for i in range(L):
            st = st_refs[i][...]
            w1, b1, w2, b2 = down[i]
            h = jnp.maximum(gcn3(h, st, w1, b1), 0.0)
            h = jnp.maximum(gcn3(h, st, w2, b2), 0.0)
            # TODO(synk): nn.Dropout treated as identity (inference-mode semantics).
            if i != L - 1:
                skips.append(h)
                ncp = st_refs[i + 1].shape[1]
                d = jnp.dot(pool[i][...], h, preferred_element_type=jnp.float32)
                # 2x2 max-pool routed onto coarse node positions.  0 replaces the
                # reference's -inf grid fill: exact since h >= 0 (post-ReLU) and every
                # coarse-node window contains at least one fine node.
                h = jnp.maximum(jnp.maximum(d[0 * ncp:1 * ncp], d[1 * ncp:2 * ncp]),
                                jnp.maximum(d[2 * ncp:3 * ncp], d[3 * ncp:4 * ncp]))

        # ---------------- decoder ----------------
        for u in range(L - 1):
            f = L - 2 - u                                              # fine level of this step
            g_ref, ctw_ref, ctb_ref, w1, b1, w2, b2 = up[u]
            st = st_refs[f][...]
            cout = ctb_ref.shape[-1]
            # ConvTranspose2d(k=2, s=2, d=2) + center-crop + node gather, evaluated only at
            # fine node positions: one K=C matmul over the coarse rows, then 4 tiny gathers.
            y = jnp.dot(h, ctw_ref[...], preferred_element_type=jnp.float32)  # (Ncp, 4*cout)
            up0 = jnp.dot(g_ref[0], y[:, :cout], preferred_element_type=jnp.float32)
            for t in range(1, 4):
                up0 = up0 + jnp.dot(g_ref[t], y[:, t * cout:(t + 1) * cout],
                                    preferred_element_type=jnp.float32)
            up0 = up0 + ctb_ref[...]
            cat0 = jnp.concatenate([up0, skips[f]], axis=1)            # [up, bridge]
            h = jnp.maximum(gcn3(cat0, st, w1, b1), 0.0)
            h = jnp.maximum(gcn3(h, st, w2, b2), 0.0)
            # TODO(synk): dropout after each up block treated as identity.

        # ---------------- final GCN (kernel_size=1) ----------------
        o_ref[0] = (jnp.dot(h, lw_ref[...], preferred_element_type=jnp.float32)
                    + lb_ref[...])

    return kernel


# ----------------------------- pallas_call wrapper --------------------------

def _rep_spec(a):
    shape = tuple(int(s) for s in a.shape)
    zeros = (0,) * len(shape)
    return pl.BlockSpec(shape, lambda b, _z=zeros: _z)


def dcrnn_single_forward(x, prep, *, horizon, output_dim):
    """x: (B, seq_len*input_dim, N0) -> (B, horizon, output_dim, N0)."""
    B, cin, n0 = x.shape
    st_list = prep["st"]
    L = len(st_list)
    n0p = st_list[0].shape[1]
    out_ch = prep["last_w"].shape[1]

    h = jnp.transpose(x, (0, 2, 1))                      # single entry transpose (B, N0, Cin)
    h = jnp.pad(h, ((0, 0), (0, n0p - n0), (0, 0)))

    args = [h]
    args += list(st_list)
    for d in prep["down"]:
        args += [d["w1"], d["b1"], d["w2"], d["b2"]]
    args += list(prep["pool"])
    for u in prep["up"]:
        args += [u["g"], u["ctw"], u["ctb"], u["w1"], u["b1"], u["w2"], u["b2"]]
    args += [prep["last_w"], prep["last_b"]]

    in_specs = [pl.BlockSpec((1, n0p, cin), lambda b: (b, 0, 0))]
    in_specs += [_rep_spec(a) for a in args[1:]]

    y = pl.pallas_call(
        make_fused_kernel(L),
        grid=(B,),
        out_shape=jax.ShapeDtypeStruct((B, n0p, out_ch), jnp.float32),
        in_specs=in_specs,
        out_specs=pl.BlockSpec((1, n0p, out_ch), lambda b: (b, 0, 0)),
        compiler_params=pltpu.CompilerParams(dimension_semantics=("parallel",)),
    )(*args)

    preds = jnp.transpose(y[:, :n0, :], (0, 2, 1))       # single exit transpose
    return preds.reshape(B, horizon, output_dim, n0)


# ----------------------------- static routing / weight packing -------------

def _merge_gcn_w(w, cin, K):
    """PyTorch GCN Linear weight rows are ordered channel-major / tap-minor (c*K + k);
    reorder to tap-major (k*cin + c) to match the kernel's lane-concat [x0 | x1 | x2].
    NOTE: verify this (cin, k) ordering before importing real PyTorch checkpoints."""
    w = np.asarray(w, np.float32)
    cout = w.shape[1]
    return jnp.asarray(np.transpose(w.reshape(cin, K, cout), (1, 0, 2)).reshape(K * cin, cout))


def _bias(b):
    return jnp.asarray(np.asarray(b, np.float32).reshape(1, -1))


def build_pool_matrix(pos_f, pos_c, hw_f, nfp, ncp):
    """Stacked 0/1 selection matrix (4*ncp, nfp): row k*ncp + j selects the k-th fine node
    inside coarse node j's 2x2 max-pool window (zero row if the slot is empty)."""
    H, W = hw_f
    hc, wc = H // 2, W // 2
    cmap = {tuple(p): j for j, p in enumerate(pos_c.tolist())}
    P = np.zeros((4, ncp, nfp), np.float32)
    counts = {}
    for n, (r, c) in enumerate(pos_f.tolist()):
        if r < 2 * hc and c < 2 * wc:
            key = (r // 2, c // 2)
            if key in cmap:
                j = cmap[key]
                k = counts.get(j, 0)
                if k < 4:
                    P[k, j, n] = 1.0
                    counts[j] = k + 1
    return jnp.asarray(P.reshape(4 * ncp, nfp))


def build_up_gather(pos_c, pos_f, hw_c, hw_f, nfp, ncp):
    """Per-tap (nfp, ncp) 0/1 matrices so that ConvTranspose2d(k=2,s=2,d=2) + center crop
    + node gather reduces to: up = bias + sum_t G_t @ x_coarse @ W_t."""
    hc, wc = hw_c
    ht, wt = hw_f
    dy = (2 * hc + 1 - ht) // 2
    dx = (2 * wc + 1 - wt) // 2
    cmap = {tuple(p): j for j, p in enumerate(pos_c.tolist())}
    G = np.zeros((4, nfp, ncp), np.float32)
    for n, (r, c) in enumerate(pos_f.tolist()):
        R, C = r + dy, c + dx
        if R % 2 or C % 2:                    # odd output positions only receive the bias
            continue
        jr, jc = R // 2, C // 2
        for t, (ki, kj) in enumerate(TAPS):
            src = (jr - ki, jc - kj)
            if 0 <= src[0] < hc and 0 <= src[1] < wc and src in cmap:
                G[t, n, cmap[src]] = 1.0
    return jnp.asarray(G)


def prepare_model(params, supports, node_pos_list, grid_hw0):
    L = len(supports)
    n = [int(p.shape[0]) for p in node_pos_list]
    npad = [_pad8(v) for v in n]
    hw = [grid_hw0]
    for _ in range(L - 1):
        hh, ww = hw[-1]
        hw.append((hh // 2, ww // 2))

    prep = {"st": [], "down": [], "pool": [], "up": []}

    # stacked [S; T2] per level, node-padded to a multiple of 8 (T2 kept in f32)
    for i, S in enumerate(supports):
        S = np.asarray(S, np.float32)
        T2 = 2.0 * (S @ S) - np.eye(n[i], dtype=np.float32)
        st = np.zeros((2 * npad[i], npad[i]), np.float32)
        st[:n[i], :n[i]] = S
        st[npad[i]:npad[i] + n[i], :n[i]] = T2
        prep["st"].append(jnp.asarray(st))

    for p in params["down"]:
        cin = p["w1"].shape[0] // 3
        c = p["w1"].shape[1]
        prep["down"].append({
            "w1": _merge_gcn_w(p["w1"], cin, 3), "b1": _bias(p["b1"]),
            "w2": _merge_gcn_w(p["w2"], c, 3), "b2": _bias(p["b2"]),
        })

    for i in range(L - 1):
        prep["pool"].append(build_pool_matrix(node_pos_list[i], node_pos_list[i + 1],
                                              hw[i], npad[i], npad[i + 1]))

    for u, p in enumerate(params["up"]):
        lc, lf = L - 1 - u, L - 2 - u                     # coarse / fine levels of up step u
        c = p["ct_w"].shape[1]
        ctw = np.concatenate(
            [np.asarray(p["ct_w"], np.float32)[:, :, ki, kj] for ki, kj in TAPS], axis=1)
        cb = p["conv_block"]
        prep["up"].append({
            "g": build_up_gather(node_pos_list[lc], node_pos_list[lf],
                                 hw[lc], hw[lf], npad[lf], npad[lc]),
            "ctw": jnp.asarray(ctw), "ctb": _bias(p["ct_b"]),
            "w1": _merge_gcn_w(cb["w1"], 2 * c, 3), "b1": _bias(cb["b1"]),
            "w2": _merge_gcn_w(cb["w2"], c, 3), "b2": _bias(cb["b2"]),
        })

    prep["last_w"] = jnp.asarray(np.asarray(params["last"]["w"], np.float32))
    prep["last_b"] = _bias(params["last"]["b"])
    return prep


# ----------------------------- deterministic params ------------------------

def _uniform(key, shape, fan_in):
    bound = fan_in ** -0.5
    return jax.random.uniform(key, shape, jnp.float32, -bound, bound)


def init_params(key, in_channels, wf, coarsen_levels, output_dim, horizon):
    params = {"down": [], "up": []}
    prev = in_channels
    k = [key]

    def nk():
        k[0], sub = jax.random.split(k[0])
        return sub

    for i in range(coarsen_levels):
        c = 2 ** (wf + i)
        params["down"].append({
            "w1": _uniform(nk(), (prev * 3, c), prev * 3),
            "b1": _uniform(nk(), (c,), prev * 3),
            "w2": _uniform(nk(), (c * 3, c), c * 3),
            "b2": _uniform(nk(), (c,), c * 3),
        })
        prev = c
    for i in reversed(range(coarsen_levels - 1)):
        c = 2 ** (wf + i)
        params["up"].append({
            "ct_w": _uniform(nk(), (prev, c, 2, 2), prev * 4),
            "ct_b": _uniform(nk(), (c,), prev * 4),
            "conv_block": {
                "w1": _uniform(nk(), (2 * c * 3, c), 2 * c * 3),
                "b1": _uniform(nk(), (c,), 2 * c * 3),
                "w2": _uniform(nk(), (c * 3, c), c * 3),
                "b2": _uniform(nk(), (c,), c * 3),
            },
        })
        prev = c
    params["last"] = {
        "w": _uniform(nk(), (prev, output_dim * horizon), prev),
        "b": _uniform(nk(), (output_dim * horizon,), prev),
    }
    return params


def make_support(key, n):
    """Deterministic scaled-Laplacian-like support (lambda_max=2 -> -D^-1/2 A D^-1/2)."""
    a = jax.random.uniform(key, (n, n), jnp.float32)
    a = 0.5 * (a + a.T) * (1.0 - jnp.eye(n, dtype=jnp.float32))
    dinv = 1.0 / jnp.sqrt(a.sum(axis=1))
    return -(dinv[:, None] * a * dinv[None, :])


# ----------------------------- demo ----------------------------------------

if __name__ == "__main__":
    B = 2
    seq_len, input_dim = 4, 3            # -> 12 input channels (b, t*c, n)
    output_dim, horizon = 3, 2
    wf = 3                               # down channels: 8, 16, 32, 64
    coarsen_levels = 4
    grid_hw0 = (16, 16)                  # spatial grid at the finest level

    # Hierarchical node positions (level i+1 node at (r,c) covered by level i node at (2r,2c))
    np3 = np.array([[0, 0], [0, 1], [1, 0], [1, 1]], np.int32)
    np2 = np.concatenate([2 * np3, np.array([[1, 1], [3, 3]], np.int32)], 0)
    np1 = np.concatenate([2 * np2, np.array([[1, 5], [5, 1]], np.int32)], 0)
    np0 = np.concatenate([2 * np1, np.array([[3, 3], [5, 7], [7, 5], [13, 1]], np.int32)], 0)
    node_pos_list = [np0, np1, np2, np3]
    node_counts = [p.shape[0] for p in node_pos_list]     # [12, 8, 6, 4]

    key = jax.random.PRNGKey(0)
    ks = jax.random.split(key, 6)
    supports = [make_support(ks[i], node_counts[i]) for i in range(coarsen_levels)]
    params = init_params(ks[4], input_dim * seq_len, wf, coarsen_levels, output_dim, horizon)
    x = jax.random.normal(ks[5], (B, input_dim * seq_len, node_counts[0]), jnp.float32)

    prep = prepare_model(params, supports, node_pos_list, grid_hw0)
    fwd = jax.jit(functools.partial(dcrnn_single_forward,
                                    horizon=horizon, output_dim=output_dim))
    preds = jax.block_until_ready(fwd(x, prep))
    assert preds.shape == (B, horizon, output_dim, node_counts[0])
    assert bool(jnp.all(jnp.isfinite(preds)))
    print("KERNEL_OK")
</pallas_src>

<mosaic_0001>
module attributes {stable_mosaic.version = 11 : i64} {
  func.func @kernel(%arg0: i32, %arg1: memref<1x16x12xf32, #tpu.memory_space<vmem>>, %arg2: memref<32x16xf32, #tpu.memory_space<vmem>>, %arg3: memref<16x8xf32, #tpu.memory_space<vmem>>, %arg4: memref<16x8xf32, #tpu.memory_space<vmem>>, %arg5: memref<16x8xf32, #tpu.memory_space<vmem>>, %arg6: memref<36x8xf32, #tpu.memory_space<vmem>>, %arg7: memref<1x8xf32, #tpu.memory_space<vmem>>, %arg8: memref<24x8xf32, #tpu.memory_space<vmem>>, %arg9: memref<1x8xf32, #tpu.memory_space<vmem>>, %arg10: memref<24x16xf32, #tpu.memory_space<vmem>>, %arg11: memref<1x16xf32, #tpu.memory_space<vmem>>, %arg12: memref<48x16xf32, #tpu.memory_space<vmem>>, %arg13: memref<1x16xf32, #tpu.memory_space<vmem>>, %arg14: memref<48x32xf32, #tpu.memory_space<vmem>>, %arg15: memref<1x32xf32, #tpu.memory_space<vmem>>, %arg16: memref<96x32xf32, #tpu.memory_space<vmem>>, %arg17: memref<1x32xf32, #tpu.memory_space<vmem>>, %arg18: memref<96x64xf32, #tpu.memory_space<vmem>>, %arg19: memref<1x64xf32, #tpu.memory_space<vmem>>, %arg20: memref<192x64xf32, #tpu.memory_space<vmem>>, %arg21: memref<1x64xf32, #tpu.memory_space<vmem>>, %arg22: memref<32x16xf32, #tpu.memory_space<vmem>>, %arg23: memref<32x8xf32, #tpu.memory_space<vmem>>, %arg24: memref<32x8xf32, #tpu.memory_space<vmem>>, %arg25: memref<4x8x8xf32, #tpu.memory_space<vmem>>, %arg26: memref<64x128xf32, #tpu.memory_space<vmem>>, %arg27: memref<1x32xf32, #tpu.memory_space<vmem>>, %arg28: memref<192x32xf32, #tpu.memory_space<vmem>>, %arg29: memref<1x32xf32, #tpu.memory_space<vmem>>, %arg30: memref<96x32xf32, #tpu.memory_space<vmem>>, %arg31: memref<1x32xf32, #tpu.memory_space<vmem>>, %arg32: memref<4x8x8xf32, #tpu.memory_space<vmem>>, %arg33: memref<32x64xf32, #tpu.memory_space<vmem>>, %arg34: memref<1x16xf32, #tpu.memory_space<vmem>>, %arg35: memref<96x16xf32, #tpu.memory_space<vmem>>, %arg36: memref<1x16xf32, #tpu.memory_space<vmem>>, %arg37: memref<48x16xf32, #tpu.memory_space<vmem>>, %arg38: memref<1x16xf32, #tpu.memory_space<vmem>>, %arg39: memref<4x16x8xf32, #tpu.memory_space<vmem>>, %arg40: memref<16x32xf32, #tpu.memory_space<vmem>>, %arg41: memref<1x8xf32, #tpu.memory_space<vmem>>, %arg42: memref<48x8xf32, #tpu.memory_space<vmem>>, %arg43: memref<1x8xf32, #tpu.memory_space<vmem>>, %arg44: memref<24x8xf32, #tpu.memory_space<vmem>>, %arg45: memref<1x8xf32, #tpu.memory_space<vmem>>, %arg46: memref<8x6xf32, #tpu.memory_space<vmem>>, %arg47: memref<1x6xf32, #tpu.memory_space<vmem>>, %arg48: memref<1x16x6xf32, #tpu.memory_space<vmem>>) attributes {dimension_semantics = [#tpu.dimension_semantics<parallel>], iteration_bounds = array<i64: 2>, scalar_prefetch = 0 : i64, scratch_operands = 0 : i64, tpu.core_type = #tpu.core_type<tc>, window_params = [{transform_indices = @transform_0, window_bounds = array<i64: 1, 16, 12>}, {pipeline_mode = #tpu.pipeline_mode<synchronous>, transform_indices = @transform_1, window_bounds = array<i64: 32, 16>}, {pipeline_mode = #tpu.pipeline_mode<synchronous>, transform_indices = @transform_2, window_bounds = array<i64: 16, 8>}, {pipeline_mode = #tpu.pipeline_mode<synchronous>, transform_indices = @transform_3, window_bounds = array<i64: 16, 8>}, {pipeline_mode = #tpu.pipeline_mode<synchronous>, transform_indices = @transform_4, window_bounds = array<i64: 16, 8>}, {pipeline_mode = #tpu.pipeline_mode<synchronous>, transform_indices = @transform_5, window_bounds = array<i64: 36, 8>}, {pipeline_mode = #tpu.pipeline_mode<synchronous>, transform_indices = @transform_6, window_bounds = array<i64: 1, 8>}, {pipeline_mode = #tpu.pipeline_mode<synchronous>, transform_indices = @transform_7, window_bounds = array<i64: 24, 8>}, {pipeline_mode = #tpu.pipeline_mode<synchronous>, transform_indices = @transform_8, window_bounds = array<i64: 1, 8>}, {pipeline_mode = #tpu.pipeline_mode<synchronous>, transform_indices = @transform_9, window_bounds = array<i64: 24, 16>}, {pipeline_mode = #tpu.pipeline_mode<synchronous>, transform_indices = @transform_10, window_bounds = array<i64: 1, 16>}, {pipeline_mode = #tpu.pipeline_mode<synchronous>, transform_indices = @transform_11, window_bounds = array<i64: 48, 16>}, {pipeline_mode = #tpu.pipeline_mode<synchronous>, transform_indices = @transform_12, window_bounds = array<i64: 1, 16>}, {pipeline_mode = #tpu.pipeline_mode<synchronous>, transform_indices = @transform_13, window_bounds = array<i64: 48, 32>}, {pipeline_mode = #tpu.pipeline_mode<synchronous>, transform_indices = @transform_14, window_bounds = array<i64: 1, 32>}, {pipeline_mode = #tpu.pipeline_mode<synchronous>, transform_indices = @transform_15, window_bounds = array<i64: 96, 32>}, {pipeline_mode = #tpu.pipeline_mode<synchronous>, transform_indices = @transform_16, window_bounds = array<i64: 1, 32>}, {pipeline_mode = #tpu.pipeline_mode<synchronous>, transform_indices = @transform_17, window_bounds = array<i64: 96, 64>}, {pipeline_mode = #tpu.pipeline_mode<synchronous>, transform_indices = @transform_18, window_bounds = array<i64: 1, 64>}, {pipeline_mode = #tpu.pipeline_mode<synchronous>, transform_indices = @transform_19, window_bounds = array<i64: 192, 64>}, {pipeline_mode = #tpu.pipeline_mode<synchronous>, transform_indices = @transform_20, window_bounds = array<i64: 1, 64>}, {pipeline_mode = #tpu.pipeline_mode<synchronous>, transform_indices = @transform_21, window_bounds = array<i64: 32, 16>}, {pipeline_mode = #tpu.pipeline_mode<synchronous>, transform_indices = @transform_22, window_bounds = array<i64: 32, 8>}, {pipeline_mode = #tpu.pipeline_mode<synchronous>, transform_indices = @transform_23, window_bounds = array<i64: 32, 8>}, {pipeline_mode = #tpu.pipeline_mode<synchronous>, transform_indices = @transform_24, window_bounds = array<i64: 4, 8, 8>}, {pipeline_mode = #tpu.pipeline_mode<synchronous>, transform_indices = @transform_25, window_bounds = array<i64: 64, 128>}, {pipeline_mode = #tpu.pipeline_mode<synchronous>, transform_indices = @transform_26, window_bounds = array<i64: 1, 32>}, {pipeline_mode = #tpu.pipeline_mode<synchronous>, transform_indices = @transform_27, window_bounds = array<i64: 192, 32>}, {pipeline_mode = #tpu.pipeline_mode<synchronous>, transform_indices = @transform_28, window_bounds = array<i64: 1, 32>}, {pipeline_mode = #tpu.pipeline_mode<synchronous>, transform_indices = @transform_29, window_bounds = array<i64: 96, 32>}, {pipeline_mode = #tpu.pipeline_mode<synchronous>, transform_indices = @transform_30, window_bounds = array<i64: 1, 32>}, {pipeline_mode = #tpu.pipeline_mode<synchronous>, transform_indices = @transform_31, window_bounds = array<i64: 4, 8, 8>}, {pipeline_mode = #tpu.pipeline_mode<synchronous>, transform_indices = @transform_32, window_bounds = array<i64: 32, 64>}, {pipeline_mode = #tpu.pipeline_mode<synchronous>, transform_indices = @transform_33, window_bounds = array<i64: 1, 16>}, {pipeline_mode = #tpu.pipeline_mode<synchronous>, transform_indices = @transform_34, window_bounds = array<i64: 96, 16>}, {pipeline_mode = #tpu.pipeline_mode<synchronous>, transform_indices = @transform_35, window_bounds = array<i64: 1, 16>}, {pipeline_mode = #tpu.pipeline_mode<synchronous>, transform_indices = @transform_36, window_bounds = array<i64: 48, 16>}, {pipeline_mode = #tpu.pipeline_mode<synchronous>, transform_indices = @transform_37, window_bounds = array<i64: 1, 16>}, {pipeline_mode = #tpu.pipeline_mode<synchronous>, transform_indices = @transform_38, window_bounds = array<i64: 4, 16, 8>}, {pipeline_mode = #tpu.pipeline_mode<synchronous>, transform_indices = @transform_39, window_bounds = array<i64: 16, 32>}, {pipeline_mode = #tpu.pipeline_mode<synchronous>, transform_indices = @transform_40, window_bounds = array<i64: 1, 8>}, {pipeline_mode = #tpu.pipeline_mode<synchronous>, transform_indices = @transform_41, window_bounds = array<i64: 48, 8>}, {pipeline_mode = #tpu.pipeline_mode<synchronous>, transform_indices = @transform_42, window_bounds = array<i64: 1, 8>}, {pipeline_mode = #tpu.pipeline_mode<synchronous>, transform_indices = @transform_43, window_bounds = array<i64: 24, 8>}, {pipeline_mode = #tpu.pipeline_mode<synchronous>, transform_indices = @transform_44, window_bounds = array<i64: 1, 8>}, {pipeline_mode = #tpu.pipeline_mode<synchronous>, transform_indices = @transform_45, window_bounds = array<i64: 8, 6>}, {pipeline_mode = #tpu.pipeline_mode<synchronous>, transform_indices = @transform_46, window_bounds = array<i64: 1, 6>}, {transform_indices = @transform_47, window_bounds = array<i64: 1, 16, 6>}]} {
    %c0 = arith.constant 0 : index
    %c0_0 = arith.constant 0 : index
    %c0_1 = arith.constant 0 : index
    %0 = vector.load %arg1[%c0, %c0_0, %c0_1] : memref<1x16x12xf32, #tpu.memory_space<vmem>>, vector<1x16x12xf32>
    %1 = vector.shape_cast %0 : vector<1x16x12xf32> to vector<16x12xf32>
    %c0_2 = arith.constant 0 : index
    %c0_3 = arith.constant 0 : index
    %2 = vector.load %arg2[%c0_2, %c0_3] : memref<32x16xf32, #tpu.memory_space<vmem>>, vector<32x16xf32>
    %cst = arith.constant dense<0.000000e+00> : vector<32x12xf32>
    %3 = tpu.matmul %2, %1, %cst {dimension_numbers = #tpu.dot_dimension_numbers<[1], [0], [0], [1], [0, 0, 1, 1], [], []>} : vector<32x16xf32>, vector<16x12xf32>, vector<32x12xf32> -> vector<32x12xf32>
    %4 = vector.extract_strided_slice %3 {offsets = [0, 0], sizes = [16, 12], strides = [1, 1]} : vector<32x12xf32> to vector<16x12xf32>
    %5 = vector.extract_strided_slice %3 {offsets = [16, 0], sizes = [16, 12], strides = [1, 1]} : vector<32x12xf32> to vector<16x12xf32>
    %6 = tpu.concatenate %1, %4, %5 in 1 : vector<16x12xf32>, vector<16x12xf32>, vector<16x12xf32> -> vector<16x36xf32>
    %c0_4 = arith.constant 0 : index
    %c0_5 = arith.constant 0 : index
    %7 = vector.load %arg6[%c0_4, %c0_5] : memref<36x8xf32, #tpu.memory_space<vmem>>, vector<36x8xf32>
    %cst_6 = arith.constant dense<0.000000e+00> : vector<16x8xf32>
    %8 = tpu.matmul %6, %7, %cst_6 {dimension_numbers = #tpu.dot_dimension_numbers<[1], [0], [0], [1], [0, 0, 1, 1], [], []>} : vector<16x36xf32>, vector<36x8xf32>, vector<16x8xf32> -> vector<16x8xf32>
    %c0_7 = arith.constant 0 : index
    %c0_8 = arith.constant 0 : index
    %9 = vector.load %arg7[%c0_7, %c0_8] : memref<1x8xf32, #tpu.memory_space<vmem>>, vector<1x8xf32>
    %10 = vector.broadcast %9 : vector<1x8xf32> to vector<16x8xf32>
    %11 = arith.addf %8, %10 : vector<16x8xf32>
    %cst_9 = arith.constant 0.000000e+00 : f32
    %12 = vector.broadcast %cst_9 : f32 to vector<16x8xf32>
    %13 = arith.maximumf %11, %12 : vector<16x8xf32>
    %cst_10 = arith.constant dense<0.000000e+00> : vector<32x8xf32>
    %14 = tpu.matmul %2, %13, %cst_10 {dimension_numbers = #tpu.dot_dimension_numbers<[1], [0], [0], [1], [0, 0, 1, 1], [], []>} : vector<32x16xf32>, vector<16x8xf32>, vector<32x8xf32> -> vector<32x8xf32>
    %15 = vector.extract_strided_slice %14 {offsets = [0, 0], sizes = [16, 8], strides = [1, 1]} : vector<32x8xf32> to vector<16x8xf32>
    %16 = vector.extract_strided_slice %14 {offsets = [16, 0], sizes = [16, 8], strides = [1, 1]} : vector<32x8xf32> to vector<16x8xf32>
    %17 = tpu.concatenate %13, %15, %16 in 1 : vector<16x8xf32>, vector<16x8xf32>, vector<16x8xf32> -> vector<16x24xf32>
    %c0_11 = arith.constant 0 : index
    %c0_12 = arith.constant 0 : index
    %18 = vector.load %arg8[%c0_11, %c0_12] : memref<24x8xf32, #tpu.memory_space<vmem>>, vector<24x8xf32>
    %cst_13 = arith.constant dense<0.000000e+00> : vector<16x8xf32>
    %19 = tpu.matmul %17, %18, %cst_13 {dimension_numbers = #tpu.dot_dimension_numbers<[1], [0], [0], [1], [0, 0, 1, 1], [], []>} : vector<16x24xf32>, vector<24x8xf32>, vector<16x8xf32> -> vector<16x8xf32>
    %c0_14 = arith.constant 0 : index
    %c0_15 = arith.constant 0 : index
    %20 = vector.load %arg9[%c0_14, %c0_15] : memref<1x8xf32, #tpu.memory_space<vmem>>, vector<1x8xf32>
    %21 = vector.broadcast %20 : vector<1x8xf32> to vector<16x8xf32>
    %22 = arith.addf %19, %21 : vector<16x8xf32>
    %cst_16 = arith.constant 0.000000e+00 : f32
    %23 = vector.broadcast %cst_16 : f32 to vector<16x8xf32>
    %24 = arith.maximumf %22, %23 : vector<16x8xf32>
    %c0_17 = arith.constant 0 : index
    %c0_18 = arith.constant 0 : index
    %25 = vector.load %arg22[%c0_17, %c0_18] : memref<32x16xf32, #tpu.memory_space<vmem>>, vector<32x16xf32>
    %cst_19 = arith.constant dense<0.000000e+00> : vector<32x8xf32>
    %26 = tpu.matmul %25, %24, %cst_19 {dimension_numbers = #tpu.dot_dimension_numbers<[1], [0], [0], [1], [0, 0, 1, 1], [], []>} : vector<32x16xf32>, vector<16x8xf32>, vector<32x8xf32> -> vector<32x8xf32>
    %27 = vector.extract_strided_slice %26 {offsets = [0, 0], sizes = [8, 8], strides = [1, 1]} : vector<32x8xf32> to vector<8x8xf32>
    %28 = vector.extract_strided_slice %26 {offsets = [8, 0], sizes = [8, 8], strides = [1, 1]} : vector<32x8xf32> to vector<8x8xf32>
    %29 = arith.maximumf %27, %28 : vector<8x8xf32>
    %30 = vector.extract_strided_slice %26 {offsets = [16, 0], sizes = [8, 8], strides = [1, 1]} : vector<32x8xf32> to vector<8x8xf32>
    %31 = vector.extract_strided_slice %26 {offsets = [24, 0], sizes = [8, 8], strides = [1, 1]} : vector<32x8xf32> to vector<8x8xf32>
    %32 = arith.maximumf %30, %31 : vector<8x8xf32>
    %33 = arith.maximumf %29, %32 : vector<8x8xf32>
    %c0_20 = arith.constant 0 : index
    %c0_21 = arith.constant 0 : index
    %34 = vector.load %arg3[%c0_20, %c0_21] : memref<16x8xf32, #tpu.memory_space<vmem>>, vector<16x8xf32>
    %cst_22 = arith.constant dense<0.000000e+00> : vector<16x8xf32>
    %35 = tpu.matmul %34, %33, %cst_22 {dimension_numbers = #tpu.dot_dimension_numbers<[1], [0], [0], [1], [0, 0, 1, 1], [], []>} : vector<16x8xf32>, vector<8x8xf32>, vector<16x8xf32> -> vector<16x8xf32>
    %36 = vector.extract_strided_slice %35 {offsets = [0, 0], sizes = [8, 8], strides = [1, 1]} : vector<16x8xf32> to vector<8x8xf32>
    %37 = vector.extract_strided_slice %35 {offsets = [8, 0], sizes = [8, 8], strides = [1, 1]} : vector<16x8xf32> to vector<8x8xf32>
    %38 = tpu.concatenate %33, %36, %37 in 1 : vector<8x8xf32>, vector<8x8xf32>, vector<8x8xf32> -> vector<8x24xf32>
    %c0_23 = arith.constant 0 : index
    %c0_24 = arith.constant 0 : index
    %39 = vector.load %arg10[%c0_23, %c0_24] : memref<24x16xf32, #tpu.memory_space<vmem>>, vector<24x16xf32>
    %cst_25 = arith.constant dense<0.000000e+00> : vector<8x16xf32>
    %40 = tpu.matmul %38, %39, %cst_25 {dimension_numbers = #tpu.dot_dimension_numbers<[1], [0], [0], [1], [0, 0, 1, 1], [], []>} : vector<8x24xf32>, vector<24x16xf32>, vector<8x16xf32> -> vector<8x16xf32>
    %c0_26 = arith.constant 0 : index
    %c0_27 = arith.constant 0 : index
    %41 = vector.load %arg11[%c0_26, %c0_27] : memref<1x16xf32, #tpu.memory_space<vmem>>, vector<1x16xf32>
    %42 = vector.broadcast %41 : vector<1x16xf32> to vector<8x16xf32>
    %43 = arith.addf %40, %42 : vector<8x16xf32>
    %cst_28 = arith.constant 0.000000e+00 : f32
    %44 = vector.broadcast %cst_28 : f32 to vector<8x16xf32>
    %45 = arith.maximumf %43, %44 : vector<8x16xf32>
    %cst_29 = arith.constant dense<0.000000e+00> : vector<16x16xf32>
    %46 = tpu.matmul %34, %45, %cst_29 {dimension_numbers = #tpu.dot_dimension_numbers<[1], [0], [0], [1], [0, 0, 1, 1], [], []>} : vector<16x8xf32>, vector<8x16xf32>, vector<16x16xf32> -> vector<16x16xf32>
    %47 = vector.extract_strided_slice %46 {offsets = [0, 0], sizes = [8, 16], strides = [1, 1]} : vector<16x16xf32> to vector<8x16xf32>
    %48 = vector.extract_strided_slice %46 {offsets = [8, 0], sizes = [8, 16], strides = [1, 1]} : vector<16x16xf32> to vector<8x16xf32>
    %49 = tpu.concatenate %45, %47, %48 in 1 : vector<8x16xf32>, vector<8x16xf32>, vector<8x16xf32> -> vector<8x48xf32>
    %c0_30 = arith.constant 0 : index
    %c0_31 = arith.constant 0 : index
    %50 = vector.load %arg12[%c0_30, %c0_31] : memref<48x16xf32, #tpu.memory_space<vmem>>, vector<48x16xf32>
    %cst_32 = arith.constant dense<0.000000e+00> : vector<8x16xf32>
    %51 = tpu.matmul %49, %50, %cst_32 {dimension_numbers = #tpu.dot_dimension_numbers<[1], [0], [0], [1], [0, 0, 1, 1], [], []>} : vector<8x48xf32>, vector<48x16xf32>, vector<8x16xf32> -> vector<8x16xf32>
    %c0_33 = arith.constant 0 : index
    %c0_34 = arith.constant 0 : index
    %52 = vector.load %arg13[%c0_33, %c0_34] : memref<1x16xf32, #tpu.memory_space<vmem>>, vector<1x16xf32>
    %53 = vector.broadcast %52 : vector<1x16xf32> to vector<8x16xf32>
    %54 = arith.addf %51, %53 : vector<8x16xf32>
    %cst_35 = arith.constant 0.000000e+00 : f32
    %55 = vector.broadcast %cst_35 : f32 to vector<8x16xf32>
    %56 = arith.maximumf %54, %55 : vector<8x16xf32>
    %c0_36 = arith.constant 0 : index
    %c0_37 = arith.constant 0 : index
    %57 = vector.load %arg23[%c0_36, %c0_37] : memref<32x8xf32, #tpu.memory_space<vmem>>, vector<32x8xf32>
    %cst_38 = arith.constant dense<0.000000e+00> : vector<32x16xf32>
    %58 = tpu.matmul %57, %56, %cst_38 {dimension_numbers = #tpu.dot_dimension_numbers<[1], [0], [0], [1], [0, 0, 1, 1], [], []>} : vector<32x8xf32>, vector<8x16xf32>, vector<32x16xf32> -> vector<32x16xf32>
    %59 = vector.extract_strided_slice %58 {offsets = [0, 0], sizes = [8, 16], strides = [1, 1]} : vector<32x16xf32> to vector<8x16xf32>
    %60 = vector.extract_strided_slice %58 {offsets = [8, 0], sizes = [8, 16], strides = [1, 1]} : vector<32x16xf32> to vector<8x16xf32>
    %61 = arith.maximumf %59, %60 : vector<8x16xf32>
    %62 = vector.extract_strided_slice %58 {offsets = [16, 0], sizes = [8, 16], strides = [1, 1]} : vector<32x16xf32> to vector<8x16xf32>
    %63 = vector.extract_strided_slice %58 {offsets = [24, 0], sizes = [8, 16], strides = [1, 1]} : vector<32x16xf32> to vector<8x16xf32>
    %64 = arith.maximumf %62, %63 : vector<8x16xf32>
    %65 = arith.maximumf %61, %64 : vector<8x16xf32>
    %c0_39 = arith.constant 0 : index
    %c0_40 = arith.constant 0 : index
    %66 = vector.load %arg4[%c0_39, %c0_40] : memref<16x8xf32, #tpu.memory_space<vmem>>, vector<16x8xf32>
    %cst_41 = arith.constant dense<0.000000e+00> : vector<16x16xf32>
    %67 = tpu.matmul %66, %65, %cst_41 {dimension_numbers = #tpu.dot_dimension_numbers<[1], [0], [0], [1], [0, 0, 1, 1], [], []>} : vector<16x8xf32>, vector<8x16xf32>, vector<16x16xf32> -> vector<16x16xf32>
    %68 = vector.extract_strided_slice %67 {offsets = [0, 0], sizes = [8, 16], strides = [1, 1]} : vector<16x16xf32> to vector<8x16xf32>
    %69 = vector.extract_strided_slice %67 {offsets = [8, 0], sizes = [8, 16], strides = [1, 1]} : vector<16x16xf32> to vector<8x16xf32>
    %70 = tpu.concatenate %65, %68, %69 in 1 : vector<8x16xf32>, vector<8x16xf32>, vector<8x16xf32> -> vector<8x48xf32>
    %c0_42 = arith.constant 0 : index
    %c0_43 = arith.constant 0 : index
    %71 = vector.load %arg14[%c0_42, %c0_43] : memref<48x32xf32, #tpu.memory_space<vmem>>, vector<48x32xf32>
    %cst_44 = arith.constant dense<0.000000e+00> : vector<8x32xf32>
    %72 = tpu.matmul %70, %71, %cst_44 {dimension_numbers = #tpu.dot_dimension_numbers<[1], [0], [0], [1], [0, 0, 1, 1], [], []>} : vector<8x48xf32>, vector<48x32xf32>, vector<8x32xf32> -> vector<8x32xf32>
    %c0_45 = arith.constant 0 : index
    %c0_46 = arith.constant 0 : index
    %73 = vector.load %arg15[%c0_45, %c0_46] : memref<1x32xf32, #tpu.memory_space<vmem>>, vector<1x32xf32>
    %74 = vector.broadcast %73 : vector<1x32xf32> to vector<8x32xf32>
    %75 = arith.addf %72, %74 : vector<8x32xf32>
    %cst_47 = arith.constant 0.000000e+00 : f32
    %76 = vector.broadcast %cst_47 : f32 to vector<8x32xf32>
    %77 = arith.maximumf %75, %76 : vector<8x32xf32>
    %cst_48 = arith.constant dense<0.000000e+00> : vector<16x32xf32>
    %78 = tpu.matmul %66, %77, %cst_48 {dimension_numbers = #tpu.dot_dimension_numbers<[1], [0], [0], [1], [0, 0, 1, 1], [], []>} : vector<16x8xf32>, vector<8x32xf32>, vector<16x32xf32> -> vector<16x32xf32>
    %79 = vector.extract_strided_slice %78 {offsets = [0, 0], sizes = [8, 32], strides = [1, 1]} : vector<16x32xf32> to vector<8x32xf32>
    %80 = vector.extract_strided_slice %78 {offsets = [8, 0], sizes = [8, 32], strides = [1, 1]} : vector<16x32xf32> to vector<8x32xf32>
    %81 = tpu.concatenate %77, %79, %80 in 1 : vector<8x32xf32>, vector<8x32xf32>, vector<8x32xf32> -> vector<8x96xf32>
    %c0_49 = arith.constant 0 : index
    %c0_50 = arith.constant 0 : index
    %82 = vector.load %arg16[%c0_49, %c0_50] : memref<96x32xf32, #tpu.memory_space<vmem>>, vector<96x32xf32>
    %cst_51 = arith.constant dense<0.000000e+00> : vector<8x32xf32>
    %83 = tpu.matmul %81, %82, %cst_51 {dimension_numbers = #tpu.dot_dimension_numbers<[1], [0], [0], [1], [0, 0, 1, 1], [], []>} : vector<8x96xf32>, vector<96x32xf32>, vector<8x32xf32> -> vector<8x32xf32>
    %c0_52 = arith.constant 0 : index
    %c0_53 = arith.constant 0 : index
    %84 = vector.load %arg17[%c0_52, %c0_53] : memref<1x32xf32, #tpu.memory_space<vmem>>, vector<1x32xf32>
    %85 = vector.broadcast %84 : vector<1x32xf32> to vector<8x32xf32>
    %86 = arith.addf %83, %85 : vector<8x32xf32>
    %cst_54 = arith.constant 0.000000e+00 : f32
    %87 = vector.broadcast %cst_54 : f32 to vector<8x32xf32>
    %88 = arith.maximumf %86, %87 : vector<8x32xf32>
    %c0_55 = arith.constant 0 : index
    %c0_56 = arith.constant 0 : index
    %89 = vector.load %arg24[%c0_55, %c0_56] : memref<32x8xf32, #tpu.memory_space<vmem>>, vector<32x8xf32>
    %cst_57 = arith.constant dense<0.000000e+00> : vector<32x32xf32>
    %90 = tpu.matmul %89, %88, %cst_57 {dimension_numbers = #tpu.dot_dimension_numbers<[1], [0], [0], [1], [0, 0, 1, 1], [], []>} : vector<32x8xf32>, vector<8x32xf32>, vector<32x32xf32> -> vector<32x32xf32>
    %91 = vector.extract_strided_slice %90 {offsets = [0, 0], sizes = [8, 32], strides = [1, 1]} : vector<32x32xf32> to vector<8x32xf32>
    %92 = vector.extract_strided_slice %90 {offsets = [8, 0], sizes = [8, 32], strides = [1, 1]} : vector<32x32xf32> to vector<8x32xf32>
    %93 = arith.maximumf %91, %92 : vector<8x32xf32>
    %94 = vector.extract_strided_slice %90 {offsets = [16, 0], sizes = [8, 32], strides = [1, 1]} : vector<32x32xf32> to vector<8x32xf32>
    %95 = vector.extract_strided_slice %90 {offsets = [24, 0], sizes = [8, 32], strides = [1, 1]} : vector<32x32xf32> to vector<8x32xf32>
    %96 = arith.maximumf %94, %95 : vector<8x32xf32>
    %97 = arith.maximumf %93, %96 : vector<8x32xf32>
    %c0_58 = arith.constant 0 : index
    %c0_59 = arith.constant 0 : index
    %98 = vector.load %arg5[%c0_58, %c0_59] : memref<16x8xf32, #tpu.memory_space<vmem>>, vector<16x8xf32>
    %cst_60 = arith.constant dense<0.000000e+00> : vector<16x32xf32>
    %99 = tpu.matmul %98, %97, %cst_60 {dimension_numbers = #tpu.dot_dimension_numbers<[1], [0], [0], [1], [0, 0, 1, 1], [], []>} : vector<16x8xf32>, vector<8x32xf32>, vector<16x32xf32> -> vector<16x32xf32>
    %100 = vector.extract_strided_slice %99 {offsets = [0, 0], sizes = [8, 32], strides = [1, 1]} : vector<16x32xf32> to vector<8x32xf32>
    %101 = vector.extract_strided_slice %99 {offsets = [8, 0], sizes = [8, 32], strides = [1, 1]} : vector<16x32xf32> to vector<8x32xf32>
    %102 = tpu.concatenate %97, %100, %101 in 1 : vector<8x32xf32>, vector<8x32xf32>, vector<8x32xf32> -> vector<8x96xf32>
    %c0_61 = arith.constant 0 : index
    %c0_62 = arith.constant 0 : index
    %103 = vector.load %arg18[%c0_61, %c0_62] : memref<96x64xf32, #tpu.memory_space<vmem>>, vector<96x64xf32>
    %cst_63 = arith.constant dense<0.000000e+00> : vector<8x64xf32>
    %104 = tpu.matmul %102, %103, %cst_63 {dimension_numbers = #tpu.dot_dimension_numbers<[1], [0], [0], [1], [0, 0, 1, 1], [], []>} : vector<8x96xf32>, vector<96x64xf32>, vector<8x64xf32> -> vector<8x64xf32>
    %c0_64 = arith.constant 0 : index
    %c0_65 = arith.constant 0 : index
    %105 = vector.load %arg19[%c0_64, %c0_65] : memref<1x64xf32, #tpu.memory_space<vmem>>, vector<1x64xf32>
    %106 = vector.broadcast %105 : vector<1x64xf32> to vector<8x64xf32>
    %107 = arith.addf %104, %106 : vector<8x64xf32>
    %cst_66 = arith.constant 0.000000e+00 : f32
    %108 = vector.broadcast %cst_66 : f32 to vector<8x64xf32>
    %109 = arith.maximumf %107, %108 : vector<8x64xf32>
    %cst_67 = arith.constant dense<0.000000e+00> : vector<16x64xf32>
    %110 = tpu.matmul %98, %109, %cst_67 {dimension_numbers = #tpu.dot_dimension_numbers<[1], [0], [0], [1], [0, 0, 1, 1], [], []>} : vector<16x8xf32>, vector<8x64xf32>, vector<16x64xf32> -> vector<16x64xf32>
    %111 = vector.extract_strided_slice %110 {offsets = [0, 0], sizes = [8, 64], strides = [1, 1]} : vector<16x64xf32> to vector<8x64xf32>
    %112 = vector.extract_strided_slice %110 {offsets = [8, 0], sizes = [8, 64], strides = [1, 1]} : vector<16x64xf32> to vector<8x64xf32>
    %113 = tpu.concatenate %109, %111, %112 in 1 : vector<8x64xf32>, vector<8x64xf32>, vector<8x64xf32> -> vector<8x192xf32>
    %c0_68 = arith.constant 0 : index
    %c0_69 = arith.constant 0 : index
    %114 = vector.load %arg20[%c0_68, %c0_69] : memref<192x64xf32, #tpu.memory_space<vmem>>, vector<192x64xf32>
    %cst_70 = arith.constant dense<0.000000e+00> : vector<8x64xf32>
    %115 = tpu.matmul %113, %114, %cst_70 {dimension_numbers = #tpu.dot_dimension_numbers<[1], [0], [0], [1], [0, 0, 1, 1], [], []>} : vector<8x192xf32>, vector<192x64xf32>, vector<8x64xf32> -> vector<8x64xf32>
    %c0_71 = arith.constant 0 : index
    %c0_72 = arith.constant 0 : index
    %116 = vector.load %arg21[%c0_71, %c0_72] : memref<1x64xf32, #tpu.memory_space<vmem>>, vector<1x64xf32>
    %117 = vector.broadcast %116 : vector<1x64xf32> to vector<8x64xf32>
    %118 = arith.addf %115, %117 : vector<8x64xf32>
    %cst_73 = arith.constant 0.000000e+00 : f32
    %119 = vector.broadcast %cst_73 : f32 to vector<8x64xf32>
    %120 = arith.maximumf %118, %119 : vector<8x64xf32>
    %c0_74 = arith.constant 0 : index
    %c0_75 = arith.constant 0 : index
    %121 = vector.load %arg4[%c0_74, %c0_75] : memref<16x8xf32, #tpu.memory_space<vmem>>, vector<16x8xf32>
    %c0_76 = arith.constant 0 : index
    %c0_77 = arith.constant 0 : index
    %122 = vector.load %arg26[%c0_76, %c0_77] : memref<64x128xf32, #tpu.memory_space<vmem>>, vector<64x128xf32>
    %cst_78 = arith.constant dense<0.000000e+00> : vector<8x128xf32>
    %123 = tpu.matmul %120, %122, %cst_78 {dimension_numbers = #tpu.dot_dimension_numbers<[1], [0], [0], [1], [0, 0, 1, 1], [], []>} : vector<8x64xf32>, vector<64x128xf32>, vector<8x128xf32> -> vector<8x128xf32>
    %c0_79 = arith.constant 0 : index
    %c0_80 = arith.constant 0 : index
    %c0_81 = arith.constant 0 : index
    %124 = vector.load %arg25[%c0_79, %c0_80, %c0_81] : memref<4x8x8xf32, #tpu.memory_space<vmem>>, vector<1x8x8xf32>
    %125 = vector.shape_cast %124 : vector<1x8x8xf32> to vector<8x8xf32>
    %126 = vector.extract_strided_slice %123 {offsets = [0, 0], sizes = [8, 32], strides = [1, 1]} : vector<8x128xf32> to vector<8x32xf32>
    %cst_82 = arith.constant dense<0.000000e+00> : vector<8x32xf32>
    %127 = tpu.matmul %125, %126, %cst_82 {dimension_numbers = #tpu.dot_dimension_numbers<[1], [0], [0], [1], [0, 0, 1, 1], [], []>} : vector<8x8xf32>, vector<8x32xf32>, vector<8x32xf32> -> vector<8x32xf32>
    %c1 = arith.constant 1 : index
    %c0_83 = arith.constant 0 : index
    %c0_84 = arith.constant 0 : index
    %128 = vector.load %arg25[%c1, %c0_83, %c0_84] : memref<4x8x8xf32, #tpu.memory_space<vmem>>, vector<1x8x8xf32>
    %129 = vector.shape_cast %128 : vector<1x8x8xf32> to vector<8x8xf32>
    %130 = vector.extract_strided_slice %123 {offsets = [0, 32], sizes = [8, 32], strides = [1, 1]} : vector<8x128xf32> to vector<8x32xf32>
    %cst_85 = arith.constant dense<0.000000e+00> : vector<8x32xf32>
    %131 = tpu.matmul %129, %130, %cst_85 {dimension_numbers = #tpu.dot_dimension_numbers<[1], [0], [0], [1], [0, 0, 1, 1], [], []>} : vector<8x8xf32>, vector<8x32xf32>, vector<8x32xf32> -> vector<8x32xf32>
    %132 = arith.addf %127, %131 : vector<8x32xf32>
    %c2 = arith.constant 2 : index
    %c0_86 = arith.constant 0 : index
    %c0_87 = arith.constant 0 : index
    %133 = vector.load %arg25[%c2, %c0_86, %c0_87] : memref<4x8x8xf32, #tpu.memory_space<vmem>>, vector<1x8x8xf32>
    %134 = vector.shape_cast %133 : vector<1x8x8xf32> to vector<8x8xf32>
    %135 = vector.extract_strided_slice %123 {offsets = [0, 64], sizes = [8, 32], strides = [1, 1]} : vector<8x128xf32> to vector<8x32xf32>
    %cst_88 = arith.constant dense<0.000000e+00> : vector<8x32xf32>
    %136 = tpu.matmul %134, %135, %cst_88 {dimension_numbers = #tpu.dot_dimension_numbers<[1], [0], [0], [1], [0, 0, 1, 1], [], []>} : vector<8x8xf32>, vector<8x32xf32>, vector<8x32xf32> -> vector<8x32xf32>
    %137 = arith.addf %132, %136 : vector<8x32xf32>
    %c3 = arith.constant 3 : index
    %c0_89 = arith.constant 0 : index
    %c0_90 = arith.constant 0 : index
    %138 = vector.load %arg25[%c3, %c0_89, %c0_90] : memref<4x8x8xf32, #tpu.memory_space<vmem>>, vector<1x8x8xf32>
    %139 = vector.shape_cast %138 : vector<1x8x8xf32> to vector<8x8xf32>
    %140 = vector.extract_strided_slice %123 {offsets = [0, 96], sizes = [8, 32], strides = [1, 1]} : vector<8x128xf32> to vector<8x32xf32>
    %cst_91 = arith.constant dense<0.000000e+00> : vector<8x32xf32>
    %141 = tpu.matmul %139, %140, %cst_91 {dimension_numbers = #tpu.dot_dimension_numbers<[1], [0], [0], [1], [0, 0, 1, 1], [], []>} : vector<8x8xf32>, vector<8x32xf32>, vector<8x32xf32> -> vector<8x32xf32>
    %142 = arith.addf %137, %141 : vector<8x32xf32>
    %c0_92 = arith.constant 0 : index
    %c0_93 = arith.constant 0 : index
    %143 = vector.load %arg27[%c0_92, %c0_93] : memref<1x32xf32, #tpu.memory_space<vmem>>, vector<1x32xf32>
    %144 = vector.broadcast %143 : vector<1x32xf32> to vector<8x32xf32>
    %145 = arith.addf %142, %144 : vector<8x32xf32>
    %146 = tpu.concatenate %145, %88 in 1 : vector<8x32xf32>, vector<8x32xf32> -> vector<8x64xf32>
    %cst_94 = arith.constant dense<0.000000e+00> : vector<16x64xf32>
    %147 = tpu.matmul %121, %146, %cst_94 {dimension_numbers = #tpu.dot_dimension_numbers<[1], [0], [0], [1], [0, 0, 1, 1], [], []>} : vector<16x8xf32>, vector<8x64xf32>, vector<16x64xf32> -> vector<16x64xf32>
    %148 = vector.extract_strided_slice %147 {offsets = [0, 0], sizes = [8, 64], strides = [1, 1]} : vector<16x64xf32> to vector<8x64xf32>
    %149 = vector.extract_strided_slice %147 {offsets = [8, 0], sizes = [8, 64], strides = [1, 1]} : vector<16x64xf32> to vector<8x64xf32>
    %150 = tpu.concatenate %146, %148, %149 in 1 : vector<8x64xf32>, vector<8x64xf32>, vector<8x64xf32> -> vector<8x192xf32>
    %c0_95 = arith.constant 0 : index
    %c0_96 = arith.constant 0 : index
    %151 = vector.load %arg28[%c0_95, %c0_96] : memref<192x32xf32, #tpu.memory_space<vmem>>, vector<192x32xf32>
    %cst_97 = arith.constant dense<0.000000e+00> : vector<8x32xf32>
    %152 = tpu.matmul %150, %151, %cst_97 {dimension_numbers = #tpu.dot_dimension_numbers<[1], [0], [0], [1], [0, 0, 1, 1], [], []>} : vector<8x192xf32>, vector<192x32xf32>, vector<8x32xf32> -> vector<8x32xf32>
    %c0_98 = arith.constant 0 : index
    %c0_99 = arith.constant 0 : index
    %153 = vector.load %arg29[%c0_98, %c0_99] : memref<1x32xf32, #tpu.memory_space<vmem>>, vector<1x32xf32>
    %154 = vector.broadcast %153 : vector<1x32xf32> to vector<8x32xf32>
    %155 = arith.addf %152, %154 : vector<8x32xf32>
    %cst_100 = arith.constant 0.000000e+00 : f32
    %156 = vector.broadcast %cst_100 : f32 to vector<8x32xf32>
    %157 = arith.maximumf %155, %156 : vector<8x32xf32>
    %cst_101 = arith.constant dense<0.000000e+00> : vector<16x32xf32>
    %158 = tpu.matmul %121, %157, %cst_101 {dimension_numbers = #tpu.dot_dimension_numbers<[1], [0], [0], [1], [0, 0, 1, 1], [], []>} : vector<16x8xf32>, vector<8x32xf32>, vector<16x32xf32> -> vector<16x32xf32>
    %159 = vector.extract_strided_slice %158 {offsets = [0, 0], sizes = [8, 32], strides = [1, 1]} : vector<16x32xf32> to vector<8x32xf32>
    %160 = vector.extract_strided_slice %158 {offsets = [8, 0], sizes = [8, 32], strides = [1, 1]} : vector<16x32xf32> to vector<8x32xf32>
    %161 = tpu.concatenate %157, %159, %160 in 1 : vector<8x32xf32>, vector<8x32xf32>, vector<8x32xf32> -> vector<8x96xf32>
    %c0_102 = arith.constant 0 : index
    %c0_103 = arith.constant 0 : index
    %162 = vector.load %arg30[%c0_102, %c0_103] : memref<96x32xf32, #tpu.memory_space<vmem>>, vector<96x32xf32>
    %cst_104 = arith.constant dense<0.000000e+00> : vector<8x32xf32>
    %163 = tpu.matmul %161, %162, %cst_104 {dimension_numbers = #tpu.dot_dimension_numbers<[1], [0], [0], [1], [0, 0, 1, 1], [], []>} : vector<8x96xf32>, vector<96x32xf32>, vector<8x32xf32> -> vector<8x32xf32>
    %c0_105 = arith.constant 0 : index
    %c0_106 = arith.constant 0 : index
    %164 = vector.load %arg31[%c0_105, %c0_106] : memref<1x32xf32, #tpu.memory_space<vmem>>, vector<1x32xf32>
    %165 = vector.broadcast %164 : vector<1x32xf32> to vector<8x32xf32>
    %166 = arith.addf %163, %165 : vector<8x32xf32>
    %cst_107 = arith.constant 0.000000e+00 : f32
    %167 = vector.broadcast %cst_107 : f32 to vector<8x32xf32>
    %168 = arith.maximumf %166, %167 : vector<8x32xf32>
    %c0_108 = arith.constant 0 : index
    %c0_109 = arith.constant 0 : index
    %169 = vector.load %arg3[%c0_108, %c0_109] : memref<16x8xf32, #tpu.memory_space<vmem>>, vector<16x8xf32>
    %c0_110 = arith.constant 0 : index
    %c0_111 = arith.constant 0 : index
    %170 = vector.load %arg33[%c0_110, %c0_111] : memref<32x64xf32, #tpu.memory_space<vmem>>, vector<32x64xf32>
    %cst_112 = arith.constant dense<0.000000e+00> : vector<8x64xf32>
    %171 = tpu.matmul %168, %170, %cst_112 {dimension_numbers = #tpu.dot_dimension_numbers<[1], [0], [0], [1], [0, 0, 1, 1], [], []>} : vector<8x32xf32>, vector<32x64xf32>, vector<8x64xf32> -> vector<8x64xf32>
    %c0_113 = arith.constant 0 : index
    %c0_114 = arith.constant 0 : index
    %c0_115 = arith.constant 0 : index
    %172 = vector.load %arg32[%c0_113, %c0_114, %c0_115] : memref<4x8x8xf32, #tpu.memory_space<vmem>>, vector<1x8x8xf32>
    %173 = vector.shape_cast %172 : vector<1x8x8xf32> to vector<8x8xf32>
    %174 = vector.extract_strided_slice %171 {offsets = [0, 0], sizes = [8, 16], strides = [1, 1]} : vector<8x64xf32> to vector<8x16xf32>
    %cst_116 = arith.constant dense<0.000000e+00> : vector<8x16xf32>
    %175 = tpu.matmul %173, %174, %cst_116 {dimension_numbers = #tpu.dot_dimension_numbers<[1], [0], [0], [1], [0, 0, 1, 1], [], []>} : vector<8x8xf32>, vector<8x16xf32>, vector<8x16xf32> -> vector<8x16xf32>
    %c1_117 = arith.constant 1 : index
    %c0_118 = arith.constant 0 : index
    %c0_119 = arith.constant 0 : index
    %176 = vector.load %arg32[%c1_117, %c0_118, %c0_119] : memref<4x8x8xf32, #tpu.memory_space<vmem>>, vector<1x8x8xf32>
    %177 = vector.shape_cast %176 : vector<1x8x8xf32> to vector<8x8xf32>
    %178 = vector.extract_strided_slice %171 {offsets = [0, 16], sizes = [8, 16], strides = [1, 1]} : vector<8x64xf32> to vector<8x16xf32>
    %cst_120 = arith.constant dense<0.000000e+00> : vector<8x16xf32>
    %179 = tpu.matmul %177, %178, %cst_120 {dimension_numbers = #tpu.dot_dimension_numbers<[1], [0], [0], [1], [0, 0, 1, 1], [], []>} : vector<8x8xf32>, vector<8x16xf32>, vector<8x16xf32> -> vector<8x16xf32>
    %180 = arith.addf %175, %179 : vector<8x16xf32>
    %c2_121 = arith.constant 2 : index
    %c0_122 = arith.constant 0 : index
    %c0_123 = arith.constant 0 : index
    %181 = vector.load %arg32[%c2_121, %c0_122, %c0_123] : memref<4x8x8xf32, #tpu.memory_space<vmem>>, vector<1x8x8xf32>
    %182 = vector.shape_cast %181 : vector<1x8x8xf32> to vector<8x8xf32>
    %183 = vector.extract_strided_slice %171 {offsets = [0, 32], sizes = [8, 16], strides = [1, 1]} : vector<8x64xf32> to vector<8x16xf32>
    %cst_124 = arith.constant dense<0.000000e+00> : vector<8x16xf32>
    %184 = tpu.matmul %182, %183, %cst_124 {dimension_numbers = #tpu.dot_dimension_numbers<[1], [0], [0], [1], [0, 0, 1, 1], [], []>} : vector<8x8xf32>, vector<8x16xf32>, vector<8x16xf32> -> vector<8x16xf32>
    %185 = arith.addf %180, %184 : vector<8x16xf32>
    %c3_125 = arith.constant 3 : index
    %c0_126 = arith.constant 0 : index
    %c0_127 = arith.constant 0 : index
    %186 = vector.load %arg32[%c3_125, %c0_126, %c0_127] : memref<4x8x8xf32, #tpu.memory_space<vmem>>, vector<1x8x8xf32>
    %187 = vector.shape_cast %186 : vector<1x8x8xf32> to vector<8x8xf32>
    %188 = vector.extract_strided_slice %171 {offsets = [0, 48], sizes = [8, 16], strides = [1, 1]} : vector<8x64xf32> to vector<8x16xf32>
    %cst_128 = arith.constant dense<0.000000e+00> : vector<8x16xf32>
    %189 = tpu.matmul %187, %188, %cst_128 {dimension_numbers = #tpu.dot_dimension_numbers<[1], [0], [0], [1], [0, 0, 1, 1], [], []>} : vector<8x8xf32>, vector<8x16xf32>, vector<8x16xf32> -> vector<8x16xf32>
    %190 = arith.addf %185, %189 : vector<8x16xf32>
    %c0_129 = arith.constant 0 : index
    %c0_130 = arith.constant 0 : index
    %191 = vector.load %arg34[%c0_129, %c0_130] : memref<1x16xf32, #tpu.memory_space<vmem>>, vector<1x16xf32>
    %192 = vector.broadcast %191 : vector<1x16xf32> to vector<8x16xf32>
    %193 = arith.addf %190, %192 : vector<8x16xf32>
    %194 = tpu.concatenate %193, %56 in 1 : vector<8x16xf32>, vector<8x16xf32> -> vector<8x32xf32>
    %cst_131 = arith.constant dense<0.000000e+00> : vector<16x32xf32>
    %195 = tpu.matmul %169, %194, %cst_131 {dimension_numbers = #tpu.dot_dimension_numbers<[1], [0], [0], [1], [0, 0, 1, 1], [], []>} : vector<16x8xf32>, vector<8x32xf32>, vector<16x32xf32> -> vector<16x32xf32>
    %196 = vector.extract_strided_slice %195 {offsets = [0, 0], sizes = [8, 32], strides = [1, 1]} : vector<16x32xf32> to vector<8x32xf32>
    %197 = vector.extract_strided_slice %195 {offsets = [8, 0], sizes = [8, 32], strides = [1, 1]} : vector<16x32xf32> to vector<8x32xf32>
    %198 = tpu.concatenate %194, %196, %197 in 1 : vector<8x32xf32>, vector<8x32xf32>, vector<8x32xf32> -> vector<8x96xf32>
    %c0_132 = arith.constant 0 : index
    %c0_133 = arith.constant 0 : index
    %199 = vector.load %arg35[%c0_132, %c0_133] : memref<96x16xf32, #tpu.memory_space<vmem>>, vector<96x16xf32>
    %cst_134 = arith.constant dense<0.000000e+00> : vector<8x16xf32>
    %200 = tpu.matmul %198, %199, %cst_134 {dimension_numbers = #tpu.dot_dimension_numbers<[1], [0], [0], [1], [0, 0, 1, 1], [], []>} : vector<8x96xf32>, vector<96x16xf32>, vector<8x16xf32> -> vector<8x16xf32>
    %c0_135 = arith.constant 0 : index
    %c0_136 = arith.constant 0 : index
    %201 = vector.load %arg36[%c0_135, %c0_136] : memref<1x16xf32, #tpu.memory_space<vmem>>, vector<1x16xf32>
    %202 = vector.broadcast %201 : vector<1x16xf32> to vector<8x16xf32>
    %203 = arith.addf %200, %202 : vector<8x16xf32>
    %cst_137 = arith.constant 0.000000e+00 : f32
    %204 = vector.broadcast %cst_137 : f32 to vector<8x16xf32>
    %205 = arith.maximumf %203, %204 : vector<8x16xf32>
    %cst_138 = arith.constant dense<0.000000e+00> : vector<16x16xf32>
    %206 = tpu.matmul %169, %205, %cst_138 {dimension_numbers = #tpu.dot_dimension_numbers<[1], [0], [0], [1], [0, 0, 1, 1], [], []>} : vector<16x8xf32>, vector<8x16xf32>, vector<16x16xf32> -> vector<16x16xf32>
    %207 = vector.extract_strided_slice %206 {offsets = [0, 0], sizes = [8, 16], strides = [1, 1]} : vector<16x16xf32> to vector<8x16xf32>
    %208 = vector.extract_strided_slice %206 {offsets = [8, 0], sizes = [8, 16], strides = [1, 1]} : vector<16x16xf32> to vector<8x16xf32>
    %209 = tpu.concatenate %205, %207, %208 in 1 : vector<8x16xf32>, vector<8x16xf32>, vector<8x16xf32> -> vector<8x48xf32>
    %c0_139 = arith.constant 0 : index
    %c0_140 = arith.constant 0 : index
    %210 = vector.load %arg37[%c0_139, %c0_140] : memref<48x16xf32, #tpu.memory_space<vmem>>, vector<48x16xf32>
    %cst_141 = arith.constant dense<0.000000e+00> : vector<8x16xf32>
    %211 = tpu.matmul %209, %210, %cst_141 {dimension_numbers = #tpu.dot_dimension_numbers<[1], [0], [0], [1], [0, 0, 1, 1], [], []>} : vector<8x48xf32>, vector<48x16xf32>, vector<8x16xf32> -> vector<8x16xf32>
    %c0_142 = arith.constant 0 : index
    %c0_143 = arith.constant 0 : index
    %212 = vector.load %arg38[%c0_142, %c0_143] : memref<1x16xf32, #tpu.memory_space<vmem>>, vector<1x16xf32>
    %213 = vector.broadcast %212 : vector<1x16xf32> to vector<8x16xf32>
    %214 = arith.addf %211, %213 : vector<8x16xf32>
    %cst_144 = arith.constant 0.000000e+00 : f32
    %215 = vector.broadcast %cst_144 : f32 to vector<8x16xf32>
    %216 = arith.maximumf %214, %215 : vector<8x16xf32>
    %c0_145 = arith.constant 0 : index
    %c0_146 = arith.constant 0 : index
    %217 = vector.load %arg2[%c0_145, %c0_146] : memref<32x16xf32, #tpu.memory_space<vmem>>, vector<32x16xf32>
    %c0_147 = arith.constant 0 : index
    %c0_148 = arith.constant 0 : index
    %218 = vector.load %arg40[%c0_147, %c0_148] : memref<16x32xf32, #tpu.memory_space<vmem>>, vector<16x32xf32>
    %cst_149 = arith.constant dense<0.000000e+00> : vector<8x32xf32>
    %219 = tpu.matmul %216, %218, %cst_149 {dimension_numbers = #tpu.dot_dimension_numbers<[1], [0], [0], [1], [0, 0, 1, 1], [], []>} : vector<8x16xf32>, vector<16x32xf32>, vector<8x32xf32> -> vector<8x32xf32>
    %c0_150 = arith.constant 0 : index
    %c0_151 = arith.constant 0 : index
    %c0_152 = arith.constant 0 : index
    %220 = vector.load %arg39[%c0_150, %c0_151, %c0_152] : memref<4x16x8xf32, #tpu.memory_space<vmem>>, vector<1x16x8xf32>
    %221 = vector.shape_cast %220 : vector<1x16x8xf32> to vector<16x8xf32>
    %222 = vector.extract_strided_slice %219 {offsets = [0, 0], sizes = [8, 8], strides = [1, 1]} : vector<8x32xf32> to vector<8x8xf32>
    %cst_153 = arith.constant dense<0.000000e+00> : vector<16x8xf32>
    %223 = tpu.matmul %221, %222, %cst_153 {dimension_numbers = #tpu.dot_dimension_numbers<[1], [0], [0], [1], [0, 0, 1, 1], [], []>} : vector<16x8xf32>, vector<8x8xf32>, vector<16x8xf32> -> vector<16x8xf32>
    %c1_154 = arith.constant 1 : index
    %c0_155 = arith.constant 0 : index
    %c0_156 = arith.constant 0 : index
    %224 = vector.load %arg39[%c1_154, %c0_155, %c0_156] : memref<4x16x8xf32, #tpu.memory_space<vmem>>, vector<1x16x8xf32>
    %225 = vector.shape_cast %224 : vector<1x16x8xf32> to vector<16x8xf32>
    %226 = vector.extract_strided_slice %219 {offsets = [0, 8], sizes = [8, 8], strides = [1, 1]} : vector<8x32xf32> to vector<8x8xf32>
    %cst_157 = arith.constant dense<0.000000e+00> : vector<16x8xf32>
    %227 = tpu.matmul %225, %226, %cst_157 {dimension_numbers = #tpu.dot_dimension_numbers<[1], [0], [0], [1], [0, 0, 1, 1], [], []>} : vector<16x8xf32>, vector<8x8xf32>, vector<16x8xf32> -> vector<16x8xf32>
    %228 = arith.addf %223, %227 : vector<16x8xf32>
    %c2_158 = arith.constant 2 : index
    %c0_159 = arith.constant 0 : index
    %c0_160 = arith.constant 0 : index
    %229 = vector.load %arg39[%c2_158, %c0_159, %c0_160] : memref<4x16x8xf32, #tpu.memory_space<vmem>>, vector<1x16x8xf32>
    %230 = vector.shape_cast %229 : vector<1x16x8xf32> to vector<16x8xf32>
    %231 = vector.extract_strided_slice %219 {offsets = [0, 16], sizes = [8, 8], strides = [1, 1]} : vector<8x32xf32> to vector<8x8xf32>
    %cst_161 = arith.constant dense<0.000000e+00> : vector<16x8xf32>
    %232 = tpu.matmul %230, %231, %cst_161 {dimension_numbers = #tpu.dot_dimension_numbers<[1], [0], [0], [1], [0, 0, 1, 1], [], []>} : vector<16x8xf32>, vector<8x8xf32>, vector<16x8xf32> -> vector<16x8xf32>
    %233 = arith.addf %228, %232 : vector<16x8xf32>
    %c3_162 = arith.constant 3 : index
    %c0_163 = arith.constant 0 : index
    %c0_164 = arith.constant 0 : index
    %234 = vector.load %arg39[%c3_162, %c0_163, %c0_164] : memref<4x16x8xf32, #tpu.memory_space<vmem>>, vector<1x16x8xf32>
    %235 = vector.shape_cast %234 : vector<1x16x8xf32> to vector<16x8xf32>
    %236 = vector.extract_strided_slice %219 {offsets = [0, 24], sizes = [8, 8], strides = [1, 1]} : vector<8x32xf32> to vector<8x8xf32>
    %cst_165 = arith.constant dense<0.000000e+00> : vector<16x8xf32>
    %237 = tpu.matmul %235, %236, %cst_165 {dimension_numbers = #tpu.dot_dimension_numbers<[1], [0], [0], [1], [0, 0, 1, 1], [], []>} : vector<16x8xf32>, vector<8x8xf32>, vector<16x8xf32> -> vector<16x8xf32>
    %238 = arith.addf %233, %237 : vector<16x8xf32>
    %c0_166 = arith.constant 0 : index
    %c0_167 = arith.constant 0 : index
    %239 = vector.load %arg41[%c0_166, %c0_167] : memref<1x8xf32, #tpu.memory_space<vmem>>, vector<1x8xf32>
    %240 = vector.broadcast %239 : vector<1x8xf32> to vector<16x8xf32>
    %241 = arith.addf %238, %240 : vector<16x8xf32>
    %242 = tpu.concatenate %241, %24 in 1 : vector<16x8xf32>, vector<16x8xf32> -> vector<16x16xf32>
    %cst_168 = arith.constant dense<0.000000e+00> : vector<32x16xf32>
    %243 = tpu.matmul %217, %242, %cst_168 {dimension_numbers = #tpu.dot_dimension_numbers<[1], [0], [0], [1], [0, 0, 1, 1], [], []>} : vector<32x16xf32>, vector<16x16xf32>, vector<32x16xf32> -> vector<32x16xf32>
    %244 = vector.extract_strided_slice %243 {offsets = [0, 0], sizes = [16, 16], strides = [1, 1]} : vector<32x16xf32> to vector<16x16xf32>
    %245 = vector.extract_strided_slice %243 {offsets = [16, 0], sizes = [16, 16], strides = [1, 1]} : vector<32x16xf32> to vector<16x16xf32>
    %246 = tpu.concatenate %242, %244, %245 in 1 : vector<16x16xf32>, vector<16x16xf32>, vector<16x16xf32> -> vector<16x48xf32>
    %c0_169 = arith.constant 0 : index
    %c0_170 = arith.constant 0 : index
    %247 = vector.load %arg42[%c0_169, %c0_170] : memref<48x8xf32, #tpu.memory_space<vmem>>, vector<48x8xf32>
    %cst_171 = arith.constant dense<0.000000e+00> : vector<16x8xf32>
    %248 = tpu.matmul %246, %247, %cst_171 {dimension_numbers = #tpu.dot_dimension_numbers<[1], [0], [0], [1], [0, 0, 1, 1], [], []>} : vector<16x48xf32>, vector<48x8xf32>, vector<16x8xf32> -> vector<16x8xf32>
    %c0_172 = arith.constant 0 : index
    %c0_173 = arith.constant 0 : index
    %249 = vector.load %arg43[%c0_172, %c0_173] : memref<1x8xf32, #tpu.memory_space<vmem>>, vector<1x8xf32>
    %250 = vector.broadcast %249 : vector<1x8xf32> to vector<16x8xf32>
    %251 = arith.addf %248, %250 : vector<16x8xf32>
    %cst_174 = arith.constant 0.000000e+00 : f32
    %252 = vector.broadcast %cst_174 : f32 to vector<16x8xf32>
    %253 = arith.maximumf %251, %252 : vector<16x8xf32>
    %cst_175 = arith.constant dense<0.000000e+00> : vector<32x8xf32>
    %254 = tpu.matmul %217, %253, %cst_175 {dimension_numbers = #tpu.dot_dimension_numbers<[1], [0], [0], [1], [0, 0, 1, 1], [], []>} : vector<32x16xf32>, vector<16x8xf32>, vector<32x8xf32> -> vector<32x8xf32>
    %255 = vector.extract_strided_slice %254 {offsets = [0, 0], sizes = [16, 8], strides = [1, 1]} : vector<32x8xf32> to vector<16x8xf32>
    %256 = vector.extract_strided_slice %254 {offsets = [16, 0], sizes = [16, 8], strides = [1, 1]} : vector<32x8xf32> to vector<16x8xf32>
    %257 = tpu.concatenate %253, %255, %256 in 1 : vector<16x8xf32>, vector<16x8xf32>, vector<16x8xf32> -> vector<16x24xf32>
    %c0_176 = arith.constant 0 : index
    %c0_177 = arith.constant 0 : index
    %258 = vector.load %arg44[%c0_176, %c0_177] : memref<24x8xf32, #tpu.memory_space<vmem>>, vector<24x8xf32>
    %cst_178 = arith.constant dense<0.000000e+00> : vector<16x8xf32>
    %259 = tpu.matmul %257, %258, %cst_178 {dimension_numbers = #tpu.dot_dimension_numbers<[1], [0], [0], [1], [0, 0, 1, 1], [], []>} : vector<16x24xf32>, vector<24x8xf32>, vector<16x8xf32> -> vector<16x8xf32>
    %c0_179 = arith.constant 0 : index
    %c0_180 = arith.constant 0 : index
    %260 = vector.load %arg45[%c0_179, %c0_180] : memref<1x8xf32, #tpu.memory_space<vmem>>, vector<1x8xf32>
    %261 = vector.broadcast %260 : vector<1x8xf32> to vector<16x8xf32>
    %262 = arith.addf %259, %261 : vector<16x8xf32>
    %cst_181 = arith.constant 0.000000e+00 : f32
    %263 = vector.broadcast %cst_181 : f32 to vector<16x8xf32>
    %264 = arith.maximumf %262, %263 : vector<16x8xf32>
    %c0_182 = arith.constant 0 : index
    %c0_183 = arith.constant 0 : index
    %265 = vector.load %arg46[%c0_182, %c0_183] : memref<8x6xf32, #tpu.memory_space<vmem>>, vector<8x6xf32>
    %cst_184 = arith.constant dense<0.000000e+00> : vector<16x6xf32>
    %266 = tpu.matmul %264, %265, %cst_184 {dimension_numbers = #tpu.dot_dimension_numbers<[1], [0], [0], [1], [0, 0, 1, 1], [], []>} : vector<16x8xf32>, vector<8x6xf32>, vector<16x6xf32> -> vector<16x6xf32>
    %c0_185 = arith.constant 0 : index
    %c0_186 = arith.constant 0 : index
    %267 = vector.load %arg47[%c0_185, %c0_186] : memref<1x6xf32, #tpu.memory_space<vmem>>, vector<1x6xf32>
    %268 = vector.broadcast %267 : vector<1x6xf32> to vector<16x6xf32>
    %269 = arith.addf %266, %268 : vector<16x6xf32>
    %c0_187 = arith.constant 0 : index
    %c0_188 = arith.constant 0 : index
    %c0_189 = arith.constant 0 : index
    %270 = vector.load %arg48[%c0_187, %c0_188, %c0_189] : memref<1x16x6xf32, #tpu.memory_space<vmem>>, vector<1x16x6xf32>
    %271 = vector.shape_cast %270 : vector<1x16x6xf32> to vector<16x6xf32>
    %272 = vector.shape_cast %269 : vector<16x6xf32> to vector<1x16x6xf32>
    tpu.vector_store %arg48[%c0_187, %c0_188, %c0_189], %272 {strides = array<i32>} : memref<1x16x6xf32, #tpu.memory_space<vmem>>, vector<1x16x6xf32>,
    return
  }
  func.func @transform_0(%arg0: i32) -> (i32, i32, i32) {
    %c0_i32 = arith.constant 0 : i32
    %c0_i32_0 = arith.constant 0 : i32
    %c0_i32_1 = arith.constant 0 : i32
    return %arg0, %c0_i32, %c0_i32_0 : i32, i32, i32
  }
  func.func @transform_1(%arg0: i32) -> (i32, i32) {
    %c0_i32 = arith.constant 0 : i32
    %c0_i32_0 = arith.constant 0 : i32
    %c0_i32_1 = arith.constant 0 : i32
    return %c0_i32, %c0_i32_0 : i32, i32
  }
  func.func @transform_2(%arg0: i32) -> (i32, i32) {
    %c0_i32 = arith.constant 0 : i32
    %c0_i32_0 = arith.constant 0 : i32
    %c0_i32_1 = arith.constant 0 : i32
    return %c0_i32, %c0_i32_0 : i32, i32
  }
  func.func @transform_3(%arg0: i32) -> (i32, i32) {
    %c0_i32 = arith.constant 0 : i32
    %c0_i32_0 = arith.constant 0 : i32
    %c0_i32_1 = arith.constant 0 : i32
    return %c0_i32, %c0_i32_0 : i32, i32
  }
  func.func @transform_4(%arg0: i32) -> (i32, i32) {
    %c0_i32 = arith.constant 0 : i32
    %c0_i32_0 = arith.constant 0 : i32
    %c0_i32_1 = arith.constant 0 : i32
    return %c0_i32, %c0_i32_0 : i32, i32
  }
  func.func @transform_5(%arg0: i32) -> (i32, i32) {
    %c0_i32 = arith.constant 0 : i32
    %c0_i32_0 = arith.constant 0 : i32
    %c0_i32_1 = arith.constant 0 : i32
    return %c0_i32, %c0_i32_0 : i32, i32
  }
  func.func @transform_6(%arg0: i32) -> (i32, i32) {
    %c0_i32 = arith.constant 0 : i32
    %c0_i32_0 = arith.constant 0 : i32
    %c0_i32_1 = arith.constant 0 : i32
    return %c0_i32, %c0_i32_0 : i32, i32
  }
  func.func @transform_7(%arg0: i32) -> (i32, i32) {
    %c0_i32 = arith.constant 0 : i32
    %c0_i32_0 = arith.constant 0 : i32
    %c0_i32_1 = arith.constant 0 : i32
    return %c0_i32, %c0_i32_0 : i32, i32
  }
  func.func @transform_8(%arg0: i32) -> (i32, i32) {
    %c0_i32 = arith.constant 0 : i32
    %c0_i32_0 = arith.constant 0 : i32
    %c0_i32_1 = arith.constant 0 : i32
    return %c0_i32, %c0_i32_0 : i32, i32
  }
  func.func @transform_9(%arg0: i32) -> (i32, i32) {
    %c0_i32 = arith.constant 0 : i32
    %c0_i32_0 = arith.constant 0 : i32
    %c0_i32_1 = arith.constant 0 : i32
    return %c0_i32, %c0_i32_0 : i32, i32
  }
  func.func @transform_10(%arg0: i32) -> (i32, i32) {
    %c0_i32 = arith.constant 0 : i32
    %c0_i32_0 = arith.constant 0 : i32
    %c0_i32_1 = arith.constant 0 : i32
    return %c0_i32, %c0_i32_0 : i32, i32
  }
  func.func @transform_11(%arg0: i32) -> (i32, i32) {
    %c0_i32 = arith.constant 0 : i32
    %c0_i32_0 = arith.constant 0 : i32
    %c0_i32_1 = arith.constant 0 : i32
    return %c0_i32, %c0_i32_0 : i32, i32
  }
  func.func @transform_12(%arg0: i32) -> (i32, i32) {
    %c0_i32 = arith.constant 0 : i32
    %c0_i32_0 = arith.constant 0 : i32
    %c0_i32_1 = arith.constant 0 : i32
    return %c0_i32, %c0_i32_0 : i32, i32
  }
  func.func @transform_13(%arg0: i32) -> (i32, i32) {
    %c0_i32 = arith.constant 0 : i32
    %c0_i32_0 = arith.constant 0 : i32
    %c0_i32_1 = arith.constant 0 : i32
    return %c0_i32, %c0_i32_0 : i32, i32
  }
  func.func @transform_14(%arg0: i32) -> (i32, i32) {
    %c0_i32 = arith.constant 0 : i32
    %c0_i32_0 = arith.constant 0 : i32
    %c0_i32_1 = arith.constant 0 : i32
    return %c0_i32, %c0_i32_0 : i32, i32
  }
  func.func @transform_15(%arg0: i32) -> (i32, i32) {
    %c0_i32 = arith.constant 0 : i32
    %c0_i32_0 = arith.constant 0 : i32
    %c0_i32_1 = arith.constant 0 : i32
    return %c0_i32, %c0_i32_0 : i32, i32
  }
  func.func @transform_16(%arg0: i32) -> (i32, i32) {
    %c0_i32 = arith.constant 0 : i32
    %c0_i32_0 = arith.constant 0 : i32
    %c0_i32_1 = arith.constant 0 : i32
    return %c0_i32, %c0_i32_0 : i32, i32
  }
  func.func @transform_17(%arg0: i32) -> (i32, i32) {
    %c0_i32 = arith.constant 0 : i32
    %c0_i32_0 = arith.constant 0 : i32
    %c0_i32_1 = arith.constant 0 : i32
    return %c0_i32, %c0_i32_0 : i32, i32
  }
  func.func @transform_18(%arg0: i32) -> (i32, i32) {
    %c0_i32 = arith.constant 0 : i32
    %c0_i32_0 = arith.constant 0 : i32
    %c0_i32_1 = arith.constant 0 : i32
    return %c0_i32, %c0_i32_0 : i32, i32
  }
  func.func @transform_19(%arg0: i32) -> (i32, i32) {
    %c0_i32 = arith.constant 0 : i32
    %c0_i32_0 = arith.constant 0 : i32
    %c0_i32_1 = arith.constant 0 : i32
    return %c0_i32, %c0_i32_0 : i32, i32
  }
  func.func @transform_20(%arg0: i32) -> (i32, i32) {
    %c0_i32 = arith.constant 0 : i32
    %c0_i32_0 = arith.constant 0 : i32
    %c0_i32_1 = arith.constant 0 : i32
    return %c0_i32, %c0_i32_0 : i32, i32
  }
  func.func @transform_21(%arg0: i32) -> (i32, i32) {
    %c0_i32 = arith.constant 0 : i32
    %c0_i32_0 = arith.constant 0 : i32
    %c0_i32_1 = arith.constant 0 : i32
    return %c0_i32, %c0_i32_0 : i32, i32
  }
  func.func @transform_22(%arg0: i32) -> (i32, i32) {
    %c0_i32 = arith.constant 0 : i32
    %c0_i32_0 = arith.constant 0 : i32
    %c0_i32_1 = arith.constant 0 : i32
    return %c0_i32, %c0_i32_0 : i32, i32
  }
  func.func @transform_23(%arg0: i32) -> (i32, i32) {
    %c0_i32 = arith.constant 0 : i32
    %c0_i32_0 = arith.constant 0 : i32
    %c0_i32_1 = arith.constant 0 : i32
    return %c0_i32, %c0_i32_0 : i32, i32
  }
  func.func @transform_24(%arg0: i32) -> (i32, i32, i32) {
    %c0_i32 = arith.constant 0 : i32
    %c0_i32_0 = arith.constant 0 : i32
    %c0_i32_1 = arith.constant 0 : i32
    %c0_i32_2 = arith.constant 0 : i32
    return %c0_i32, %c0_i32_0, %c0_i32_1 : i32, i32, i32
  }
  func.func @transform_25(%arg0: i32) -> (i32, i32) {
    %c0_i32 = arith.constant 0 : i32
    %c0_i32_0 = arith.constant 0 : i32
    %c0_i32_1 = arith.constant 0 : i32
    return %c0_i32, %c0_i32_0 : i32, i32
  }
  func.func @transform_26(%arg0: i32) -> (i32, i32) {
    %c0_i32 = arith.constant 0 : i32
    %c0_i32_0 = arith.constant 0 : i32
    %c0_i32_1 = arith.constant 0 : i32
    return %c0_i32, %c0_i32_0 : i32, i32
  }
  func.func @transform_27(%arg0: i32) -> (i32, i32) {
    %c0_i32 = arith.constant 0 : i32
    %c0_i32_0 = arith.constant 0 : i32
    %c0_i32_1 = arith.constant 0 : i32
    return %c0_i32, %c0_i32_0 : i32, i32
  }
  func.func @transform_28(%arg0: i32) -> (i32, i32) {
    %c0_i32 = arith.constant 0 : i32
    %c0_i32_0 = arith.constant 0 : i32
    %c0_i32_1 = arith.constant 0 : i32
    return %c0_i32, %c0_i32_0 : i32, i32
  }
  func.func @transform_29(%arg0: i32) -> (i32, i32) {
    %c0_i32 = arith.constant 0 : i32
    %c0_i32_0 = arith.constant 0 : i32
    %c0_i32_1 = arith.constant 0 : i32
    return %c0_i32, %c0_i32_0 : i32, i32
  }
  func.func @transform_30(%arg0: i32) -> (i32, i32) {
    %c0_i32 = arith.constant 0 : i32
    %c0_i32_0 = arith.constant 0 : i32
    %c0_i32_1 = arith.constant 0 : i32
    return %c0_i32, %c0_i32_0 : i32, i32
  }
  func.func @transform_31(%arg0: i32) -> (i32, i32, i32) {
    %c0_i32 = arith.constant 0 : i32
    %c0_i32_0 = arith.constant 0 : i32
    %c0_i32_1 = arith.constant 0 : i32
    %c0_i32_2 = arith.constant 0 : i32
    return %c0_i32, %c0_i32_0, %c0_i32_1 : i32, i32, i32
  }
  func.func @transform_32(%arg0: i32) -> (i32, i32) {
    %c0_i32 = arith.constant 0 : i32
    %c0_i32_0 = arith.constant 0 : i32
    %c0_i32_1 = arith.constant 0 : i32
    return %c0_i32, %c0_i32_0 : i32, i32
  }
  func.func @transform_33(%arg0: i32) -> (i32, i32) {
    %c0_i32 = arith.constant 0 : i32
    %c0_i32_0 = arith.constant 0 : i32
    %c0_i32_1 = arith.constant 0 : i32
    return %c0_i32, %c0_i32_0 : i32, i32
  }
  func.func @transform_34(%arg0: i32) -> (i32, i32) {
    %c0_i32 = arith.constant 0 : i32
    %c0_i32_0 = arith.constant 0 : i32
    %c0_i32_1 = arith.constant 0 : i32
    return %c0_i32, %c0_i32_0 : i32, i32
  }
  func.func @transform_35(%arg0: i32) -> (i32, i32) {
    %c0_i32 = arith.constant 0 : i32
    %c0_i32_0 = arith.constant 0 : i32
    %c0_i32_1 = arith.constant 0 : i32
    return %c0_i32, %c0_i32_0 : i32, i32
  }
  func.func @transform_36(%arg0: i32) -> (i32, i32) {
    %c0_i32 = arith.constant 0 : i32
    %c0_i32_0 = arith.constant 0 : i32
    %c0_i32_1 = arith.constant 0 : i32
    return %c0_i32, %c0_i32_0 : i32, i32
  }
  func.func @transform_37(%arg0: i32) -> (i32, i32) {
    %c0_i32 = arith.constant 0 : i32
    %c0_i32_0 = arith.constant 0 : i32
    %c0_i32_1 = arith.constant 0 : i32
    return %c0_i32, %c0_i32_0 : i32, i32
  }
  func.func @transform_38(%arg0: i32) -> (i32, i32, i32) {
    %c0_i32 = arith.constant 0 : i32
    %c0_i32_0 = arith.constant 0 : i32
    %c0_i32_1 = arith.constant 0 : i32
    %c0_i32_2 = arith.constant 0 : i32
    return %c0_i32, %c0_i32_0, %c0_i32_1 : i32, i32, i32
  }
  func.func @transform_39(%arg0: i32) -> (i32, i32) {
    %c0_i32 = arith.constant 0 : i32
    %c0_i32_0 = arith.constant 0 : i32
    %c0_i32_1 = arith.constant 0 : i32
    return %c0_i32, %c0_i32_0 : i32, i32
  }
  func.func @transform_40(%arg0: i32) -> (i32, i32) {
    %c0_i32 = arith.constant 0 : i32
    %c0_i32_0 = arith.constant 0 : i32
    %c0_i32_1 = arith.constant 0 : i32
    return %c0_i32, %c0_i32_0 : i32, i32
  }
  func.func @transform_41(%arg0: i32) -> (i32, i32) {
    %c0_i32 = arith.constant 0 : i32
    %c0_i32_0 = arith.constant 0 : i32
    %c0_i32_1 = arith.constant 0 : i32
    return %c0_i32, %c0_i32_0 : i32, i32
  }
  func.func @transform_42(%arg0: i32) -> (i32, i32) {
    %c0_i32 = arith.constant 0 : i32
    %c0_i32_0 = arith.constant 0 : i32
    %c0_i32_1 = arith.constant 0 : i32
    return %c0_i32, %c0_i32_0 : i32, i32
  }
  func.func @transform_43(%arg0: i32) -> (i32, i32) {
    %c0_i32 = arith.constant 0 : i32
    %c0_i32_0 = arith.constant 0 : i32
    %c0_i32_1 = arith.constant 0 : i32
    return %c0_i32, %c0_i32_0 : i32, i32
  }
  func.func @transform_44(%arg0: i32) -> (i32, i32) {
    %c0_i32 = arith.constant 0 : i32
    %c0_i32_0 = arith.constant 0 : i32
    %c0_i32_1 = arith.constant 0 : i32
    return %c0_i32, %c0_i32_0 : i32, i32
  }
  func.func @transform_45(%arg0: i32) -> (i32, i32) {
    %c0_i32 = arith.constant 0 : i32
    %c0_i32_0 = arith.constant 0 : i32
    %c0_i32_1 = arith.constant 0 : i32
    return %c0_i32, %c0_i32_0 : i32, i32
  }
  func.func @transform_46(%arg0: i32) -> (i32, i32) {
    %c0_i32 = arith.constant 0 : i32
    %c0_i32_0 = arith.constant 0 : i32
    %c0_i32_1 = arith.constant 0 : i32
    return %c0_i32, %c0_i32_0 : i32, i32
  }
  func.func @transform_47(%arg0: i32) -> (i32, i32, i32) {
    %c0_i32 = arith.constant 0 : i32
    %c0_i32_0 = arith.constant 0 : i32
    %c0_i32_1 = arith.constant 0 : i32
    return %arg0, %c0_i32, %c0_i32_0 : i32, i32, i32
  }
}

</mosaic_0001>

<llo_original>
// kernel: dcrnn_single_forward.1
$region0: #{dcrnn_single_forward.1}
  #allocation0 [shape = 'u32[]', space=smem, size = 0x4, offset = 0x4, fixed_abs, tag = 'smem constant byte address 0x4 - core index']
  #allocation1 [shape = 'u32[144,128]{1,0:T(1,128)}', space=vmem, size = 0x12000, scoped, tag = 'internal scratch']
  %s0 = inlined_call_operand.smem [shape: u32[48], index: -1, kind: input, shape index: {}]
  %s1 = sld [smem:[%s0]]
  %s2 = scalar_lea.smem %s0, 1
  %s3 = sld [smem:[%s2]]
  %s4 = scalar_lea.smem %s0, 2
  %s5 = sld [smem:[%s4]]
  %s6 = scalar_lea.smem %s0, 3
  %s7 = sld [smem:[%s6]]
  %s8 = scalar_lea.smem %s0, 4
  %s9 = sld [smem:[%s8]]
  %s10 = scalar_lea.smem %s0, 5
  %s11 = sld [smem:[%s10]]
  %s12 = scalar_lea.smem %s0, 6
  %s13 = sld [smem:[%s12]]
  %s14 = scalar_lea.smem %s0, 7
  %s15 = sld [smem:[%s14]]
  %s16 = scalar_lea.smem %s0, 8
  %s17 = sld [smem:[%s16]]
  %s18 = scalar_lea.smem %s0, 9
  %s19 = sld [smem:[%s18]]
  %s20 = scalar_lea.smem %s0, 10
  %s21 = sld [smem:[%s20]]
  %s22 = scalar_lea.smem %s0, 11
  %s23 = sld [smem:[%s22]]
  %s24 = scalar_lea.smem %s0, 12
  %s25 = sld [smem:[%s24]]
  %s26 = scalar_lea.smem %s0, 13
  %s27 = sld [smem:[%s26]]
  %s28 = scalar_lea.smem %s0, 14
  %s29 = sld [smem:[%s28]]
  %s30 = scalar_lea.smem %s0, 15
  %s31 = sld [smem:[%s30]]
  %s32 = scalar_lea.smem %s0, 16
  %s33 = sld [smem:[%s32]]
  %s34 = scalar_lea.smem %s0, 17
  %s35 = sld [smem:[%s34]]
  %s36 = scalar_lea.smem %s0, 18
  %s37 = sld [smem:[%s36]]
  %s38 = scalar_lea.smem %s0, 19
  %s39 = sld [smem:[%s38]]
  %s40 = scalar_lea.smem %s0, 20
  %s41 = sld [smem:[%s40]]
  %s42 = scalar_lea.smem %s0, 21
  %s43 = sld [smem:[%s42]]
  %s44 = scalar_lea.smem %s0, 22
  %s45 = sld [smem:[%s44]]
  %s46 = scalar_lea.smem %s0, 23
  %s47 = sld [smem:[%s46]]
  %s48 = scalar_lea.smem %s0, 24
  %s49 = sld [smem:[%s48]]
  %s50 = scalar_lea.smem %s0, 25
  %s51 = sld [smem:[%s50]]
  %s52 = scalar_lea.smem %s0, 26
  %s53 = sld [smem:[%s52]]
  %s54 = scalar_lea.smem %s0, 27
  %s55 = sld [smem:[%s54]]
  %s56 = scalar_lea.smem %s0, 28
  %s57 = sld [smem:[%s56]]
  %s58 = scalar_lea.smem %s0, 29
  %s59 = sld [smem:[%s58]]
  %s60 = scalar_lea.smem %s0, 30
  %s61 = sld [smem:[%s60]]
  %s62 = scalar_lea.smem %s0, 31
  %s63 = sld [smem:[%s62]]
  %s64 = scalar_lea.smem %s0, 32
  %s65 = sld [smem:[%s64]]
  %s66 = scalar_lea.smem %s0, 33
  %s67 = sld [smem:[%s66]]
  %s68 = scalar_lea.smem %s0, 34
  %s69 = sld [smem:[%s68]]
  %s70 = scalar_lea.smem %s0, 35
  %s71 = sld [smem:[%s70]]
  %s72 = scalar_lea.smem %s0, 36
  %s73 = sld [smem:[%s72]]
  %s74 = scalar_lea.smem %s0, 37
  %s75 = sld [smem:[%s74]]
  %s76 = scalar_lea.smem %s0, 38
  %s77 = sld [smem:[%s76]]
  %s78 = scalar_lea.smem %s0, 39
  %s79 = sld [smem:[%s78]]
  %s80 = scalar_lea.smem %s0, 40
  %s81 = sld [smem:[%s80]]
  %s82 = scalar_lea.smem %s0, 41
  %s83 = sld [smem:[%s82]]
  %s84 = scalar_lea.smem %s0, 42
  %s85 = sld [smem:[%s84]]
  %s86 = scalar_lea.smem %s0, 43
  %s87 = sld [smem:[%s86]]
  %s88 = scalar_lea.smem %s0, 44
  %s89 = sld [smem:[%s88]]
  %s90 = scalar_lea.smem %s0, 45
  %s91 = sld [smem:[%s90]]
  %s92 = scalar_lea.smem %s0, 46
  %s93 = sld [smem:[%s92]]
  %s94 = scalar_lea.smem %s0, 47
  %s95 = sld [smem:[%s94]]
  %s96 = sld [smem:[#allocation0]]
  $region221: #{dcrnn_single_forward.1} parent=0
    _
  %s98 = ssub.s32 1, %s96
  %s99 = scalar_select 0, %s98, %s96
  loop: start=0, step=1, limit=4
  $region2: #{dcrnn_single_forward.1} parent=0 // loop_pre_header
    _
  $region3: #{dcrnn_single_forward.1} parent=0 // loop_header
    %s101 = sphi 0, %s105
    %p102 = scmp.ge.s32.totalorder %s101, 4
    %s111 = sphi 0, %s113
    %s114 = sphi 0, %s111
    %s115 = sphi 0, %s114
    %s131 = sphi 0, %s115
    %s135 = sphi 0, %s135
    %s137 = sphi 0, %s135
    %s138 = sphi 0, %s137
    %s152 = sphi 0, %s138
    %s156 = sphi 0, %s156
    %s158 = sphi 0, %s156
    %s159 = sphi 0, %s158
    %s173 = sphi 0, %s159
    %s177 = sphi 0, %s177
    %s179 = sphi 0, %s177
    %s180 = sphi 0, %s179
    %s194 = sphi 0, %s180
    %s198 = sphi 0, %s198
    %s200 = sphi 0, %s198
    %s201 = sphi 0, %s200
    %s215 = sphi 0, %s201
    %s219 = sphi 0, %s219
    %s221 = sphi 0, %s219
    %s222 = sphi 0, %s221
    %s236 = sphi 0, %s222
    %s240 = sphi 0, %s240
    %s242 = sphi 0, %s240
    %s243 = sphi 0, %s242
    %s257 = sphi 0, %s243
    %s261 = sphi 0, %s261
    %s263 = sphi 0, %s261
    %s264 = sphi 0, %s263
    %s278 = sphi 0, %s264
    %s282 = sphi 0, %s282
    %s284 = sphi 0, %s282
    %s285 = sphi 0, %s284
    %s299 = sphi 0, %s285
    %s303 = sphi 0, %s303
    %s305 = sphi 0, %s303
    %s306 = sphi 0, %s305
    %s320 = sphi 0, %s306
    %s324 = sphi 0, %s324
    %s326 = sphi 0, %s324
    %s327 = sphi 0, %s326
    %s341 = sphi 0, %s327
    %s345 = sphi 0, %s345
    %s347 = sphi 0, %s345
    %s348 = sphi 0, %s347
    %s362 = sphi 0, %s348
    %s366 = sphi 0, %s366
    %s368 = sphi 0, %s366
    %s369 = sphi 0, %s368
    %s383 = sphi 0, %s369
    %s387 = sphi 0, %s387
    %s389 = sphi 0, %s387
    %s390 = sphi 0, %s389
    %s404 = sphi 0, %s390
    %s408 = sphi 0, %s408
    %s410 = sphi 0, %s408
    %s411 = sphi 0, %s410
    %s425 = sphi 0, %s411
    %s429 = sphi 0, %s429
    %s431 = sphi 0, %s429
    %s432 = sphi 0, %s431
    %s446 = sphi 0, %s432
    %s450 = sphi 0, %s450
    %s452 = sphi 0, %s450
    %s453 = sphi 0, %s452
    %s467 = sphi 0, %s453
    %s471 = sphi 0, %s471
    %s473 = sphi 0, %s471
    %s474 = sphi 0, %s473
    %s488 = sphi 0, %s474
    %s492 = sphi 0, %s492
    %s494 = sphi 0, %s492
    %s495 = sphi 0, %s494
    %s509 = sphi 0, %s495
    %s513 = sphi 0, %s513
    %s515 = sphi 0, %s513
    %s516 = sphi 0, %s515
    %s530 = sphi 0, %s516
    %s534 = sphi 0, %s534
    %s536 = sphi 0, %s534
    %s537 = sphi 0, %s536
    %s551 = sphi 0, %s537
    %s555 = sphi 0, %s555
    %s557 = sphi 0, %s555
    %s558 = sphi 0, %s557
    %s572 = sphi 0, %s558
    %s576 = sphi 0, %s576
    %s578 = sphi 0, %s576
    %s579 = sphi 0, %s578
    %s593 = sphi 0, %s579
    %s597 = sphi 0, %s597
    %s599 = sphi 0, %s597
    %s600 = sphi 0, %s599
    %s614 = sphi 0, %s600
    %s618 = sphi 0, %s618
    %s620 = sphi 0, %s618
    %s621 = sphi 0, %s620
    %s635 = sphi 0, %s621
    %s639 = sphi 0, %s639
    %s641 = sphi 0, %s639
    %s642 = sphi 0, %s641
    %s656 = sphi 0, %s642
    %s660 = sphi 0, %s660
    %s662 = sphi 0, %s660
    %s663 = sphi 0, %s662
    %s677 = sphi 0, %s663
    %s681 = sphi 0, %s681
    %s683 = sphi 0, %s681
    %s684 = sphi 0, %s683
    %s698 = sphi 0, %s684
    %s702 = sphi 0, %s702
    %s704 = sphi 0, %s702
    %s705 = sphi 0, %s704
    %s719 = sphi 0, %s705
    %s723 = sphi 0, %s723
    %s725 = sphi 0, %s723
    %s726 = sphi 0, %s725
    %s740 = sphi 0, %s726
    %s744 = sphi 0, %s744
    %s746 = sphi 0, %s744
    %s747 = sphi 0, %s746
    %s761 = sphi 0, %s747
    %s765 = sphi 0, %s765
    %s767 = sphi 0, %s765
    %s768 = sphi 0, %s767
    %s782 = sphi 0, %s768
    %s786 = sphi 0, %s786
    %s788 = sphi 0, %s786
    %s789 = sphi 0, %s788
    %s803 = sphi 0, %s789
    %s807 = sphi 0, %s807
    %s809 = sphi 0, %s807
    %s810 = sphi 0, %s809
    %s824 = sphi 0, %s810
    %s828 = sphi 0, %s828
    %s830 = sphi 0, %s828
    %s831 = sphi 0, %s830
    %s845 = sphi 0, %s831
    %s849 = sphi 0, %s849
    %s851 = sphi 0, %s849
    %s852 = sphi 0, %s851
    %s866 = sphi 0, %s852
    %s870 = sphi 0, %s870
    %s872 = sphi 0, %s870
    %s873 = sphi 0, %s872
    %s887 = sphi 0, %s873
    %s891 = sphi 0, %s891
    %s893 = sphi 0, %s891
    %s894 = sphi 0, %s893
    %s908 = sphi 0, %s894
    %s912 = sphi 0, %s912
    %s914 = sphi 0, %s912
    %s915 = sphi 0, %s914
    %s929 = sphi 0, %s915
    %s933 = sphi 0, %s933
    %s935 = sphi 0, %s933
    %s936 = sphi 0, %s935
    %s950 = sphi 0, %s936
    %s954 = sphi 0, %s954
    %s956 = sphi 0, %s954
    %s957 = sphi 0, %s956
    %s971 = sphi 0, %s957
    %s975 = sphi 0, %s975
    %s977 = sphi 0, %s975
    %s978 = sphi 0, %s977
    %s992 = sphi 0, %s978
    %s996 = sphi 0, %s996
    %s998 = sphi 0, %s996
    %s999 = sphi 0, %s998
    %s1013 = sphi 0, %s999
    %s1017 = sphi 0, %s1017
    %s1019 = sphi 0, %s1017
    %s1020 = sphi 0, %s1019
    %s1034 = sphi 0, %s1020
    %s1038 = sphi 0, %s1038
    %s1040 = sphi 0, %s1038
    %s1041 = sphi 0, %s1040
    %s1055 = sphi 0, %s1041
    %s1059 = sphi 0, %s1059
    %s1061 = sphi 0, %s1059
    %s1062 = sphi 0, %s1061
    %s1076 = sphi 0, %s1062
    %s1080 = sphi 0, %s1080
    %s1082 = sphi 0, %s1080
    %s1083 = sphi 0, %s1082
    %s1097 = sphi 0, %s1083
    %s1103 = sphi 0, %s1105
    %s1106 = sphi 0, %s1103
    %s1107 = sphi 0, %s1106
    %s1123 = sphi 0, %s1107
  $region4: #{dcrnn_single_forward.1} parent=0 // loop_header_branch
    %104 = sbr.rel (%p102) target = $region8
  $region5: #{dcrnn_single_forward.1} parent=0 // loop_body
    %s106 = ssub.s32 %s101, 1
    %s107 = ssub.s32 %s101, 2
    %s108 = sadd.s32 %s101, 1
    %s109 = ssub.s32 %s101, %s108
    %p110 = scmp.eq.s32.totalorder %s109, 0
    %s112 = sadd.s32 %s111, 1
    %s113 = scalar_select %p110, %s111, %s112
    %p116 = pneg %p110
    %p117 = scmp.eq.s32.totalorder %s101, 1
    %p118 = por %p116, %p117
    %p119 = scmp.ne.s32.totalorder %s111, %s114
    %p120 = scmp.eq.s32.totalorder %s101, 0
    %p121 = por %p119, %p120
    %p122 = scmp.ne.s32.totalorder %s111, %s114
    %p123 = scmp.eq.s32.totalorder %s106, 1
    %p124 = por %p122, %p123
    %p125 = scmp.ne.s32.totalorder %s114, %s115
    %p126 = scmp.eq.s32.totalorder %s106, 0
    %p127 = por %p125, %p126
    %p128 = scmp.ne.s32.totalorder %s114, %s115
    %p129 = scmp.eq.s32.totalorder %s107, 1
    %p130 = por %p128, %p129
    %p132 = scmp.ne.s32.totalorder %s115, %s131
    %p133 = scmp.eq.s32.totalorder %s107, 0
    %p134 = por %p132, %p133
    %s136 = sadd.s32 %s135, 1
    %p139 = scmp.eq.s32.totalorder %s101, 1
    %p140 = scmp.ne.s32.totalorder %s135, %s137
    %p141 = scmp.eq.s32.totalorder %s101, 0
    %p142 = por %p140, %p141
    %p143 = scmp.ne.s32.totalorder %s135, %s137
    %p144 = scmp.eq.s32.totalorder %s106, 1
    %p145 = por %p143, %p144
    %p146 = scmp.ne.s32.totalorder %s137, %s138
    %p147 = scmp.eq.s32.totalorder %s106, 0
    %p148 = por %p146, %p147
    %p149 = scmp.ne.s32.totalorder %s137, %s138
    %p150 = scmp.eq.s32.totalorder %s107, 1
    %p151 = por %p149, %p150
    %p153 = scmp.ne.s32.totalorder %s138, %s152
    %p154 = scmp.eq.s32.totalorder %s107, 0
    %p155 = por %p153, %p154
    %s157 = sadd.s32 %s156, 1
    %p160 = scmp.eq.s32.totalorder %s101, 1
    %p161 = scmp.ne.s32.totalorder %s156, %s158
    %p162 = scmp.eq.s32.totalorder %s101, 0
    %p163 = por %p161, %p162
    %p164 = scmp.ne.s32.totalorder %s156, %s158
    %p165 = scmp.eq.s32.totalorder %s106, 1
    %p166 = por %p164, %p165
    %p167 = scmp.ne.s32.totalorder %s158, %s159
    %p168 = scmp.eq.s32.totalorder %s106, 0
    %p169 = por %p167, %p168
    %p170 = scmp.ne.s32.totalorder %s158, %s159
    %p171 = scmp.eq.s32.totalorder %s107, 1
    %p172 = por %p170, %p171
    %p174 = scmp.ne.s32.totalorder %s159, %s173
    %p175 = scmp.eq.s32.totalorder %s107, 0
    %p176 = por %p174, %p175
    %s178 = sadd.s32 %s177, 1
    %p181 = scmp.eq.s32.totalorder %s101, 1
    %p182 = scmp.ne.s32.totalorder %s177, %s179
    %p183 = scmp.eq.s32.totalorder %s101, 0
    %p184 = por %p182, %p183
    %p185 = scmp.ne.s32.totalorder %s177, %s179
    %p186 = scmp.eq.s32.totalorder %s106, 1
    %p187 = por %p185, %p186
    %p188 = scmp.ne.s32.totalorder %s179, %s180
    %p189 = scmp.eq.s32.totalorder %s106, 0
    %p190 = por %p188, %p189
    %p191 = scmp.ne.s32.totalorder %s179, %s180
    %p192 = scmp.eq.s32.totalorder %s107, 1
    %p193 = por %p191, %p192
    %p195 = scmp.ne.s32.totalorder %s180, %s194
    %p196 = scmp.eq.s32.totalorder %s107, 0
    %p197 = por %p195, %p196
    %s199 = sadd.s32 %s198, 1
    %p202 = scmp.eq.s32.totalorder %s101, 1
    %p203 = scmp.ne.s32.totalorder %s198, %s200
    %p204 = scmp.eq.s32.totalorder %s101, 0
    %p205 = por %p203, %p204
    %p206 = scmp.ne.s32.totalorder %s198, %s200
    %p207 = scmp.eq.s32.totalorder %s106, 1
    %p208 = por %p206, %p207
    %p209 = scmp.ne.s32.totalorder %s200, %s201
    %p210 = scmp.eq.s32.totalorder %s106, 0
    %p211 = por %p209, %p210
    %p212 = scmp.ne.s32.totalorder %s200, %s201
    %p213 = scmp.eq.s32.totalorder %s107, 1
    %p214 = por %p212, %p213
    %p216 = scmp.ne.s32.totalorder %s201, %s215
    %p217 = scmp.eq.s32.totalorder %s107, 0
    %p218 = por %p216, %p217
    %s220 = sadd.s32 %s219, 1
    %p223 = scmp.eq.s32.totalorder %s101, 1
    %p224 = scmp.ne.s32.totalorder %s219, %s221
    %p225 = scmp.eq.s32.totalorder %s101, 0
    %p226 = por %p224, %p225
    %p227 = scmp.ne.s32.totalorder %s219, %s221
    %p228 = scmp.eq.s32.totalorder %s106, 1
    %p229 = por %p227, %p228
    %p230 = scmp.ne.s32.totalorder %s221, %s222
    %p231 = scmp.eq.s32.totalorder %s106, 0
    %p232 = por %p230, %p231
    %p233 = scmp.ne.s32.totalorder %s221, %s222
    %p234 = scmp.eq.s32.totalorder %s107, 1
    %p235 = por %p233, %p234
    %p237 = scmp.ne.s32.totalorder %s222, %s236
    %p238 = scmp.eq.s32.totalorder %s107, 0
    %p239 = por %p237, %p238
    %s241 = sadd.s32 %s240, 1
    %p244 = scmp.eq.s32.totalorder %s101, 1
    %p245 = scmp.ne.s32.totalorder %s240, %s242
    %p246 = scmp.eq.s32.totalorder %s101, 0
    %p247 = por %p245, %p246
    %p248 = scmp.ne.s32.totalorder %s240, %s242
    %p249 = scmp.eq.s32.totalorder %s106, 1
    %p250 = por %p248, %p249
    %p251 = scmp.ne.s32.totalorder %s242, %s243
    %p252 = scmp.eq.s32.totalorder %s106, 0
    %p253 = por %p251, %p252
    %p254 = scmp.ne.s32.totalorder %s242, %s243
    %p255 = scmp.eq.s32.totalorder %s107, 1
    %p256 = por %p254, %p255
    %p258 = scmp.ne.s32.totalorder %s243, %s257
    %p259 = scmp.eq.s32.totalorder %s107, 0
    %p260 = por %p258, %p259
    %s262 = sadd.s32 %s261, 1
    %p265 = scmp.eq.s32.totalorder %s101, 1
    %p266 = scmp.ne.s32.totalorder %s261, %s263
    %p267 = scmp.eq.s32.totalorder %s101, 0
    %p268 = por %p266, %p267
    %p269 = scmp.ne.s32.totalorder %s261, %s263
    %p270 = scmp.eq.s32.totalorder %s106, 1
    %p271 = por %p269, %p270
    %p272 = scmp.ne.s32.totalorder %s263, %s264
    %p273 = scmp.eq.s32.totalorder %s106, 0
    %p274 = por %p272, %p273
    %p275 = scmp.ne.s32.totalorder %s263, %s264
    %p276 = scmp.eq.s32.totalorder %s107, 1
    %p277 = por %p275, %p276
    %p279 = scmp.ne.s32.totalorder %s264, %s278
    %p280 = scmp.eq.s32.totalorder %s107, 0
    %p281 = por %p279, %p280
    %s283 = sadd.s32 %s282, 1
    %p286 = scmp.eq.s32.totalorder %s101, 1
    %p287 = scmp.ne.s32.totalorder %s282, %s284
    %p288 = scmp.eq.s32.totalorder %s101, 0
    %p289 = por %p287, %p288
    %p290 = scmp.ne.s32.totalorder %s282, %s284
    %p291 = scmp.eq.s32.totalorder %s106, 1
    %p292 = por %p290, %p291
    %p293 = scmp.ne.s32.totalorder %s284, %s285
    %p294 = scmp.eq.s32.totalorder %s106, 0
    %p295 = por %p293, %p294
    %p296 = scmp.ne.s32.totalorder %s284, %s285
    %p297 = scmp.eq.s32.totalorder %s107, 1
    %p298 = por %p296, %p297
    %p300 = scmp.ne.s32.totalorder %s285, %s299
    %p301 = scmp.eq.s32.totalorder %s107, 0
    %p302 = por %p300, %p301
    %s304 = sadd.s32 %s303, 1
    %p307 = scmp.eq.s32.totalorder %s101, 1
    %p308 = scmp.ne.s32.totalorder %s303, %s305
    %p309 = scmp.eq.s32.totalorder %s101, 0
    %p310 = por %p308, %p309
    %p311 = scmp.ne.s32.totalorder %s303, %s305
    %p312 = scmp.eq.s32.totalorder %s106, 1
    %p313 = por %p311, %p312
    %p314 = scmp.ne.s32.totalorder %s305, %s306
    %p315 = scmp.eq.s32.totalorder %s106, 0
    %p316 = por %p314, %p315
    %p317 = scmp.ne.s32.totalorder %s305, %s306
    %p318 = scmp.eq.s32.totalorder %s107, 1
    %p319 = por %p317, %p318
    %p321 = scmp.ne.s32.totalorder %s306, %s320
    %p322 = scmp.eq.s32.totalorder %s107, 0
    %p323 = por %p321, %p322
    %s325 = sadd.s32 %s324, 1
    %p328 = scmp.eq.s32.totalorder %s101, 1
    %p329 = scmp.ne.s32.totalorder %s324, %s326
    %p330 = scmp.eq.s32.totalorder %s101, 0
    %p331 = por %p329, %p330
    %p332 = scmp.ne.s32.totalorder %s324, %s326
    %p333 = scmp.eq.s32.totalorder %s106, 1
    %p334 = por %p332, %p333
    %p335 = scmp.ne.s32.totalorder %s326, %s327
    %p336 = scmp.eq.s32.totalorder %s106, 0
    %p337 = por %p335, %p336
    %p338 = scmp.ne.s32.totalorder %s326, %s327
    %p339 = scmp.eq.s32.totalorder %s107, 1
    %p340 = por %p338, %p339
    %p342 = scmp.ne.s32.totalorder %s327, %s341
    %p343 = scmp.eq.s32.totalorder %s107, 0
    %p344 = por %p342, %p343
    %s346 = sadd.s32 %s345, 1
    %p349 = scmp.eq.s32.totalorder %s101, 1
    %p350 = scmp.ne.s32.totalorder %s345, %s347
    %p351 = scmp.eq.s32.totalorder %s101, 0
    %p352 = por %p350, %p351
    %p353 = scmp.ne.s32.totalorder %s345, %s347
    %p354 = scmp.eq.s32.totalorder %s106, 1
    %p355 = por %p353, %p354
    %p356 = scmp.ne.s32.totalorder %s347, %s348
    %p357 = scmp.eq.s32.totalorder %s106, 0
    %p358 = por %p356, %p357
    %p359 = scmp.ne.s32.totalorder %s347, %s348
    %p360 = scmp.eq.s32.totalorder %s107, 1
    %p361 = por %p359, %p360
    %p363 = scmp.ne.s32.totalorder %s348, %s362
    %p364 = scmp.eq.s32.totalorder %s107, 0
    %p365 = por %p363, %p364
    %s367 = sadd.s32 %s366, 1
    %p370 = scmp.eq.s32.totalorder %s101, 1
    %p371 = scmp.ne.s32.totalorder %s366, %s368
    %p372 = scmp.eq.s32.totalorder %s101, 0
    %p373 = por %p371, %p372
    %p374 = scmp.ne.s32.totalorder %s366, %s368
    %p375 = scmp.eq.s32.totalorder %s106, 1
    %p376 = por %p374, %p375
    %p377 = scmp.ne.s32.totalorder %s368, %s369
    %p378 = scmp.eq.s32.totalorder %s106, 0
    %p379 = por %p377, %p378
    %p380 = scmp.ne.s32.totalorder %s368, %s369
    %p381 = scmp.eq.s32.totalorder %s107, 1
    %p382 = por %p380, %p381
    %p384 = scmp.ne.s32.totalorder %s369, %s383
    %p385 = scmp.eq.s32.totalorder %s107, 0
    %p386 = por %p384, %p385
    %s388 = sadd.s32 %s387, 1
    %p391 = scmp.eq.s32.totalorder %s101, 1
    %p392 = scmp.ne.s32.totalorder %s387, %s389
    %p393 = scmp.eq.s32.totalorder %s101, 0
    %p394 = por %p392, %p393
    %p395 = scmp.ne.s32.totalorder %s387, %s389
    %p396 = scmp.eq.s32.totalorder %s106, 1
    %p397 = por %p395, %p396
    %p398 = scmp.ne.s32.totalorder %s389, %s390
    %p399 = scmp.eq.s32.totalorder %s106, 0
    %p400 = por %p398, %p399
    %p401 = scmp.ne.s32.totalorder %s389, %s390
    %p402 = scmp.eq.s32.totalorder %s107, 1
    %p403 = por %p401, %p402
    %p405 = scmp.ne.s32.totalorder %s390, %s404
    %p406 = scmp.eq.s32.totalorder %s107, 0
    %p407 = por %p405, %p406
    %s409 = sadd.s32 %s408, 1
    %p412 = scmp.eq.s32.totalorder %s101, 1
    %p413 = scmp.ne.s32.totalorder %s408, %s410
    %p414 = scmp.eq.s32.totalorder %s101, 0
    %p415 = por %p413, %p414
    %p416 = scmp.ne.s32.totalorder %s408, %s410
    %p417 = scmp.eq.s32.totalorder %s106, 1
    %p418 = por %p416, %p417
    %p419 = scmp.ne.s32.totalorder %s410, %s411
    %p420 = scmp.eq.s32.totalorder %s106, 0
    %p421 = por %p419, %p420
    %p422 = scmp.ne.s32.totalorder %s410, %s411
    %p423 = scmp.eq.s32.totalorder %s107, 1
    %p424 = por %p422, %p423
    %p426 = scmp.ne.s32.totalorder %s411, %s425
    %p427 = scmp.eq.s32.totalorder %s107, 0
    %p428 = por %p426, %p427
    %s430 = sadd.s32 %s429, 1
    %p433 = scmp.eq.s32.totalorder %s101, 1
    %p434 = scmp.ne.s32.totalorder %s429, %s431
    %p435 = scmp.eq.s32.totalorder %s101, 0
    %p436 = por %p434, %p435
    %p437 = scmp.ne.s32.totalorder %s429, %s431
    %p438 = scmp.eq.s32.totalorder %s106, 1
    %p439 = por %p437, %p438
    %p440 = scmp.ne.s32.totalorder %s431, %s432
    %p441 = scmp.eq.s32.totalorder %s106, 0
    %p442 = por %p440, %p441
    %p443 = scmp.ne.s32.totalorder %s431, %s432
    %p444 = scmp.eq.s32.totalorder %s107, 1
    %p445 = por %p443, %p444
    %p447 = scmp.ne.s32.totalorder %s432, %s446
    %p448 = scmp.eq.s32.totalorder %s107, 0
    %p449 = por %p447, %p448
    %s451 = sadd.s32 %s450, 1
    %p454 = scmp.eq.s32.totalorder %s101, 1
    %p455 = scmp.ne.s32.totalorder %s450, %s452
    %p456 = scmp.eq.s32.totalorder %s101, 0
    %p457 = por %p455, %p456
    %p458 = scmp.ne.s32.totalorder %s450, %s452
    %p459 = scmp.eq.s32.totalorder %s106, 1
    %p460 = por %p458, %p459
    %p461 = scmp.ne.s32.totalorder %s452, %s453
    %p462 = scmp.eq.s32.totalorder %s106, 0
    %p463 = por %p461, %p462
    %p464 = scmp.ne.s32.totalorder %s452, %s453
    %p465 = scmp.eq.s32.totalorder %s107, 1
    %p466 = por %p464, %p465
    %p468 = scmp.ne.s32.totalorder %s453, %s467
    %p469 = scmp.eq.s32.totalorder %s107, 0
    %p470 = por %p468, %p469
    %s472 = sadd.s32 %s471, 1
    %p475 = scmp.eq.s32.totalorder %s101, 1
    %p476 = scmp.ne.s32.totalorder %s471, %s473
    %p477 = scmp.eq.s32.totalorder %s101, 0
    %p478 = por %p476, %p477
    %p479 = scmp.ne.s32.totalorder %s471, %s473
    %p480 = scmp.eq.s32.totalorder %s106, 1
    %p481 = por %p479, %p480
    %p482 = scmp.ne.s32.totalorder %s473, %s474
    %p483 = scmp.eq.s32.totalorder %s106, 0
    %p484 = por %p482, %p483
    %p485 = scmp.ne.s32.totalorder %s473, %s474
    %p486 = scmp.eq.s32.totalorder %s107, 1
    %p487 = por %p485, %p486
    %p489 = scmp.ne.s32.totalorder %s474, %s488
    %p490 = scmp.eq.s32.totalorder %s107, 0
    %p491 = por %p489, %p490
    %s493 = sadd.s32 %s492, 1
    %p496 = scmp.eq.s32.totalorder %s101, 1
    %p497 = scmp.ne.s32.totalorder %s492, %s494
    %p498 = scmp.eq.s32.totalorder %s101, 0
    %p499 = por %p497, %p498
    %p500 = scmp.ne.s32.totalorder %s492, %s494
    %p501 = scmp.eq.s32.totalorder %s106, 1
    %p502 = por %p500, %p501
    %p503 = scmp.ne.s32.totalorder %s494, %s495
    %p504 = scmp.eq.s32.totalorder %s106, 0
    %p505 = por %p503, %p504
    %p506 = scmp.ne.s32.totalorder %s494, %s495
    %p507 = scmp.eq.s32.totalorder %s107, 1
    %p508 = por %p506, %p507
    %p510 = scmp.ne.s32.totalorder %s495, %s509
    %p511 = scmp.eq.s32.totalorder %s107, 0
    %p512 = por %p510, %p511
    %s514 = sadd.s32 %s513, 1
    %p517 = scmp.eq.s32.totalorder %s101, 1
    %p518 = scmp.ne.s32.totalorder %s513, %s515
    %p519 = scmp.eq.s32.totalorder %s101, 0
    %p520 = por %p518, %p519
    %p521 = scmp.ne.s32.totalorder %s513, %s515
    %p522 = scmp.eq.s32.totalorder %s106, 1
    %p523 = por %p521, %p522
    %p524 = scmp.ne.s32.totalorder %s515, %s516
    %p525 = scmp.eq.s32.totalorder %s106, 0
    %p526 = por %p524, %p525
    %p527 = scmp.ne.s32.totalorder %s515, %s516
    %p528 = scmp.eq.s32.totalorder %s107, 1
    %p529 = por %p527, %p528
    %p531 = scmp.ne.s32.totalorder %s516, %s530
    %p532 = scmp.eq.s32.totalorder %s107, 0
    %p533 = por %p531, %p532
    %s535 = sadd.s32 %s534, 1
    %p538 = scmp.eq.s32.totalorder %s101, 1
    %p539 = scmp.ne.s32.totalorder %s534, %s536
    %p540 = scmp.eq.s32.totalorder %s101, 0
    %p541 = por %p539, %p540
    %p542 = scmp.ne.s32.totalorder %s534, %s536
    %p543 = scmp.eq.s32.totalorder %s106, 1
    %p544 = por %p542, %p543
    %p545 = scmp.ne.s32.totalorder %s536, %s537
    %p546 = scmp.eq.s32.totalorder %s106, 0
    %p547 = por %p545, %p546
    %p548 = scmp.ne.s32.totalorder %s536, %s537
    %p549 = scmp.eq.s32.totalorder %s107, 1
    %p550 = por %p548, %p549
    %p552 = scmp.ne.s32.totalorder %s537, %s551
    %p553 = scmp.eq.s32.totalorder %s107, 0
    %p554 = por %p552, %p553
    %s556 = sadd.s32 %s555, 1
    %p559 = scmp.eq.s32.totalorder %s101, 1
    %p560 = scmp.ne.s32.totalorder %s555, %s557
    %p561 = scmp.eq.s32.totalorder %s101, 0
    %p562 = por %p560, %p561
    %p563 = scmp.ne.s32.totalorder %s555, %s557
    %p564 = scmp.eq.s32.totalorder %s106, 1
    %p565 = por %p563, %p564
    %p566 = scmp.ne.s32.totalorder %s557, %s558
    %p567 = scmp.eq.s32.totalorder %s106, 0
    %p568 = por %p566, %p567
    %p569 = scmp.ne.s32.totalorder %s557, %s558
    %p570 = scmp.eq.s32.totalorder %s107, 1
    %p571 = por %p569, %p570
    %p573 = scmp.ne.s32.totalorder %s558, %s572
    %p574 = scmp.eq.s32.totalorder %s107, 0
    %p575 = por %p573, %p574
    %s577 = sadd.s32 %s576, 1
    %p580 = scmp.eq.s32.totalorder %s101, 1
    %p581 = scmp.ne.s32.totalorder %s576, %s578
    %p582 = scmp.eq.s32.totalorder %s101, 0
    %p583 = por %p581, %p582
    %p584 = scmp.ne.s32.totalorder %s576, %s578
    %p585 = scmp.eq.s32.totalorder %s106, 1
    %p586 = por %p584, %p585
    %p587 = scmp.ne.s32.totalorder %s578, %s579
    %p588 = scmp.eq.s32.totalorder %s106, 0
    %p589 = por %p587, %p588
    %p590 = scmp.ne.s32.totalorder %s578, %s579
    %p591 = scmp.eq.s32.totalorder %s107, 1
    %p592 = por %p590, %p591
    %p594 = scmp.ne.s32.totalorder %s579, %s593
    %p595 = scmp.eq.s32.totalorder %s107, 0
    %p596 = por %p594, %p595
    %s598 = sadd.s32 %s597, 1
    %p601 = scmp.eq.s32.totalorder %s101, 1
    %p602 = scmp.ne.s32.totalorder %s597, %s599
    %p603 = scmp.eq.s32.totalorder %s101, 0
    %p604 = por %p602, %p603
    %p605 = scmp.ne.s32.totalorder %s597, %s599
    %p606 = scmp.eq.s32.totalorder %s106, 1
    %p607 = por %p605, %p606
    %p608 = scmp.ne.s32.totalorder %s599, %s600
    %p609 = scmp.eq.s32.totalorder %s106, 0
    %p610 = por %p608, %p609
    %p611 = scmp.ne.s32.totalorder %s599, %s600
    %p612 = scmp.eq.s32.totalorder %s107, 1
    %p613 = por %p611, %p612
    %p615 = scmp.ne.s32.totalorder %s600, %s614
    %p616 = scmp.eq.s32.totalorder %s107, 0
    %p617 = por %p615, %p616
    %s619 = sadd.s32 %s618, 1
    %p622 = scmp.eq.s32.totalorder %s101, 1
    %p623 = scmp.ne.s32.totalorder %s618, %s620
    %p624 = scmp.eq.s32.totalorder %s101, 0
    %p625 = por %p623, %p624
    %p626 = scmp.ne.s32.totalorder %s618, %s620
    %p627 = scmp.eq.s32.totalorder %s106, 1
    %p628 = por %p626, %p627
    %p629 = scmp.ne.s32.totalorder %s620, %s621
    %p630 = scmp.eq.s32.totalorder %s106, 0
    %p631 = por %p629, %p630
    %p632 = scmp.ne.s32.totalorder %s620, %s621
    %p633 = scmp.eq.s32.totalorder %s107, 1
    %p634 = por %p632, %p633
    %p636 = scmp.ne.s32.totalorder %s621, %s635
    %p637 = scmp.eq.s32.totalorder %s107, 0
    %p638 = por %p636, %p637
    %s640 = sadd.s32 %s639, 1
    %p643 = scmp.eq.s32.totalorder %s101, 1
    %p644 = scmp.ne.s32.totalorder %s639, %s641
    %p645 = scmp.eq.s32.totalorder %s101, 0
    %p646 = por %p644, %p645
    %p647 = scmp.ne.s32.totalorder %s639, %s641
    %p648 = scmp.eq.s32.totalorder %s106, 1
    %p649 = por %p647, %p648
    %p650 = scmp.ne.s32.totalorder %s641, %s642
    %p651 = scmp.eq.s32.totalorder %s106, 0
    %p652 = por %p650, %p651
    %p653 = scmp.ne.s32.totalorder %s641, %s642
    %p654 = scmp.eq.s32.totalorder %s107, 1
    %p655 = por %p653, %p654
    %p657 = scmp.ne.s32.totalorder %s642, %s656
    %p658 = scmp.eq.s32.totalorder %s107, 0
    %p659 = por %p657, %p658
    %s661 = sadd.s32 %s660, 1
    %p664 = scmp.eq.s32.totalorder %s101, 1
    %p665 = scmp.ne.s32.totalorder %s660, %s662
    %p666 = scmp.eq.s32.totalorder %s101, 0
    %p667 = por %p665, %p666
    %p668 = scmp.ne.s32.totalorder %s660, %s662
    %p669 = scmp.eq.s32.totalorder %s106, 1
    %p670 = por %p668, %p669
    %p671 = scmp.ne.s32.totalorder %s662, %s663
    %p672 = scmp.eq.s32.totalorder %s106, 0
    %p673 = por %p671, %p672
    %p674 = scmp.ne.s32.totalorder %s662, %s663
    %p675 = scmp.eq.s32.totalorder %s107, 1
    %p676 = por %p674, %p675
    %p678 = scmp.ne.s32.totalorder %s663, %s677
    %p679 = scmp.eq.s32.totalorder %s107, 0
    %p680 = por %p678, %p679
    %s682 = sadd.s32 %s681, 1
    %p685 = scmp.eq.s32.totalorder %s101, 1
    %p686 = scmp.ne.s32.totalorder %s681, %s683
    %p687 = scmp.eq.s32.totalorder %s101, 0
    %p688 = por %p686, %p687
    %p689 = scmp.ne.s32.totalorder %s681, %s683
    %p690 = scmp.eq.s32.totalorder %s106, 1
    %p691 = por %p689, %p690
    %p692 = scmp.ne.s32.totalorder %s683, %s684
    %p693 = scmp.eq.s32.totalorder %s106, 0
    %p694 = por %p692, %p693
    %p695 = scmp.ne.s32.totalorder %s683, %s684
    %p696 = scmp.eq.s32.totalorder %s107, 1
    %p697 = por %p695, %p696
    %p699 = scmp.ne.s32.totalorder %s684, %s698
    %p700 = scmp.eq.s32.totalorder %s107, 0
    %p701 = por %p699, %p700
    %s703 = sadd.s32 %s702, 1
    %p706 = scmp.eq.s32.totalorder %s101, 1
    %p707 = scmp.ne.s32.totalorder %s702, %s704
    %p708 = scmp.eq.s32.totalorder %s101, 0
    %p709 = por %p707, %p708
    %p710 = scmp.ne.s32.totalorder %s702, %s704
    %p711 = scmp.eq.s32.totalorder %s106, 1
    %p712 = por %p710, %p711
    %p713 = scmp.ne.s32.totalorder %s704, %s705
    %p714 = scmp.eq.s32.totalorder %s106, 0
    %p715 = por %p713, %p714
    %p716 = scmp.ne.s32.totalorder %s704, %s705
    %p717 = scmp.eq.s32.totalorder %s107, 1
    %p718 = por %p716, %p717
    %p720 = scmp.ne.s32.totalorder %s705, %s719
    %p721 = scmp.eq.s32.totalorder %s107, 0
    %p722 = por %p720, %p721
    %s724 = sadd.s32 %s723, 1
    %p727 = scmp.eq.s32.totalorder %s101, 1
    %p728 = scmp.ne.s32.totalorder %s723, %s725
    %p729 = scmp.eq.s32.totalorder %s101, 0
    %p730 = por %p728, %p729
    %p731 = scmp.ne.s32.totalorder %s723, %s725
    %p732 = scmp.eq.s32.totalorder %s106, 1
    %p733 = por %p731, %p732
    %p734 = scmp.ne.s32.totalorder %s725, %s726
    %p735 = scmp.eq.s32.totalorder %s106, 0
    %p736 = por %p734, %p735
    %p737 = scmp.ne.s32.totalorder %s725, %s726
    %p738 = scmp.eq.s32.totalorder %s107, 1
    %p739 = por %p737, %p738
    %p741 = scmp.ne.s32.totalorder %s726, %s740
    %p742 = scmp.eq.s32.totalorder %s107, 0
    %p743 = por %p741, %p742
    %s745 = sadd.s32 %s744, 1
    %p748 = scmp.eq.s32.totalorder %s101, 1
    %p749 = scmp.ne.s32.totalorder %s744, %s746
    %p750 = scmp.eq.s32.totalorder %s101, 0
    %p751 = por %p749, %p750
    %p752 = scmp.ne.s32.totalorder %s744, %s746
    %p753 = scmp.eq.s32.totalorder %s106, 1
    %p754 = por %p752, %p753
    %p755 = scmp.ne.s32.totalorder %s746, %s747
    %p756 = scmp.eq.s32.totalorder %s106, 0
    %p757 = por %p755, %p756
    %p758 = scmp.ne.s32.totalorder %s746, %s747
    %p759 = scmp.eq.s32.totalorder %s107, 1
    %p760 = por %p758, %p759
    %p762 = scmp.ne.s32.totalorder %s747, %s761
    %p763 = scmp.eq.s32.totalorder %s107, 0
    %p764 = por %p762, %p763
    %s766 = sadd.s32 %s765, 1
    %p769 = scmp.eq.s32.totalorder %s101, 1
    %p770 = scmp.ne.s32.totalorder %s765, %s767
    %p771 = scmp.eq.s32.totalorder %s101, 0
    %p772 = por %p770, %p771
    %p773 = scmp.ne.s32.totalorder %s765, %s767
    %p774 = scmp.eq.s32.totalorder %s106, 1
    %p775 = por %p773, %p774
    %p776 = scmp.ne.s32.totalorder %s767, %s768
    %p777 = scmp.eq.s32.totalorder %s106, 0
    %p778 = por %p776, %p777
    %p779 = scmp.ne.s32.totalorder %s767, %s768
    %p780 = scmp.eq.s32.totalorder %s107, 1
    %p781 = por %p779, %p780
    %p783 = scmp.ne.s32.totalorder %s768, %s782
    %p784 = scmp.eq.s32.totalorder %s107, 0
    %p785 = por %p783, %p784
    %s787 = sadd.s32 %s786, 1
    %p790 = scmp.eq.s32.totalorder %s101, 1
    %p791 = scmp.ne.s32.totalorder %s786, %s788
    %p792 = scmp.eq.s32.totalorder %s101, 0
    %p793 = por %p791, %p792
    %p794 = scmp.ne.s32.totalorder %s786, %s788
    %p795 = scmp.eq.s32.totalorder %s106, 1
    %p796 = por %p794, %p795
    %p797 = scmp.ne.s32.totalorder %s788, %s789
    %p798 = scmp.eq.s32.totalorder %s106, 0
    %p799 = por %p797, %p798
    %p800 = scmp.ne.s32.totalorder %s788, %s789
    %p801 = scmp.eq.s32.totalorder %s107, 1
    %p802 = por %p800, %p801
    %p804 = scmp.ne.s32.totalorder %s789, %s803
    %p805 = scmp.eq.s32.totalorder %s107, 0
    %p806 = por %p804, %p805
    %s808 = sadd.s32 %s807, 1
    %p811 = scmp.eq.s32.totalorder %s101, 1
    %p812 = scmp.ne.s32.totalorder %s807, %s809
    %p813 = scmp.eq.s32.totalorder %s101, 0
    %p814 = por %p812, %p813
    %p815 = scmp.ne.s32.totalorder %s807, %s809
    %p816 = scmp.eq.s32.totalorder %s106, 1
    %p817 = por %p815, %p816
    %p818 = scmp.ne.s32.totalorder %s809, %s810
    %p819 = scmp.eq.s32.totalorder %s106, 0
    %p820 = por %p818, %p819
    %p821 = scmp.ne.s32.totalorder %s809, %s810
    %p822 = scmp.eq.s32.totalorder %s107, 1
    %p823 = por %p821, %p822
    %p825 = scmp.ne.s32.totalorder %s810, %s824
    %p826 = scmp.eq.s32.totalorder %s107, 0
    %p827 = por %p825, %p826
    %s829 = sadd.s32 %s828, 1
    %p832 = scmp.eq.s32.totalorder %s101, 1
    %p833 = scmp.ne.s32.totalorder %s828, %s830
    %p834 = scmp.eq.s32.totalorder %s101, 0
    %p835 = por %p833, %p834
    %p836 = scmp.ne.s32.totalorder %s828, %s830
    %p837 = scmp.eq.s32.totalorder %s106, 1
    %p838 = por %p836, %p837
    %p839 = scmp.ne.s32.totalorder %s830, %s831
    %p840 = scmp.eq.s32.totalorder %s106, 0
    %p841 = por %p839, %p840
    %p842 = scmp.ne.s32.totalorder %s830, %s831
    %p843 = scmp.eq.s32.totalorder %s107, 1
    %p844 = por %p842, %p843
    %p846 = scmp.ne.s32.totalorder %s831, %s845
    %p847 = scmp.eq.s32.totalorder %s107, 0
    %p848 = por %p846, %p847
    %s850 = sadd.s32 %s849, 1
    %p853 = scmp.eq.s32.totalorder %s101, 1
    %p854 = scmp.ne.s32.totalorder %s849, %s851
    %p855 = scmp.eq.s32.totalorder %s101, 0
    %p856 = por %p854, %p855
    %p857 = scmp.ne.s32.totalorder %s849, %s851
    %p858 = scmp.eq.s32.totalorder %s106, 1
    %p859 = por %p857, %p858
    %p860 = scmp.ne.s32.totalorder %s851, %s852
    %p861 = scmp.eq.s32.totalorder %s106, 0
    %p862 = por %p860, %p861
    %p863 = scmp.ne.s32.totalorder %s851, %s852
    %p864 = scmp.eq.s32.totalorder %s107, 1
    %p865 = por %p863, %p864
    %p867 = scmp.ne.s32.totalorder %s852, %s866
    %p868 = scmp.eq.s32.totalorder %s107, 0
    %p869 = por %p867, %p868
    %s871 = sadd.s32 %s870, 1
    %p874 = scmp.eq.s32.totalorder %s101, 1
    %p875 = scmp.ne.s32.totalorder %s870, %s872
    %p876 = scmp.eq.s32.totalorder %s101, 0
    %p877 = por %p875, %p876
    %p878 = scmp.ne.s32.totalorder %s870, %s872
    %p879 = scmp.eq.s32.totalorder %s106, 1
    %p880 = por %p878, %p879
    %p881 = scmp.ne.s32.totalorder %s872, %s873
    %p882 = scmp.eq.s32.totalorder %s106, 0
    %p883 = por %p881, %p882
    %p884 = scmp.ne.s32.totalorder %s872, %s873
    %p885 = scmp.eq.s32.totalorder %s107, 1
    %p886 = por %p884, %p885
    %p888 = scmp.ne.s32.totalorder %s873, %s887
    %p889 = scmp.eq.s32.totalorder %s107, 0
    %p890 = por %p888, %p889
    %s892 = sadd.s32 %s891, 1
    %p895 = scmp.eq.s32.totalorder %s101, 1
    %p896 = scmp.ne.s32.totalorder %s891, %s893
    %p897 = scmp.eq.s32.totalorder %s101, 0
    %p898 = por %p896, %p897
    %p899 = scmp.ne.s32.totalorder %s891, %s893
    %p900 = scmp.eq.s32.totalorder %s106, 1
    %p901 = por %p899, %p900
    %p902 = scmp.ne.s32.totalorder %s893, %s894
    %p903 = scmp.eq.s32.totalorder %s106, 0
    %p904 = por %p902, %p903
    %p905 = scmp.ne.s32.totalorder %s893, %s894
    %p906 = scmp.eq.s32.totalorder %s107, 1
    %p907 = por %p905, %p906
    %p909 = scmp.ne.s32.totalorder %s894, %s908
    %p910 = scmp.eq.s32.totalorder %s107, 0
    %p911 = por %p909, %p910
    %s913 = sadd.s32 %s912, 1
    %p916 = scmp.eq.s32.totalorder %s101, 1
    %p917 = scmp.ne.s32.totalorder %s912, %s914
    %p918 = scmp.eq.s32.totalorder %s101, 0
    %p919 = por %p917, %p918
    %p920 = scmp.ne.s32.totalorder %s912, %s914
    %p921 = scmp.eq.s32.totalorder %s106, 1
    %p922 = por %p920, %p921
    %p923 = scmp.ne.s32.totalorder %s914, %s915
    %p924 = scmp.eq.s32.totalorder %s106, 0
    %p925 = por %p923, %p924
    %p926 = scmp.ne.s32.totalorder %s914, %s915
    %p927 = scmp.eq.s32.totalorder %s107, 1
    %p928 = por %p926, %p927
    %p930 = scmp.ne.s32.totalorder %s915, %s929
    %p931 = scmp.eq.s32.totalorder %s107, 0
    %p932 = por %p930, %p931
    %s934 = sadd.s32 %s933, 1
    %p937 = scmp.eq.s32.totalorder %s101, 1
    %p938 = scmp.ne.s32.totalorder %s933, %s935
    %p939 = scmp.eq.s32.totalorder %s101, 0
    %p940 = por %p938, %p939
    %p941 = scmp.ne.s32.totalorder %s933, %s935
    %p942 = scmp.eq.s32.totalorder %s106, 1
    %p943 = por %p941, %p942
    %p944 = scmp.ne.s32.totalorder %s935, %s936
    %p945 = scmp.eq.s32.totalorder %s106, 0
    %p946 = por %p944, %p945
    %p947 = scmp.ne.s32.totalorder %s935, %s936
    %p948 = scmp.eq.s32.totalorder %s107, 1
    %p949 = por %p947, %p948
    %p951 = scmp.ne.s32.totalorder %s936, %s950
    %p952 = scmp.eq.s32.totalorder %s107, 0
    %p953 = por %p951, %p952
    %s955 = sadd.s32 %s954, 1
    %p958 = scmp.eq.s32.totalorder %s101, 1
    %p959 = scmp.ne.s32.totalorder %s954, %s956
    %p960 = scmp.eq.s32.totalorder %s101, 0
    %p961 = por %p959, %p960
    %p962 = scmp.ne.s32.totalorder %s954, %s956
    %p963 = scmp.eq.s32.totalorder %s106, 1
    %p964 = por %p962, %p963
    %p965 = scmp.ne.s32.totalorder %s956, %s957
    %p966 = scmp.eq.s32.totalorder %s106, 0
    %p967 = por %p965, %p966
    %p968 = scmp.ne.s32.totalorder %s956, %s957
    %p969 = scmp.eq.s32.totalorder %s107, 1
    %p970 = por %p968, %p969
    %p972 = scmp.ne.s32.totalorder %s957, %s971
    %p973 = scmp.eq.s32.totalorder %s107, 0
    %p974 = por %p972, %p973
    %s976 = sadd.s32 %s975, 1
    %p979 = scmp.eq.s32.totalorder %s101, 1
    %p980 = scmp.ne.s32.totalorder %s975, %s977
    %p981 = scmp.eq.s32.totalorder %s101, 0
    %p982 = por %p980, %p981
    %p983 = scmp.ne.s32.totalorder %s975, %s977
    %p984 = scmp.eq.s32.totalorder %s106, 1
    %p985 = por %p983, %p984
    %p986 = scmp.ne.s32.totalorder %s977, %s978
    %p987 = scmp.eq.s32.totalorder %s106, 0
    %p988 = por %p986, %p987
    %p989 = scmp.ne.s32.totalorder %s977, %s978
    %p990 = scmp.eq.s32.totalorder %s107, 1
    %p991 = por %p989, %p990
    %p993 = scmp.ne.s32.totalorder %s978, %s992
    %p994 = scmp.eq.s32.totalorder %s107, 0
    %p995 = por %p993, %p994
    %s997 = sadd.s32 %s996, 1
    %p1000 = scmp.eq.s32.totalorder %s101, 1
    %p1001 = scmp.ne.s32.totalorder %s996, %s998
    %p1002 = scmp.eq.s32.totalorder %s101, 0
    %p1003 = por %p1001, %p1002
    %p1004 = scmp.ne.s32.totalorder %s996, %s998
    %p1005 = scmp.eq.s32.totalorder %s106, 1
    %p1006 = por %p1004, %p1005
    %p1007 = scmp.ne.s32.totalorder %s998, %s999
    %p1008 = scmp.eq.s32.totalorder %s106, 0
    %p1009 = por %p1007, %p1008
    %p1010 = scmp.ne.s32.totalorder %s998, %s999
    %p1011 = scmp.eq.s32.totalorder %s107, 1
    %p1012 = por %p1010, %p1011
    %p1014 = scmp.ne.s32.totalorder %s999, %s1013
    %p1015 = scmp.eq.s32.totalorder %s107, 0
    %p1016 = por %p1014, %p1015
    %s1018 = sadd.s32 %s1017, 1
    %p1021 = scmp.eq.s32.totalorder %s101, 1
    %p1022 = scmp.ne.s32.totalorder %s1017, %s1019
    %p1023 = scmp.eq.s32.totalorder %s101, 0
    %p1024 = por %p1022, %p1023
    %p1025 = scmp.ne.s32.totalorder %s1017, %s1019
    %p1026 = scmp.eq.s32.totalorder %s106, 1
    %p1027 = por %p1025, %p1026
    %p1028 = scmp.ne.s32.totalorder %s1019, %s1020
    %p1029 = scmp.eq.s32.totalorder %s106, 0
    %p1030 = por %p1028, %p1029
    %p1031 = scmp.ne.s32.totalorder %s1019, %s1020
    %p1032 = scmp.eq.s32.totalorder %s107, 1
    %p1033 = por %p1031, %p1032
    %p1035 = scmp.ne.s32.totalorder %s1020, %s1034
    %p1036 = scmp.eq.s32.totalorder %s107, 0
    %p1037 = por %p1035, %p1036
    %s1039 = sadd.s32 %s1038, 1
    %p1042 = scmp.eq.s32.totalorder %s101, 1
    %p1043 = scmp.ne.s32.totalorder %s1038, %s1040
    %p1044 = scmp.eq.s32.totalorder %s101, 0
    %p1045 = por %p1043, %p1044
    %p1046 = scmp.ne.s32.totalorder %s1038, %s1040
    %p1047 = scmp.eq.s32.totalorder %s106, 1
    %p1048 = por %p1046, %p1047
    %p1049 = scmp.ne.s32.totalorder %s1040, %s1041
    %p1050 = scmp.eq.s32.totalorder %s106, 0
    %p1051 = por %p1049, %p1050
    %p1052 = scmp.ne.s32.totalorder %s1040, %s1041
    %p1053 = scmp.eq.s32.totalorder %s107, 1
    %p1054 = por %p1052, %p1053
    %p1056 = scmp.ne.s32.totalorder %s1041, %s1055
    %p1057 = scmp.eq.s32.totalorder %s107, 0
    %p1058 = por %p1056, %p1057
    %s1060 = sadd.s32 %s1059, 1
    %p1063 = scmp.eq.s32.totalorder %s101, 1
    %p1064 = scmp.ne.s32.totalorder %s1059, %s1061
    %p1065 = scmp.eq.s32.totalorder %s101, 0
    %p1066 = por %p1064, %p1065
    %p1067 = scmp.ne.s32.totalorder %s1059, %s1061
    %p1068 = scmp.eq.s32.totalorder %s106, 1
    %p1069 = por %p1067, %p1068
    %p1070 = scmp.ne.s32.totalorder %s1061, %s1062
    %p1071 = scmp.eq.s32.totalorder %s106, 0
    %p1072 = por %p1070, %p1071
    %p1073 = scmp.ne.s32.totalorder %s1061, %s1062
    %p1074 = scmp.eq.s32.totalorder %s107, 1
    %p1075 = por %p1073, %p1074
    %p1077 = scmp.ne.s32.totalorder %s1062, %s1076
    %p1078 = scmp.eq.s32.totalorder %s107, 0
    %p1079 = por %p1077, %p1078
    %s1081 = sadd.s32 %s1080, 1
    %p1084 = scmp.eq.s32.totalorder %s101, 1
    %p1085 = scmp.ne.s32.totalorder %s1080, %s1082
    %p1086 = scmp.eq.s32.totalorder %s101, 0
    %p1087 = por %p1085, %p1086
    %p1088 = scmp.ne.s32.totalorder %s1080, %s1082
    %p1089 = scmp.eq.s32.totalorder %s106, 1
    %p1090 = por %p1088, %p1089
    %p1091 = scmp.ne.s32.totalorder %s1082, %s1083
    %p1092 = scmp.eq.s32.totalorder %s106, 0
    %p1093 = por %p1091, %p1092
    %p1094 = scmp.ne.s32.totalorder %s1082, %s1083
    %p1095 = scmp.eq.s32.totalorder %s107, 1
    %p1096 = por %p1094, %p1095
    %p1098 = scmp.ne.s32.totalorder %s1083, %s1097
    %p1099 = scmp.eq.s32.totalorder %s107, 0
    %p1100 = por %p1098, %p1099
    %s1101 = ssub.s32 %s101, %s108
    %p1102 = scmp.eq.s32.totalorder %s1101, 0
    %s1104 = sadd.s32 %s1103, 1
    %s1105 = scalar_select %p1102, %s1103, %s1104
    %p1108 = pneg %p1102
    %p1109 = scmp.eq.s32.totalorder %s101, 1
    %p1110 = por %p1108, %p1109
    %p1111 = scmp.ne.s32.totalorder %s1103, %s1106
    %p1112 = scmp.eq.s32.totalorder %s101, 0
    %p1113 = por %p1111, %p1112
    %p1114 = scmp.ne.s32.totalorder %s1103, %s1106
    %p1115 = scmp.eq.s32.totalorder %s106, 1
    %p1116 = por %p1114, %p1115
    %p1117 = scmp.ne.s32.totalorder %s1106, %s1107
    %p1118 = scmp.eq.s32.totalorder %s106, 0
    %p1119 = por %p1117, %p1118
    %p1120 = scmp.ne.s32.totalorder %s1106, %s1107
    %p1121 = scmp.eq.s32.totalorder %s107, 1
    %p1122 = por %p1120, %p1121
    %p1124 = scmp.ne.s32.totalorder %s1107, %s1123
    %p1125 = scmp.eq.s32.totalorder %s107, 0
    %p1126 = por %p1124, %p1125
    %p1127 = scmp.le.s32.totalorder 1, %s101
    %p1128 = scmp.lt.s32.totalorder %s101, 3
    %p1129 = pnand %p1127, %p1128
    %p1130 = pneg %p1129
    // Predicated region
    $region9: #{dcrnn_single_forward.1} parent=5 // pred_check
      _
    $region10: #{dcrnn_single_forward.1} parent=5 // pred_check_branch
      %1132 = sbr.rel (%p1129) target = $region12
    $region11: #{dcrnn_single_forward.1} parent=5 // pred_region
      %s1133 = ssub.s32 %s101, 1
      // Predicated region
      $region13: #{dcrnn_single_forward.1} parent=11 // pred_check
        %p1134 = pneg %p148
      $region14: #{dcrnn_single_forward.1} parent=11 // pred_check_branch
        %1136 = sbr.rel (%p1134) target = $region16
      $region15: #{dcrnn_single_forward.1} parent=11 // pred_region
        _
      $region16: #{dcrnn_single_forward.1} parent=11 // pred_fallthru
        _
      // Predicated region
      $region17: #{dcrnn_single_forward.1} parent=11 // pred_check
        %p1137 = pneg %p169
      $region18: #{dcrnn_single_forward.1} parent=11 // pred_check_branch
        %1139 = sbr.rel (%p1137) target = $region20
      $region19: #{dcrnn_single_forward.1} parent=11 // pred_region
        _
      $region20: #{dcrnn_single_forward.1} parent=11 // pred_fallthru
        _
      // Predicated region
      $region21: #{dcrnn_single_forward.1} parent=11 // pred_check
        %p1140 = pneg %p190
      $region22: #{dcrnn_single_forward.1} parent=11 // pred_check_branch
        %1142 = sbr.rel (%p1140) target = $region24
      $region23: #{dcrnn_single_forward.1} parent=11 // pred_region
        _
      $region24: #{dcrnn_single_forward.1} parent=11 // pred_fallthru
        _
      // Predicated region
      $region25: #{dcrnn_single_forward.1} parent=11 // pred_check
        %p1143 = pneg %p211
      $region26: #{dcrnn_single_forward.1} parent=11 // pred_check_branch
        %1145 = sbr.rel (%p1143) target = $region28
      $region27: #{dcrnn_single_forward.1} parent=11 // pred_region
        _
      $region28: #{dcrnn_single_forward.1} parent=11 // pred_fallthru
        _
      // Predicated region
      $region29: #{dcrnn_single_forward.1} parent=11 // pred_check
        %p1146 = pneg %p232
      $region30: #{dcrnn_single_forward.1} parent=11 // pred_check_branch
        %1148 = sbr.rel (%p1146) target = $region32
      $region31: #{dcrnn_single_forward.1} parent=11 // pred_region
        _
      $region32: #{dcrnn_single_forward.1} parent=11 // pred_fallthru
        _
      // Predicated region
      $region33: #{dcrnn_single_forward.1} parent=11 // pred_check
        %p1149 = pneg %p253
      $region34: #{dcrnn_single_forward.1} parent=11 // pred_check_branch
        %1151 = sbr.rel (%p1149) target = $region36
      $region35: #{dcrnn_single_forward.1} parent=11 // pred_region
        _
      $region36: #{dcrnn_single_forward.1} parent=11 // pred_fallthru
        _
      // Predicated region
      $region37: #{dcrnn_single_forward.1} parent=11 // pred_check
        %p1152 = pneg %p274
      $region38: #{dcrnn_single_forward.1} parent=11 // pred_check_branch
        %1154 = sbr.rel (%p1152) target = $region40
      $region39: #{dcrnn_single_forward.1} parent=11 // pred_region
        _
      $region40: #{dcrnn_single_forward.1} parent=11 // pred_fallthru
        _
      // Predicated region
      $region41: #{dcrnn_single_forward.1} parent=11 // pred_check
        %p1155 = pneg %p295
      $region42: #{dcrnn_single_forward.1} parent=11 // pred_check_branch
        %1157 = sbr.rel (%p1155) target = $region44
      $region43: #{dcrnn_single_forward.1} parent=11 // pred_region
        _
      $region44: #{dcrnn_single_forward.1} parent=11 // pred_fallthru
        _
      // Predicated region
      $region45: #{dcrnn_single_forward.1} parent=11 // pred_check
        %p1158 = pneg %p316
      $region46: #{dcrnn_single_forward.1} parent=11 // pred_check_branch
        %1160 = sbr.rel (%p1158) target = $region48
      $region47: #{dcrnn_single_forward.1} parent=11 // pred_region
        _
      $region48: #{dcrnn_single_forward.1} parent=11 // pred_fallthru
        _
      // Predicated region
      $region49: #{dcrnn_single_forward.1} parent=11 // pred_check
        %p1161 = pneg %p337
      $region50: #{dcrnn_single_forward.1} parent=11 // pred_check_branch
        %1163 = sbr.rel (%p1161) target = $region52
      $region51: #{dcrnn_single_forward.1} parent=11 // pred_region
        _
      $region52: #{dcrnn_single_forward.1} parent=11 // pred_fallthru
        _
      // Predicated region
      $region53: #{dcrnn_single_forward.1} parent=11 // pred_check
        %p1164 = pneg %p358
      $region54: #{dcrnn_single_forward.1} parent=11 // pred_check_branch
        %1166 = sbr.rel (%p1164) target = $region56
      $region55: #{dcrnn_single_forward.1} parent=11 // pred_region
        _
      $region56: #{dcrnn_single_forward.1} parent=11 // pred_fallthru
        _
      // Predicated region
      $region57: #{dcrnn_single_forward.1} parent=11 // pred_check
        %p1167 = pneg %p379
      $region58: #{dcrnn_single_forward.1} parent=11 // pred_check_branch
        %1169 = sbr.rel (%p1167) target = $region60
      $region59: #{dcrnn_single_forward.1} parent=11 // pred_region
        _
      $region60: #{dcrnn_single_forward.1} parent=11 // pred_fallthru
        _
      // Predicated region
      $region61: #{dcrnn_single_forward.1} parent=11 // pred_check
        %p1170 = pneg %p400
      $region62: #{dcrnn_single_forward.1} parent=11 // pred_check_branch
        %1172 = sbr.rel (%p1170) target = $region64
      $region63: #{dcrnn_single_forward.1} parent=11 // pred_region
        _
      $region64: #{dcrnn_single_forward.1} parent=11 // pred_fallthru
        _
      // Predicated region
      $region65: #{dcrnn_single_forward.1} parent=11 // pred_check
        %p1173 = pneg %p421
      $region66: #{dcrnn_single_forward.1} parent=11 // pred_check_branch
        %1175 = sbr.rel (%p1173) target = $region68
      $region67: #{dcrnn_single_forward.1} parent=11 // pred_region
        _
      $region68: #{dcrnn_single_forward.1} parent=11 // pred_fallthru
        _
      // Predicated region
      $region69: #{dcrnn_single_forward.1} parent=11 // pred_check
        %p1176 = pneg %p442
      $region70: #{dcrnn_single_forward.1} parent=11 // pred_check_branch
        %1178 = sbr.rel (%p1176) target = $region72
      $region71: #{dcrnn_single_forward.1} parent=11 // pred_region
        _
      $region72: #{dcrnn_single_forward.1} parent=11 // pred_fallthru
        _
      // Predicated region
      $region73: #{dcrnn_single_forward.1} parent=11 // pred_check
        %p1179 = pneg %p463
      $region74: #{dcrnn_single_forward.1} parent=11 // pred_check_branch
        %1181 = sbr.rel (%p1179) target = $region76
      $region75: #{dcrnn_single_forward.1} parent=11 // pred_region
        _
      $region76: #{dcrnn_single_forward.1} parent=11 // pred_fallthru
        _
      // Predicated region
      $region77: #{dcrnn_single_forward.1} parent=11 // pred_check
        %p1182 = pneg %p484
      $region78: #{dcrnn_single_forward.1} parent=11 // pred_check_branch
        %1184 = sbr.rel (%p1182) target = $region80
      $region79: #{dcrnn_single_forward.1} parent=11 // pred_region
        _
      $region80: #{dcrnn_single_forward.1} parent=11 // pred_fallthru
        _
      // Predicated region
      $region81: #{dcrnn_single_forward.1} parent=11 // pred_check
        %p1185 = pneg %p505
      $region82: #{dcrnn_single_forward.1} parent=11 // pred_check_branch
        %1187 = sbr.rel (%p1185) target = $region84
      $region83: #{dcrnn_single_forward.1} parent=11 // pred_region
        _
      $region84: #{dcrnn_single_forward.1} parent=11 // pred_fallthru
        _
      // Predicated region
      $region85: #{dcrnn_single_forward.1} parent=11 // pred_check
        %p1188 = pneg %p526
      $region86: #{dcrnn_single_forward.1} parent=11 // pred_check_branch
        %1190 = sbr.rel (%p1188) target = $region88
      $region87: #{dcrnn_single_forward.1} parent=11 // pred_region
        _
      $region88: #{dcrnn_single_forward.1} parent=11 // pred_fallthru
        _
      // Predicated region
      $region89: #{dcrnn_single_forward.1} parent=11 // pred_check
        %p1191 = pneg %p547
      $region90: #{dcrnn_single_forward.1} parent=11 // pred_check_branch
        %1193 = sbr.rel (%p1191) target = $region92
      $region91: #{dcrnn_single_forward.1} parent=11 // pred_region
        _
      $region92: #{dcrnn_single_forward.1} parent=11 // pred_fallthru
        _
      // Predicated region
      $region93: #{dcrnn_single_forward.1} parent=11 // pred_check
        %p1194 = pneg %p568
      $region94: #{dcrnn_single_forward.1} parent=11 // pred_check_branch
        %1196 = sbr.rel (%p1194) target = $region96
      $region95: #{dcrnn_single_forward.1} parent=11 // pred_region
        _
      $region96: #{dcrnn_single_forward.1} parent=11 // pred_fallthru
        _
      // Predicated region
      $region97: #{dcrnn_single_forward.1} parent=11 // pred_check
        %p1197 = pneg %p589
      $region98: #{dcrnn_single_forward.1} parent=11 // pred_check_branch
        %1199 = sbr.rel (%p1197) target = $region100
      $region99: #{dcrnn_single_forward.1} parent=11 // pred_region
        _
      $region100: #{dcrnn_single_forward.1} parent=11 // pred_fallthru
        _
      // Predicated region
      $region101: #{dcrnn_single_forward.1} parent=11 // pred_check
        %p1200 = pneg %p610
      $region102: #{dcrnn_single_forward.1} parent=11 // pred_check_branch
        %1202 = sbr.rel (%p1200) target = $region104
      $region103: #{dcrnn_single_forward.1} parent=11 // pred_region
        _
      $region104: #{dcrnn_single_forward.1} parent=11 // pred_fallthru
        _
      // Predicated region
      $region105: #{dcrnn_single_forward.1} parent=11 // pred_check
        %p1203 = pneg %p631
      $region106: #{dcrnn_single_forward.1} parent=11 // pred_check_branch
        %1205 = sbr.rel (%p1203) target = $region108
      $region107: #{dcrnn_single_forward.1} parent=11 // pred_region
        _
      $region108: #{dcrnn_single_forward.1} parent=11 // pred_fallthru
        _
      // Predicated region
      $region109: #{dcrnn_single_forward.1} parent=11 // pred_check
        %p1206 = pneg %p652
      $region110: #{dcrnn_single_forward.1} parent=11 // pred_check_branch
        %1208 = sbr.rel (%p1206) target = $region112
      $region111: #{dcrnn_single_forward.1} parent=11 // pred_region
        _
      $region112: #{dcrnn_single_forward.1} parent=11 // pred_fallthru
        _
      // Predicated region
      $region113: #{dcrnn_single_forward.1} parent=11 // pred_check
        %p1209 = pneg %p673
      $region114: #{dcrnn_single_forward.1} parent=11 // pred_check_branch
        %1211 = sbr.rel (%p1209) target = $region116
      $region115: #{dcrnn_single_forward.1} parent=11 // pred_region
        _
      $region116: #{dcrnn_single_forward.1} parent=11 // pred_fallthru
        _
      // Predicated region
      $region117: #{dcrnn_single_forward.1} parent=11 // pred_check
        %p1212 = pneg %p694
      $region118: #{dcrnn_single_forward.1} parent=11 // pred_check_branch
        %1214 = sbr.rel (%p1212) target = $region120
      $region119: #{dcrnn_single_forward.1} parent=11 // pred_region
        _
      $region120: #{dcrnn_single_forward.1} parent=11 // pred_fallthru
        _
      // Predicated region
      $region121: #{dcrnn_single_forward.1} parent=11 // pred_check
        %p1215 = pneg %p715
      $region122: #{dcrnn_single_forward.1} parent=11 // pred_check_branch
        %1217 = sbr.rel (%p1215) target = $region124
      $region123: #{dcrnn_single_forward.1} parent=11 // pred_region
        _
      $region124: #{dcrnn_single_forward.1} parent=11 // pred_fallthru
        _
      // Predicated region
      $region125: #{dcrnn_single_forward.1} parent=11 // pred_check
        %p1218 = pneg %p736
      $region126: #{dcrnn_single_forward.1} parent=11 // pred_check_branch
        %1220 = sbr.rel (%p1218) target = $region128
      $region127: #{dcrnn_single_forward.1} parent=11 // pred_region
        _
      $region128: #{dcrnn_single_forward.1} parent=11 // pred_fallthru
        _
      // Predicated region
      $region129: #{dcrnn_single_forward.1} parent=11 // pred_check
        %p1221 = pneg %p757
      $region130: #{dcrnn_single_forward.1} parent=11 // pred_check_branch
        %1223 = sbr.rel (%p1221) target = $region132
      $region131: #{dcrnn_single_forward.1} parent=11 // pred_region
        _
      $region132: #{dcrnn_single_forward.1} parent=11 // pred_fallthru
        _
      // Predicated region
      $region133: #{dcrnn_single_forward.1} parent=11 // pred_check
        %p1224 = pneg %p778
      $region134: #{dcrnn_single_forward.1} parent=11 // pred_check_branch
        %1226 = sbr.rel (%p1224) target = $region136
      $region135: #{dcrnn_single_forward.1} parent=11 // pred_region
        _
      $region136: #{dcrnn_single_forward.1} parent=11 // pred_fallthru
        _
      // Predicated region
      $region137: #{dcrnn_single_forward.1} parent=11 // pred_check
        %p1227 = pneg %p799
      $region138: #{dcrnn_single_forward.1} parent=11 // pred_check_branch
        %1229 = sbr.rel (%p1227) target = $region140
      $region139: #{dcrnn_single_forward.1} parent=11 // pred_region
        _
      $region140: #{dcrnn_single_forward.1} parent=11 // pred_fallthru
        _
      // Predicated region
      $region141: #{dcrnn_single_forward.1} parent=11 // pred_check
        %p1230 = pneg %p820
      $region142: #{dcrnn_single_forward.1} parent=11 // pred_check_branch
        %1232 = sbr.rel (%p1230) target = $region144
      $region143: #{dcrnn_single_forward.1} parent=11 // pred_region
        _
      $region144: #{dcrnn_single_forward.1} parent=11 // pred_fallthru
        _
      // Predicated region
      $region145: #{dcrnn_single_forward.1} parent=11 // pred_check
        %p1233 = pneg %p841
      $region146: #{dcrnn_single_forward.1} parent=11 // pred_check_branch
        %1235 = sbr.rel (%p1233) target = $region148
      $region147: #{dcrnn_single_forward.1} parent=11 // pred_region
        _
      $region148: #{dcrnn_single_forward.1} parent=11 // pred_fallthru
        _
      // Predicated region
      $region149: #{dcrnn_single_forward.1} parent=11 // pred_check
        %p1236 = pneg %p862
      $region150: #{dcrnn_single_forward.1} parent=11 // pred_check_branch
        %1238 = sbr.rel (%p1236) target = $region152
      $region151: #{dcrnn_single_forward.1} parent=11 // pred_region
        _
      $region152: #{dcrnn_single_forward.1} parent=11 // pred_fallthru
        _
      // Predicated region
      $region153: #{dcrnn_single_forward.1} parent=11 // pred_check
        %p1239 = pneg %p883
      $region154: #{dcrnn_single_forward.1} parent=11 // pred_check_branch
        %1241 = sbr.rel (%p1239) target = $region156
      $region155: #{dcrnn_single_forward.1} parent=11 // pred_region
        _
      $region156: #{dcrnn_single_forward.1} parent=11 // pred_fallthru
        _
      // Predicated region
      $region157: #{dcrnn_single_forward.1} parent=11 // pred_check
        %p1242 = pneg %p904
      $region158: #{dcrnn_single_forward.1} parent=11 // pred_check_branch
        %1244 = sbr.rel (%p1242) target = $region160
      $region159: #{dcrnn_single_forward.1} parent=11 // pred_region
        _
      $region160: #{dcrnn_single_forward.1} parent=11 // pred_fallthru
        _
      // Predicated region
      $region161: #{dcrnn_single_forward.1} parent=11 // pred_check
        %p1245 = pneg %p925
      $region162: #{dcrnn_single_forward.1} parent=11 // pred_check_branch
        %1247 = sbr.rel (%p1245) target = $region164
      $region163: #{dcrnn_single_forward.1} parent=11 // pred_region
        _
      $region164: #{dcrnn_single_forward.1} parent=11 // pred_fallthru
        _
      // Predicated region
      $region165: #{dcrnn_single_forward.1} parent=11 // pred_check
        %p1248 = pneg %p946
      $region166: #{dcrnn_single_forward.1} parent=11 // pred_check_branch
        %1250 = sbr.rel (%p1248) target = $region168
      $region167: #{dcrnn_single_forward.1} parent=11 // pred_region
        _
      $region168: #{dcrnn_single_forward.1} parent=11 // pred_fallthru
        _
      // Predicated region
      $region169: #{dcrnn_single_forward.1} parent=11 // pred_check
        %p1251 = pneg %p967
      $region170: #{dcrnn_single_forward.1} parent=11 // pred_check_branch
        %1253 = sbr.rel (%p1251) target = $region172
      $region171: #{dcrnn_single_forward.1} parent=11 // pred_region
        _
      $region172: #{dcrnn_single_forward.1} parent=11 // pred_fallthru
        _
      // Predicated region
      $region173: #{dcrnn_single_forward.1} parent=11 // pred_check
        %p1254 = pneg %p988
      $region174: #{dcrnn_single_forward.1} parent=11 // pred_check_branch
        %1256 = sbr.rel (%p1254) target = $region176
      $region175: #{dcrnn_single_forward.1} parent=11 // pred_region
        _
      $region176: #{dcrnn_single_forward.1} parent=11 // pred_fallthru
        _
      // Predicated region
      $region177: #{dcrnn_single_forward.1} parent=11 // pred_check
        %p1257 = pneg %p1009
      $region178: #{dcrnn_single_forward.1} parent=11 // pred_check_branch
        %1259 = sbr.rel (%p1257) target = $region180
      $region179: #{dcrnn_single_forward.1} parent=11 // pred_region
        _
      $region180: #{dcrnn_single_forward.1} parent=11 // pred_fallthru
        _
      // Predicated region
      $region181: #{dcrnn_single_forward.1} parent=11 // pred_check
        %p1260 = pneg %p1030
      $region182: #{dcrnn_single_forward.1} parent=11 // pred_check_branch
        %1262 = sbr.rel (%p1260) target = $region184
      $region183: #{dcrnn_single_forward.1} parent=11 // pred_region
        _
      $region184: #{dcrnn_single_forward.1} parent=11 // pred_fallthru
        _
      // Predicated region
      $region185: #{dcrnn_single_forward.1} parent=11 // pred_check
        %p1263 = pneg %p1051
      $region186: #{dcrnn_single_forward.1} parent=11 // pred_check_branch
        %1265 = sbr.rel (%p1263) target = $region188
      $region187: #{dcrnn_single_forward.1} parent=11 // pred_region
        _
      $region188: #{dcrnn_single_forward.1} parent=11 // pred_fallthru
        _
      // Predicated region
      $region189: #{dcrnn_single_forward.1} parent=11 // pred_check
        %p1266 = pneg %p1072
      $region190: #{dcrnn_single_forward.1} parent=11 // pred_check_branch
        %1268 = sbr.rel (%p1266) target = $region192
      $region191: #{dcrnn_single_forward.1} parent=11 // pred_region
        _
      $region192: #{dcrnn_single_forward.1} parent=11 // pred_fallthru
        _
      // Predicated region
      $region193: #{dcrnn_single_forward.1} parent=11 // pred_check
        %p1269 = pneg %p1093
      $region194: #{dcrnn_single_forward.1} parent=11 // pred_check_branch
        %1271 = sbr.rel (%p1269) target = $region196
      $region195: #{dcrnn_single_forward.1} parent=11 // pred_region
        _
      $region196: #{dcrnn_single_forward.1} parent=11 // pred_fallthru
        _
    $region12: #{dcrnn_single_forward.1} parent=5 // pred_fallthru
      _
    %p1272 = scmp.lt.s32.totalorder %s101, 2
    // Predicated region
    $region197: #{dcrnn_single_forward.1} parent=5 // pred_check
      %p1273 = pneg %p1272
    $region198: #{dcrnn_single_forward.1} parent=5 // pred_check_branch
      %1275 = sbr.rel (%p1273) target = $region200
    $region199: #{dcrnn_single_forward.1} parent=5 // pred_region
      // Predicated region
      $region201: #{dcrnn_single_forward.1} parent=199 // pred_check
        %p1276 = pneg %p121
      $region202: #{dcrnn_single_forward.1} parent=199 // pred_check_branch
        %1278 = sbr.rel (%p1276) target = $region204
      $region203: #{dcrnn_single_forward.1} parent=199 // pred_region
        %p1279 = scmp.lt.s32.totalorder %s101, 1
        %s1280 = scalar_select %p1279, %s101, 1
        %s1281 = smul.addr %s1280, 2
        %s1282 = smul.addr %s1281, 8
        %s1283 = scalar_lea.vmem %s1, %s1282
      $region204: #{dcrnn_single_forward.1} parent=199 // pred_fallthru
        _
    $region200: #{dcrnn_single_forward.1} parent=5 // pred_fallthru
      _
    %p1284 = scmp.le.s32.totalorder 1, %s101
    %p1285 = scmp.lt.s32.totalorder %s101, 3
    %p1286 = pnand %p1284, %p1285
    %p1287 = pneg %p1286
    // Predicated region
    $region205: #{dcrnn_single_forward.1} parent=5 // pred_check
      _
    $region206: #{dcrnn_single_forward.1} parent=5 // pred_check_branch
      %1289 = sbr.rel (%p1286) target = $region208
    $region207: #{dcrnn_single_forward.1} parent=5 // pred_region
      %s1290 = ssub.s32 %s101, 1
      %p1291 = scmp.lt.s32.totalorder %s106, 1
      %s1292 = scalar_select %p1291, %s106, 1
      %s1293 = smul.addr %s1292, 2
      %s1294 = smul.addr %s1293, 8
      %s1295 = scalar_lea.vmem %s1, %s1294
      %p1296 = pneg %p127
      %p1297 = pneg %p124
      %p1298 = pneg %p148
      %p1299 = pneg %p145
      %p1300 = pneg %p169
      %p1301 = pneg %p166
      %p1302 = pneg %p190
      %p1303 = pneg %p187
      %p1304 = pneg %p211
      %p1305 = pneg %p208
      %p1306 = pneg %p232
      %p1307 = pneg %p229
      %p1308 = pneg %p253
      %p1309 = pneg %p250
      %p1310 = pneg %p274
      %p1311 = pneg %p271
      %p1312 = pneg %p295
      %p1313 = pneg %p292
      %p1314 = pneg %p316
      %p1315 = pneg %p313
      %p1316 = pneg %p337
      %p1317 = pneg %p334
      %p1318 = pneg %p358
      %p1319 = pneg %p355
      %p1320 = pneg %p379
      %p1321 = pneg %p376
      %p1322 = pneg %p400
      %p1323 = pneg %p397
      %p1324 = pneg %p421
      %p1325 = pneg %p418
      %p1326 = pneg %p442
      %p1327 = pneg %p439
      %p1328 = pneg %p463
      %p1329 = pneg %p460
      %p1330 = pneg %p484
      %p1331 = pneg %p481
      %p1332 = pneg %p505
      %p1333 = pneg %p502
      %p1334 = pneg %p526
      %p1335 = pneg %p523
      %p1336 = pneg %p547
      %p1337 = pneg %p544
      %p1338 = pneg %p568
      %p1339 = pneg %p565
      %p1340 = pneg %p589
      %p1341 = pneg %p586
      %p1342 = pneg %p610
      %p1343 = pneg %p607
      %p1344 = pneg %p631
      %p1345 = pneg %p628
      %p1346 = pneg %p652
      %p1347 = pneg %p649
      %p1348 = pneg %p673
      %p1349 = pneg %p670
      %p1350 = pneg %p694
      %p1351 = pneg %p691
      %p1352 = pneg %p715
      %p1353 = pneg %p712
      %p1354 = pneg %p736
      %p1355 = pneg %p733
      %p1356 = pneg %p757
      %p1357 = pneg %p754
      %p1358 = pneg %p778
      %p1359 = pneg %p775
      %p1360 = pneg %p799
      %p1361 = pneg %p796
      %p1362 = pneg %p820
      %p1363 = pneg %p817
      %p1364 = pneg %p841
      %p1365 = pneg %p838
      %p1366 = pneg %p862
      %p1367 = pneg %p859
      %p1368 = pneg %p883
      %p1369 = pneg %p880
      %p1370 = pneg %p904
      %p1371 = pneg %p901
      %p1372 = pneg %p925
      %p1373 = pneg %p922
      %p1374 = pneg %p946
      %p1375 = pneg %p943
      %p1376 = pneg %p967
      %p1377 = pneg %p964
      %p1378 = pneg %p988
      %p1379 = pneg %p985
      %p1380 = pneg %p1009
      %p1381 = pneg %p1006
      %p1382 = pneg %p1030
      %p1383 = pneg %p1027
      %p1384 = pneg %p1051
      %p1385 = pneg %p1048
      %p1386 = pneg %p1072
      %p1387 = pneg %p1069
      %p1388 = pneg %p1093
      %p1389 = pneg %p1090
      %p1390 = pneg %p1119
      %p1391 = pneg %p1116
      %p1392 = scmp.lt.s32.totalorder %s106, 1
      %s1393 = scalar_select %p1392, %s106, 1
      %s1394 = smul.addr %s1393, 2
      %s1395 = smul.addr %s1394, 8
      %s1396 = scalar_lea.vmem %s95, %s1395
      %p1397 = scmp.lt.s32.totalorder %s106, 1
      %s1398 = scalar_select %p1397, %s106, 1
      %s1399 = smul.addr %s1398, 2
      %s1400 = smul.addr %s1399, 8
      %s1401 = scalar_lea.vmem %s1, %s1400
      %p1402 = scmp.lt.s32.totalorder %s106, 1
      %s1403 = scalar_select %p1402, %s106, 1
      %s1404 = smul.addr %s1403, 2
      %s1405 = smul.addr %s1404, 8
      %s1406 = scalar_lea.vmem %s95, %s1405
      %v1407 = vld [vmem:[%s1401] sm:$0xff]
      %v1408 = vld [vmem:[%s1401 + $0x8] sm:$0xff]
      %v1409 = vld [vmem:[%s3] sm:$0xff]
      %v1410 = vld [vmem:[%s3 + $0x8] sm:$0xff]
      %v1411 = vld [vmem:[%s3 + $0x10] sm:$0xff]
      %v1412 = vld [vmem:[%s3 + $0x18] sm:$0xff]
      %vm1413 = vcmask 130048
      %v1415 = vsel %vm1413, %v1409, 0
      %v1418 = vsel %vm1413, %v1410, 0
      %v1421 = vsel %vm1413, %v1411, 0
      %v1424 = vsel %vm1413, %v1412, 0
      %1426 = vmatprep.subr.mxu0 0.0
      %1427 = vmatpush1.msra.mxu0 0.0
      %1428 = vmatprep.subr.mxu0 0.0
      %1429 = vmatpush1.msra.mxu0 0.0
      %1430 = vmatprep.subr.mxu0 0.0
      %1431 = vmatpush1.msra.mxu0 0.0
      %1432 = vmatprep.subr.mxu0 0.0
      %1433 = vmatpush1.msra.mxu0 0.0
      %1434 = vmatprep.subr.mxu0 0.0
      %1435 = vmatpush1.msra.mxu0 0.0
      %1436 = vmatprep.subr.mxu0 0.0
      %1437 = vmatpush1.msra.mxu0 0.0
      %1438 = vmatprep.subr.mxu0 0.0
      %1439 = vmatpush1.msra.mxu0 0.0
      %1440 = vmatprep.subr.mxu0 0.0
      %1441 = vmatpush1.msra.mxu0 0.0
      %1442 = vmatprep.subr.mxu0 0.0
      %1443 = vmatpush1.msra.mxu0 0.0
      %1444 = vmatprep.subr.mxu0 0.0
      %1445 = vmatpush1.msra.mxu0 0.0
      %1446 = vmatprep.subr.mxu0 0.0
      %1447 = vmatpush1.msra.mxu0 0.0
      %1448 = vmatprep.subr.mxu0 0.0
      %1449 = vmatpush1.msra.mxu0 0.0
      %1450 = vmatprep.subr.mxu0 0.0
      %1451 = vmatpush1.msra.mxu0 0.0
      %1452 = vmatprep.subr.mxu0 0.0
      %1453 = vmatpush1.msra.mxu0 0.0
      %1454 = vmatprep.subr.mxu0 0.0
      %1455 = vmatpush1.msra.mxu0 %v1408
      %1456 = vmatprep.subr.mxu0 0.0
      %1457 = vmatpush1.msra.mxu0 %v1407
      %1458 = vmatprep.subr.mxu0 0.0
      %1459 = vmatpush2.msra.mxu0 0.0
      %1460 = vmatprep.subr.mxu0 0.0
      %1461 = vmatpush2.msra.mxu0 0.0
      %1462 = vmatprep.subr.mxu0 0.0
      %1463 = vmatpush2.msra.mxu0 0.0
      %1464 = vmatprep.subr.mxu0 0.0
      %1465 = vmatpush2.msra.mxu0 0.0
      %1466 = vmatprep.subr.mxu0 0.0
      %1467 = vmatpush2.msra.mxu0 0.0
      %1468 = vmatprep.subr.mxu0 0.0
      %1469 = vmatpush2.msra.mxu0 0.0
      %1470 = vmatprep.subr.mxu0 0.0
      %1471 = vmatpush2.msra.mxu0 0.0
      %1472 = vmatprep.subr.mxu0 0.0
      %1473 = vmatpush2.msra.mxu0 0.0
      %1474 = vmatprep.subr.mxu0 0.0
      %1475 = vmatpush2.msra.mxu0 0.0
      %1476 = vmatprep.subr.mxu0 0.0
      %1477 = vmatpush2.msra.mxu0 0.0
      %1478 = vmatprep.subr.mxu0 0.0
      %1479 = vmatpush2.msra.mxu0 0.0
      %1480 = vmatprep.subr.mxu0 0.0
      %1481 = vmatpush2.msra.mxu0 0.0
      %1482 = vmatprep.subr.mxu0 0.0
      %1483 = vmatpush2.msra.mxu0 0.0
      %1484 = vmatprep.subr.mxu0 0.0
      %1485 = vmatpush2.msra.mxu0 0.0
      %1486 = vmatprep.subr.mxu0 0.0
      %1487 = vmatpush2.msra.mxu0 0.0
      %1488 = vmatprep.subr.mxu0 0.0
      %1489 = vmatpush2.msra.mxu0 0.0
      %1490 = vmatprep.mubr.f32.mxu0 0.0
      %1491 = vmatmul.mubr.f32.gmra.mxu0 %v1415
      %v1492 = vpop.f32.mrf.mxu0
      %v1493 = vadd.f32 0.0, %v1492
      %v1494 = vpop.f32.mrf.mxu0
      %1495 = vmatprep.mubr.f32.mxu0 0.0
      %1496 = vmatmul.mubr.f32.gmra.mxu0 %v1418
      %v1497 = vpop.f32.mrf.mxu0
      %v1498 = vadd.f32 0.0, %v1497
      %v1499 = vpop.f32.mrf.mxu0
      %1500 = vmatprep.mubr.f32.mxu0 0.0
      %1501 = vmatmul.mubr.f32.gmra.mxu0 %v1421
      %v1502 = vpop.f32.mrf.mxu0
      %v1503 = vadd.f32 0.0, %v1502
      %v1504 = vpop.f32.mrf.mxu0
      %1505 = vmatprep.mubr.f32.mxu0 0.0
      %1506 = vmatmul.mubr.f32.gmra.mxu0 %v1424
      %v1507 = vpop.f32.mrf.mxu0
      %v1508 = vadd.f32 0.0, %v1507
      %v1509 = vpop.f32.mrf.mxu0
      %1510 = vdwg.mxu0
      %1513 = vrot.lane.b32.xlu0 %v1493, 12
      %v1514 = vpop.permute.xlu0 %1513
      %1515 = vrot.lane.b32.xlu0 %v1498, 12
      %v1516 = vpop.permute.xlu0 %1515
      %1521 = vrot.lane.b32.xlu0 %v1503, 24
      %v1522 = vpop.permute.xlu0 %1521
      %1523 = vrot.lane.b32.xlu0 %v1508, 24
      %v1524 = vpop.permute.xlu0 %1523
      %vm1527 = vcmask 97280
      %v1528 = vsel %vm1527, %v1407, %v1514
      %v1529 = vsel %vm1527, %v1408, %v1516
      %vm1530 = vcmask 195584
      %v1531 = vsel %vm1530, %v1528, %v1522
      %v1532 = vsel %vm1530, %v1529, %v1524
      %v1533 = vld [vmem:[%s11] sm:$0xff]
      %v1534 = vld [vmem:[%s11 + $0x8] sm:$0xff]
      %v1535 = vld [vmem:[%s11 + $0x10] sm:$0xff]
      %v1536 = vld [vmem:[%s11 + $0x18] sm:$0xff]
      %v1537 = vld [vmem:[%s11 + $0x20] sm:$0xf]
      %v1538 = vld [vmem:[%s13] sm:$0x1]
      %v1540 = vlaneseq
      %v1541 = vshrl.u32 %v1540, 7
      %v1542 = vsub.s32 0, %v1541
      %v1543 = vrot.slane %v1538, %v1542
      %vm1545 = vcmask 293888
      %v1547 = vsel %vm1545, %v1531, 0
      %v1550 = vsel %vm1545, %v1532, 0
      %vm1552 = vcmask 1043456
      %v1554 = vsel %vm1552, %v1537, 0
      %1556 = vmatprep.subr.mxu0 0.0
      %1557 = vmatpush1.msra.mxu0 0.0
      %1558 = vmatprep.subr.mxu0 0.0
      %1559 = vmatpush1.msra.mxu0 0.0
      %1560 = vmatprep.subr.mxu0 0.0
      %1561 = vmatpush1.msra.mxu0 0.0
      %1562 = vmatprep.subr.mxu0 0.0
      %1563 = vmatpush1.msra.mxu0 0.0
      %1564 = vmatprep.subr.mxu0 0.0
      %1565 = vmatpush1.msra.mxu0 0.0
      %1566 = vmatprep.subr.mxu0 0.0
      %1567 = vmatpush1.msra.mxu0 0.0
      %1568 = vmatprep.subr.mxu0 0.0
      %1569 = vmatpush1.msra.mxu0 0.0
      %1570 = vmatprep.subr.mxu0 0.0
      %1571 = vmatpush1.msra.mxu0 0.0
      %1572 = vmatprep.subr.mxu0 0.0
      %1573 = vmatpush1.msra.mxu0 0.0
      %1574 = vmatprep.subr.mxu0 0.0
      %1575 = vmatpush1.msra.mxu0 0.0
      %1576 = vmatprep.subr.mxu0 0.0
      %1577 = vmatpush1.msra.mxu0 0.0
      %1578 = vmatprep.subr.mxu0 0.0
      %1579 = vmatpush1.msra.mxu0 %v1554
      %1580 = vmatprep.subr.mxu0 0.0
      %1581 = vmatpush1.msra.mxu0 %v1536
      %1582 = vmatprep.subr.mxu0 0.0
      %1583 = vmatpush1.msra.mxu0 %v1535
      %1584 = vmatprep.subr.mxu0 0.0
      %1585 = vmatpush1.msra.mxu0 %v1534
      %1586 = vmatprep.subr.mxu0 0.0
      %1587 = vmatpush1.msra.mxu0 %v1533
      %1588 = vmatprep.subr.mxu0 0.0
      %1589 = vmatpush2.msra.mxu0 0.0
      %1590 = vmatprep.subr.mxu0 0.0
      %1591 = vmatpush2.msra.mxu0 0.0
      %1592 = vmatprep.subr.mxu0 0.0
      %1593 = vmatpush2.msra.mxu0 0.0
      %1594 = vmatprep.subr.mxu0 0.0
      %1595 = vmatpush2.msra.mxu0 0.0
      %1596 = vmatprep.subr.mxu0 0.0
      %1597 = vmatpush2.msra.mxu0 0.0
      %1598 = vmatprep.subr.mxu0 0.0
      %1599 = vmatpush2.msra.mxu0 0.0
      %1600 = vmatprep.subr.mxu0 0.0
      %1601 = vmatpush2.msra.mxu0 0.0
      %1602 = vmatprep.subr.mxu0 0.0
      %1603 = vmatpush2.msra.mxu0 0.0
      %1604 = vmatprep.subr.mxu0 0.0
      %1605 = vmatpush2.msra.mxu0 0.0
      %1606 = vmatprep.subr.mxu0 0.0
      %1607 = vmatpush2.msra.mxu0 0.0
      %1608 = vmatprep.subr.mxu0 0.0
      %1609 = vmatpush2.msra.mxu0 0.0
      %1610 = vmatprep.subr.mxu0 0.0
      %1611 = vmatpush2.msra.mxu0 0.0
      %1612 = vmatprep.subr.mxu0 0.0
      %1613 = vmatpush2.msra.mxu0 0.0
      %1614 = vmatprep.subr.mxu0 0.0
      %1615 = vmatpush2.msra.mxu0 0.0
      %1616 = vmatprep.subr.mxu0 0.0
      %1617 = vmatpush2.msra.mxu0 0.0
      %1618 = vmatprep.subr.mxu0 0.0
      %1619 = vmatpush2.msra.mxu0 0.0
      %1620 = vmatprep.mubr.f32.mxu0 0.0
      %1621 = vmatmul.mubr.f32.gmra.mxu0 %v1547
      %v1622 = vpop.f32.mrf.mxu0
      %v1623 = vadd.f32 %v1543, %v1622
      %v1624 = vpop.f32.mrf.mxu0
      %1625 = vmatprep.mubr.f32.mxu0 0.0
      %1626 = vmatmul.mubr.f32.gmra.mxu0 %v1550
      %v1627 = vpop.f32.mrf.mxu0
      %v1628 = vadd.f32 %v1543, %v1627
      %v1629 = vpop.f32.mrf.mxu0
      %1630 = vdwg.mxu0
      %v1631 = vmax.f32 %v1623, 0.0
      %v1632 = vmax.f32 %v1628, 0.0
      %1633 = vmatprep.subr.mxu0 0.0
      %1634 = vmatpush1.msra.mxu0 0.0
      %1635 = vmatprep.subr.mxu0 0.0
      %1636 = vmatpush1.msra.mxu0 0.0
      %1637 = vmatprep.subr.mxu0 0.0
      %1638 = vmatpush1.msra.mxu0 0.0
      %1639 = vmatprep.subr.mxu0 0.0
      %1640 = vmatpush1.msra.mxu0 0.0
      %1641 = vmatprep.subr.mxu0 0.0
      %1642 = vmatpush1.msra.mxu0 0.0
      %1643 = vmatprep.subr.mxu0 0.0
      %1644 = vmatpush1.msra.mxu0 0.0
      %1645 = vmatprep.subr.mxu0 0.0
      %1646 = vmatpush1.msra.mxu0 0.0
      %1647 = vmatprep.subr.mxu0 0.0
      %1648 = vmatpush1.msra.mxu0 0.0
      %1649 = vmatprep.subr.mxu0 0.0
      %1650 = vmatpush1.msra.mxu0 0.0
      %1651 = vmatprep.subr.mxu0 0.0
      %1652 = vmatpush1.msra.mxu0 0.0
      %1653 = vmatprep.subr.mxu0 0.0
      %1654 = vmatpush1.msra.mxu0 0.0
      %1655 = vmatprep.subr.mxu0 0.0
      %1656 = vmatpush1.msra.mxu0 0.0
      %1657 = vmatprep.subr.mxu0 0.0
      %1658 = vmatpush1.msra.mxu0 0.0
      %1659 = vmatprep.subr.mxu0 0.0
      %1660 = vmatpush1.msra.mxu0 0.0
      %1661 = vmatprep.subr.mxu0 0.0
      %1662 = vmatpush1.msra.mxu0 %v1632
      %1663 = vmatprep.subr.mxu0 0.0
      %1664 = vmatpush1.msra.mxu0 %v1631
      %1665 = vmatprep.subr.mxu0 0.0
      %1666 = vmatpush2.msra.mxu0 0.0
      %1667 = vmatprep.subr.mxu0 0.0
      %1668 = vmatpush2.msra.mxu0 0.0
      %1669 = vmatprep.subr.mxu0 0.0
      %1670 = vmatpush2.msra.mxu0 0.0
      %1671 = vmatprep.subr.mxu0 0.0
      %1672 = vmatpush2.msra.mxu0 0.0
      %1673 = vmatprep.subr.mxu0 0.0
      %1674 = vmatpush2.msra.mxu0 0.0
      %1675 = vmatprep.subr.mxu0 0.0
      %1676 = vmatpush2.msra.mxu0 0.0
      %1677 = vmatprep.subr.mxu0 0.0
      %1678 = vmatpush2.msra.mxu0 0.0
      %1679 = vmatprep.subr.mxu0 0.0
      %1680 = vmatpush2.msra.mxu0 0.0
      %1681 = vmatprep.subr.mxu0 0.0
      %1682 = vmatpush2.msra.mxu0 0.0
      %1683 = vmatprep.subr.mxu0 0.0
      %1684 = vmatpush2.msra.mxu0 0.0
      %1685 = vmatprep.subr.mxu0 0.0
      %1686 = vmatpush2.msra.mxu0 0.0
      %1687 = vmatprep.subr.mxu0 0.0
      %1688 = vmatpush2.msra.mxu0 0.0
      %1689 = vmatprep.subr.mxu0 0.0
      %1690 = vmatpush2.msra.mxu0 0.0
      %1691 = vmatprep.subr.mxu0 0.0
      %1692 = vmatpush2.msra.mxu0 0.0
      %1693 = vmatprep.subr.mxu0 0.0
      %1694 = vmatpush2.msra.mxu0 0.0
      %1695 = vmatprep.subr.mxu0 0.0
      %1696 = vmatpush2.msra.mxu0 0.0
      %1697 = vmatprep.mubr.f32.mxu0 0.0
      %1698 = vmatmul.mubr.f32.gmra.mxu0 %v1415
      %v1699 = vpop.f32.mrf.mxu0
      %v1700 = vadd.f32 0.0, %v1699
      %v1701 = vpop.f32.mrf.mxu0
      %1702 = vmatprep.mubr.f32.mxu0 0.0
      %1703 = vmatmul.mubr.f32.gmra.mxu0 %v1418
      %v1704 = vpop.f32.mrf.mxu0
      %v1705 = vadd.f32 0.0, %v1704
      %v1706 = vpop.f32.mrf.mxu0
      %1707 = vmatprep.mubr.f32.mxu0 0.0
      %1708 = vmatmul.mubr.f32.gmra.mxu0 %v1421
      %v1709 = vpop.f32.mrf.mxu0
      %v1710 = vadd.f32 0.0, %v1709
      %v1711 = vpop.f32.mrf.mxu0
      %1712 = vmatprep.mubr.f32.mxu0 0.0
      %1713 = vmatmul.mubr.f32.gmra.mxu0 %v1424
      %v1714 = vpop.f32.mrf.mxu0
      %v1715 = vadd.f32 0.0, %v1714
      %v1716 = vpop.f32.mrf.mxu0
      %1717 = vdwg.mxu0
      %1720 = vrot.lane.b32.xlu0 %v1700, 8
      %v1721 = vpop.permute.xlu0 %1720
      %1722 = vrot.lane.b32.xlu0 %v1705, 8
      %v1723 = vpop.permute.xlu0 %1722
      %1728 = vrot.lane.b32.xlu0 %v1710, 16
      %v1729 = vpop.permute.xlu0 %1728
      %1730 = vrot.lane.b32.xlu0 %v1715, 16
      %v1731 = vpop.permute.xlu0 %1730
      %vm1734 = vcmask 64512
      %v1735 = vsel %vm1734, %v1631, %v1721
      %v1736 = vsel %vm1734, %v1632, %v1723
      %v1737 = vsel %vm1413, %v1735, %v1729
      %v1738 = vsel %vm1413, %v1736, %v1731
      %v1739 = vld [vmem:[%s15] sm:$0xff]
      %v1740 = vld [vmem:[%s15 + $0x8] sm:$0xff]
      %v1741 = vld [vmem:[%s15 + $0x10] sm:$0xff]
      %v1742 = vld [vmem:[%s17] sm:$0x1]
      %v1744 = vlaneseq
      %v1745 = vshrl.u32 %v1744, 7
      %v1746 = vsub.s32 0, %v1745
      %v1747 = vrot.slane %v1742, %v1746
      %v1750 = vsel %vm1530, %v1737, 0
      %v1753 = vsel %vm1530, %v1738, 0
      %1755 = vmatprep.subr.mxu0 0.0
      %1756 = vmatpush1.msra.mxu0 0.0
      %1757 = vmatprep.subr.mxu0 0.0
      %1758 = vmatpush1.msra.mxu0 0.0
      %1759 = vmatprep.subr.mxu0 0.0
      %1760 = vmatpush1.msra.mxu0 0.0
      %1761 = vmatprep.subr.mxu0 0.0
      %1762 = vmatpush1.msra.mxu0 0.0
      %1763 = vmatprep.subr.mxu0 0.0
      %1764 = vmatpush1.msra.mxu0 0.0
      %1765 = vmatprep.subr.mxu0 0.0
      %1766 = vmatpush1.msra.mxu0 0.0
      %1767 = vmatprep.subr.mxu0 0.0
      %1768 = vmatpush1.msra.mxu0 0.0
      %1769 = vmatprep.subr.mxu0 0.0
      %1770 = vmatpush1.msra.mxu0 0.0
      %1771 = vmatprep.subr.mxu0 0.0
      %1772 = vmatpush1.msra.mxu0 0.0
      %1773 = vmatprep.subr.mxu0 0.0
      %1774 = vmatpush1.msra.mxu0 0.0
      %1775 = vmatprep.subr.mxu0 0.0
      %1776 = vmatpush1.msra.mxu0 0.0
      %1777 = vmatprep.subr.mxu0 0.0
      %1778 = vmatpush1.msra.mxu0 0.0
      %1779 = vmatprep.subr.mxu0 0.0
      %1780 = vmatpush1.msra.mxu0 0.0
      %1781 = vmatprep.subr.mxu0 0.0
      %1782 = vmatpush1.msra.mxu0 %v1741
      %1783 = vmatprep.subr.mxu0 0.0
      %1784 = vmatpush1.msra.mxu0 %v1740
      %1785 = vmatprep.subr.mxu0 0.0
      %1786 = vmatpush1.msra.mxu0 %v1739
      %1787 = vmatprep.subr.mxu0 0.0
      %1788 = vmatpush2.msra.mxu0 0.0
      %1789 = vmatprep.subr.mxu0 0.0
      %1790 = vmatpush2.msra.mxu0 0.0
      %1791 = vmatprep.subr.mxu0 0.0
      %1792 = vmatpush2.msra.mxu0 0.0
      %1793 = vmatprep.subr.mxu0 0.0
      %1794 = vmatpush2.msra.mxu0 0.0
      %1795 = vmatprep.subr.mxu0 0.0
      %1796 = vmatpush2.msra.mxu0 0.0
      %1797 = vmatprep.subr.mxu0 0.0
      %1798 = vmatpush2.msra.mxu0 0.0
      %1799 = vmatprep.subr.mxu0 0.0
      %1800 = vmatpush2.msra.mxu0 0.0
      %1801 = vmatprep.subr.mxu0 0.0
      %1802 = vmatpush2.msra.mxu0 0.0
      %1803 = vmatprep.subr.mxu0 0.0
      %1804 = vmatpush2.msra.mxu0 0.0
      %1805 = vmatprep.subr.mxu0 0.0
      %1806 = vmatpush2.msra.mxu0 0.0
      %1807 = vmatprep.subr.mxu0 0.0
      %1808 = vmatpush2.msra.mxu0 0.0
      %1809 = vmatprep.subr.mxu0 0.0
      %1810 = vmatpush2.msra.mxu0 0.0
      %1811 = vmatprep.subr.mxu0 0.0
      %1812 = vmatpush2.msra.mxu0 0.0
      %1813 = vmatprep.subr.mxu0 0.0
      %1814 = vmatpush2.msra.mxu0 0.0
      %1815 = vmatprep.subr.mxu0 0.0
      %1816 = vmatpush2.msra.mxu0 0.0
      %1817 = vmatprep.subr.mxu0 0.0
      %1818 = vmatpush2.msra.mxu0 0.0
      %1819 = vmatprep.mubr.f32.mxu0 0.0
      %1820 = vmatmul.mubr.f32.gmra.mxu0 %v1750
      %v1821 = vpop.f32.mrf.mxu0
      %v1822 = vadd.f32 %v1747, %v1821
      %v1823 = vpop.f32.mrf.mxu0
      %1824 = vmatprep.mubr.f32.mxu0 0.0
      %1825 = vmatmul.mubr.f32.gmra.mxu0 %v1753
      %v1826 = vpop.f32.mrf.mxu0
      %v1827 = vadd.f32 %v1747, %v1826
      %v1828 = vpop.f32.mrf.mxu0
      %1829 = vdwg.mxu0
      %v1830 = vmax.f32 %v1822, 0.0
      %v1831 = vmax.f32 %v1827, 0.0
      %v1832 = vld [vmem:[%s43] sm:$0xff]
      %v1833 = vld [vmem:[%s43 + $0x8] sm:$0xff]
      %v1834 = vld [vmem:[%s43 + $0x10] sm:$0xff]
      %v1835 = vld [vmem:[%s43 + $0x18] sm:$0xff]
      %v1837 = vsel %vm1413, %v1832, 0
      %v1840 = vsel %vm1413, %v1833, 0
      %v1843 = vsel %vm1413, %v1834, 0
      %v1846 = vsel %vm1413, %v1835, 0
      %1848 = vmatprep.subr.mxu0 0.0
      %1849 = vmatpush1.msra.mxu0 0.0
      %1850 = vmatprep.subr.mxu0 0.0
      %1851 = vmatpush1.msra.mxu0 0.0
      %1852 = vmatprep.subr.mxu0 0.0
      %1853 = vmatpush1.msra.mxu0 0.0
      %1854 = vmatprep.subr.mxu0 0.0
      %1855 = vmatpush1.msra.mxu0 0.0
      %1856 = vmatprep.subr.mxu0 0.0
      %1857 = vmatpush1.msra.mxu0 0.0
      %1858 = vmatprep.subr.mxu0 0.0
      %1859 = vmatpush1.msra.mxu0 0.0
      %1860 = vmatprep.subr.mxu0 0.0
      %1861 = vmatpush1.msra.mxu0 0.0
      %1862 = vmatprep.subr.mxu0 0.0
      %1863 = vmatpush1.msra.mxu0 0.0
      %1864 = vmatprep.subr.mxu0 0.0
      %1865 = vmatpush1.msra.mxu0 0.0
      %1866 = vmatprep.subr.mxu0 0.0
      %1867 = vmatpush1.msra.mxu0 0.0
      %1868 = vmatprep.subr.mxu0 0.0
      %1869 = vmatpush1.msra.mxu0 0.0
      %1870 = vmatprep.subr.mxu0 0.0
      %1871 = vmatpush1.msra.mxu0 0.0
      %1872 = vmatprep.subr.mxu0 0.0
      %1873 = vmatpush1.msra.mxu0 0.0
      %1874 = vmatprep.subr.mxu0 0.0
      %1875 = vmatpush1.msra.mxu0 0.0
      %1876 = vmatprep.subr.mxu0 0.0
      %1877 = vmatpush1.msra.mxu0 %v1831
      %1878 = vmatprep.subr.mxu0 0.0
      %1879 = vmatpush1.msra.mxu0 %v1830
      %1880 = vmatprep.subr.mxu0 0.0
      %1881 = vmatpush2.msra.mxu0 0.0
      %1882 = vmatprep.subr.mxu0 0.0
      %1883 = vmatpush2.msra.mxu0 0.0
      %1884 = vmatprep.subr.mxu0 0.0
      %1885 = vmatpush2.msra.mxu0 0.0
      %1886 = vmatprep.subr.mxu0 0.0
      %1887 = vmatpush2.msra.mxu0 0.0
      %1888 = vmatprep.subr.mxu0 0.0
      %1889 = vmatpush2.msra.mxu0 0.0
      %1890 = vmatprep.subr.mxu0 0.0
      %1891 = vmatpush2.msra.mxu0 0.0
      %1892 = vmatprep.subr.mxu0 0.0
      %1893 = vmatpush2.msra.mxu0 0.0
      %1894 = vmatprep.subr.mxu0 0.0
      %1895 = vmatpush2.msra.mxu0 0.0
      %1896 = vmatprep.subr.mxu0 0.0
      %1897 = vmatpush2.msra.mxu0 0.0
      %1898 = vmatprep.subr.mxu0 0.0
      %1899 = vmatpush2.msra.mxu0 0.0
      %1900 = vmatprep.subr.mxu0 0.0
      %1901 = vmatpush2.msra.mxu0 0.0
      %1902 = vmatprep.subr.mxu0 0.0
      %1903 = vmatpush2.msra.mxu0 0.0
      %1904 = vmatprep.subr.mxu0 0.0
      %1905 = vmatpush2.msra.mxu0 0.0
      %1906 = vmatprep.subr.mxu0 0.0
      %1907 = vmatpush2.msra.mxu0 0.0
      %1908 = vmatprep.subr.mxu0 0.0
      %1909 = vmatpush2.msra.mxu0 0.0
      %1910 = vmatprep.subr.mxu0 0.0
      %1911 = vmatpush2.msra.mxu0 0.0
      %1912 = vmatprep.mubr.f32.mxu0 0.0
      %1913 = vmatmul.mubr.f32.gmra.mxu0 %v1837
      %v1914 = vpop.f32.mrf.mxu0
      %v1915 = vadd.f32 0.0, %v1914
      %v1916 = vpop.f32.mrf.mxu0
      %1917 = vmatprep.mubr.f32.mxu0 0.0
      %1918 = vmatmul.mubr.f32.gmra.mxu0 %v1840
      %v1919 = vpop.f32.mrf.mxu0
      %v1920 = vadd.f32 0.0, %v1919
      %v1921 = vpop.f32.mrf.mxu0
      %1922 = vmatprep.mubr.f32.mxu0 0.0
      %1923 = vmatmul.mubr.f32.gmra.mxu0 %v1843
      %v1924 = vpop.f32.mrf.mxu0
      %v1925 = vadd.f32 0.0, %v1924
      %v1926 = vpop.f32.mrf.mxu0
      %1927 = vmatprep.mubr.f32.mxu0 0.0
      %1928 = vmatmul.mubr.f32.gmra.mxu0 %v1846
      %v1929 = vpop.f32.mrf.mxu0
      %v1930 = vadd.f32 0.0, %v1929
      %v1931 = vpop.f32.mrf.mxu0
      %1932 = vdwg.mxu0
      %v1933 = vmax.f32 %v1915, %v1920
      %v1934 = vmax.f32 %v1925, %v1930
      %v1935 = vmax.f32 %v1933, %v1934
      %v1936 = vld [vmem:[%s5] sm:$0xff]
      %v1937 = vld [vmem:[%s5 + $0x8] sm:$0xff]
      %v1939 = vsel %vm1734, %v1936, 0
      %v1942 = vsel %vm1734, %v1937, 0
      %1944 = vmatprep.subr.mxu0 0.0
      %1945 = vmatpush1.msra.mxu0 0.0
      %1946 = vmatprep.subr.mxu0 0.0
      %1947 = vmatpush1.msra.mxu0 0.0
      %1948 = vmatprep.subr.mxu0 0.0
      %1949 = vmatpush1.msra.mxu0 0.0
      %1950 = vmatprep.subr.mxu0 0.0
      %1951 = vmatpush1.msra.mxu0 0.0
      %1952 = vmatprep.subr.mxu0 0.0
      %1953 = vmatpush1.msra.mxu0 0.0
      %1954 = vmatprep.subr.mxu0 0.0
      %1955 = vmatpush1.msra.mxu0 0.0
      %1956 = vmatprep.subr.mxu0 0.0
      %1957 = vmatpush1.msra.mxu0 0.0
      %1958 = vmatprep.subr.mxu0 0.0
      %1959 = vmatpush1.msra.mxu0 0.0
      %1960 = vmatprep.subr.mxu0 0.0
      %1961 = vmatpush1.msra.mxu0 0.0
      %1962 = vmatprep.subr.mxu0 0.0
      %1963 = vmatpush1.msra.mxu0 0.0
      %1964 = vmatprep.subr.mxu0 0.0
      %1965 = vmatpush1.msra.mxu0 0.0
      %1966 = vmatprep.subr.mxu0 0.0
      %1967 = vmatpush1.msra.mxu0 0.0
      %1968 = vmatprep.subr.mxu0 0.0
      %1969 = vmatpush1.msra.mxu0 0.0
      %1970 = vmatprep.subr.mxu0 0.0
      %1971 = vmatpush1.msra.mxu0 0.0
      %1972 = vmatprep.subr.mxu0 0.0
      %1973 = vmatpush1.msra.mxu0 0.0
      %1974 = vmatprep.subr.mxu0 0.0
      %1975 = vmatpush1.msra.mxu0 %v1935
      %1976 = vmatprep.subr.mxu0 0.0
      %1977 = vmatpush2.msra.mxu0 0.0
      %1978 = vmatprep.subr.mxu0 0.0
      %1979 = vmatpush2.msra.mxu0 0.0
      %1980 = vmatprep.subr.mxu0 0.0
      %1981 = vmatpush2.msra.mxu0 0.0
      %1982 = vmatprep.subr.mxu0 0.0
      %1983 = vmatpush2.msra.mxu0 0.0
      %1984 = vmatprep.subr.mxu0 0.0
      %1985 = vmatpush2.msra.mxu0 0.0
      %1986 = vmatprep.subr.mxu0 0.0
      %1987 = vmatpush2.msra.mxu0 0.0
      %1988 = vmatprep.subr.mxu0 0.0
      %1989 = vmatpush2.msra.mxu0 0.0
      %1990 = vmatprep.subr.mxu0 0.0
      %1991 = vmatpush2.msra.mxu0 0.0
      %1992 = vmatprep.subr.mxu0 0.0
      %1993 = vmatpush2.msra.mxu0 0.0
      %1994 = vmatprep.subr.mxu0 0.0
      %1995 = vmatpush2.msra.mxu0 0.0
      %1996 = vmatprep.subr.mxu0 0.0
      %1997 = vmatpush2.msra.mxu0 0.0
      %1998 = vmatprep.subr.mxu0 0.0
      %1999 = vmatpush2.msra.mxu0 0.0
      %2000 = vmatprep.subr.mxu0 0.0
      %2001 = vmatpush2.msra.mxu0 0.0
      %2002 = vmatprep.subr.mxu0 0.0
      %2003 = vmatpush2.msra.mxu0 0.0
      %2004 = vmatprep.subr.mxu0 0.0
      %2005 = vmatpush2.msra.mxu0 0.0
      %2006 = vmatprep.subr.mxu0 0.0
      %2007 = vmatpush2.msra.mxu0 0.0
      %2008 = vmatprep.mubr.f32.mxu0 0.0
      %2009 = vmatmul.mubr.f32.gmra.mxu0 %v1939
      %v2010 = vpop.f32.mrf.mxu0
      %v2011 = vadd.f32 0.0, %v2010
      %v2012 = vpop.f32.mrf.mxu0
      %2013 = vmatprep.mubr.f32.mxu0 0.0
      %2014 = vmatmul.mubr.f32.gmra.mxu0 %v1942
      %v2015 = vpop.f32.mrf.mxu0
      %v2016 = vadd.f32 0.0, %v2015
      %v2017 = vpop.f32.mrf.mxu0
      %2018 = vdwg.mxu0
      %2020 = vrot.lane.b32.xlu0 %v2011, 8
      %v2021 = vpop.permute.xlu0 %2020
      %2024 = vrot.lane.b32.xlu0 %v2016, 16
      %v2025 = vpop.permute.xlu0 %2024
      %v2027 = vsel %vm1734, %v1935, %v2021
      %v2028 = vsel %vm1413, %v2027, %v2025
      %v2029 = vld [vmem:[%s19] sm:$0xff]
      %v2030 = vld [vmem:[%s19 + $0x8] sm:$0xff]
      %v2031 = vld [vmem:[%s19 + $0x10] sm:$0xff]
      %v2032 = vld [vmem:[%s21] sm:$0x1]
      %v2034 = vlaneseq
      %v2035 = vshrl.u32 %v2034, 7
      %v2036 = vsub.s32 0, %v2035
      %v2037 = vrot.slane %v2032, %v2036
      %v2040 = vsel %vm1530, %v2028, 0
      %2042 = vmatprep.subr.mxu0 0.0
      %2043 = vmatpush1.msra.mxu0 0.0
      %2044 = vmatprep.subr.mxu0 0.0
      %2045 = vmatpush1.msra.mxu0 0.0
      %2046 = vmatprep.subr.mxu0 0.0
      %2047 = vmatpush1.msra.mxu0 0.0
      %2048 = vmatprep.subr.mxu0 0.0
      %2049 = vmatpush1.msra.mxu0 0.0
      %2050 = vmatprep.subr.mxu0 0.0
      %2051 = vmatpush1.msra.mxu0 0.0
      %2052 = vmatprep.subr.mxu0 0.0
      %2053 = vmatpush1.msra.mxu0 0.0
      %2054 = vmatprep.subr.mxu0 0.0
      %2055 = vmatpush1.msra.mxu0 0.0
      %2056 = vmatprep.subr.mxu0 0.0
      %2057 = vmatpush1.msra.mxu0 0.0
      %2058 = vmatprep.subr.mxu0 0.0
      %2059 = vmatpush1.msra.mxu0 0.0
      %2060 = vmatprep.subr.mxu0 0.0
      %2061 = vmatpush1.msra.mxu0 0.0
      %2062 = vmatprep.subr.mxu0 0.0
      %2063 = vmatpush1.msra.mxu0 0.0
      %2064 = vmatprep.subr.mxu0 0.0
      %2065 = vmatpush1.msra.mxu0 0.0
      %2066 = vmatprep.subr.mxu0 0.0
      %2067 = vmatpush1.msra.mxu0 0.0
      %2068 = vmatprep.subr.mxu0 0.0
      %2069 = vmatpush1.msra.mxu0 %v2031
      %2070 = vmatprep.subr.mxu0 0.0
      %2071 = vmatpush1.msra.mxu0 %v2030
      %2072 = vmatprep.subr.mxu0 0.0
      %2073 = vmatpush1.msra.mxu0 %v2029
      %2074 = vmatprep.subr.mxu0 0.0
      %2075 = vmatpush2.msra.mxu0 0.0
      %2076 = vmatprep.subr.mxu0 0.0
      %2077 = vmatpush2.msra.mxu0 0.0
      %2078 = vmatprep.subr.mxu0 0.0
      %2079 = vmatpush2.msra.mxu0 0.0
      %2080 = vmatprep.subr.mxu0 0.0
      %2081 = vmatpush2.msra.mxu0 0.0
      %2082 = vmatprep.subr.mxu0 0.0
      %2083 = vmatpush2.msra.mxu0 0.0
      %2084 = vmatprep.subr.mxu0 0.0
      %2085 = vmatpush2.msra.mxu0 0.0
      %2086 = vmatprep.subr.mxu0 0.0
      %2087 = vmatpush2.msra.mxu0 0.0
      %2088 = vmatprep.subr.mxu0 0.0
      %2089 = vmatpush2.msra.mxu0 0.0
      %2090 = vmatprep.subr.mxu0 0.0
      %2091 = vmatpush2.msra.mxu0 0.0
      %2092 = vmatprep.subr.mxu0 0.0
      %2093 = vmatpush2.msra.mxu0 0.0
      %2094 = vmatprep.subr.mxu0 0.0
      %2095 = vmatpush2.msra.mxu0 0.0
      %2096 = vmatprep.subr.mxu0 0.0
      %2097 = vmatpush2.msra.mxu0 0.0
      %2098 = vmatprep.subr.mxu0 0.0
      %2099 = vmatpush2.msra.mxu0 0.0
      %2100 = vmatprep.subr.mxu0 0.0
      %2101 = vmatpush2.msra.mxu0 0.0
      %2102 = vmatprep.subr.mxu0 0.0
      %2103 = vmatpush2.msra.mxu0 0.0
      %2104 = vmatprep.subr.mxu0 0.0
      %2105 = vmatpush2.msra.mxu0 0.0
      %2106 = vmatprep.mubr.f32.mxu0 0.0
      %2107 = vmatmul.mubr.f32.gmra.mxu0 %v2040
      %v2108 = vpop.f32.mrf.mxu0
      %v2109 = vadd.f32 %v2037, %v2108
      %v2110 = vpop.f32.mrf.mxu0
      %2111 = vdwg.mxu0
      %v2112 = vmax.f32 %v2109, 0.0
      %2113 = vmatprep.subr.mxu0 0.0
      %2114 = vmatpush1.msra.mxu0 0.0
      %2115 = vmatprep.subr.mxu0 0.0
      %2116 = vmatpush1.msra.mxu0 0.0
      %2117 = vmatprep.subr.mxu0 0.0
      %2118 = vmatpush1.msra.mxu0 0.0
      %2119 = vmatprep.subr.mxu0 0.0
      %2120 = vmatpush1.msra.mxu0 0.0
      %2121 = vmatprep.subr.mxu0 0.0
      %2122 = vmatpush1.msra.mxu0 0.0
      %2123 = vmatprep.subr.mxu0 0.0
      %2124 = vmatpush1.msra.mxu0 0.0
      %2125 = vmatprep.subr.mxu0 0.0
      %2126 = vmatpush1.msra.mxu0 0.0
      %2127 = vmatprep.subr.mxu0 0.0
      %2128 = vmatpush1.msra.mxu0 0.0
      %2129 = vmatprep.subr.mxu0 0.0
      %2130 = vmatpush1.msra.mxu0 0.0
      %2131 = vmatprep.subr.mxu0 0.0
      %2132 = vmatpush1.msra.mxu0 0.0
      %2133 = vmatprep.subr.mxu0 0.0
      %2134 = vmatpush1.msra.mxu0 0.0
      %2135 = vmatprep.subr.mxu0 0.0
      %2136 = vmatpush1.msra.mxu0 0.0
      %2137 = vmatprep.subr.mxu0 0.0
      %2138 = vmatpush1.msra.mxu0 0.0
      %2139 = vmatprep.subr.mxu0 0.0
      %2140 = vmatpush1.msra.mxu0 0.0
      %2141 = vmatprep.subr.mxu0 0.0
      %2142 = vmatpush1.msra.mxu0 0.0
      %2143 = vmatprep.subr.mxu0 0.0
      %2144 = vmatpush1.msra.mxu0 %v2112
      %2145 = vmatprep.subr.mxu0 0.0
      %2146 = vmatpush2.msra.mxu0 0.0
      %2147 = vmatprep.subr.mxu0 0.0
      %2148 = vmatpush2.msra.mxu0 0.0
      %2149 = vmatprep.subr.mxu0 0.0
      %2150 = vmatpush2.msra.mxu0 0.0
      %2151 = vmatprep.subr.mxu0 0.0
      %2152 = vmatpush2.msra.mxu0 0.0
      %2153 = vmatprep.subr.mxu0 0.0
      %2154 = vmatpush2.msra.mxu0 0.0
      %2155 = vmatprep.subr.mxu0 0.0
      %2156 = vmatpush2.msra.mxu0 0.0
      %2157 = vmatprep.subr.mxu0 0.0
      %2158 = vmatpush2.msra.mxu0 0.0
      %2159 = vmatprep.subr.mxu0 0.0
      %2160 = vmatpush2.msra.mxu0 0.0
      %2161 = vmatprep.subr.mxu0 0.0
      %2162 = vmatpush2.msra.mxu0 0.0
      %2163 = vmatprep.subr.mxu0 0.0
      %2164 = vmatpush2.msra.mxu0 0.0
      %2165 = vmatprep.subr.mxu0 0.0
      %2166 = vmatpush2.msra.mxu0 0.0
      %2167 = vmatprep.subr.mxu0 0.0
      %2168 = vmatpush2.msra.mxu0 0.0
      %2169 = vmatprep.subr.mxu0 0.0
      %2170 = vmatpush2.msra.mxu0 0.0
      %2171 = vmatprep.subr.mxu0 0.0
      %2172 = vmatpush2.msra.mxu0 0.0
      %2173 = vmatprep.subr.mxu0 0.0
      %2174 = vmatpush2.msra.mxu0 0.0
      %2175 = vmatprep.subr.mxu0 0.0
      %2176 = vmatpush2.msra.mxu0 0.0
      %2177 = vmatprep.mubr.f32.mxu0 0.0
      %2178 = vmatmul.mubr.f32.gmra.mxu0 %v1939
      %v2179 = vpop.f32.mrf.mxu0
      %v2180 = vadd.f32 0.0, %v2179
      %v2181 = vpop.f32.mrf.mxu0
      %2182 = vmatprep.mubr.f32.mxu0 0.0
      %2183 = vmatmul.mubr.f32.gmra.mxu0 %v1942
      %v2184 = vpop.f32.mrf.mxu0
      %v2185 = vadd.f32 0.0, %v2184
      %v2186 = vpop.f32.mrf.mxu0
      %2187 = vdwg.mxu0
      %2189 = vrot.lane.b32.xlu0 %v2180, 16
      %v2190 = vpop.permute.xlu0 %2189
      %2193 = vrot.lane.b32.xlu0 %v2185, 32
      %v2194 = vpop.permute.xlu0 %2193
      %v2196 = vsel %vm1413, %v2112, %v2190
      %vm2197 = vcmask 261120
      %v2198 = vsel %vm2197, %v2196, %v2194
      %v2199 = vld [vmem:[%s23] sm:$0xff]
      %v2200 = vld [vmem:[%s23 + $0x8] sm:$0xff]
      %v2201 = vld [vmem:[%s23 + $0x10] sm:$0xff]
      %v2202 = vld [vmem:[%s23 + $0x18] sm:$0xff]
      %v2203 = vld [vmem:[%s23 + $0x20] sm:$0xff]
      %v2204 = vld [vmem:[%s23 + $0x28] sm:$0xff]
      %v2205 = vld [vmem:[%s25] sm:$0x1]
      %v2207 = vlaneseq
      %v2208 = vshrl.u32 %v2207, 7
      %v2209 = vsub.s32 0, %v2208
      %v2210 = vrot.slane %v2205, %v2209
      %vm2212 = vcmask 392192
      %v2214 = vsel %vm2212, %v2198, 0
      %2216 = vmatprep.subr.mxu0 0.0
      %2217 = vmatpush1.msra.mxu0 0.0
      %2218 = vmatprep.subr.mxu0 0.0
      %2219 = vmatpush1.msra.mxu0 0.0
      %2220 = vmatprep.subr.mxu0 0.0
      %2221 = vmatpush1.msra.mxu0 0.0
      %2222 = vmatprep.subr.mxu0 0.0
      %2223 = vmatpush1.msra.mxu0 0.0
      %2224 = vmatprep.subr.mxu0 0.0
      %2225 = vmatpush1.msra.mxu0 0.0
      %2226 = vmatprep.subr.mxu0 0.0
      %2227 = vmatpush1.msra.mxu0 0.0
      %2228 = vmatprep.subr.mxu0 0.0
      %2229 = vmatpush1.msra.mxu0 0.0
      %2230 = vmatprep.subr.mxu0 0.0
      %2231 = vmatpush1.msra.mxu0 0.0
      %2232 = vmatprep.subr.mxu0 0.0
      %2233 = vmatpush1.msra.mxu0 0.0
      %2234 = vmatprep.subr.mxu0 0.0
      %2235 = vmatpush1.msra.mxu0 0.0
      %2236 = vmatprep.subr.mxu0 0.0
      %2237 = vmatpush1.msra.mxu0 %v2204
      %2238 = vmatprep.subr.mxu0 0.0
      %2239 = vmatpush1.msra.mxu0 %v2203
      %2240 = vmatprep.subr.mxu0 0.0
      %2241 = vmatpush1.msra.mxu0 %v2202
      %2242 = vmatprep.subr.mxu0 0.0
      %2243 = vmatpush1.msra.mxu0 %v2201
      %2244 = vmatprep.subr.mxu0 0.0
      %2245 = vmatpush1.msra.mxu0 %v2200
      %2246 = vmatprep.subr.mxu0 0.0
      %2247 = vmatpush1.msra.mxu0 %v2199
      %2248 = vmatprep.subr.mxu0 0.0
      %2249 = vmatpush2.msra.mxu0 0.0
      %2250 = vmatprep.subr.mxu0 0.0
      %2251 = vmatpush2.msra.mxu0 0.0
      %2252 = vmatprep.subr.mxu0 0.0
      %2253 = vmatpush2.msra.mxu0 0.0
      %2254 = vmatprep.subr.mxu0 0.0
      %2255 = vmatpush2.msra.mxu0 0.0
      %2256 = vmatprep.subr.mxu0 0.0
      %2257 = vmatpush2.msra.mxu0 0.0
      %2258 = vmatprep.subr.mxu0 0.0
      %2259 = vmatpush2.msra.mxu0 0.0
      %2260 = vmatprep.subr.mxu0 0.0
      %2261 = vmatpush2.msra.mxu0 0.0
      %2262 = vmatprep.subr.mxu0 0.0
      %2263 = vmatpush2.msra.mxu0 0.0
      %2264 = vmatprep.subr.mxu0 0.0
      %2265 = vmatpush2.msra.mxu0 0.0
      %2266 = vmatprep.subr.mxu0 0.0
      %2267 = vmatpush2.msra.mxu0 0.0
      %2268 = vmatprep.subr.mxu0 0.0
      %2269 = vmatpush2.msra.mxu0 0.0
      %2270 = vmatprep.subr.mxu0 0.0
      %2271 = vmatpush2.msra.mxu0 0.0
      %2272 = vmatprep.subr.mxu0 0.0
      %2273 = vmatpush2.msra.mxu0 0.0
      %2274 = vmatprep.subr.mxu0 0.0
      %2275 = vmatpush2.msra.mxu0 0.0
      %2276 = vmatprep.subr.mxu0 0.0
      %2277 = vmatpush2.msra.mxu0 0.0
      %2278 = vmatprep.subr.mxu0 0.0
      %2279 = vmatpush2.msra.mxu0 0.0
      %2280 = vmatprep.mubr.f32.mxu0 0.0
      %2281 = vmatmul.mubr.f32.gmra.mxu0 %v2214
      %v2282 = vpop.f32.mrf.mxu0
      %v2283 = vadd.f32 %v2210, %v2282
      %v2284 = vpop.f32.mrf.mxu0
      %2285 = vdwg.mxu0
      %v2286 = vmax.f32 %v2283, 0.0
      %v2287 = vld [vmem:[%s45] sm:$0xff]
      %v2288 = vld [vmem:[%s45 + $0x8] sm:$0xff]
      %v2289 = vld [vmem:[%s45 + $0x10] sm:$0xff]
      %v2290 = vld [vmem:[%s45 + $0x18] sm:$0xff]
      %v2292 = vsel %vm1734, %v2287, 0
      %v2295 = vsel %vm1734, %v2288, 0
      %v2298 = vsel %vm1734, %v2289, 0
      %v2301 = vsel %vm1734, %v2290, 0
      %2303 = vmatprep.subr.mxu0 0.0
      %2304 = vmatpush1.msra.mxu0 0.0
      %2305 = vmatprep.subr.mxu0 0.0
      %2306 = vmatpush1.msra.mxu0 0.0
      %2307 = vmatprep.subr.mxu0 0.0
      %2308 = vmatpush1.msra.mxu0 0.0
      %2309 = vmatprep.subr.mxu0 0.0
      %2310 = vmatpush1.msra.mxu0 0.0
      %2311 = vmatprep.subr.mxu0 0.0
      %2312 = vmatpush1.msra.mxu0 0.0
      %2313 = vmatprep.subr.mxu0 0.0
      %2314 = vmatpush1.msra.mxu0 0.0
      %2315 = vmatprep.subr.mxu0 0.0
      %2316 = vmatpush1.msra.mxu0 0.0
      %2317 = vmatprep.subr.mxu0 0.0
      %2318 = vmatpush1.msra.mxu0 0.0
      %2319 = vmatprep.subr.mxu0 0.0
      %2320 = vmatpush1.msra.mxu0 0.0
      %2321 = vmatprep.subr.mxu0 0.0
      %2322 = vmatpush1.msra.mxu0 0.0
      %2323 = vmatprep.subr.mxu0 0.0
      %2324 = vmatpush1.msra.mxu0 0.0
      %2325 = vmatprep.subr.mxu0 0.0
      %2326 = vmatpush1.msra.mxu0 0.0
      %2327 = vmatprep.subr.mxu0 0.0
      %2328 = vmatpush1.msra.mxu0 0.0
      %2329 = vmatprep.subr.mxu0 0.0
      %2330 = vmatpush1.msra.mxu0 0.0
      %2331 = vmatprep.subr.mxu0 0.0
      %2332 = vmatpush1.msra.mxu0 0.0
      %2333 = vmatprep.subr.mxu0 0.0
      %2334 = vmatpush1.msra.mxu0 %v2286
      %2335 = vmatprep.subr.mxu0 0.0
      %2336 = vmatpush2.msra.mxu0 0.0
      %2337 = vmatprep.subr.mxu0 0.0
      %2338 = vmatpush2.msra.mxu0 0.0
      %2339 = vmatprep.subr.mxu0 0.0
      %2340 = vmatpush2.msra.mxu0 0.0
      %2341 = vmatprep.subr.mxu0 0.0
      %2342 = vmatpush2.msra.mxu0 0.0
      %2343 = vmatprep.subr.mxu0 0.0
      %2344 = vmatpush2.msra.mxu0 0.0
      %2345 = vmatprep.subr.mxu0 0.0
      %2346 = vmatpush2.msra.mxu0 0.0
      %2347 = vmatprep.subr.mxu0 0.0
      %2348 = vmatpush2.msra.mxu0 0.0
      %2349 = vmatprep.subr.mxu0 0.0
      %2350 = vmatpush2.msra.mxu0 0.0
      %2351 = vmatprep.subr.mxu0 0.0
      %2352 = vmatpush2.msra.mxu0 0.0
      %2353 = vmatprep.subr.mxu0 0.0
      %2354 = vmatpush2.msra.mxu0 0.0
      %2355 = vmatprep.subr.mxu0 0.0
      %2356 = vmatpush2.msra.mxu0 0.0
      %2357 = vmatprep.subr.mxu0 0.0
      %2358 = vmatpush2.msra.mxu0 0.0
      %2359 = vmatprep.subr.mxu0 0.0
      %2360 = vmatpush2.msra.mxu0 0.0
      %2361 = vmatprep.subr.mxu0 0.0
      %2362 = vmatpush2.msra.mxu0 0.0
      %2363 = vmatprep.subr.mxu0 0.0
      %2364 = vmatpush2.msra.mxu0 0.0
      %2365 = vmatprep.subr.mxu0 0.0
      %2366 = vmatpush2.msra.mxu0 0.0
      %2367 = vmatprep.mubr.f32.mxu0 0.0
      %2368 = vmatmul.mubr.f32.gmra.mxu0 %v2292
      %v2369 = vpop.f32.mrf.mxu0
      %v2370 = vadd.f32 0.0, %v2369
      %v2371 = vpop.f32.mrf.mxu0
      %2372 = vmatprep.mubr.f32.mxu0 0.0
      %2373 = vmatmul.mubr.f32.gmra.mxu0 %v2295
      %v2374 = vpop.f32.mrf.mxu0
      %v2375 = vadd.f32 0.0, %v2374
      %v2376 = vpop.f32.mrf.mxu0
      %2377 = vmatprep.mubr.f32.mxu0 0.0
      %2378 = vmatmul.mubr.f32.gmra.mxu0 %v2298
      %v2379 = vpop.f32.mrf.mxu0
      %v2380 = vadd.f32 0.0, %v2379
      %v2381 = vpop.f32.mrf.mxu0
      %2382 = vmatprep.mubr.f32.mxu0 0.0
      %2383 = vmatmul.mubr.f32.gmra.mxu0 %v2301
      %v2384 = vpop.f32.mrf.mxu0
      %v2385 = vadd.f32 0.0, %v2384
      %v2386 = vpop.f32.mrf.mxu0
      %2387 = vdwg.mxu0
      %v2388 = vmax.f32 %v2370, %v2375
      %v2389 = vmax.f32 %v2380, %v2385
      %v2390 = vmax.f32 %v2388, %v2389
      %v2391 = vld [vmem:[%s7] sm:$0xff]
      %v2392 = vld [vmem:[%s7 + $0x8] sm:$0xff]
      %v2394 = vsel %vm1734, %v2391, 0
      %v2397 = vsel %vm1734, %v2392, 0
      %2399 = vmatprep.subr.mxu0 0.0
      %2400 = vmatpush1.msra.mxu0 0.0
      %2401 = vmatprep.subr.mxu0 0.0
      %2402 = vmatpush1.msra.mxu0 0.0
      %2403 = vmatprep.subr.mxu0 0.0
      %2404 = vmatpush1.msra.mxu0 0.0
      %2405 = vmatprep.subr.mxu0 0.0
      %2406 = vmatpush1.msra.mxu0 0.0
      %2407 = vmatprep.subr.mxu0 0.0
      %2408 = vmatpush1.msra.mxu0 0.0
      %2409 = vmatprep.subr.mxu0 0.0
      %2410 = vmatpush1.msra.mxu0 0.0
      %2411 = vmatprep.subr.mxu0 0.0
      %2412 = vmatpush1.msra.mxu0 0.0
      %2413 = vmatprep.subr.mxu0 0.0
      %2414 = vmatpush1.msra.mxu0 0.0
      %2415 = vmatprep.subr.mxu0 0.0
      %2416 = vmatpush1.msra.mxu0 0.0
      %2417 = vmatprep.subr.mxu0 0.0
      %2418 = vmatpush1.msra.mxu0 0.0
      %2419 = vmatprep.subr.mxu0 0.0
      %2420 = vmatpush1.msra.mxu0 0.0
      %2421 = vmatprep.subr.mxu0 0.0
      %2422 = vmatpush1.msra.mxu0 0.0
      %2423 = vmatprep.subr.mxu0 0.0
      %2424 = vmatpush1.msra.mxu0 0.0
      %2425 = vmatprep.subr.mxu0 0.0
      %2426 = vmatpush1.msra.mxu0 0.0
      %2427 = vmatprep.subr.mxu0 0.0
      %2428 = vmatpush1.msra.mxu0 0.0
      %2429 = vmatprep.subr.mxu0 0.0
      %2430 = vmatpush1.msra.mxu0 %v2390
      %2431 = vmatprep.subr.mxu0 0.0
      %2432 = vmatpush2.msra.mxu0 0.0
      %2433 = vmatprep.subr.mxu0 0.0
      %2434 = vmatpush2.msra.mxu0 0.0
      %2435 = vmatprep.subr.mxu0 0.0
      %2436 = vmatpush2.msra.mxu0 0.0
      %2437 = vmatprep.subr.mxu0 0.0
      %2438 = vmatpush2.msra.mxu0 0.0
      %2439 = vmatprep.subr.mxu0 0.0
      %2440 = vmatpush2.msra.mxu0 0.0
      %2441 = vmatprep.subr.mxu0 0.0
      %2442 = vmatpush2.msra.mxu0 0.0
      %2443 = vmatprep.subr.mxu0 0.0
      %2444 = vmatpush2.msra.mxu0 0.0
      %2445 = vmatprep.subr.mxu0 0.0
      %2446 = vmatpush2.msra.mxu0 0.0
      %2447 = vmatprep.subr.mxu0 0.0
      %2448 = vmatpush2.msra.mxu0 0.0
      %2449 = vmatprep.subr.mxu0 0.0
      %2450 = vmatpush2.msra.mxu0 0.0
      %2451 = vmatprep.subr.mxu0 0.0
      %2452 = vmatpush2.msra.mxu0 0.0
      %2453 = vmatprep.subr.mxu0 0.0
      %2454 = vmatpush2.msra.mxu0 0.0
      %2455 = vmatprep.subr.mxu0 0.0
      %2456 = vmatpush2.msra.mxu0 0.0
      %2457 = vmatprep.subr.mxu0 0.0
      %2458 = vmatpush2.msra.mxu0 0.0
      %2459 = vmatprep.subr.mxu0 0.0
      %2460 = vmatpush2.msra.mxu0 0.0
      %2461 = vmatprep.subr.mxu0 0.0
      %2462 = vmatpush2.msra.mxu0 0.0
      %2463 = vmatprep.mubr.f32.mxu0 0.0
      %2464 = vmatmul.mubr.f32.gmra.mxu0 %v2394
      %v2465 = vpop.f32.mrf.mxu0
      %v2466 = vadd.f32 0.0, %v2465
      %v2467 = vpop.f32.mrf.mxu0
      %2468 = vmatprep.mubr.f32.mxu0 0.0
      %2469 = vmatmul.mubr.f32.gmra.mxu0 %v2397
      %v2470 = vpop.f32.mrf.mxu0
      %v2471 = vadd.f32 0.0, %v2470
      %v2472 = vpop.f32.mrf.mxu0
      %2473 = vdwg.mxu0
      %2475 = vrot.lane.b32.xlu0 %v2466, 16
      %v2476 = vpop.permute.xlu0 %2475
      %2479 = vrot.lane.b32.xlu0 %v2471, 32
      %v2480 = vpop.permute.xlu0 %2479
      %v2482 = vsel %vm1413, %v2390, %v2476
      %v2483 = vsel %vm2197, %v2482, %v2480
      %v2484 = vld [vmem:[%s27] sm:$0xff]
      %v2485 = vld [vmem:[%s27 + $0x8] sm:$0xff]
      %v2486 = vld [vmem:[%s27 + $0x10] sm:$0xff]
      %v2487 = vld [vmem:[%s27 + $0x18] sm:$0xff]
      %v2488 = vld [vmem:[%s27 + $0x20] sm:$0xff]
      %v2489 = vld [vmem:[%s27 + $0x28] sm:$0xff]
      %v2490 = vld [vmem:[%s29] sm:$0x1]
      %v2492 = vlaneseq
      %v2493 = vshrl.u32 %v2492, 7
      %v2494 = vsub.s32 0, %v2493
      %v2495 = vrot.slane %v2490, %v2494
      %v2498 = vsel %vm2212, %v2483, 0
      %2500 = vmatprep.subr.mxu0 0.0
      %2501 = vmatpush1.msra.mxu0 0.0
      %2502 = vmatprep.subr.mxu0 0.0
      %2503 = vmatpush1.msra.mxu0 0.0
      %2504 = vmatprep.subr.mxu0 0.0
      %2505 = vmatpush1.msra.mxu0 0.0
      %2506 = vmatprep.subr.mxu0 0.0
      %2507 = vmatpush1.msra.mxu0 0.0
      %2508 = vmatprep.subr.mxu0 0.0
      %2509 = vmatpush1.msra.mxu0 0.0
      %2510 = vmatprep.subr.mxu0 0.0
      %2511 = vmatpush1.msra.mxu0 0.0
      %2512 = vmatprep.subr.mxu0 0.0
      %2513 = vmatpush1.msra.mxu0 0.0
      %2514 = vmatprep.subr.mxu0 0.0
      %2515 = vmatpush1.msra.mxu0 0.0
      %2516 = vmatprep.subr.mxu0 0.0
      %2517 = vmatpush1.msra.mxu0 0.0
      %2518 = vmatprep.subr.mxu0 0.0
      %2519 = vmatpush1.msra.mxu0 0.0
      %2520 = vmatprep.subr.mxu0 0.0
      %2521 = vmatpush1.msra.mxu0 %v2489
      %2522 = vmatprep.subr.mxu0 0.0
      %2523 = vmatpush1.msra.mxu0 %v2488
      %2524 = vmatprep.subr.mxu0 0.0
      %2525 = vmatpush1.msra.mxu0 %v2487
      %2526 = vmatprep.subr.mxu0 0.0
      %2527 = vmatpush1.msra.mxu0 %v2486
      %2528 = vmatprep.subr.mxu0 0.0
      %2529 = vmatpush1.msra.mxu0 %v2485
      %2530 = vmatprep.subr.mxu0 0.0
      %2531 = vmatpush1.msra.mxu0 %v2484
      %2532 = vmatprep.subr.mxu0 0.0
      %2533 = vmatpush2.msra.mxu0 0.0
      %2534 = vmatprep.subr.mxu0 0.0
      %2535 = vmatpush2.msra.mxu0 0.0
      %2536 = vmatprep.subr.mxu0 0.0
      %2537 = vmatpush2.msra.mxu0 0.0
      %2538 = vmatprep.subr.mxu0 0.0
      %2539 = vmatpush2.msra.mxu0 0.0
      %2540 = vmatprep.subr.mxu0 0.0
      %2541 = vmatpush2.msra.mxu0 0.0
      %2542 = vmatprep.subr.mxu0 0.0
      %2543 = vmatpush2.msra.mxu0 0.0
      %2544 = vmatprep.subr.mxu0 0.0
      %2545 = vmatpush2.msra.mxu0 0.0
      %2546 = vmatprep.subr.mxu0 0.0
      %2547 = vmatpush2.msra.mxu0 0.0
      %2548 = vmatprep.subr.mxu0 0.0
      %2549 = vmatpush2.msra.mxu0 0.0
      %2550 = vmatprep.subr.mxu0 0.0
      %2551 = vmatpush2.msra.mxu0 0.0
      %2552 = vmatprep.subr.mxu0 0.0
      %2553 = vmatpush2.msra.mxu0 0.0
      %2554 = vmatprep.subr.mxu0 0.0
      %2555 = vmatpush2.msra.mxu0 0.0
      %2556 = vmatprep.subr.mxu0 0.0
      %2557 = vmatpush2.msra.mxu0 0.0
      %2558 = vmatprep.subr.mxu0 0.0
      %2559 = vmatpush2.msra.mxu0 0.0
      %2560 = vmatprep.subr.mxu0 0.0
      %2561 = vmatpush2.msra.mxu0 0.0
      %2562 = vmatprep.subr.mxu0 0.0
      %2563 = vmatpush2.msra.mxu0 0.0
      %2564 = vmatprep.mubr.f32.mxu0 0.0
      %2565 = vmatmul.mubr.f32.gmra.mxu0 %v2498
      %v2566 = vpop.f32.mrf.mxu0
      %v2567 = vadd.f32 %v2495, %v2566
      %v2568 = vpop.f32.mrf.mxu0
      %2569 = vdwg.mxu0
      %v2570 = vmax.f32 %v2567, 0.0
      %2571 = vmatprep.subr.mxu0 0.0
      %2572 = vmatpush1.msra.mxu0 0.0
      %2573 = vmatprep.subr.mxu0 0.0
      %2574 = vmatpush1.msra.mxu0 0.0
      %2575 = vmatprep.subr.mxu0 0.0
      %2576 = vmatpush1.msra.mxu0 0.0
      %2577 = vmatprep.subr.mxu0 0.0
      %2578 = vmatpush1.msra.mxu0 0.0
      %2579 = vmatprep.subr.mxu0 0.0
      %2580 = vmatpush1.msra.mxu0 0.0
      %2581 = vmatprep.subr.mxu0 0.0
      %2582 = vmatpush1.msra.mxu0 0.0
      %2583 = vmatprep.subr.mxu0 0.0
      %2584 = vmatpush1.msra.mxu0 0.0
      %2585 = vmatprep.subr.mxu0 0.0
      %2586 = vmatpush1.msra.mxu0 0.0
      %2587 = vmatprep.subr.mxu0 0.0
      %2588 = vmatpush1.msra.mxu0 0.0
      %2589 = vmatprep.subr.mxu0 0.0
      %2590 = vmatpush1.msra.mxu0 0.0
      %2591 = vmatprep.subr.mxu0 0.0
      %2592 = vmatpush1.msra.mxu0 0.0
      %2593 = vmatprep.subr.mxu0 0.0
      %2594 = vmatpush1.msra.mxu0 0.0
      %2595 = vmatprep.subr.mxu0 0.0
      %2596 = vmatpush1.msra.mxu0 0.0
      %2597 = vmatprep.subr.mxu0 0.0
      %2598 = vmatpush1.msra.mxu0 0.0
      %2599 = vmatprep.subr.mxu0 0.0
      %2600 = vmatpush1.msra.mxu0 0.0
      %2601 = vmatprep.subr.mxu0 0.0
      %2602 = vmatpush1.msra.mxu0 %v2570
      %2603 = vmatprep.subr.mxu0 0.0
      %2604 = vmatpush2.msra.mxu0 0.0
      %2605 = vmatprep.subr.mxu0 0.0
      %2606 = vmatpush2.msra.mxu0 0.0
      %2607 = vmatprep.subr.mxu0 0.0
      %2608 = vmatpush2.msra.mxu0 0.0
      %2609 = vmatprep.subr.mxu0 0.0
      %2610 = vmatpush2.msra.mxu0 0.0
      %2611 = vmatprep.subr.mxu0 0.0
      %2612 = vmatpush2.msra.mxu0 0.0
      %2613 = vmatprep.subr.mxu0 0.0
      %2614 = vmatpush2.msra.mxu0 0.0
      %2615 = vmatprep.subr.mxu0 0.0
      %2616 = vmatpush2.msra.mxu0 0.0
      %2617 = vmatprep.subr.mxu0 0.0
      %2618 = vmatpush2.msra.mxu0 0.0
      %2619 = vmatprep.subr.mxu0 0.0
      %2620 = vmatpush2.msra.mxu0 0.0
      %2621 = vmatprep.subr.mxu0 0.0
      %2622 = vmatpush2.msra.mxu0 0.0
      %2623 = vmatprep.subr.mxu0 0.0
      %2624 = vmatpush2.msra.mxu0 0.0
      %2625 = vmatprep.subr.mxu0 0.0
      %2626 = vmatpush2.msra.mxu0 0.0
      %2627 = vmatprep.subr.mxu0 0.0
      %2628 = vmatpush2.msra.mxu0 0.0
      %2629 = vmatprep.subr.mxu0 0.0
      %2630 = vmatpush2.msra.mxu0 0.0
      %2631 = vmatprep.subr.mxu0 0.0
      %2632 = vmatpush2.msra.mxu0 0.0
      %2633 = vmatprep.subr.mxu0 0.0
      %2634 = vmatpush2.msra.mxu0 0.0
      %2635 = vmatprep.mubr.f32.mxu0 0.0
      %2636 = vmatmul.mubr.f32.gmra.mxu0 %v2394
      %v2637 = vpop.f32.mrf.mxu0
      %v2638 = vadd.f32 0.0, %v2637
      %v2639 = vpop.f32.mrf.mxu0
      %2640 = vmatprep.mubr.f32.mxu0 0.0
      %2641 = vmatmul.mubr.f32.gmra.mxu0 %v2397
      %v2642 = vpop.f32.mrf.mxu0
      %v2643 = vadd.f32 0.0, %v2642
      %v2644 = vpop.f32.mrf.mxu0
      %2645 = vdwg.mxu0
      %2647 = vrot.lane.b32.xlu0 %v2638, 32
      %v2648 = vpop.permute.xlu0 %2647
      %2651 = vrot.lane.b32.xlu0 %v2643, 64
      %v2652 = vpop.permute.xlu0 %2651
      %v2654 = vsel %vm2197, %v2570, %v2648
      %vm2655 = vcmask 523264
      %v2656 = vsel %vm2655, %v2654, %v2652
      %v2657 = vld [vmem:[%s31] sm:$0xff]
      %v2658 = vld [vmem:[%s31 + $0x8] sm:$0xff]
      %v2659 = vld [vmem:[%s31 + $0x10] sm:$0xff]
      %v2660 = vld [vmem:[%s31 + $0x18] sm:$0xff]
      %v2661 = vld [vmem:[%s31 + $0x20] sm:$0xff]
      %v2662 = vld [vmem:[%s31 + $0x28] sm:$0xff]
      %v2663 = vld [vmem:[%s31 + $0x30] sm:$0xff]
      %v2664 = vld [vmem:[%s31 + $0x38] sm:$0xff]
      %v2665 = vld [vmem:[%s31 + $0x40] sm:$0xff]
      %v2666 = vld [vmem:[%s31 + $0x48] sm:$0xff]
      %v2667 = vld [vmem:[%s31 + $0x50] sm:$0xff]
      %v2668 = vld [vmem:[%s31 + $0x58] sm:$0xff]
      %v2669 = vld [vmem:[%s33] sm:$0x1]
      %v2671 = vlaneseq
      %v2672 = vshrl.u32 %v2671, 7
      %v2673 = vsub.s32 0, %v2672
      %v2674 = vrot.slane %v2669, %v2673
      %vm2676 = vcmask 785408
      %v2678 = vsel %vm2676, %v2656, 0
      %2680 = vmatprep.subr.mxu0 0.0
      %2681 = vmatpush1.msra.mxu0 0.0
      %2682 = vmatprep.subr.mxu0 0.0
      %2683 = vmatpush1.msra.mxu0 0.0
      %2684 = vmatprep.subr.mxu0 0.0
      %2685 = vmatpush1.msra.mxu0 0.0
      %2686 = vmatprep.subr.mxu0 0.0
      %2687 = vmatpush1.msra.mxu0 0.0
      %2688 = vmatprep.subr.mxu0 0.0
      %2689 = vmatpush1.msra.mxu0 %v2668
      %2690 = vmatprep.subr.mxu0 0.0
      %2691 = vmatpush1.msra.mxu0 %v2667
      %2692 = vmatprep.subr.mxu0 0.0
      %2693 = vmatpush1.msra.mxu0 %v2666
      %2694 = vmatprep.subr.mxu0 0.0
      %2695 = vmatpush1.msra.mxu0 %v2665
      %2696 = vmatprep.subr.mxu0 0.0
      %2697 = vmatpush1.msra.mxu0 %v2664
      %2698 = vmatprep.subr.mxu0 0.0
      %2699 = vmatpush1.msra.mxu0 %v2663
      %2700 = vmatprep.subr.mxu0 0.0
      %2701 = vmatpush1.msra.mxu0 %v2662
      %2702 = vmatprep.subr.mxu0 0.0
      %2703 = vmatpush1.msra.mxu0 %v2661
      %2704 = vmatprep.subr.mxu0 0.0
      %2705 = vmatpush1.msra.mxu0 %v2660
      %2706 = vmatprep.subr.mxu0 0.0
      %2707 = vmatpush1.msra.mxu0 %v2659
      %2708 = vmatprep.subr.mxu0 0.0
      %2709 = vmatpush1.msra.mxu0 %v2658
      %2710 = vmatprep.subr.mxu0 0.0
      %2711 = vmatpush1.msra.mxu0 %v2657
      %2712 = vmatprep.subr.mxu0 0.0
      %2713 = vmatpush2.msra.mxu0 0.0
      %2714 = vmatprep.subr.mxu0 0.0
      %2715 = vmatpush2.msra.mxu0 0.0
      %2716 = vmatprep.subr.mxu0 0.0
      %2717 = vmatpush2.msra.mxu0 0.0
      %2718 = vmatprep.subr.mxu0 0.0
      %2719 = vmatpush2.msra.mxu0 0.0
      %2720 = vmatprep.subr.mxu0 0.0
      %2721 = vmatpush2.msra.mxu0 0.0
      %2722 = vmatprep.subr.mxu0 0.0
      %2723 = vmatpush2.msra.mxu0 0.0
      %2724 = vmatprep.subr.mxu0 0.0
      %2725 = vmatpush2.msra.mxu0 0.0
      %2726 = vmatprep.subr.mxu0 0.0
      %2727 = vmatpush2.msra.mxu0 0.0
      %2728 = vmatprep.subr.mxu0 0.0
      %2729 = vmatpush2.msra.mxu0 0.0
      %2730 = vmatprep.subr.mxu0 0.0
      %2731 = vmatpush2.msra.mxu0 0.0
      %2732 = vmatprep.subr.mxu0 0.0
      %2733 = vmatpush2.msra.mxu0 0.0
      %2734 = vmatprep.subr.mxu0 0.0
      %2735 = vmatpush2.msra.mxu0 0.0
      %2736 = vmatprep.subr.mxu0 0.0
      %2737 = vmatpush2.msra.mxu0 0.0
      %2738 = vmatprep.subr.mxu0 0.0
      %2739 = vmatpush2.msra.mxu0 0.0
      %2740 = vmatprep.subr.mxu0 0.0
      %2741 = vmatpush2.msra.mxu0 0.0
      %2742 = vmatprep.subr.mxu0 0.0
      %2743 = vmatpush2.msra.mxu0 0.0
      %2744 = vmatprep.mubr.f32.mxu0 0.0
      %2745 = vmatmul.mubr.f32.gmra.mxu0 %v2678
      %v2746 = vpop.f32.mrf.mxu0
      %v2747 = vadd.f32 %v2674, %v2746
      %v2748 = vpop.f32.mrf.mxu0
      %2749 = vdwg.mxu0
      %v2750 = vmax.f32 %v2747, 0.0
      %v2751 = vld [vmem:[%s47] sm:$0xff]
      %v2752 = vld [vmem:[%s47 + $0x8] sm:$0xff]
      %v2753 = vld [vmem:[%s47 + $0x10] sm:$0xff]
      %v2754 = vld [vmem:[%s47 + $0x18] sm:$0xff]
      %v2756 = vsel %vm1734, %v2751, 0
      %v2759 = vsel %vm1734, %v2752, 0
      %v2762 = vsel %vm1734, %v2753, 0
      %v2765 = vsel %vm1734, %v2754, 0
      %2767 = vmatprep.subr.mxu0 0.0
      %2768 = vmatpush1.msra.mxu0 0.0
      %2769 = vmatprep.subr.mxu0 0.0
      %2770 = vmatpush1.msra.mxu0 0.0
      %2771 = vmatprep.subr.mxu0 0.0
      %2772 = vmatpush1.msra.mxu0 0.0
      %2773 = vmatprep.subr.mxu0 0.0
      %2774 = vmatpush1.msra.mxu0 0.0
      %2775 = vmatprep.subr.mxu0 0.0
      %2776 = vmatpush1.msra.mxu0 0.0
      %2777 = vmatprep.subr.mxu0 0.0
      %2778 = vmatpush1.msra.mxu0 0.0
      %2779 = vmatprep.subr.mxu0 0.0
      %2780 = vmatpush1.msra.mxu0 0.0
      %2781 = vmatprep.subr.mxu0 0.0
      %2782 = vmatpush1.msra.mxu0 0.0
      %2783 = vmatprep.subr.mxu0 0.0
      %2784 = vmatpush1.msra.mxu0 0.0
      %2785 = vmatprep.subr.mxu0 0.0
      %2786 = vmatpush1.msra.mxu0 0.0
      %2787 = vmatprep.subr.mxu0 0.0
      %2788 = vmatpush1.msra.mxu0 0.0
      %2789 = vmatprep.subr.mxu0 0.0
      %2790 = vmatpush1.msra.mxu0 0.0
      %2791 = vmatprep.subr.mxu0 0.0
      %2792 = vmatpush1.msra.mxu0 0.0
      %2793 = vmatprep.subr.mxu0 0.0
      %2794 = vmatpush1.msra.mxu0 0.0
      %2795 = vmatprep.subr.mxu0 0.0
      %2796 = vmatpush1.msra.mxu0 0.0
      %2797 = vmatprep.subr.mxu0 0.0
      %2798 = vmatpush1.msra.mxu0 %v2750
      %2799 = vmatprep.subr.mxu0 0.0
      %2800 = vmatpush2.msra.mxu0 0.0
      %2801 = vmatprep.subr.mxu0 0.0
      %2802 = vmatpush2.msra.mxu0 0.0
      %2803 = vmatprep.subr.mxu0 0.0
      %2804 = vmatpush2.msra.mxu0 0.0
      %2805 = vmatprep.subr.mxu0 0.0
      %2806 = vmatpush2.msra.mxu0 0.0
      %2807 = vmatprep.subr.mxu0 0.0
      %2808 = vmatpush2.msra.mxu0 0.0
      %2809 = vmatprep.subr.mxu0 0.0
      %2810 = vmatpush2.msra.mxu0 0.0
      %2811 = vmatprep.subr.mxu0 0.0
      %2812 = vmatpush2.msra.mxu0 0.0
      %2813 = vmatprep.subr.mxu0 0.0
      %2814 = vmatpush2.msra.mxu0 0.0
      %2815 = vmatprep.subr.mxu0 0.0
      %2816 = vmatpush2.msra.mxu0 0.0
      %2817 = vmatprep.subr.mxu0 0.0
      %2818 = vmatpush2.msra.mxu0 0.0
      %2819 = vmatprep.subr.mxu0 0.0
      %2820 = vmatpush2.msra.mxu0 0.0
      %2821 = vmatprep.subr.mxu0 0.0
      %2822 = vmatpush2.msra.mxu0 0.0
      %2823 = vmatprep.subr.mxu0 0.0
      %2824 = vmatpush2.msra.mxu0 0.0
      %2825 = vmatprep.subr.mxu0 0.0
      %2826 = vmatpush2.msra.mxu0 0.0
      %2827 = vmatprep.subr.mxu0 0.0
      %2828 = vmatpush2.msra.mxu0 0.0
      %2829 = vmatprep.subr.mxu0 0.0
      %2830 = vmatpush2.msra.mxu0 0.0
      %2831 = vmatprep.mubr.f32.mxu0 0.0
      %2832 = vmatmul.mubr.f32.gmra.mxu0 %v2756
      %v2833 = vpop.f32.mrf.mxu0
      %v2834 = vadd.f32 0.0, %v2833
      %v2835 = vpop.f32.mrf.mxu0
      %2836 = vmatprep.mubr.f32.mxu0 0.0
      %2837 = vmatmul.mubr.f32.gmra.mxu0 %v2759
      %v2838 = vpop.f32.mrf.mxu0
      %v2839 = vadd.f32 0.0, %v2838
      %v2840 = vpop.f32.mrf.mxu0
      %2841 = vmatprep.mubr.f32.mxu0 0.0
      %2842 = vmatmul.mubr.f32.gmra.mxu0 %v2762
      %v2843 = vpop.f32.mrf.mxu0
      %v2844 = vadd.f32 0.0, %v2843
      %v2845 = vpop.f32.mrf.mxu0
      %2846 = vmatprep.mubr.f32.mxu0 0.0
      %2847 = vmatmul.mubr.f32.gmra.mxu0 %v2765
      %v2848 = vpop.f32.mrf.mxu0
      %v2849 = vadd.f32 0.0, %v2848
      %v2850 = vpop.f32.mrf.mxu0
      %2851 = vdwg.mxu0
      %v2852 = vmax.f32 %v2834, %v2839
      %v2853 = vmax.f32 %v2844, %v2849
      %v2854 = vmax.f32 %v2852, %v2853
      %v2855 = vld [vmem:[%s9] sm:$0xff]
      %v2856 = vld [vmem:[%s9 + $0x8] sm:$0xff]
      %v2858 = vsel %vm1734, %v2855, 0
      %v2861 = vsel %vm1734, %v2856, 0
      %2863 = vmatprep.subr.mxu0 0.0
      %2864 = vmatpush1.msra.mxu0 0.0
      %2865 = vmatprep.subr.mxu0 0.0
      %2866 = vmatpush1.msra.mxu0 0.0
      %2867 = vmatprep.subr.mxu0 0.0
      %2868 = vmatpush1.msra.mxu0 0.0
      %2869 = vmatprep.subr.mxu0 0.0
      %2870 = vmatpush1.msra.mxu0 0.0
      %2871 = vmatprep.subr.mxu0 0.0
      %2872 = vmatpush1.msra.mxu0 0.0
      %2873 = vmatprep.subr.mxu0 0.0
      %2874 = vmatpush1.msra.mxu0 0.0
      %2875 = vmatprep.subr.mxu0 0.0
      %2876 = vmatpush1.msra.mxu0 0.0
      %2877 = vmatprep.subr.mxu0 0.0
      %2878 = vmatpush1.msra.mxu0 0.0
      %2879 = vmatprep.subr.mxu0 0.0
      %2880 = vmatpush1.msra.mxu0 0.0
      %2881 = vmatprep.subr.mxu0 0.0
      %2882 = vmatpush1.msra.mxu0 0.0
      %2883 = vmatprep.subr.mxu0 0.0
      %2884 = vmatpush1.msra.mxu0 0.0
      %2885 = vmatprep.subr.mxu0 0.0
      %2886 = vmatpush1.msra.mxu0 0.0
      %2887 = vmatprep.subr.mxu0 0.0
      %2888 = vmatpush1.msra.mxu0 0.0
      %2889 = vmatprep.subr.mxu0 0.0
      %2890 = vmatpush1.msra.mxu0 0.0
      %2891 = vmatprep.subr.mxu0 0.0
      %2892 = vmatpush1.msra.mxu0 0.0
      %2893 = vmatprep.subr.mxu0 0.0
      %2894 = vmatpush1.msra.mxu0 %v2854
      %2895 = vmatprep.subr.mxu0 0.0
      %2896 = vmatpush2.msra.mxu0 0.0
      %2897 = vmatprep.subr.mxu0 0.0
      %2898 = vmatpush2.msra.mxu0 0.0
      %2899 = vmatprep.subr.mxu0 0.0
      %2900 = vmatpush2.msra.mxu0 0.0
      %2901 = vmatprep.subr.mxu0 0.0
      %2902 = vmatpush2.msra.mxu0 0.0
      %2903 = vmatprep.subr.mxu0 0.0
      %2904 = vmatpush2.msra.mxu0 0.0
      %2905 = vmatprep.subr.mxu0 0.0
      %2906 = vmatpush2.msra.mxu0 0.0
      %2907 = vmatprep.subr.mxu0 0.0
      %2908 = vmatpush2.msra.mxu0 0.0
      %2909 = vmatprep.subr.mxu0 0.0
      %2910 = vmatpush2.msra.mxu0 0.0
      %2911 = vmatprep.subr.mxu0 0.0
      %2912 = vmatpush2.msra.mxu0 0.0
      %2913 = vmatprep.subr.mxu0 0.0
      %2914 = vmatpush2.msra.mxu0 0.0
      %2915 = vmatprep.subr.mxu0 0.0
      %2916 = vmatpush2.msra.mxu0 0.0
      %2917 = vmatprep.subr.mxu0 0.0
      %2918 = vmatpush2.msra.mxu0 0.0
      %2919 = vmatprep.subr.mxu0 0.0
      %2920 = vmatpush2.msra.mxu0 0.0
      %2921 = vmatprep.subr.mxu0 0.0
      %2922 = vmatpush2.msra.mxu0 0.0
      %2923 = vmatprep.subr.mxu0 0.0
      %2924 = vmatpush2.msra.mxu0 0.0
      %2925 = vmatprep.subr.mxu0 0.0
      %2926 = vmatpush2.msra.mxu0 0.0
      %2927 = vmatprep.mubr.f32.mxu0 0.0
      %2928 = vmatmul.mubr.f32.gmra.mxu0 %v2858
      %v2929 = vpop.f32.mrf.mxu0
      %v2930 = vadd.f32 0.0, %v2929
      %v2931 = vpop.f32.mrf.mxu0
      %2932 = vmatprep.mubr.f32.mxu0 0.0
      %2933 = vmatmul.mubr.f32.gmra.mxu0 %v2861
      %v2934 = vpop.f32.mrf.mxu0
      %v2935 = vadd.f32 0.0, %v2934
      %v2936 = vpop.f32.mrf.mxu0
      %2937 = vdwg.mxu0
      %2939 = vrot.lane.b32.xlu0 %v2930, 32
      %v2940 = vpop.permute.xlu0 %2939
      %2943 = vrot.lane.b32.xlu0 %v2935, 64
      %v2944 = vpop.permute.xlu0 %2943
      %v2946 = vsel %vm2197, %v2854, %v2940
      %v2947 = vsel %vm2655, %v2946, %v2944
      %v2948 = vld [vmem:[%s35] sm:$0xff]
      %v2949 = vld [vmem:[%s35 + $0x8] sm:$0xff]
      %v2950 = vld [vmem:[%s35 + $0x10] sm:$0xff]
      %v2951 = vld [vmem:[%s35 + $0x18] sm:$0xff]
      %v2952 = vld [vmem:[%s35 + $0x20] sm:$0xff]
      %v2953 = vld [vmem:[%s35 + $0x28] sm:$0xff]
      %v2954 = vld [vmem:[%s35 + $0x30] sm:$0xff]
      %v2955 = vld [vmem:[%s35 + $0x38] sm:$0xff]
      %v2956 = vld [vmem:[%s35 + $0x40] sm:$0xff]
      %v2957 = vld [vmem:[%s35 + $0x48] sm:$0xff]
      %v2958 = vld [vmem:[%s35 + $0x50] sm:$0xff]
      %v2959 = vld [vmem:[%s35 + $0x58] sm:$0xff]
      %v2960 = vld [vmem:[%s37] sm:$0x1]
      %v2962 = vlaneseq
      %v2963 = vshrl.u32 %v2962, 7
      %v2964 = vsub.s32 0, %v2963
      %v2965 = vrot.slane %v2960, %v2964
      %v2968 = vsel %vm2676, %v2947, 0
      %2970 = vmatprep.subr.mxu0 0.0
      %2971 = vmatpush1.msra.mxu0 0.0
      %2972 = vmatprep.subr.mxu0 0.0
      %2973 = vmatpush1.msra.mxu0 0.0
      %2974 = vmatprep.subr.mxu0 0.0
      %2975 = vmatpush1.msra.mxu0 0.0
      %2976 = vmatprep.subr.mxu0 0.0
      %2977 = vmatpush1.msra.mxu0 0.0
      %2978 = vmatprep.subr.mxu0 0.0
      %2979 = vmatpush1.msra.mxu0 %v2959
      %2980 = vmatprep.subr.mxu0 0.0
      %2981 = vmatpush1.msra.mxu0 %v2958
      %2982 = vmatprep.subr.mxu0 0.0
      %2983 = vmatpush1.msra.mxu0 %v2957
      %2984 = vmatprep.subr.mxu0 0.0
      %2985 = vmatpush1.msra.mxu0 %v2956
      %2986 = vmatprep.subr.mxu0 0.0
      %2987 = vmatpush1.msra.mxu0 %v2955
      %2988 = vmatprep.subr.mxu0 0.0
      %2989 = vmatpush1.msra.mxu0 %v2954
      %2990 = vmatprep.subr.mxu0 0.0
      %2991 = vmatpush1.msra.mxu0 %v2953
      %2992 = vmatprep.subr.mxu0 0.0
      %2993 = vmatpush1.msra.mxu0 %v2952
      %2994 = vmatprep.subr.mxu0 0.0
      %2995 = vmatpush1.msra.mxu0 %v2951
      %2996 = vmatprep.subr.mxu0 0.0
      %2997 = vmatpush1.msra.mxu0 %v2950
      %2998 = vmatprep.subr.mxu0 0.0
      %2999 = vmatpush1.msra.mxu0 %v2949
      %3000 = vmatprep.subr.mxu0 0.0
      %3001 = vmatpush1.msra.mxu0 %v2948
      %3002 = vmatprep.subr.mxu0 0.0
      %3003 = vmatpush2.msra.mxu0 0.0
      %3004 = vmatprep.subr.mxu0 0.0
      %3005 = vmatpush2.msra.mxu0 0.0
      %3006 = vmatprep.subr.mxu0 0.0
      %3007 = vmatpush2.msra.mxu0 0.0
      %3008 = vmatprep.subr.mxu0 0.0
      %3009 = vmatpush2.msra.mxu0 0.0
      %3010 = vmatprep.subr.mxu0 0.0
      %3011 = vmatpush2.msra.mxu0 0.0
      %3012 = vmatprep.subr.mxu0 0.0
      %3013 = vmatpush2.msra.mxu0 0.0
      %3014 = vmatprep.subr.mxu0 0.0
      %3015 = vmatpush2.msra.mxu0 0.0
      %3016 = vmatprep.subr.mxu0 0.0
      %3017 = vmatpush2.msra.mxu0 0.0
      %3018 = vmatprep.subr.mxu0 0.0
      %3019 = vmatpush2.msra.mxu0 0.0
      %3020 = vmatprep.subr.mxu0 0.0
      %3021 = vmatpush2.msra.mxu0 0.0
      %3022 = vmatprep.subr.mxu0 0.0
      %3023 = vmatpush2.msra.mxu0 0.0
      %3024 = vmatprep.subr.mxu0 0.0
      %3025 = vmatpush2.msra.mxu0 0.0
      %3026 = vmatprep.subr.mxu0 0.0
      %3027 = vmatpush2.msra.mxu0 0.0
      %3028 = vmatprep.subr.mxu0 0.0
      %3029 = vmatpush2.msra.mxu0 0.0
      %3030 = vmatprep.subr.mxu0 0.0
      %3031 = vmatpush2.msra.mxu0 0.0
      %3032 = vmatprep.subr.mxu0 0.0
      %3033 = vmatpush2.msra.mxu0 0.0
      %3034 = vmatprep.mubr.f32.mxu0 0.0
      %3035 = vmatmul.mubr.f32.gmra.mxu0 %v2968
      %v3036 = vpop.f32.mrf.mxu0
      %v3037 = vadd.f32 %v2965, %v3036
      %v3038 = vpop.f32.mrf.mxu0
      %3039 = vdwg.mxu0
      %v3040 = vmax.f32 %v3037, 0.0
      %3041 = vmatprep.subr.mxu0 0.0
      %3042 = vmatpush1.msra.mxu0 0.0
      %3043 = vmatprep.subr.mxu0 0.0
      %3044 = vmatpush1.msra.mxu0 0.0
      %3045 = vmatprep.subr.mxu0 0.0
      %3046 = vmatpush1.msra.mxu0 0.0
      %3047 = vmatprep.subr.mxu0 0.0
      %3048 = vmatpush1.msra.mxu0 0.0
      %3049 = vmatprep.subr.mxu0 0.0
      %3050 = vmatpush1.msra.mxu0 0.0
      %3051 = vmatprep.subr.mxu0 0.0
      %3052 = vmatpush1.msra.mxu0 0.0
      %3053 = vmatprep.subr.mxu0 0.0
      %3054 = vmatpush1.msra.mxu0 0.0
      %3055 = vmatprep.subr.mxu0 0.0
      %3056 = vmatpush1.msra.mxu0 0.0
      %3057 = vmatprep.subr.mxu0 0.0
      %3058 = vmatpush1.msra.mxu0 0.0
      %3059 = vmatprep.subr.mxu0 0.0
      %3060 = vmatpush1.msra.mxu0 0.0
      %3061 = vmatprep.subr.mxu0 0.0
      %3062 = vmatpush1.msra.mxu0 0.0
      %3063 = vmatprep.subr.mxu0 0.0
      %3064 = vmatpush1.msra.mxu0 0.0
      %3065 = vmatprep.subr.mxu0 0.0
      %3066 = vmatpush1.msra.mxu0 0.0
      %3067 = vmatprep.subr.mxu0 0.0
      %3068 = vmatpush1.msra.mxu0 0.0
      %3069 = vmatprep.subr.mxu0 0.0
      %3070 = vmatpush1.msra.mxu0 0.0
      %3071 = vmatprep.subr.mxu0 0.0
      %3072 = vmatpush1.msra.mxu0 %v3040
      %3073 = vmatprep.subr.mxu0 0.0
      %3074 = vmatpush2.msra.mxu0 0.0
      %3075 = vmatprep.subr.mxu0 0.0
      %3076 = vmatpush2.msra.mxu0 0.0
      %3077 = vmatprep.subr.mxu0 0.0
      %3078 = vmatpush2.msra.mxu0 0.0
      %3079 = vmatprep.subr.mxu0 0.0
      %3080 = vmatpush2.msra.mxu0 0.0
      %3081 = vmatprep.subr.mxu0 0.0
      %3082 = vmatpush2.msra.mxu0 0.0
      %3083 = vmatprep.subr.mxu0 0.0
      %3084 = vmatpush2.msra.mxu0 0.0
      %3085 = vmatprep.subr.mxu0 0.0
      %3086 = vmatpush2.msra.mxu0 0.0
      %3087 = vmatprep.subr.mxu0 0.0
      %3088 = vmatpush2.msra.mxu0 0.0
      %3089 = vmatprep.subr.mxu0 0.0
      %3090 = vmatpush2.msra.mxu0 0.0
      %3091 = vmatprep.subr.mxu0 0.0
      %3092 = vmatpush2.msra.mxu0 0.0
      %3093 = vmatprep.subr.mxu0 0.0
      %3094 = vmatpush2.msra.mxu0 0.0
      %3095 = vmatprep.subr.mxu0 0.0
      %3096 = vmatpush2.msra.mxu0 0.0
      %3097 = vmatprep.subr.mxu0 0.0
      %3098 = vmatpush2.msra.mxu0 0.0
      %3099 = vmatprep.subr.mxu0 0.0
      %3100 = vmatpush2.msra.mxu0 0.0
      %3101 = vmatprep.subr.mxu0 0.0
      %3102 = vmatpush2.msra.mxu0 0.0
      %3103 = vmatprep.subr.mxu0 0.0
      %3104 = vmatpush2.msra.mxu0 0.0
      %3105 = vmatprep.mubr.f32.mxu0 0.0
      %3106 = vmatmul.mubr.f32.gmra.mxu0 %v2858
      %v3107 = vpop.f32.mrf.mxu0
      %v3108 = vadd.f32 0.0, %v3107
      %v3109 = vpop.f32.mrf.mxu0
      %3110 = vmatprep.mubr.f32.mxu0 0.0
      %3111 = vmatmul.mubr.f32.gmra.mxu0 %v2861
      %v3112 = vpop.f32.mrf.mxu0
      %v3113 = vadd.f32 0.0, %v3112
      %v3114 = vpop.f32.mrf.mxu0
      %3115 = vdwg.mxu0
      %3117 = vrot.lane.b32.xlu0 %v3108, 64
      %v3118 = vpop.permute.xlu0 %3117
      %v3120 = vsel %vm2655, %v3040, %v3118
      %v3121 = vld [vmem:[%s39] sm:$0xff]
      %v3122 = vld [vmem:[%s39 + $0x8] sm:$0xff]
      %v3123 = vld [vmem:[%s39 + $0x10] sm:$0xff]
      %v3124 = vld [vmem:[%s39 + $0x18] sm:$0xff]
      %v3125 = vld [vmem:[%s39 + $0x20] sm:$0xff]
      %v3126 = vld [vmem:[%s39 + $0x28] sm:$0xff]
      %v3127 = vld [vmem:[%s39 + $0x30] sm:$0xff]
      %v3128 = vld [vmem:[%s39 + $0x38] sm:$0xff]
      %v3129 = vld [vmem:[%s39 + $0x40] sm:$0xff]
      %v3130 = vld [vmem:[%s39 + $0x48] sm:$0xff]
      %v3131 = vld [vmem:[%s39 + $0x50] sm:$0xff]
      %v3132 = vld [vmem:[%s39 + $0x58] sm:$0xff]
      %v3133 = vld [vmem:[%s39 + $0x60] sm:$0xff]
      %v3134 = vld [vmem:[%s39 + $0x68] sm:$0xff]
      %v3135 = vld [vmem:[%s39 + $0x70] sm:$0xff]
      %v3136 = vld [vmem:[%s39 + $0x78] sm:$0xff]
      %v3137 = vld [vmem:[%s39 + $0x80] sm:$0xff]
      %v3138 = vld [vmem:[%s39 + $0x88] sm:$0xff]
      %v3139 = vld [vmem:[%s39 + $0x90] sm:$0xff]
      %v3140 = vld [vmem:[%s39 + $0x98] sm:$0xff]
      %v3141 = vld [vmem:[%s39 + $0xa0] sm:$0xff]
      %v3142 = vld [vmem:[%s39 + $0xa8] sm:$0xff]
      %v3143 = vld [vmem:[%s39 + $0xb0] sm:$0xff]
      %v3144 = vld [vmem:[%s39 + $0xb8] sm:$0xff]
      %v3145 = vld [vmem:[%s41] sm:$0x1]
      %v3147 = vlaneseq
      %v3148 = vshrl.u32 %v3147, 7
      %v3149 = vsub.s32 0, %v3148
      %v3150 = vrot.slane %v3145, %v3149
      %v3153 = vsel %vm2655, %v3113, 0
      %3155 = vmatprep.subr.mxu0 0.0
      %3156 = vmatpush1.msra.mxu0 %v3136
      %3157 = vmatprep.subr.mxu0 0.0
      %3158 = vmatpush1.msra.mxu0 %v3135
      %3159 = vmatprep.subr.mxu0 0.0
      %3160 = vmatpush1.msra.mxu0 %v3134
      %3161 = vmatprep.subr.mxu0 0.0
      %3162 = vmatpush1.msra.mxu0 %v3133
      %3163 = vmatprep.subr.mxu0 0.0
      %3164 = vmatpush1.msra.mxu0 %v3132
      %3165 = vmatprep.subr.mxu0 0.0
      %3166 = vmatpush1.msra.mxu0 %v3131
      %3167 = vmatprep.subr.mxu0 0.0
      %3168 = vmatpush1.msra.mxu0 %v3130
      %3169 = vmatprep.subr.mxu0 0.0
      %3170 = vmatpush1.msra.mxu0 %v3129
      %3171 = vmatprep.subr.mxu0 0.0
      %3172 = vmatpush1.msra.mxu0 %v3128
      %3173 = vmatprep.subr.mxu0 0.0
      %3174 = vmatpush1.msra.mxu0 %v3127
      %3175 = vmatprep.subr.mxu0 0.0
      %3176 = vmatpush1.msra.mxu0 %v3126
      %3177 = vmatprep.subr.mxu0 0.0
      %3178 = vmatpush1.msra.mxu0 %v3125
      %3179 = vmatprep.subr.mxu0 0.0
      %3180 = vmatpush1.msra.mxu0 %v3124
      %3181 = vmatprep.subr.mxu0 0.0
      %3182 = vmatpush1.msra.mxu0 %v3123
      %3183 = vmatprep.subr.mxu0 0.0
      %3184 = vmatpush1.msra.mxu0 %v3122
      %3185 = vmatprep.subr.mxu0 0.0
      %3186 = vmatpush1.msra.mxu0 %v3121
      %3187 = vmatprep.subr.mxu0 0.0
      %3188 = vmatpush2.msra.mxu0 0.0
      %3189 = vmatprep.subr.mxu0 0.0
      %3190 = vmatpush2.msra.mxu0 0.0
      %3191 = vmatprep.subr.mxu0 0.0
      %3192 = vmatpush2.msra.mxu0 0.0
      %3193 = vmatprep.subr.mxu0 0.0
      %3194 = vmatpush2.msra.mxu0 0.0
      %3195 = vmatprep.subr.mxu0 0.0
      %3196 = vmatpush2.msra.mxu0 0.0
      %3197 = vmatprep.subr.mxu0 0.0
      %3198 = vmatpush2.msra.mxu0 0.0
      %3199 = vmatprep.subr.mxu0 0.0
      %3200 = vmatpush2.msra.mxu0 0.0
      %3201 = vmatprep.subr.mxu0 0.0
      %3202 = vmatpush2.msra.mxu0 0.0
      %3203 = vmatprep.subr.mxu0 0.0
      %3204 = vmatpush2.msra.mxu0 %v3144
      %3205 = vmatprep.subr.mxu0 0.0
      %3206 = vmatpush2.msra.mxu0 %v3143
      %3207 = vmatprep.subr.mxu0 0.0
      %3208 = vmatpush2.msra.mxu0 %v3142
      %3209 = vmatprep.subr.mxu0 0.0
      %3210 = vmatpush2.msra.mxu0 %v3141
      %3211 = vmatprep.subr.mxu0 0.0
      %3212 = vmatpush2.msra.mxu0 %v3140
      %3213 = vmatprep.subr.mxu0 0.0
      %3214 = vmatpush2.msra.mxu0 %v3139
      %3215 = vmatprep.subr.mxu0 0.0
      %3216 = vmatpush2.msra.mxu0 %v3138
      %3217 = vmatprep.subr.mxu0 0.0
      %3218 = vmatpush2.msra.mxu0 %v3137
      %3219 = vmatprep.mubr.f32.mxu0 %v3153
      %3220 = vmatmul.mubr.f32.gmra.mxu0 %v3120
      %v3221 = vpop.f32.mrf.mxu0
      %v3222 = vadd.f32 %v3150, %v3221
      %v3223 = vpop.f32.mrf.mxu0
      %3224 = vdwg.mxu0
      %v3225 = vmax.f32 %v3222, 0.0
      %v3226 = vld [vmem:[%s51] sm:$0xff]
      %v3227 = vld [vmem:[%s51 + $0x8] sm:$0xff]
      %v3228 = vld [vmem:[%s51 + $0x10] sm:$0xff]
      %v3229 = vld [vmem:[%s51 + $0x18] sm:$0xff]
      %v3230 = vld [vmem:[%s51 + $0x20] sm:$0xff]
      %v3231 = vld [vmem:[%s51 + $0x28] sm:$0xff]
      %v3232 = vld [vmem:[%s51 + $0x30] sm:$0xff]
      %v3233 = vld [vmem:[%s51 + $0x38] sm:$0xff]
      %v3235 = vsel %vm2655, %v3225, 0
      %3237 = vmatprep.subr.mxu0 0.0
      %3238 = vmatpush1.msra.mxu0 0.0
      %3239 = vmatprep.subr.mxu0 0.0
      %3240 = vmatpush1.msra.mxu0 0.0
      %3241 = vmatprep.subr.mxu0 0.0
      %3242 = vmatpush1.msra.mxu0 0.0
      %3243 = vmatprep.subr.mxu0 0.0
      %3244 = vmatpush1.msra.mxu0 0.0
      %3245 = vmatprep.subr.mxu0 0.0
      %3246 = vmatpush1.msra.mxu0 0.0
      %3247 = vmatprep.subr.mxu0 0.0
      %3248 = vmatpush1.msra.mxu0 0.0
      %3249 = vmatprep.subr.mxu0 0.0
      %3250 = vmatpush1.msra.mxu0 0.0
      %3251 = vmatprep.subr.mxu0 0.0
      %3252 = vmatpush1.msra.mxu0 0.0
      %3253 = vmatprep.subr.mxu0 0.0
      %3254 = vmatpush1.msra.mxu0 %v3233
      %3255 = vmatprep.subr.mxu0 0.0
      %3256 = vmatpush1.msra.mxu0 %v3232
      %3257 = vmatprep.subr.mxu0 0.0
      %3258 = vmatpush1.msra.mxu0 %v3231
      %3259 = vmatprep.subr.mxu0 0.0
      %3260 = vmatpush1.msra.mxu0 %v3230
      %3261 = vmatprep.subr.mxu0 0.0
      %3262 = vmatpush1.msra.mxu0 %v3229
      %3263 = vmatprep.subr.mxu0 0.0
      %3264 = vmatpush1.msra.mxu0 %v3228
      %3265 = vmatprep.subr.mxu0 0.0
      %3266 = vmatpush1.msra.mxu0 %v3227
      %3267 = vmatprep.subr.mxu0 0.0
      %3268 = vmatpush1.msra.mxu0 %v3226
      %3269 = vmatprep.subr.mxu0 0.0
      %3270 = vmatpush2.msra.mxu0 0.0
      %3271 = vmatprep.subr.mxu0 0.0
      %3272 = vmatpush2.msra.mxu0 0.0
      %3273 = vmatprep.subr.mxu0 0.0
      %3274 = vmatpush2.msra.mxu0 0.0
      %3275 = vmatprep.subr.mxu0 0.0
      %3276 = vmatpush2.msra.mxu0 0.0
      %3277 = vmatprep.subr.mxu0 0.0
      %3278 = vmatpush2.msra.mxu0 0.0
      %3279 = vmatprep.subr.mxu0 0.0
      %3280 = vmatpush2.msra.mxu0 0.0
      %3281 = vmatprep.subr.mxu0 0.0
      %3282 = vmatpush2.msra.mxu0 0.0
      %3283 = vmatprep.subr.mxu0 0.0
      %3284 = vmatpush2.msra.mxu0 0.0
      %3285 = vmatprep.subr.mxu0 0.0
      %3286 = vmatpush2.msra.mxu0 0.0
      %3287 = vmatprep.subr.mxu0 0.0
      %3288 = vmatpush2.msra.mxu0 0.0
      %3289 = vmatprep.subr.mxu0 0.0
      %3290 = vmatpush2.msra.mxu0 0.0
      %3291 = vmatprep.subr.mxu0 0.0
      %3292 = vmatpush2.msra.mxu0 0.0
      %3293 = vmatprep.subr.mxu0 0.0
      %3294 = vmatpush2.msra.mxu0 0.0
      %3295 = vmatprep.subr.mxu0 0.0
      %3296 = vmatpush2.msra.mxu0 0.0
      %3297 = vmatprep.subr.mxu0 0.0
      %3298 = vmatpush2.msra.mxu0 0.0
      %3299 = vmatprep.subr.mxu0 0.0
      %3300 = vmatpush2.msra.mxu0 0.0
      %3301 = vmatprep.mubr.f32.mxu0 0.0
      %3302 = vmatmul.mubr.f32.gmra.mxu0 %v3235
      %v3303 = vpop.f32.mrf.mxu0
      %v3304 = vadd.f32 0.0, %v3303
      %v3305 = vpop.f32.mrf.mxu0
      %3306 = vdwg.mxu0
      %v3307 = vld [vmem:[%s49] sm:$0xff]
      %s3308 = scalar_lea.vmem %s49, 8
      %v3309 = vld [vmem:[%s3308] sm:$0xff]
      %3311 = vrot.lane.b32.xlu0 %v3304, 96
      %v3312 = vpop.permute.xlu0 %3311
      %v3315 = vsel %vm1734, %v3309, 0
      %3317 = vmatprep.subr.mxu0 0.0
      %3318 = vmatpush1.msra.mxu0 0.0
      %3319 = vmatprep.subr.mxu0 0.0
      %3320 = vmatpush1.msra.mxu0 0.0
      %3321 = vmatprep.subr.mxu0 0.0
      %3322 = vmatpush1.msra.mxu0 0.0
      %3323 = vmatprep.subr.mxu0 0.0
      %3324 = vmatpush1.msra.mxu0 0.0
      %3325 = vmatprep.subr.mxu0 0.0
      %3326 = vmatpush1.msra.mxu0 0.0
      %3327 = vmatprep.subr.mxu0 0.0
      %3328 = vmatpush1.msra.mxu0 0.0
      %3329 = vmatprep.subr.mxu0 0.0
      %3330 = vmatpush1.msra.mxu0 0.0
      %3331 = vmatprep.subr.mxu0 0.0
      %3332 = vmatpush1.msra.mxu0 0.0
      %3333 = vmatprep.subr.mxu0 0.0
      %3334 = vmatpush1.msra.mxu0 0.0
      %3335 = vmatprep.subr.mxu0 0.0
      %3336 = vmatpush1.msra.mxu0 0.0
      %3337 = vmatprep.subr.mxu0 0.0
      %3338 = vmatpush1.msra.mxu0 0.0
      %3339 = vmatprep.subr.mxu0 0.0
      %3340 = vmatpush1.msra.mxu0 0.0
      %3341 = vmatprep.subr.mxu0 0.0
      %3342 = vmatpush1.msra.mxu0 0.0
      %3343 = vmatprep.subr.mxu0 0.0
      %3344 = vmatpush1.msra.mxu0 0.0
      %3345 = vmatprep.subr.mxu0 0.0
      %3346 = vmatpush1.msra.mxu0 0.0
      %3347 = vmatprep.subr.mxu0 0.0
      %3348 = vmatpush1.msra.mxu0 %v3312
      %3349 = vmatprep.subr.mxu0 0.0
      %3350 = vmatpush2.msra.mxu0 0.0
      %3351 = vmatprep.subr.mxu0 0.0
      %3352 = vmatpush2.msra.mxu0 0.0
      %3353 = vmatprep.subr.mxu0 0.0
      %3354 = vmatpush2.msra.mxu0 0.0
      %3355 = vmatprep.subr.mxu0 0.0
      %3356 = vmatpush2.msra.mxu0 0.0
      %3357 = vmatprep.subr.mxu0 0.0
      %3358 = vmatpush2.msra.mxu0 0.0
      %3359 = vmatprep.subr.mxu0 0.0
      %3360 = vmatpush2.msra.mxu0 0.0
      %3361 = vmatprep.subr.mxu0 0.0
      %3362 = vmatpush2.msra.mxu0 0.0
      %3363 = vmatprep.subr.mxu0 0.0
      %3364 = vmatpush2.msra.mxu0 0.0
      %3365 = vmatprep.subr.mxu0 0.0
      %3366 = vmatpush2.msra.mxu0 0.0
      %3367 = vmatprep.subr.mxu0 0.0
      %3368 = vmatpush2.msra.mxu0 0.0
      %3369 = vmatprep.subr.mxu0 0.0
      %3370 = vmatpush2.msra.mxu0 0.0
      %3371 = vmatprep.subr.mxu0 0.0
      %3372 = vmatpush2.msra.mxu0 0.0
      %3373 = vmatprep.subr.mxu0 0.0
      %3374 = vmatpush2.msra.mxu0 0.0
      %3375 = vmatprep.subr.mxu0 0.0
      %3376 = vmatpush2.msra.mxu0 0.0
      %3377 = vmatprep.subr.mxu0 0.0
      %3378 = vmatpush2.msra.mxu0 0.0
      %3379 = vmatprep.subr.mxu0 0.0
      %3380 = vmatpush2.msra.mxu0 0.0
      %3381 = vmatprep.mubr.f32.mxu0 0.0
      %3382 = vmatmul.mubr.f32.gmra.mxu0 %v3315
      %v3383 = vpop.f32.mrf.mxu0
      %v3384 = vadd.f32 0.0, %v3383
      %v3385 = vpop.f32.mrf.mxu0
      %3386 = vdwg.mxu0
      %v3388 = vsel %vm1734, %v3307, 0
      %3390 = vmatprep.subr.mxu0 0.0
      %3391 = vmatpush1.msra.mxu0 0.0
      %3392 = vmatprep.subr.mxu0 0.0
      %3393 = vmatpush1.msra.mxu0 0.0
      %3394 = vmatprep.subr.mxu0 0.0
      %3395 = vmatpush1.msra.mxu0 0.0
      %3396 = vmatprep.subr.mxu0 0.0
      %3397 = vmatpush1.msra.mxu0 0.0
      %3398 = vmatprep.subr.mxu0 0.0
      %3399 = vmatpush1.msra.mxu0 0.0
      %3400 = vmatprep.subr.mxu0 0.0
      %3401 = vmatpush1.msra.mxu0 0.0
      %3402 = vmatprep.subr.mxu0 0.0
      %3403 = vmatpush1.msra.mxu0 0.0
      %3404 = vmatprep.subr.mxu0 0.0
      %3405 = vmatpush1.msra.mxu0 0.0
      %3406 = vmatprep.subr.mxu0 0.0
      %3407 = vmatpush1.msra.mxu0 0.0
      %3408 = vmatprep.subr.mxu0 0.0
      %3409 = vmatpush1.msra.mxu0 0.0
      %3410 = vmatprep.subr.mxu0 0.0
      %3411 = vmatpush1.msra.mxu0 0.0
      %3412 = vmatprep.subr.mxu0 0.0
      %3413 = vmatpush1.msra.mxu0 0.0
      %3414 = vmatprep.subr.mxu0 0.0
      %3415 = vmatpush1.msra.mxu0 0.0
      %3416 = vmatprep.subr.mxu0 0.0
      %3417 = vmatpush1.msra.mxu0 0.0
      %3418 = vmatprep.subr.mxu0 0.0
      %3419 = vmatpush1.msra.mxu0 0.0
      %3420 = vmatprep.subr.mxu0 0.0
      %3421 = vmatpush1.msra.mxu0 %v3304
      %3422 = vmatprep.subr.mxu0 0.0
      %3423 = vmatpush2.msra.mxu0 0.0
      %3424 = vmatprep.subr.mxu0 0.0
      %3425 = vmatpush2.msra.mxu0 0.0
      %3426 = vmatprep.subr.mxu0 0.0
      %3427 = vmatpush2.msra.mxu0 0.0
      %3428 = vmatprep.subr.mxu0 0.0
      %3429 = vmatpush2.msra.mxu0 0.0
      %3430 = vmatprep.subr.mxu0 0.0
      %3431 = vmatpush2.msra.mxu0 0.0
      %3432 = vmatprep.subr.mxu0 0.0
      %3433 = vmatpush2.msra.mxu0 0.0
      %3434 = vmatprep.subr.mxu0 0.0
      %3435 = vmatpush2.msra.mxu0 0.0
      %3436 = vmatprep.subr.mxu0 0.0
      %3437 = vmatpush2.msra.mxu0 0.0
      %3438 = vmatprep.subr.mxu0 0.0
      %3439 = vmatpush2.msra.mxu0 0.0
      %3440 = vmatprep.subr.mxu0 0.0
      %3441 = vmatpush2.msra.mxu0 0.0
      %3442 = vmatprep.subr.mxu0 0.0
      %3443 = vmatpush2.msra.mxu0 0.0
      %3444 = vmatprep.subr.mxu0 0.0
      %3445 = vmatpush2.msra.mxu0 0.0
      %3446 = vmatprep.subr.mxu0 0.0
      %3447 = vmatpush2.msra.mxu0 0.0
      %3448 = vmatprep.subr.mxu0 0.0
      %3449 = vmatpush2.msra.mxu0 0.0
      %3450 = vmatprep.subr.mxu0 0.0
      %3451 = vmatpush2.msra.mxu0 0.0
      %3452 = vmatprep.subr.mxu0 0.0
      %3453 = vmatpush2.msra.mxu0 0.0
      %3454 = vmatprep.mubr.f32.mxu0 0.0
      %3455 = vmatmul.mubr.f32.gmra.mxu0 %v3388
      %v3456 = vpop.f32.mrf.mxu0
      %v3457 = vadd.f32 %v3384, %v3456
      %v3458 = vpop.f32.mrf.mxu0
      %3459 = vdwg.mxu0
      %s3460 = scalar_lea.vmem %s49, 16
      %v3461 = vld [vmem:[%s3460] sm:$0xff]
      %3462 = vrot.lane.b32.xlu0 %v3304, 64
      %v3463 = vpop.permute.xlu0 %3462
      %v3466 = vsel %vm1734, %v3461, 0
      %3468 = vmatprep.subr.mxu0 0.0
      %3469 = vmatpush1.msra.mxu0 0.0
      %3470 = vmatprep.subr.mxu0 0.0
      %3471 = vmatpush1.msra.mxu0 0.0
      %3472 = vmatprep.subr.mxu0 0.0
      %3473 = vmatpush1.msra.mxu0 0.0
      %3474 = vmatprep.subr.mxu0 0.0
      %3475 = vmatpush1.msra.mxu0 0.0
      %3476 = vmatprep.subr.mxu0 0.0
      %3477 = vmatpush1.msra.mxu0 0.0
      %3478 = vmatprep.subr.mxu0 0.0
      %3479 = vmatpush1.msra.mxu0 0.0
      %3480 = vmatprep.subr.mxu0 0.0
      %3481 = vmatpush1.msra.mxu0 0.0
      %3482 = vmatprep.subr.mxu0 0.0
      %3483 = vmatpush1.msra.mxu0 0.0
      %3484 = vmatprep.subr.mxu0 0.0
      %3485 = vmatpush1.msra.mxu0 0.0
      %3486 = vmatprep.subr.mxu0 0.0
      %3487 = vmatpush1.msra.mxu0 0.0
      %3488 = vmatprep.subr.mxu0 0.0
      %3489 = vmatpush1.msra.mxu0 0.0
      %3490 = vmatprep.subr.mxu0 0.0
      %3491 = vmatpush1.msra.mxu0 0.0
      %3492 = vmatprep.subr.mxu0 0.0
      %3493 = vmatpush1.msra.mxu0 0.0
      %3494 = vmatprep.subr.mxu0 0.0
      %3495 = vmatpush1.msra.mxu0 0.0
      %3496 = vmatprep.subr.mxu0 0.0
      %3497 = vmatpush1.msra.mxu0 0.0
      %3498 = vmatprep.subr.mxu0 0.0
      %3499 = vmatpush1.msra.mxu0 %v3463
      %3500 = vmatprep.subr.mxu0 0.0
      %3501 = vmatpush2.msra.mxu0 0.0
      %3502 = vmatprep.subr.mxu0 0.0
      %3503 = vmatpush2.msra.mxu0 0.0
      %3504 = vmatprep.subr.mxu0 0.0
      %3505 = vmatpush2.msra.mxu0 0.0
      %3506 = vmatprep.subr.mxu0 0.0
      %3507 = vmatpush2.msra.mxu0 0.0
      %3508 = vmatprep.subr.mxu0 0.0
      %3509 = vmatpush2.msra.mxu0 0.0
      %3510 = vmatprep.subr.mxu0 0.0
      %3511 = vmatpush2.msra.mxu0 0.0
      %3512 = vmatprep.subr.mxu0 0.0
      %3513 = vmatpush2.msra.mxu0 0.0
      %3514 = vmatprep.subr.mxu0 0.0
      %3515 = vmatpush2.msra.mxu0 0.0
      %3516 = vmatprep.subr.mxu0 0.0
      %3517 = vmatpush2.msra.mxu0 0.0
      %3518 = vmatprep.subr.mxu0 0.0
      %3519 = vmatpush2.msra.mxu0 0.0
      %3520 = vmatprep.subr.mxu0 0.0
      %3521 = vmatpush2.msra.mxu0 0.0
      %3522 = vmatprep.subr.mxu0 0.0
      %3523 = vmatpush2.msra.mxu0 0.0
      %3524 = vmatprep.subr.mxu0 0.0
      %3525 = vmatpush2.msra.mxu0 0.0
      %3526 = vmatprep.subr.mxu0 0.0
      %3527 = vmatpush2.msra.mxu0 0.0
      %3528 = vmatprep.subr.mxu0 0.0
      %3529 = vmatpush2.msra.mxu0 0.0
      %3530 = vmatprep.subr.mxu0 0.0
      %3531 = vmatpush2.msra.mxu0 0.0
      %3532 = vmatprep.mubr.f32.mxu0 0.0
      %3533 = vmatmul.mubr.f32.gmra.mxu0 %v3466
      %v3534 = vpop.f32.mrf.mxu0
      %v3535 = vadd.f32 0.0, %v3534
      %v3536 = vpop.f32.mrf.mxu0
      %3537 = vdwg.mxu0
      %v3538 = vadd.f32 %v3457, %v3535
      %s3539 = scalar_lea.vmem %s49, 24
      %v3540 = vld [vmem:[%s3539] sm:$0xff]
      %3541 = vrot.lane.b32.xlu0 %v3304, 32
      %v3542 = vpop.permute.xlu0 %3541
      %v3545 = vsel %vm1734, %v3540, 0
      %3547 = vmatprep.subr.mxu0 0.0
      %3548 = vmatpush1.msra.mxu0 0.0
      %3549 = vmatprep.subr.mxu0 0.0
      %3550 = vmatpush1.msra.mxu0 0.0
      %3551 = vmatprep.subr.mxu0 0.0
      %3552 = vmatpush1.msra.mxu0 0.0
      %3553 = vmatprep.subr.mxu0 0.0
      %3554 = vmatpush1.msra.mxu0 0.0
      %3555 = vmatprep.subr.mxu0 0.0
      %3556 = vmatpush1.msra.mxu0 0.0
      %3557 = vmatprep.subr.mxu0 0.0
      %3558 = vmatpush1.msra.mxu0 0.0
      %3559 = vmatprep.subr.mxu0 0.0
      %3560 = vmatpush1.msra.mxu0 0.0
      %3561 = vmatprep.subr.mxu0 0.0
      %3562 = vmatpush1.msra.mxu0 0.0
      %3563 = vmatprep.subr.mxu0 0.0
      %3564 = vmatpush1.msra.mxu0 0.0
      %3565 = vmatprep.subr.mxu0 0.0
      %3566 = vmatpush1.msra.mxu0 0.0
      %3567 = vmatprep.subr.mxu0 0.0
      %3568 = vmatpush1.msra.mxu0 0.0
      %3569 = vmatprep.subr.mxu0 0.0
      %3570 = vmatpush1.msra.mxu0 0.0
      %3571 = vmatprep.subr.mxu0 0.0
      %3572 = vmatpush1.msra.mxu0 0.0
      %3573 = vmatprep.subr.mxu0 0.0
      %3574 = vmatpush1.msra.mxu0 0.0
      %3575 = vmatprep.subr.mxu0 0.0
      %3576 = vmatpush1.msra.mxu0 0.0
      %3577 = vmatprep.subr.mxu0 0.0
      %3578 = vmatpush1.msra.mxu0 %v3542
      %3579 = vmatprep.subr.mxu0 0.0
      %3580 = vmatpush2.msra.mxu0 0.0
      %3581 = vmatprep.subr.mxu0 0.0
      %3582 = vmatpush2.msra.mxu0 0.0
      %3583 = vmatprep.subr.mxu0 0.0
      %3584 = vmatpush2.msra.mxu0 0.0
      %3585 = vmatprep.subr.mxu0 0.0
      %3586 = vmatpush2.msra.mxu0 0.0
      %3587 = vmatprep.subr.mxu0 0.0
      %3588 = vmatpush2.msra.mxu0 0.0
      %3589 = vmatprep.subr.mxu0 0.0
      %3590 = vmatpush2.msra.mxu0 0.0
      %3591 = vmatprep.subr.mxu0 0.0
      %3592 = vmatpush2.msra.mxu0 0.0
      %3593 = vmatprep.subr.mxu0 0.0
      %3594 = vmatpush2.msra.mxu0 0.0
      %3595 = vmatprep.subr.mxu0 0.0
      %3596 = vmatpush2.msra.mxu0 0.0
      %3597 = vmatprep.subr.mxu0 0.0
      %3598 = vmatpush2.msra.mxu0 0.0
      %3599 = vmatprep.subr.mxu0 0.0
      %3600 = vmatpush2.msra.mxu0 0.0
      %3601 = vmatprep.subr.mxu0 0.0
      %3602 = vmatpush2.msra.mxu0 0.0
      %3603 = vmatprep.subr.mxu0 0.0
      %3604 = vmatpush2.msra.mxu0 0.0
      %3605 = vmatprep.subr.mxu0 0.0
      %3606 = vmatpush2.msra.mxu0 0.0
      %3607 = vmatprep.subr.mxu0 0.0
      %3608 = vmatpush2.msra.mxu0 0.0
      %3609 = vmatprep.subr.mxu0 0.0
      %3610 = vmatpush2.msra.mxu0 0.0
      %3611 = vmatprep.mubr.f32.mxu0 0.0
      %3612 = vmatmul.mubr.f32.gmra.mxu0 %v3545
      %v3613 = vpop.f32.mrf.mxu0
      %v3614 = vadd.f32 0.0, %v3613
      %v3615 = vpop.f32.mrf.mxu0
      %3616 = vdwg.mxu0
      %v3617 = vadd.f32 %v3538, %v3614
      %v3618 = vld [vmem:[%s53] sm:$0x1]
      %v3620 = vlaneseq
      %v3621 = vshrl.u32 %v3620, 7
      %v3622 = vsub.s32 0, %v3621
      %v3623 = vrot.slane %v3618, %v3622
      %v3625 = vadd.f32 %v3617, %v3623
      %3627 = vrot.lane.b32.xlu0 %v2750, 32
      %v3628 = vpop.permute.xlu0 %3627
      %v3630 = vsel %vm2197, %v3625, %v3628
      %3631 = vmatprep.subr.mxu0 0.0
      %3632 = vmatpush1.msra.mxu0 0.0
      %3633 = vmatprep.subr.mxu0 0.0
      %3634 = vmatpush1.msra.mxu0 0.0
      %3635 = vmatprep.subr.mxu0 0.0
      %3636 = vmatpush1.msra.mxu0 0.0
      %3637 = vmatprep.subr.mxu0 0.0
      %3638 = vmatpush1.msra.mxu0 0.0
      %3639 = vmatprep.subr.mxu0 0.0
      %3640 = vmatpush1.msra.mxu0 0.0
      %3641 = vmatprep.subr.mxu0 0.0
      %3642 = vmatpush1.msra.mxu0 0.0
      %3643 = vmatprep.subr.mxu0 0.0
      %3644 = vmatpush1.msra.mxu0 0.0
      %3645 = vmatprep.subr.mxu0 0.0
      %3646 = vmatpush1.msra.mxu0 0.0
      %3647 = vmatprep.subr.mxu0 0.0
      %3648 = vmatpush1.msra.mxu0 0.0
      %3649 = vmatprep.subr.mxu0 0.0
      %3650 = vmatpush1.msra.mxu0 0.0
      %3651 = vmatprep.subr.mxu0 0.0
      %3652 = vmatpush1.msra.mxu0 0.0
      %3653 = vmatprep.subr.mxu0 0.0
      %3654 = vmatpush1.msra.mxu0 0.0
      %3655 = vmatprep.subr.mxu0 0.0
      %3656 = vmatpush1.msra.mxu0 0.0
      %3657 = vmatprep.subr.mxu0 0.0
      %3658 = vmatpush1.msra.mxu0 0.0
      %3659 = vmatprep.subr.mxu0 0.0
      %3660 = vmatpush1.msra.mxu0 0.0
      %3661 = vmatprep.subr.mxu0 0.0
      %3662 = vmatpush1.msra.mxu0 %v3630
      %3663 = vmatprep.subr.mxu0 0.0
      %3664 = vmatpush2.msra.mxu0 0.0
      %3665 = vmatprep.subr.mxu0 0.0
      %3666 = vmatpush2.msra.mxu0 0.0
      %3667 = vmatprep.subr.mxu0 0.0
      %3668 = vmatpush2.msra.mxu0 0.0
      %3669 = vmatprep.subr.mxu0 0.0
      %3670 = vmatpush2.msra.mxu0 0.0
      %3671 = vmatprep.subr.mxu0 0.0
      %3672 = vmatpush2.msra.mxu0 0.0
      %3673 = vmatprep.subr.mxu0 0.0
      %3674 = vmatpush2.msra.mxu0 0.0
      %3675 = vmatprep.subr.mxu0 0.0
      %3676 = vmatpush2.msra.mxu0 0.0
      %3677 = vmatprep.subr.mxu0 0.0
      %3678 = vmatpush2.msra.mxu0 0.0
      %3679 = vmatprep.subr.mxu0 0.0
      %3680 = vmatpush2.msra.mxu0 0.0
      %3681 = vmatprep.subr.mxu0 0.0
      %3682 = vmatpush2.msra.mxu0 0.0
      %3683 = vmatprep.subr.mxu0 0.0
      %3684 = vmatpush2.msra.mxu0 0.0
      %3685 = vmatprep.subr.mxu0 0.0
      %3686 = vmatpush2.msra.mxu0 0.0
      %3687 = vmatprep.subr.mxu0 0.0
      %3688 = vmatpush2.msra.mxu0 0.0
      %3689 = vmatprep.subr.mxu0 0.0
      %3690 = vmatpush2.msra.mxu0 0.0
      %3691 = vmatprep.subr.mxu0 0.0
      %3692 = vmatpush2.msra.mxu0 0.0
      %3693 = vmatprep.subr.mxu0 0.0
      %3694 = vmatpush2.msra.mxu0 0.0
      %3695 = vmatprep.mubr.f32.mxu0 0.0
      %3696 = vmatmul.mubr.f32.gmra.mxu0 %v2394
      %v3697 = vpop.f32.mrf.mxu0
      %v3698 = vadd.f32 0.0, %v3697
      %v3699 = vpop.f32.mrf.mxu0
      %3700 = vmatprep.mubr.f32.mxu0 0.0
      %3701 = vmatmul.mubr.f32.gmra.mxu0 %v2397
      %v3702 = vpop.f32.mrf.mxu0
      %v3703 = vadd.f32 0.0, %v3702
      %v3704 = vpop.f32.mrf.mxu0
      %3705 = vdwg.mxu0
      %3707 = vrot.lane.b32.xlu0 %v3698, 64
      %v3708 = vpop.permute.xlu0 %3707
      %v3710 = vsel %vm2655, %v3630, %v3708
      %v3711 = vld [vmem:[%s55] sm:$0xff]
      %v3712 = vld [vmem:[%s55 + $0x8] sm:$0xff]
      %v3713 = vld [vmem:[%s55 + $0x10] sm:$0xff]
      %v3714 = vld [vmem:[%s55 + $0x18] sm:$0xff]
      %v3715 = vld [vmem:[%s55 + $0x20] sm:$0xff]
      %v3716 = vld [vmem:[%s55 + $0x28] sm:$0xff]
      %v3717 = vld [vmem:[%s55 + $0x30] sm:$0xff]
      %v3718 = vld [vmem:[%s55 + $0x38] sm:$0xff]
      %v3719 = vld [vmem:[%s55 + $0x40] sm:$0xff]
      %v3720 = vld [vmem:[%s55 + $0x48] sm:$0xff]
      %v3721 = vld [vmem:[%s55 + $0x50] sm:$0xff]
      %v3722 = vld [vmem:[%s55 + $0x58] sm:$0xff]
      %v3723 = vld [vmem:[%s55 + $0x60] sm:$0xff]
      %v3724 = vld [vmem:[%s55 + $0x68] sm:$0xff]
      %v3725 = vld [vmem:[%s55 + $0x70] sm:$0xff]
      %v3726 = vld [vmem:[%s55 + $0x78] sm:$0xff]
      %v3727 = vld [vmem:[%s55 + $0x80] sm:$0xff]
      %v3728 = vld [vmem:[%s55 + $0x88] sm:$0xff]
      %v3729 = vld [vmem:[%s55 + $0x90] sm:$0xff]
      %v3730 = vld [vmem:[%s55 + $0x98] sm:$0xff]
      %v3731 = vld [vmem:[%s55 + $0xa0] sm:$0xff]
      %v3732 = vld [vmem:[%s55 + $0xa8] sm:$0xff]
      %v3733 = vld [vmem:[%s55 + $0xb0] sm:$0xff]
      %v3734 = vld [vmem:[%s55 + $0xb8] sm:$0xff]
      %v3735 = vld [vmem:[%s57] sm:$0x1]
      %v3737 = vlaneseq
      %v3738 = vshrl.u32 %v3737, 7
      %v3739 = vsub.s32 0, %v3738
      %v3740 = vrot.slane %v3735, %v3739
      %v3743 = vsel %vm2655, %v3703, 0
      %3745 = vmatprep.subr.mxu0 0.0
      %3746 = vmatpush1.msra.mxu0 %v3726
      %3747 = vmatprep.subr.mxu0 0.0
      %3748 = vmatpush1.msra.mxu0 %v3725
      %3749 = vmatprep.subr.mxu0 0.0
      %3750 = vmatpush1.msra.mxu0 %v3724
      %3751 = vmatprep.subr.mxu0 0.0
      %3752 = vmatpush1.msra.mxu0 %v3723
      %3753 = vmatprep.subr.mxu0 0.0
      %3754 = vmatpush1.msra.mxu0 %v3722
      %3755 = vmatprep.subr.mxu0 0.0
      %3756 = vmatpush1.msra.mxu0 %v3721
      %3757 = vmatprep.subr.mxu0 0.0
      %3758 = vmatpush1.msra.mxu0 %v3720
      %3759 = vmatprep.subr.mxu0 0.0
      %3760 = vmatpush1.msra.mxu0 %v3719
      %3761 = vmatprep.subr.mxu0 0.0
      %3762 = vmatpush1.msra.mxu0 %v3718
      %3763 = vmatprep.subr.mxu0 0.0
      %3764 = vmatpush1.msra.mxu0 %v3717
      %3765 = vmatprep.subr.mxu0 0.0
      %3766 = vmatpush1.msra.mxu0 %v3716
      %3767 = vmatprep.subr.mxu0 0.0
      %3768 = vmatpush1.msra.mxu0 %v3715
      %3769 = vmatprep.subr.mxu0 0.0
      %3770 = vmatpush1.msra.mxu0 %v3714
      %3771 = vmatprep.subr.mxu0 0.0
      %3772 = vmatpush1.msra.mxu0 %v3713
      %3773 = vmatprep.subr.mxu0 0.0
      %3774 = vmatpush1.msra.mxu0 %v3712
      %3775 = vmatprep.subr.mxu0 0.0
      %3776 = vmatpush1.msra.mxu0 %v3711
      %3777 = vmatprep.subr.mxu0 0.0
      %3778 = vmatpush2.msra.mxu0 0.0
      %3779 = vmatprep.subr.mxu0 0.0
      %3780 = vmatpush2.msra.mxu0 0.0
      %3781 = vmatprep.subr.mxu0 0.0
      %3782 = vmatpush2.msra.mxu0 0.0
      %3783 = vmatprep.subr.mxu0 0.0
      %3784 = vmatpush2.msra.mxu0 0.0
      %3785 = vmatprep.subr.mxu0 0.0
      %3786 = vmatpush2.msra.mxu0 0.0
      %3787 = vmatprep.subr.mxu0 0.0
      %3788 = vmatpush2.msra.mxu0 0.0
      %3789 = vmatprep.subr.mxu0 0.0
      %3790 = vmatpush2.msra.mxu0 0.0
      %3791 = vmatprep.subr.mxu0 0.0
      %3792 = vmatpush2.msra.mxu0 0.0
      %3793 = vmatprep.subr.mxu0 0.0
      %3794 = vmatpush2.msra.mxu0 %v3734
      %3795 = vmatprep.subr.mxu0 0.0
      %3796 = vmatpush2.msra.mxu0 %v3733
      %3797 = vmatprep.subr.mxu0 0.0
      %3798 = vmatpush2.msra.mxu0 %v3732
      %3799 = vmatprep.subr.mxu0 0.0
      %3800 = vmatpush2.msra.mxu0 %v3731
      %3801 = vmatprep.subr.mxu0 0.0
      %3802 = vmatpush2.msra.mxu0 %v3730
      %3803 = vmatprep.subr.mxu0 0.0
      %3804 = vmatpush2.msra.mxu0 %v3729
      %3805 = vmatprep.subr.mxu0 0.0
      %3806 = vmatpush2.msra.mxu0 %v3728
      %3807 = vmatprep.subr.mxu0 0.0
      %3808 = vmatpush2.msra.mxu0 %v3727
      %3809 = vmatprep.mubr.f32.mxu0 %v3743
      %3810 = vmatmul.mubr.f32.gmra.mxu0 %v3710
      %v3811 = vpop.f32.mrf.mxu0
      %v3812 = vadd.f32 %v3740, %v3811
      %v3813 = vpop.f32.mrf.mxu0
      %3814 = vdwg.mxu0
      %v3815 = vmax.f32 %v3812, 0.0
      %3816 = vmatprep.subr.mxu0 0.0
      %3817 = vmatpush1.msra.mxu0 0.0
      %3818 = vmatprep.subr.mxu0 0.0
      %3819 = vmatpush1.msra.mxu0 0.0
      %3820 = vmatprep.subr.mxu0 0.0
      %3821 = vmatpush1.msra.mxu0 0.0
      %3822 = vmatprep.subr.mxu0 0.0
      %3823 = vmatpush1.msra.mxu0 0.0
      %3824 = vmatprep.subr.mxu0 0.0
      %3825 = vmatpush1.msra.mxu0 0.0
      %3826 = vmatprep.subr.mxu0 0.0
      %3827 = vmatpush1.msra.mxu0 0.0
      %3828 = vmatprep.subr.mxu0 0.0
      %3829 = vmatpush1.msra.mxu0 0.0
      %3830 = vmatprep.subr.mxu0 0.0
      %3831 = vmatpush1.msra.mxu0 0.0
      %3832 = vmatprep.subr.mxu0 0.0
      %3833 = vmatpush1.msra.mxu0 0.0
      %3834 = vmatprep.subr.mxu0 0.0
      %3835 = vmatpush1.msra.mxu0 0.0
      %3836 = vmatprep.subr.mxu0 0.0
      %3837 = vmatpush1.msra.mxu0 0.0
      %3838 = vmatprep.subr.mxu0 0.0
      %3839 = vmatpush1.msra.mxu0 0.0
      %3840 = vmatprep.subr.mxu0 0.0
      %3841 = vmatpush1.msra.mxu0 0.0
      %3842 = vmatprep.subr.mxu0 0.0
      %3843 = vmatpush1.msra.mxu0 0.0
      %3844 = vmatprep.subr.mxu0 0.0
      %3845 = vmatpush1.msra.mxu0 0.0
      %3846 = vmatprep.subr.mxu0 0.0
      %3847 = vmatpush1.msra.mxu0 %v3815
      %3848 = vmatprep.subr.mxu0 0.0
      %3849 = vmatpush2.msra.mxu0 0.0
      %3850 = vmatprep.subr.mxu0 0.0
      %3851 = vmatpush2.msra.mxu0 0.0
      %3852 = vmatprep.subr.mxu0 0.0
      %3853 = vmatpush2.msra.mxu0 0.0
      %3854 = vmatprep.subr.mxu0 0.0
      %3855 = vmatpush2.msra.mxu0 0.0
      %3856 = vmatprep.subr.mxu0 0.0
      %3857 = vmatpush2.msra.mxu0 0.0
      %3858 = vmatprep.subr.mxu0 0.0
      %3859 = vmatpush2.msra.mxu0 0.0
      %3860 = vmatprep.subr.mxu0 0.0
      %3861 = vmatpush2.msra.mxu0 0.0
      %3862 = vmatprep.subr.mxu0 0.0
      %3863 = vmatpush2.msra.mxu0 0.0
      %3864 = vmatprep.subr.mxu0 0.0
      %3865 = vmatpush2.msra.mxu0 0.0
      %3866 = vmatprep.subr.mxu0 0.0
      %3867 = vmatpush2.msra.mxu0 0.0
      %3868 = vmatprep.subr.mxu0 0.0
      %3869 = vmatpush2.msra.mxu0 0.0
      %3870 = vmatprep.subr.mxu0 0.0
      %3871 = vmatpush2.msra.mxu0 0.0
      %3872 = vmatprep.subr.mxu0 0.0
      %3873 = vmatpush2.msra.mxu0 0.0
      %3874 = vmatprep.subr.mxu0 0.0
      %3875 = vmatpush2.msra.mxu0 0.0
      %3876 = vmatprep.subr.mxu0 0.0
      %3877 = vmatpush2.msra.mxu0 0.0
      %3878 = vmatprep.subr.mxu0 0.0
      %3879 = vmatpush2.msra.mxu0 0.0
      %3880 = vmatprep.mubr.f32.mxu0 0.0
      %3881 = vmatmul.mubr.f32.gmra.mxu0 %v2394
      %v3882 = vpop.f32.mrf.mxu0
      %v3883 = vadd.f32 0.0, %v3882
      %v3884 = vpop.f32.mrf.mxu0
      %3885 = vmatprep.mubr.f32.mxu0 0.0
      %3886 = vmatmul.mubr.f32.gmra.mxu0 %v2397
      %v3887 = vpop.f32.mrf.mxu0
      %v3888 = vadd.f32 0.0, %v3887
      %v3889 = vpop.f32.mrf.mxu0
      %3890 = vdwg.mxu0
      %3892 = vrot.lane.b32.xlu0 %v3883, 32
      %v3893 = vpop.permute.xlu0 %3892
      %3896 = vrot.lane.b32.xlu0 %v3888, 64
      %v3897 = vpop.permute.xlu0 %3896
      %v3899 = vsel %vm2197, %v3815, %v3893
      %v3900 = vsel %vm2655, %v3899, %v3897
      %v3901 = vld [vmem:[%s59] sm:$0xff]
      %v3902 = vld [vmem:[%s59 + $0x8] sm:$0xff]
      %v3903 = vld [vmem:[%s59 + $0x10] sm:$0xff]
      %v3904 = vld [vmem:[%s59 + $0x18] sm:$0xff]
      %v3905 = vld [vmem:[%s59 + $0x20] sm:$0xff]
      %v3906 = vld [vmem:[%s59 + $0x28] sm:$0xff]
      %v3907 = vld [vmem:[%s59 + $0x30] sm:$0xff]
      %v3908 = vld [vmem:[%s59 + $0x38] sm:$0xff]
      %v3909 = vld [vmem:[%s59 + $0x40] sm:$0xff]
      %v3910 = vld [vmem:[%s59 + $0x48] sm:$0xff]
      %v3911 = vld [vmem:[%s59 + $0x50] sm:$0xff]
      %v3912 = vld [vmem:[%s59 + $0x58] sm:$0xff]
      %v3913 = vld [vmem:[%s61] sm:$0x1]
      %v3915 = vlaneseq
      %v3916 = vshrl.u32 %v3915, 7
      %v3917 = vsub.s32 0, %v3916
      %v3918 = vrot.slane %v3913, %v3917
      %v3921 = vsel %vm2676, %v3900, 0
      %3923 = vmatprep.subr.mxu0 0.0
      %3924 = vmatpush1.msra.mxu0 0.0
      %3925 = vmatprep.subr.mxu0 0.0
      %3926 = vmatpush1.msra.mxu0 0.0
      %3927 = vmatprep.subr.mxu0 0.0
      %3928 = vmatpush1.msra.mxu0 0.0
      %3929 = vmatprep.subr.mxu0 0.0
      %3930 = vmatpush1.msra.mxu0 0.0
      %3931 = vmatprep.subr.mxu0 0.0
      %3932 = vmatpush1.msra.mxu0 %v3912
      %3933 = vmatprep.subr.mxu0 0.0
      %3934 = vmatpush1.msra.mxu0 %v3911
      %3935 = vmatprep.subr.mxu0 0.0
      %3936 = vmatpush1.msra.mxu0 %v3910
      %3937 = vmatprep.subr.mxu0 0.0
      %3938 = vmatpush1.msra.mxu0 %v3909
      %3939 = vmatprep.subr.mxu0 0.0
      %3940 = vmatpush1.msra.mxu0 %v3908
      %3941 = vmatprep.subr.mxu0 0.0
      %3942 = vmatpush1.msra.mxu0 %v3907
      %3943 = vmatprep.subr.mxu0 0.0
      %3944 = vmatpush1.msra.mxu0 %v3906
      %3945 = vmatprep.subr.mxu0 0.0
      %3946 = vmatpush1.msra.mxu0 %v3905
      %3947 = vmatprep.subr.mxu0 0.0
      %3948 = vmatpush1.msra.mxu0 %v3904
      %3949 = vmatprep.subr.mxu0 0.0
      %3950 = vmatpush1.msra.mxu0 %v3903
      %3951 = vmatprep.subr.mxu0 0.0
      %3952 = vmatpush1.msra.mxu0 %v3902
      %3953 = vmatprep.subr.mxu0 0.0
      %3954 = vmatpush1.msra.mxu0 %v3901
      %3955 = vmatprep.subr.mxu0 0.0
      %3956 = vmatpush2.msra.mxu0 0.0
      %3957 = vmatprep.subr.mxu0 0.0
      %3958 = vmatpush2.msra.mxu0 0.0
      %3959 = vmatprep.subr.mxu0 0.0
      %3960 = vmatpush2.msra.mxu0 0.0
      %3961 = vmatprep.subr.mxu0 0.0
      %3962 = vmatpush2.msra.mxu0 0.0
      %3963 = vmatprep.subr.mxu0 0.0
      %3964 = vmatpush2.msra.mxu0 0.0
      %3965 = vmatprep.subr.mxu0 0.0
      %3966 = vmatpush2.msra.mxu0 0.0
      %3967 = vmatprep.subr.mxu0 0.0
      %3968 = vmatpush2.msra.mxu0 0.0
      %3969 = vmatprep.subr.mxu0 0.0
      %3970 = vmatpush2.msra.mxu0 0.0
      %3971 = vmatprep.subr.mxu0 0.0
      %3972 = vmatpush2.msra.mxu0 0.0
      %3973 = vmatprep.subr.mxu0 0.0
      %3974 = vmatpush2.msra.mxu0 0.0
      %3975 = vmatprep.subr.mxu0 0.0
      %3976 = vmatpush2.msra.mxu0 0.0
      %3977 = vmatprep.subr.mxu0 0.0
      %3978 = vmatpush2.msra.mxu0 0.0
      %3979 = vmatprep.subr.mxu0 0.0
      %3980 = vmatpush2.msra.mxu0 0.0
      %3981 = vmatprep.subr.mxu0 0.0
      %3982 = vmatpush2.msra.mxu0 0.0
      %3983 = vmatprep.subr.mxu0 0.0
      %3984 = vmatpush2.msra.mxu0 0.0
      %3985 = vmatprep.subr.mxu0 0.0
      %3986 = vmatpush2.msra.mxu0 0.0
      %3987 = vmatprep.mubr.f32.mxu0 0.0
      %3988 = vmatmul.mubr.f32.gmra.mxu0 %v3921
      %v3989 = vpop.f32.mrf.mxu0
      %v3990 = vadd.f32 %v3918, %v3989
      %v3991 = vpop.f32.mrf.mxu0
      %3992 = vdwg.mxu0
      %v3993 = vmax.f32 %v3990, 0.0
      %v3994 = vld [vmem:[%s65] sm:$0xff]
      %v3995 = vld [vmem:[%s65 + $0x8] sm:$0xff]
      %v3996 = vld [vmem:[%s65 + $0x10] sm:$0xff]
      %v3997 = vld [vmem:[%s65 + $0x18] sm:$0xff]
      %v3999 = vsel %vm2197, %v3993, 0
      %4001 = vmatprep.subr.mxu0 0.0
      %4002 = vmatpush1.msra.mxu0 0.0
      %4003 = vmatprep.subr.mxu0 0.0
      %4004 = vmatpush1.msra.mxu0 0.0
      %4005 = vmatprep.subr.mxu0 0.0
      %4006 = vmatpush1.msra.mxu0 0.0
      %4007 = vmatprep.subr.mxu0 0.0
      %4008 = vmatpush1.msra.mxu0 0.0
      %4009 = vmatprep.subr.mxu0 0.0
      %4010 = vmatpush1.msra.mxu0 0.0
      %4011 = vmatprep.subr.mxu0 0.0
      %4012 = vmatpush1.msra.mxu0 0.0
      %4013 = vmatprep.subr.mxu0 0.0
      %4014 = vmatpush1.msra.mxu0 0.0
      %4015 = vmatprep.subr.mxu0 0.0
      %4016 = vmatpush1.msra.mxu0 0.0
      %4017 = vmatprep.subr.mxu0 0.0
      %4018 = vmatpush1.msra.mxu0 0.0
      %4019 = vmatprep.subr.mxu0 0.0
      %4020 = vmatpush1.msra.mxu0 0.0
      %4021 = vmatprep.subr.mxu0 0.0
      %4022 = vmatpush1.msra.mxu0 0.0
      %4023 = vmatprep.subr.mxu0 0.0
      %4024 = vmatpush1.msra.mxu0 0.0
      %4025 = vmatprep.subr.mxu0 0.0
      %4026 = vmatpush1.msra.mxu0 %v3997
      %4027 = vmatprep.subr.mxu0 0.0
      %4028 = vmatpush1.msra.mxu0 %v3996
      %4029 = vmatprep.subr.mxu0 0.0
      %4030 = vmatpush1.msra.mxu0 %v3995
      %4031 = vmatprep.subr.mxu0 0.0
      %4032 = vmatpush1.msra.mxu0 %v3994
      %4033 = vmatprep.subr.mxu0 0.0
      %4034 = vmatpush2.msra.mxu0 0.0
      %4035 = vmatprep.subr.mxu0 0.0
      %4036 = vmatpush2.msra.mxu0 0.0
      %4037 = vmatprep.subr.mxu0 0.0
      %4038 = vmatpush2.msra.mxu0 0.0
      %4039 = vmatprep.subr.mxu0 0.0
      %4040 = vmatpush2.msra.mxu0 0.0
      %4041 = vmatprep.subr.mxu0 0.0
      %4042 = vmatpush2.msra.mxu0 0.0
      %4043 = vmatprep.subr.mxu0 0.0
      %4044 = vmatpush2.msra.mxu0 0.0
      %4045 = vmatprep.subr.mxu0 0.0
      %4046 = vmatpush2.msra.mxu0 0.0
      %4047 = vmatprep.subr.mxu0 0.0
      %4048 = vmatpush2.msra.mxu0 0.0
      %4049 = vmatprep.subr.mxu0 0.0
      %4050 = vmatpush2.msra.mxu0 0.0
      %4051 = vmatprep.subr.mxu0 0.0
      %4052 = vmatpush2.msra.mxu0 0.0
      %4053 = vmatprep.subr.mxu0 0.0
      %4054 = vmatpush2.msra.mxu0 0.0
      %4055 = vmatprep.subr.mxu0 0.0
      %4056 = vmatpush2.msra.mxu0 0.0
      %4057 = vmatprep.subr.mxu0 0.0
      %4058 = vmatpush2.msra.mxu0 0.0
      %4059 = vmatprep.subr.mxu0 0.0
      %4060 = vmatpush2.msra.mxu0 0.0
      %4061 = vmatprep.subr.mxu0 0.0
      %4062 = vmatpush2.msra.mxu0 0.0
      %4063 = vmatprep.subr.mxu0 0.0
      %4064 = vmatpush2.msra.mxu0 0.0
      %4065 = vmatprep.mubr.f32.mxu0 0.0
      %4066 = vmatmul.mubr.f32.gmra.mxu0 %v3999
      %v4067 = vpop.f32.mrf.mxu0
      %v4068 = vadd.f32 0.0, %v4067
      %v4069 = vpop.f32.mrf.mxu0
      %4070 = vdwg.mxu0
      %v4071 = vld [vmem:[%s63] sm:$0xff]
      %s4072 = scalar_lea.vmem %s63, 8
      %v4073 = vld [vmem:[%s4072] sm:$0xff]
      %4075 = vrot.lane.b32.xlu0 %v4068, 112
      %v4076 = vpop.permute.xlu0 %4075
      %v4079 = vsel %vm1734, %v4073, 0
      %4081 = vmatprep.subr.mxu0 0.0
      %4082 = vmatpush1.msra.mxu0 0.0
      %4083 = vmatprep.subr.mxu0 0.0
      %4084 = vmatpush1.msra.mxu0 0.0
      %4085 = vmatprep.subr.mxu0 0.0
      %4086 = vmatpush1.msra.mxu0 0.0
      %4087 = vmatprep.subr.mxu0 0.0
      %4088 = vmatpush1.msra.mxu0 0.0
      %4089 = vmatprep.subr.mxu0 0.0
      %4090 = vmatpush1.msra.mxu0 0.0
      %4091 = vmatprep.subr.mxu0 0.0
      %4092 = vmatpush1.msra.mxu0 0.0
      %4093 = vmatprep.subr.mxu0 0.0
      %4094 = vmatpush1.msra.mxu0 0.0
      %4095 = vmatprep.subr.mxu0 0.0
      %4096 = vmatpush1.msra.mxu0 0.0
      %4097 = vmatprep.subr.mxu0 0.0
      %4098 = vmatpush1.msra.mxu0 0.0
      %4099 = vmatprep.subr.mxu0 0.0
      %4100 = vmatpush1.msra.mxu0 0.0
      %4101 = vmatprep.subr.mxu0 0.0
      %4102 = vmatpush1.msra.mxu0 0.0
      %4103 = vmatprep.subr.mxu0 0.0
      %4104 = vmatpush1.msra.mxu0 0.0
      %4105 = vmatprep.subr.mxu0 0.0
      %4106 = vmatpush1.msra.mxu0 0.0
      %4107 = vmatprep.subr.mxu0 0.0
      %4108 = vmatpush1.msra.mxu0 0.0
      %4109 = vmatprep.subr.mxu0 0.0
      %4110 = vmatpush1.msra.mxu0 0.0
      %4111 = vmatprep.subr.mxu0 0.0
      %4112 = vmatpush1.msra.mxu0 %v4076
      %4113 = vmatprep.subr.mxu0 0.0
      %4114 = vmatpush2.msra.mxu0 0.0
      %4115 = vmatprep.subr.mxu0 0.0
      %4116 = vmatpush2.msra.mxu0 0.0
      %4117 = vmatprep.subr.mxu0 0.0
      %4118 = vmatpush2.msra.mxu0 0.0
      %4119 = vmatprep.subr.mxu0 0.0
      %4120 = vmatpush2.msra.mxu0 0.0
      %4121 = vmatprep.subr.mxu0 0.0
      %4122 = vmatpush2.msra.mxu0 0.0
      %4123 = vmatprep.subr.mxu0 0.0
      %4124 = vmatpush2.msra.mxu0 0.0
      %4125 = vmatprep.subr.mxu0 0.0
      %4126 = vmatpush2.msra.mxu0 0.0
      %4127 = vmatprep.subr.mxu0 0.0
      %4128 = vmatpush2.msra.mxu0 0.0
      %4129 = vmatprep.subr.mxu0 0.0
      %4130 = vmatpush2.msra.mxu0 0.0
      %4131 = vmatprep.subr.mxu0 0.0
      %4132 = vmatpush2.msra.mxu0 0.0
      %4133 = vmatprep.subr.mxu0 0.0
      %4134 = vmatpush2.msra.mxu0 0.0
      %4135 = vmatprep.subr.mxu0 0.0
      %4136 = vmatpush2.msra.mxu0 0.0
      %4137 = vmatprep.subr.mxu0 0.0
      %4138 = vmatpush2.msra.mxu0 0.0
      %4139 = vmatprep.subr.mxu0 0.0
      %4140 = vmatpush2.msra.mxu0 0.0
      %4141 = vmatprep.subr.mxu0 0.0
      %4142 = vmatpush2.msra.mxu0 0.0
      %4143 = vmatprep.subr.mxu0 0.0
      %4144 = vmatpush2.msra.mxu0 0.0
      %4145 = vmatprep.mubr.f32.mxu0 0.0
      %4146 = vmatmul.mubr.f32.gmra.mxu0 %v4079
      %v4147 = vpop.f32.mrf.mxu0
      %v4148 = vadd.f32 0.0, %v4147
      %v4149 = vpop.f32.mrf.mxu0
      %4150 = vdwg.mxu0
      %v4152 = vsel %vm1734, %v4071, 0
      %4154 = vmatprep.subr.mxu0 0.0
      %4155 = vmatpush1.msra.mxu0 0.0
      %4156 = vmatprep.subr.mxu0 0.0
      %4157 = vmatpush1.msra.mxu0 0.0
      %4158 = vmatprep.subr.mxu0 0.0
      %4159 = vmatpush1.msra.mxu0 0.0
      %4160 = vmatprep.subr.mxu0 0.0
      %4161 = vmatpush1.msra.mxu0 0.0
      %4162 = vmatprep.subr.mxu0 0.0
      %4163 = vmatpush1.msra.mxu0 0.0
      %4164 = vmatprep.subr.mxu0 0.0
      %4165 = vmatpush1.msra.mxu0 0.0
      %4166 = vmatprep.subr.mxu0 0.0
      %4167 = vmatpush1.msra.mxu0 0.0
      %4168 = vmatprep.subr.mxu0 0.0
      %4169 = vmatpush1.msra.mxu0 0.0
      %4170 = vmatprep.subr.mxu0 0.0
      %4171 = vmatpush1.msra.mxu0 0.0
      %4172 = vmatprep.subr.mxu0 0.0
      %4173 = vmatpush1.msra.mxu0 0.0
      %4174 = vmatprep.subr.mxu0 0.0
      %4175 = vmatpush1.msra.mxu0 0.0
      %4176 = vmatprep.subr.mxu0 0.0
      %4177 = vmatpush1.msra.mxu0 0.0
      %4178 = vmatprep.subr.mxu0 0.0
      %4179 = vmatpush1.msra.mxu0 0.0
      %4180 = vmatprep.subr.mxu0 0.0
      %4181 = vmatpush1.msra.mxu0 0.0
      %4182 = vmatprep.subr.mxu0 0.0
      %4183 = vmatpush1.msra.mxu0 0.0
      %4184 = vmatprep.subr.mxu0 0.0
      %4185 = vmatpush1.msra.mxu0 %v4068
      %4186 = vmatprep.subr.mxu0 0.0
      %4187 = vmatpush2.msra.mxu0 0.0
      %4188 = vmatprep.subr.mxu0 0.0
      %4189 = vmatpush2.msra.mxu0 0.0
      %4190 = vmatprep.subr.mxu0 0.0
      %4191 = vmatpush2.msra.mxu0 0.0
      %4192 = vmatprep.subr.mxu0 0.0
      %4193 = vmatpush2.msra.mxu0 0.0
      %4194 = vmatprep.subr.mxu0 0.0
      %4195 = vmatpush2.msra.mxu0 0.0
      %4196 = vmatprep.subr.mxu0 0.0
      %4197 = vmatpush2.msra.mxu0 0.0
      %4198 = vmatprep.subr.mxu0 0.0
      %4199 = vmatpush2.msra.mxu0 0.0
      %4200 = vmatprep.subr.mxu0 0.0
      %4201 = vmatpush2.msra.mxu0 0.0
      %4202 = vmatprep.subr.mxu0 0.0
      %4203 = vmatpush2.msra.mxu0 0.0
      %4204 = vmatprep.subr.mxu0 0.0
      %4205 = vmatpush2.msra.mxu0 0.0
      %4206 = vmatprep.subr.mxu0 0.0
      %4207 = vmatpush2.msra.mxu0 0.0
      %4208 = vmatprep.subr.mxu0 0.0
      %4209 = vmatpush2.msra.mxu0 0.0
      %4210 = vmatprep.subr.mxu0 0.0
      %4211 = vmatpush2.msra.mxu0 0.0
      %4212 = vmatprep.subr.mxu0 0.0
      %4213 = vmatpush2.msra.mxu0 0.0
      %4214 = vmatprep.subr.mxu0 0.0
      %4215 = vmatpush2.msra.mxu0 0.0
      %4216 = vmatprep.subr.mxu0 0.0
      %4217 = vmatpush2.msra.mxu0 0.0
      %4218 = vmatprep.mubr.f32.mxu0 0.0
      %4219 = vmatmul.mubr.f32.gmra.mxu0 %v4152
      %v4220 = vpop.f32.mrf.mxu0
      %v4221 = vadd.f32 %v4148, %v4220
      %v4222 = vpop.f32.mrf.mxu0
      %4223 = vdwg.mxu0
      %s4224 = scalar_lea.vmem %s63, 16
      %v4225 = vld [vmem:[%s4224] sm:$0xff]
      %4226 = vrot.lane.b32.xlu0 %v4068, 96
      %v4227 = vpop.permute.xlu0 %4226
      %v4230 = vsel %vm1734, %v4225, 0
      %4232 = vmatprep.subr.mxu0 0.0
      %4233 = vmatpush1.msra.mxu0 0.0
      %4234 = vmatprep.subr.mxu0 0.0
      %4235 = vmatpush1.msra.mxu0 0.0
      %4236 = vmatprep.subr.mxu0 0.0
      %4237 = vmatpush1.msra.mxu0 0.0
      %4238 = vmatprep.subr.mxu0 0.0
      %4239 = vmatpush1.msra.mxu0 0.0
      %4240 = vmatprep.subr.mxu0 0.0
      %4241 = vmatpush1.msra.mxu0 0.0
      %4242 = vmatprep.subr.mxu0 0.0
      %4243 = vmatpush1.msra.mxu0 0.0
      %4244 = vmatprep.subr.mxu0 0.0
      %4245 = vmatpush1.msra.mxu0 0.0
      %4246 = vmatprep.subr.mxu0 0.0
      %4247 = vmatpush1.msra.mxu0 0.0
      %4248 = vmatprep.subr.mxu0 0.0
      %4249 = vmatpush1.msra.mxu0 0.0
      %4250 = vmatprep.subr.mxu0 0.0
      %4251 = vmatpush1.msra.mxu0 0.0
      %4252 = vmatprep.subr.mxu0 0.0
      %4253 = vmatpush1.msra.mxu0 0.0
      %4254 = vmatprep.subr.mxu0 0.0
      %4255 = vmatpush1.msra.mxu0 0.0
      %4256 = vmatprep.subr.mxu0 0.0
      %4257 = vmatpush1.msra.mxu0 0.0
      %4258 = vmatprep.subr.mxu0 0.0
      %4259 = vmatpush1.msra.mxu0 0.0
      %4260 = vmatprep.subr.mxu0 0.0
      %4261 = vmatpush1.msra.mxu0 0.0
      %4262 = vmatprep.subr.mxu0 0.0
      %4263 = vmatpush1.msra.mxu0 %v4227
      %4264 = vmatprep.subr.mxu0 0.0
      %4265 = vmatpush2.msra.mxu0 0.0
      %4266 = vmatprep.subr.mxu0 0.0
      %4267 = vmatpush2.msra.mxu0 0.0
      %4268 = vmatprep.subr.mxu0 0.0
      %4269 = vmatpush2.msra.mxu0 0.0
      %4270 = vmatprep.subr.mxu0 0.0
      %4271 = vmatpush2.msra.mxu0 0.0
      %4272 = vmatprep.subr.mxu0 0.0
      %4273 = vmatpush2.msra.mxu0 0.0
      %4274 = vmatprep.subr.mxu0 0.0
      %4275 = vmatpush2.msra.mxu0 0.0
      %4276 = vmatprep.subr.mxu0 0.0
      %4277 = vmatpush2.msra.mxu0 0.0
      %4278 = vmatprep.subr.mxu0 0.0
      %4279 = vmatpush2.msra.mxu0 0.0
      %4280 = vmatprep.subr.mxu0 0.0
      %4281 = vmatpush2.msra.mxu0 0.0
      %4282 = vmatprep.subr.mxu0 0.0
      %4283 = vmatpush2.msra.mxu0 0.0
      %4284 = vmatprep.subr.mxu0 0.0
      %4285 = vmatpush2.msra.mxu0 0.0
      %4286 = vmatprep.subr.mxu0 0.0
      %4287 = vmatpush2.msra.mxu0 0.0
      %4288 = vmatprep.subr.mxu0 0.0
      %4289 = vmatpush2.msra.mxu0 0.0
      %4290 = vmatprep.subr.mxu0 0.0
      %4291 = vmatpush2.msra.mxu0 0.0
      %4292 = vmatprep.subr.mxu0 0.0
      %4293 = vmatpush2.msra.mxu0 0.0
      %4294 = vmatprep.subr.mxu0 0.0
      %4295 = vmatpush2.msra.mxu0 0.0
      %4296 = vmatprep.mubr.f32.mxu0 0.0
      %4297 = vmatmul.mubr.f32.gmra.mxu0 %v4230
      %v4298 = vpop.f32.mrf.mxu0
      %v4299 = vadd.f32 0.0, %v4298
      %v4300 = vpop.f32.mrf.mxu0
      %4301 = vdwg.mxu0
      %v4302 = vadd.f32 %v4221, %v4299
      %s4303 = scalar_lea.vmem %s63, 24
      %v4304 = vld [vmem:[%s4303] sm:$0xff]
      %4305 = vrot.lane.b32.xlu0 %v4068, 80
      %v4306 = vpop.permute.xlu0 %4305
      %v4309 = vsel %vm1734, %v4304, 0
      %4311 = vmatprep.subr.mxu0 0.0
      %4312 = vmatpush1.msra.mxu0 0.0
      %4313 = vmatprep.subr.mxu0 0.0
      %4314 = vmatpush1.msra.mxu0 0.0
      %4315 = vmatprep.subr.mxu0 0.0
      %4316 = vmatpush1.msra.mxu0 0.0
      %4317 = vmatprep.subr.mxu0 0.0
      %4318 = vmatpush1.msra.mxu0 0.0
      %4319 = vmatprep.subr.mxu0 0.0
      %4320 = vmatpush1.msra.mxu0 0.0
      %4321 = vmatprep.subr.mxu0 0.0
      %4322 = vmatpush1.msra.mxu0 0.0
      %4323 = vmatprep.subr.mxu0 0.0
      %4324 = vmatpush1.msra.mxu0 0.0
      %4325 = vmatprep.subr.mxu0 0.0
      %4326 = vmatpush1.msra.mxu0 0.0
      %4327 = vmatprep.subr.mxu0 0.0
      %4328 = vmatpush1.msra.mxu0 0.0
      %4329 = vmatprep.subr.mxu0 0.0
      %4330 = vmatpush1.msra.mxu0 0.0
      %4331 = vmatprep.subr.mxu0 0.0
      %4332 = vmatpush1.msra.mxu0 0.0
      %4333 = vmatprep.subr.mxu0 0.0
      %4334 = vmatpush1.msra.mxu0 0.0
      %4335 = vmatprep.subr.mxu0 0.0
      %4336 = vmatpush1.msra.mxu0 0.0
      %4337 = vmatprep.subr.mxu0 0.0
      %4338 = vmatpush1.msra.mxu0 0.0
      %4339 = vmatprep.subr.mxu0 0.0
      %4340 = vmatpush1.msra.mxu0 0.0
      %4341 = vmatprep.subr.mxu0 0.0
      %4342 = vmatpush1.msra.mxu0 %v4306
      %4343 = vmatprep.subr.mxu0 0.0
      %4344 = vmatpush2.msra.mxu0 0.0
      %4345 = vmatprep.subr.mxu0 0.0
      %4346 = vmatpush2.msra.mxu0 0.0
      %4347 = vmatprep.subr.mxu0 0.0
      %4348 = vmatpush2.msra.mxu0 0.0
      %4349 = vmatprep.subr.mxu0 0.0
      %4350 = vmatpush2.msra.mxu0 0.0
      %4351 = vmatprep.subr.mxu0 0.0
      %4352 = vmatpush2.msra.mxu0 0.0
      %4353 = vmatprep.subr.mxu0 0.0
      %4354 = vmatpush2.msra.mxu0 0.0
      %4355 = vmatprep.subr.mxu0 0.0
      %4356 = vmatpush2.msra.mxu0 0.0
      %4357 = vmatprep.subr.mxu0 0.0
      %4358 = vmatpush2.msra.mxu0 0.0
      %4359 = vmatprep.subr.mxu0 0.0
      %4360 = vmatpush2.msra.mxu0 0.0
      %4361 = vmatprep.subr.mxu0 0.0
      %4362 = vmatpush2.msra.mxu0 0.0
      %4363 = vmatprep.subr.mxu0 0.0
      %4364 = vmatpush2.msra.mxu0 0.0
      %4365 = vmatprep.subr.mxu0 0.0
      %4366 = vmatpush2.msra.mxu0 0.0
      %4367 = vmatprep.subr.mxu0 0.0
      %4368 = vmatpush2.msra.mxu0 0.0
      %4369 = vmatprep.subr.mxu0 0.0
      %4370 = vmatpush2.msra.mxu0 0.0
      %4371 = vmatprep.subr.mxu0 0.0
      %4372 = vmatpush2.msra.mxu0 0.0
      %4373 = vmatprep.subr.mxu0 0.0
      %4374 = vmatpush2.msra.mxu0 0.0
      %4375 = vmatprep.mubr.f32.mxu0 0.0
      %4376 = vmatmul.mubr.f32.gmra.mxu0 %v4309
      %v4377 = vpop.f32.mrf.mxu0
      %v4378 = vadd.f32 0.0, %v4377
      %v4379 = vpop.f32.mrf.mxu0
      %4380 = vdwg.mxu0
      %v4381 = vadd.f32 %v4302, %v4378
      %v4382 = vld [vmem:[%s67] sm:$0x1]
      %v4384 = vlaneseq
      %v4385 = vshrl.u32 %v4384, 7
      %v4386 = vsub.s32 0, %v4385
      %v4387 = vrot.slane %v4382, %v4386
      %v4389 = vadd.f32 %v4381, %v4387
      %4391 = vrot.lane.b32.xlu0 %v2286, 16
      %v4392 = vpop.permute.xlu0 %4391
      %v4394 = vsel %vm1413, %v4389, %v4392
      %4395 = vmatprep.subr.mxu0 0.0
      %4396 = vmatpush1.msra.mxu0 0.0
      %4397 = vmatprep.subr.mxu0 0.0
      %4398 = vmatpush1.msra.mxu0 0.0
      %4399 = vmatprep.subr.mxu0 0.0
      %4400 = vmatpush1.msra.mxu0 0.0
      %4401 = vmatprep.subr.mxu0 0.0
      %4402 = vmatpush1.msra.mxu0 0.0
      %4403 = vmatprep.subr.mxu0 0.0
      %4404 = vmatpush1.msra.mxu0 0.0
      %4405 = vmatprep.subr.mxu0 0.0
      %4406 = vmatpush1.msra.mxu0 0.0
      %4407 = vmatprep.subr.mxu0 0.0
      %4408 = vmatpush1.msra.mxu0 0.0
      %4409 = vmatprep.subr.mxu0 0.0
      %4410 = vmatpush1.msra.mxu0 0.0
      %4411 = vmatprep.subr.mxu0 0.0
      %4412 = vmatpush1.msra.mxu0 0.0
      %4413 = vmatprep.subr.mxu0 0.0
      %4414 = vmatpush1.msra.mxu0 0.0
      %4415 = vmatprep.subr.mxu0 0.0
      %4416 = vmatpush1.msra.mxu0 0.0
      %4417 = vmatprep.subr.mxu0 0.0
      %4418 = vmatpush1.msra.mxu0 0.0
      %4419 = vmatprep.subr.mxu0 0.0
      %4420 = vmatpush1.msra.mxu0 0.0
      %4421 = vmatprep.subr.mxu0 0.0
      %4422 = vmatpush1.msra.mxu0 0.0
      %4423 = vmatprep.subr.mxu0 0.0
      %4424 = vmatpush1.msra.mxu0 0.0
      %4425 = vmatprep.subr.mxu0 0.0
      %4426 = vmatpush1.msra.mxu0 %v4394
      %4427 = vmatprep.subr.mxu0 0.0
      %4428 = vmatpush2.msra.mxu0 0.0
      %4429 = vmatprep.subr.mxu0 0.0
      %4430 = vmatpush2.msra.mxu0 0.0
      %4431 = vmatprep.subr.mxu0 0.0
      %4432 = vmatpush2.msra.mxu0 0.0
      %4433 = vmatprep.subr.mxu0 0.0
      %4434 = vmatpush2.msra.mxu0 0.0
      %4435 = vmatprep.subr.mxu0 0.0
      %4436 = vmatpush2.msra.mxu0 0.0
      %4437 = vmatprep.subr.mxu0 0.0
      %4438 = vmatpush2.msra.mxu0 0.0
      %4439 = vmatprep.subr.mxu0 0.0
      %4440 = vmatpush2.msra.mxu0 0.0
      %4441 = vmatprep.subr.mxu0 0.0
      %4442 = vmatpush2.msra.mxu0 0.0
      %4443 = vmatprep.subr.mxu0 0.0
      %4444 = vmatpush2.msra.mxu0 0.0
      %4445 = vmatprep.subr.mxu0 0.0
      %4446 = vmatpush2.msra.mxu0 0.0
      %4447 = vmatprep.subr.mxu0 0.0
      %4448 = vmatpush2.msra.mxu0 0.0
      %4449 = vmatprep.subr.mxu0 0.0
      %4450 = vmatpush2.msra.mxu0 0.0
      %4451 = vmatprep.subr.mxu0 0.0
      %4452 = vmatpush2.msra.mxu0 0.0
      %4453 = vmatprep.subr.mxu0 0.0
      %4454 = vmatpush2.msra.mxu0 0.0
      %4455 = vmatprep.subr.mxu0 0.0
      %4456 = vmatpush2.msra.mxu0 0.0
      %4457 = vmatprep.subr.mxu0 0.0
      %4458 = vmatpush2.msra.mxu0 0.0
      %4459 = vmatprep.mubr.f32.mxu0 0.0
      %4460 = vmatmul.mubr.f32.gmra.mxu0 %v1939
      %v4461 = vpop.f32.mrf.mxu0
      %v4462 = vadd.f32 0.0, %v4461
      %v4463 = vpop.f32.mrf.mxu0
      %4464 = vmatprep.mubr.f32.mxu0 0.0
      %4465 = vmatmul.mubr.f32.gmra.mxu0 %v1942
      %v4466 = vpop.f32.mrf.mxu0
      %v4467 = vadd.f32 0.0, %v4466
      %v4468 = vpop.f32.mrf.mxu0
      %4469 = vdwg.mxu0
      %4471 = vrot.lane.b32.xlu0 %v4462, 32
      %v4472 = vpop.permute.xlu0 %4471
      %4475 = vrot.lane.b32.xlu0 %v4467, 64
      %v4476 = vpop.permute.xlu0 %4475
      %v4478 = vsel %vm2197, %v4394, %v4472
      %v4479 = vsel %vm2655, %v4478, %v4476
      %v4480 = vld [vmem:[%s69] sm:$0xff]
      %v4481 = vld [vmem:[%s69 + $0x8] sm:$0xff]
      %v4482 = vld [vmem:[%s69 + $0x10] sm:$0xff]
      %v4483 = vld [vmem:[%s69 + $0x18] sm:$0xff]
      %v4484 = vld [vmem:[%s69 + $0x20] sm:$0xff]
      %v4485 = vld [vmem:[%s69 + $0x28] sm:$0xff]
      %v4486 = vld [vmem:[%s69 + $0x30] sm:$0xff]
      %v4487 = vld [vmem:[%s69 + $0x38] sm:$0xff]
      %v4488 = vld [vmem:[%s69 + $0x40] sm:$0xff]
      %v4489 = vld [vmem:[%s69 + $0x48] sm:$0xff]
      %v4490 = vld [vmem:[%s69 + $0x50] sm:$0xff]
      %v4491 = vld [vmem:[%s69 + $0x58] sm:$0xff]
      %v4492 = vld [vmem:[%s71] sm:$0x1]
      %v4494 = vlaneseq
      %v4495 = vshrl.u32 %v4494, 7
      %v4496 = vsub.s32 0, %v4495
      %v4497 = vrot.slane %v4492, %v4496
      %v4500 = vsel %vm2676, %v4479, 0
      %4502 = vmatprep.subr.mxu0 0.0
      %4503 = vmatpush1.msra.mxu0 0.0
      %4504 = vmatprep.subr.mxu0 0.0
      %4505 = vmatpush1.msra.mxu0 0.0
      %4506 = vmatprep.subr.mxu0 0.0
      %4507 = vmatpush1.msra.mxu0 0.0
      %4508 = vmatprep.subr.mxu0 0.0
      %4509 = vmatpush1.msra.mxu0 0.0
      %4510 = vmatprep.subr.mxu0 0.0
      %4511 = vmatpush1.msra.mxu0 %v4491
      %4512 = vmatprep.subr.mxu0 0.0
      %4513 = vmatpush1.msra.mxu0 %v4490
      %4514 = vmatprep.subr.mxu0 0.0
      %4515 = vmatpush1.msra.mxu0 %v4489
      %4516 = vmatprep.subr.mxu0 0.0
      %4517 = vmatpush1.msra.mxu0 %v4488
      %4518 = vmatprep.subr.mxu0 0.0
      %4519 = vmatpush1.msra.mxu0 %v4487
      %4520 = vmatprep.subr.mxu0 0.0
      %4521 = vmatpush1.msra.mxu0 %v4486
      %4522 = vmatprep.subr.mxu0 0.0
      %4523 = vmatpush1.msra.mxu0 %v4485
      %4524 = vmatprep.subr.mxu0 0.0
      %4525 = vmatpush1.msra.mxu0 %v4484
      %4526 = vmatprep.subr.mxu0 0.0
      %4527 = vmatpush1.msra.mxu0 %v4483
      %4528 = vmatprep.subr.mxu0 0.0
      %4529 = vmatpush1.msra.mxu0 %v4482
      %4530 = vmatprep.subr.mxu0 0.0
      %4531 = vmatpush1.msra.mxu0 %v4481
      %4532 = vmatprep.subr.mxu0 0.0
      %4533 = vmatpush1.msra.mxu0 %v4480
      %4534 = vmatprep.subr.mxu0 0.0
      %4535 = vmatpush2.msra.mxu0 0.0
      %4536 = vmatprep.subr.mxu0 0.0
      %4537 = vmatpush2.msra.mxu0 0.0
      %4538 = vmatprep.subr.mxu0 0.0
      %4539 = vmatpush2.msra.mxu0 0.0
      %4540 = vmatprep.subr.mxu0 0.0
      %4541 = vmatpush2.msra.mxu0 0.0
      %4542 = vmatprep.subr.mxu0 0.0
      %4543 = vmatpush2.msra.mxu0 0.0
      %4544 = vmatprep.subr.mxu0 0.0
      %4545 = vmatpush2.msra.mxu0 0.0
      %4546 = vmatprep.subr.mxu0 0.0
      %4547 = vmatpush2.msra.mxu0 0.0
      %4548 = vmatprep.subr.mxu0 0.0
      %4549 = vmatpush2.msra.mxu0 0.0
      %4550 = vmatprep.subr.mxu0 0.0
      %4551 = vmatpush2.msra.mxu0 0.0
      %4552 = vmatprep.subr.mxu0 0.0
      %4553 = vmatpush2.msra.mxu0 0.0
      %4554 = vmatprep.subr.mxu0 0.0
      %4555 = vmatpush2.msra.mxu0 0.0
      %4556 = vmatprep.subr.mxu0 0.0
      %4557 = vmatpush2.msra.mxu0 0.0
      %4558 = vmatprep.subr.mxu0 0.0
      %4559 = vmatpush2.msra.mxu0 0.0
      %4560 = vmatprep.subr.mxu0 0.0
      %4561 = vmatpush2.msra.mxu0 0.0
      %4562 = vmatprep.subr.mxu0 0.0
      %4563 = vmatpush2.msra.mxu0 0.0
      %4564 = vmatprep.subr.mxu0 0.0
      %4565 = vmatpush2.msra.mxu0 0.0
      %4566 = vmatprep.mubr.f32.mxu0 0.0
      %4567 = vmatmul.mubr.f32.gmra.mxu0 %v4500
      %v4568 = vpop.f32.mrf.mxu0
      %v4569 = vadd.f32 %v4497, %v4568
      %v4570 = vpop.f32.mrf.mxu0
      %4571 = vdwg.mxu0
      %v4572 = vmax.f32 %v4569, 0.0
      %4573 = vmatprep.subr.mxu0 0.0
      %4574 = vmatpush1.msra.mxu0 0.0
      %4575 = vmatprep.subr.mxu0 0.0
      %4576 = vmatpush1.msra.mxu0 0.0
      %4577 = vmatprep.subr.mxu0 0.0
      %4578 = vmatpush1.msra.mxu0 0.0
      %4579 = vmatprep.subr.mxu0 0.0
      %4580 = vmatpush1.msra.mxu0 0.0
      %4581 = vmatprep.subr.mxu0 0.0
      %4582 = vmatpush1.msra.mxu0 0.0
      %4583 = vmatprep.subr.mxu0 0.0
      %4584 = vmatpush1.msra.mxu0 0.0
      %4585 = vmatprep.subr.mxu0 0.0
      %4586 = vmatpush1.msra.mxu0 0.0
      %4587 = vmatprep.subr.mxu0 0.0
      %4588 = vmatpush1.msra.mxu0 0.0
      %4589 = vmatprep.subr.mxu0 0.0
      %4590 = vmatpush1.msra.mxu0 0.0
      %4591 = vmatprep.subr.mxu0 0.0
      %4592 = vmatpush1.msra.mxu0 0.0
      %4593 = vmatprep.subr.mxu0 0.0
      %4594 = vmatpush1.msra.mxu0 0.0
      %4595 = vmatprep.subr.mxu0 0.0
      %4596 = vmatpush1.msra.mxu0 0.0
      %4597 = vmatprep.subr.mxu0 0.0
      %4598 = vmatpush1.msra.mxu0 0.0
      %4599 = vmatprep.subr.mxu0 0.0
      %4600 = vmatpush1.msra.mxu0 0.0
      %4601 = vmatprep.subr.mxu0 0.0
      %4602 = vmatpush1.msra.mxu0 0.0
      %4603 = vmatprep.subr.mxu0 0.0
      %4604 = vmatpush1.msra.mxu0 %v4572
      %4605 = vmatprep.subr.mxu0 0.0
      %4606 = vmatpush2.msra.mxu0 0.0
      %4607 = vmatprep.subr.mxu0 0.0
      %4608 = vmatpush2.msra.mxu0 0.0
      %4609 = vmatprep.subr.mxu0 0.0
      %4610 = vmatpush2.msra.mxu0 0.0
      %4611 = vmatprep.subr.mxu0 0.0
      %4612 = vmatpush2.msra.mxu0 0.0
      %4613 = vmatprep.subr.mxu0 0.0
      %4614 = vmatpush2.msra.mxu0 0.0
      %4615 = vmatprep.subr.mxu0 0.0
      %4616 = vmatpush2.msra.mxu0 0.0
      %4617 = vmatprep.subr.mxu0 0.0
      %4618 = vmatpush2.msra.mxu0 0.0
      %4619 = vmatprep.subr.mxu0 0.0
      %4620 = vmatpush2.msra.mxu0 0.0
      %4621 = vmatprep.subr.mxu0 0.0
      %4622 = vmatpush2.msra.mxu0 0.0
      %4623 = vmatprep.subr.mxu0 0.0
      %4624 = vmatpush2.msra.mxu0 0.0
      %4625 = vmatprep.subr.mxu0 0.0
      %4626 = vmatpush2.msra.mxu0 0.0
      %4627 = vmatprep.subr.mxu0 0.0
      %4628 = vmatpush2.msra.mxu0 0.0
      %4629 = vmatprep.subr.mxu0 0.0
      %4630 = vmatpush2.msra.mxu0 0.0
      %4631 = vmatprep.subr.mxu0 0.0
      %4632 = vmatpush2.msra.mxu0 0.0
      %4633 = vmatprep.subr.mxu0 0.0
      %4634 = vmatpush2.msra.mxu0 0.0
      %4635 = vmatprep.subr.mxu0 0.0
      %4636 = vmatpush2.msra.mxu0 0.0
      %4637 = vmatprep.mubr.f32.mxu0 0.0
      %4638 = vmatmul.mubr.f32.gmra.mxu0 %v1939
      %v4639 = vpop.f32.mrf.mxu0
      %v4640 = vadd.f32 0.0, %v4639
      %v4641 = vpop.f32.mrf.mxu0
      %4642 = vmatprep.mubr.f32.mxu0 0.0
      %4643 = vmatmul.mubr.f32.gmra.mxu0 %v1942
      %v4644 = vpop.f32.mrf.mxu0
      %v4645 = vadd.f32 0.0, %v4644
      %v4646 = vpop.f32.mrf.mxu0
      %4647 = vdwg.mxu0
      %4649 = vrot.lane.b32.xlu0 %v4640, 16
      %v4650 = vpop.permute.xlu0 %4649
      %4653 = vrot.lane.b32.xlu0 %v4645, 32
      %v4654 = vpop.permute.xlu0 %4653
      %v4656 = vsel %vm1413, %v4572, %v4650
      %v4657 = vsel %vm2197, %v4656, %v4654
      %v4658 = vld [vmem:[%s73] sm:$0xff]
      %v4659 = vld [vmem:[%s73 + $0x8] sm:$0xff]
      %v4660 = vld [vmem:[%s73 + $0x10] sm:$0xff]
      %v4661 = vld [vmem:[%s73 + $0x18] sm:$0xff]
      %v4662 = vld [vmem:[%s73 + $0x20] sm:$0xff]
      %v4663 = vld [vmem:[%s73 + $0x28] sm:$0xff]
      %v4664 = vld [vmem:[%s75] sm:$0x1]
      %v4666 = vlaneseq
      %v4667 = vshrl.u32 %v4666, 7
      %v4668 = vsub.s32 0, %v4667
      %v4669 = vrot.slane %v4664, %v4668
      %v4672 = vsel %vm2212, %v4657, 0
      %4674 = vmatprep.subr.mxu0 0.0
      %4675 = vmatpush1.msra.mxu0 0.0
      %4676 = vmatprep.subr.mxu0 0.0
      %4677 = vmatpush1.msra.mxu0 0.0
      %4678 = vmatprep.subr.mxu0 0.0
      %4679 = vmatpush1.msra.mxu0 0.0
      %4680 = vmatprep.subr.mxu0 0.0
      %4681 = vmatpush1.msra.mxu0 0.0
      %4682 = vmatprep.subr.mxu0 0.0
      %4683 = vmatpush1.msra.mxu0 0.0
      %4684 = vmatprep.subr.mxu0 0.0
      %4685 = vmatpush1.msra.mxu0 0.0
      %4686 = vmatprep.subr.mxu0 0.0
      %4687 = vmatpush1.msra.mxu0 0.0
      %4688 = vmatprep.subr.mxu0 0.0
      %4689 = vmatpush1.msra.mxu0 0.0
      %4690 = vmatprep.subr.mxu0 0.0
      %4691 = vmatpush1.msra.mxu0 0.0
      %4692 = vmatprep.subr.mxu0 0.0
      %4693 = vmatpush1.msra.mxu0 0.0
      %4694 = vmatprep.subr.mxu0 0.0
      %4695 = vmatpush1.msra.mxu0 %v4663
      %4696 = vmatprep.subr.mxu0 0.0
      %4697 = vmatpush1.msra.mxu0 %v4662
      %4698 = vmatprep.subr.mxu0 0.0
      %4699 = vmatpush1.msra.mxu0 %v4661
      %4700 = vmatprep.subr.mxu0 0.0
      %4701 = vmatpush1.msra.mxu0 %v4660
      %4702 = vmatprep.subr.mxu0 0.0
      %4703 = vmatpush1.msra.mxu0 %v4659
      %4704 = vmatprep.subr.mxu0 0.0
      %4705 = vmatpush1.msra.mxu0 %v4658
      %4706 = vmatprep.subr.mxu0 0.0
      %4707 = vmatpush2.msra.mxu0 0.0
      %4708 = vmatprep.subr.mxu0 0.0
      %4709 = vmatpush2.msra.mxu0 0.0
      %4710 = vmatprep.subr.mxu0 0.0
      %4711 = vmatpush2.msra.mxu0 0.0
      %4712 = vmatprep.subr.mxu0 0.0
      %4713 = vmatpush2.msra.mxu0 0.0
      %4714 = vmatprep.subr.mxu0 0.0
      %4715 = vmatpush2.msra.mxu0 0.0
      %4716 = vmatprep.subr.mxu0 0.0
      %4717 = vmatpush2.msra.mxu0 0.0
      %4718 = vmatprep.subr.mxu0 0.0
      %4719 = vmatpush2.msra.mxu0 0.0
      %4720 = vmatprep.subr.mxu0 0.0
      %4721 = vmatpush2.msra.mxu0 0.0
      %4722 = vmatprep.subr.mxu0 0.0
      %4723 = vmatpush2.msra.mxu0 0.0
      %4724 = vmatprep.subr.mxu0 0.0
      %4725 = vmatpush2.msra.mxu0 0.0
      %4726 = vmatprep.subr.mxu0 0.0
      %4727 = vmatpush2.msra.mxu0 0.0
      %4728 = vmatprep.subr.mxu0 0.0
      %4729 = vmatpush2.msra.mxu0 0.0
      %4730 = vmatprep.subr.mxu0 0.0
      %4731 = vmatpush2.msra.mxu0 0.0
      %4732 = vmatprep.subr.mxu0 0.0
      %4733 = vmatpush2.msra.mxu0 0.0
      %4734 = vmatprep.subr.mxu0 0.0
      %4735 = vmatpush2.msra.mxu0 0.0
      %4736 = vmatprep.subr.mxu0 0.0
      %4737 = vmatpush2.msra.mxu0 0.0
      %4738 = vmatprep.mubr.f32.mxu0 0.0
      %4739 = vmatmul.mubr.f32.gmra.mxu0 %v4672
      %v4740 = vpop.f32.mrf.mxu0
      %v4741 = vadd.f32 %v4669, %v4740
      %v4742 = vpop.f32.mrf.mxu0
      %4743 = vdwg.mxu0
      %v4744 = vmax.f32 %v4741, 0.0
      %v4745 = vld [vmem:[%s79] sm:$0xff]
      %v4746 = vld [vmem:[%s79 + $0x8] sm:$0xff]
      %v4748 = vsel %vm1413, %v4744, 0
      %4750 = vmatprep.subr.mxu0 0.0
      %4751 = vmatpush1.msra.mxu0 0.0
      %4752 = vmatprep.subr.mxu0 0.0
      %4753 = vmatpush1.msra.mxu0 0.0
      %4754 = vmatprep.subr.mxu0 0.0
      %4755 = vmatpush1.msra.mxu0 0.0
      %4756 = vmatprep.subr.mxu0 0.0
      %4757 = vmatpush1.msra.mxu0 0.0
      %4758 = vmatprep.subr.mxu0 0.0
      %4759 = vmatpush1.msra.mxu0 0.0
      %4760 = vmatprep.subr.mxu0 0.0
      %4761 = vmatpush1.msra.mxu0 0.0
      %4762 = vmatprep.subr.mxu0 0.0
      %4763 = vmatpush1.msra.mxu0 0.0
      %4764 = vmatprep.subr.mxu0 0.0
      %4765 = vmatpush1.msra.mxu0 0.0
      %4766 = vmatprep.subr.mxu0 0.0
      %4767 = vmatpush1.msra.mxu0 0.0
      %4768 = vmatprep.subr.mxu0 0.0
      %4769 = vmatpush1.msra.mxu0 0.0
      %4770 = vmatprep.subr.mxu0 0.0
      %4771 = vmatpush1.msra.mxu0 0.0
      %4772 = vmatprep.subr.mxu0 0.0
      %4773 = vmatpush1.msra.mxu0 0.0
      %4774 = vmatprep.subr.mxu0 0.0
      %4775 = vmatpush1.msra.mxu0 0.0
      %4776 = vmatprep.subr.mxu0 0.0
      %4777 = vmatpush1.msra.mxu0 0.0
      %4778 = vmatprep.subr.mxu0 0.0
      %4779 = vmatpush1.msra.mxu0 %v4746
      %4780 = vmatprep.subr.mxu0 0.0
      %4781 = vmatpush1.msra.mxu0 %v4745
      %4782 = vmatprep.subr.mxu0 0.0
      %4783 = vmatpush2.msra.mxu0 0.0
      %4784 = vmatprep.subr.mxu0 0.0
      %4785 = vmatpush2.msra.mxu0 0.0
      %4786 = vmatprep.subr.mxu0 0.0
      %4787 = vmatpush2.msra.mxu0 0.0
      %4788 = vmatprep.subr.mxu0 0.0
      %4789 = vmatpush2.msra.mxu0 0.0
      %4790 = vmatprep.subr.mxu0 0.0
      %4791 = vmatpush2.msra.mxu0 0.0
      %4792 = vmatprep.subr.mxu0 0.0
      %4793 = vmatpush2.msra.mxu0 0.0
      %4794 = vmatprep.subr.mxu0 0.0
      %4795 = vmatpush2.msra.mxu0 0.0
      %4796 = vmatprep.subr.mxu0 0.0
      %4797 = vmatpush2.msra.mxu0 0.0
      %4798 = vmatprep.subr.mxu0 0.0
      %4799 = vmatpush2.msra.mxu0 0.0
      %4800 = vmatprep.subr.mxu0 0.0
      %4801 = vmatpush2.msra.mxu0 0.0
      %4802 = vmatprep.subr.mxu0 0.0
      %4803 = vmatpush2.msra.mxu0 0.0
      %4804 = vmatprep.subr.mxu0 0.0
      %4805 = vmatpush2.msra.mxu0 0.0
      %4806 = vmatprep.subr.mxu0 0.0
      %4807 = vmatpush2.msra.mxu0 0.0
      %4808 = vmatprep.subr.mxu0 0.0
      %4809 = vmatpush2.msra.mxu0 0.0
      %4810 = vmatprep.subr.mxu0 0.0
      %4811 = vmatpush2.msra.mxu0 0.0
      %4812 = vmatprep.subr.mxu0 0.0
      %4813 = vmatpush2.msra.mxu0 0.0
      %4814 = vmatprep.mubr.f32.mxu0 0.0
      %4815 = vmatmul.mubr.f32.gmra.mxu0 %v4748
      %v4816 = vpop.f32.mrf.mxu0
      %v4817 = vadd.f32 0.0, %v4816
      %v4818 = vpop.f32.mrf.mxu0
      %4819 = vdwg.mxu0
      %v4820 = vld [vmem:[%s77] sm:$0xff]
      %v4821 = vld [vmem:[%s77 + $0x8] sm:$0xff]
      %s4822 = scalar_lea.vmem %s77, 16
      %v4823 = vld [vmem:[%s4822] sm:$0xff]
      %v4824 = vld [vmem:[%s4822 + $0x8] sm:$0xff]
      %4826 = vrot.lane.b32.xlu0 %v4817, 120
      %v4827 = vpop.permute.xlu0 %4826
      %v4830 = vsel %vm1734, %v4823, 0
      %v4833 = vsel %vm1734, %v4824, 0
      %4835 = vmatprep.subr.mxu0 0.0
      %4836 = vmatpush1.msra.mxu0 0.0
      %4837 = vmatprep.subr.mxu0 0.0
      %4838 = vmatpush1.msra.mxu0 0.0
      %4839 = vmatprep.subr.mxu0 0.0
      %4840 = vmatpush1.msra.mxu0 0.0
      %4841 = vmatprep.subr.mxu0 0.0
      %4842 = vmatpush1.msra.mxu0 0.0
      %4843 = vmatprep.subr.mxu0 0.0
      %4844 = vmatpush1.msra.mxu0 0.0
      %4845 = vmatprep.subr.mxu0 0.0
      %4846 = vmatpush1.msra.mxu0 0.0
      %4847 = vmatprep.subr.mxu0 0.0
      %4848 = vmatpush1.msra.mxu0 0.0
      %4849 = vmatprep.subr.mxu0 0.0
      %4850 = vmatpush1.msra.mxu0 0.0
      %4851 = vmatprep.subr.mxu0 0.0
      %4852 = vmatpush1.msra.mxu0 0.0
      %4853 = vmatprep.subr.mxu0 0.0
      %4854 = vmatpush1.msra.mxu0 0.0
      %4855 = vmatprep.subr.mxu0 0.0
      %4856 = vmatpush1.msra.mxu0 0.0
      %4857 = vmatprep.subr.mxu0 0.0
      %4858 = vmatpush1.msra.mxu0 0.0
      %4859 = vmatprep.subr.mxu0 0.0
      %4860 = vmatpush1.msra.mxu0 0.0
      %4861 = vmatprep.subr.mxu0 0.0
      %4862 = vmatpush1.msra.mxu0 0.0
      %4863 = vmatprep.subr.mxu0 0.0
      %4864 = vmatpush1.msra.mxu0 0.0
      %4865 = vmatprep.subr.mxu0 0.0
      %4866 = vmatpush1.msra.mxu0 %v4827
      %4867 = vmatprep.subr.mxu0 0.0
      %4868 = vmatpush2.msra.mxu0 0.0
      %4869 = vmatprep.subr.mxu0 0.0
      %4870 = vmatpush2.msra.mxu0 0.0
      %4871 = vmatprep.subr.mxu0 0.0
      %4872 = vmatpush2.msra.mxu0 0.0
      %4873 = vmatprep.subr.mxu0 0.0
      %4874 = vmatpush2.msra.mxu0 0.0
      %4875 = vmatprep.subr.mxu0 0.0
      %4876 = vmatpush2.msra.mxu0 0.0
      %4877 = vmatprep.subr.mxu0 0.0
      %4878 = vmatpush2.msra.mxu0 0.0
      %4879 = vmatprep.subr.mxu0 0.0
      %4880 = vmatpush2.msra.mxu0 0.0
      %4881 = vmatprep.subr.mxu0 0.0
      %4882 = vmatpush2.msra.mxu0 0.0
      %4883 = vmatprep.subr.mxu0 0.0
      %4884 = vmatpush2.msra.mxu0 0.0
      %4885 = vmatprep.subr.mxu0 0.0
      %4886 = vmatpush2.msra.mxu0 0.0
      %4887 = vmatprep.subr.mxu0 0.0
      %4888 = vmatpush2.msra.mxu0 0.0
      %4889 = vmatprep.subr.mxu0 0.0
      %4890 = vmatpush2.msra.mxu0 0.0
      %4891 = vmatprep.subr.mxu0 0.0
      %4892 = vmatpush2.msra.mxu0 0.0
      %4893 = vmatprep.subr.mxu0 0.0
      %4894 = vmatpush2.msra.mxu0 0.0
      %4895 = vmatprep.subr.mxu0 0.0
      %4896 = vmatpush2.msra.mxu0 0.0
      %4897 = vmatprep.subr.mxu0 0.0
      %4898 = vmatpush2.msra.mxu0 0.0
      %4899 = vmatprep.mubr.f32.mxu0 0.0
      %4900 = vmatmul.mubr.f32.gmra.mxu0 %v4830
      %v4901 = vpop.f32.mrf.mxu0
      %v4902 = vadd.f32 0.0, %v4901
      %v4903 = vpop.f32.mrf.mxu0
      %4904 = vmatprep.mubr.f32.mxu0 0.0
      %4905 = vmatmul.mubr.f32.gmra.mxu0 %v4833
      %v4906 = vpop.f32.mrf.mxu0
      %v4907 = vadd.f32 0.0, %v4906
      %v4908 = vpop.f32.mrf.mxu0
      %4909 = vdwg.mxu0
      %v4911 = vsel %vm1734, %v4820, 0
      %v4914 = vsel %vm1734, %v4821, 0
      %4916 = vmatprep.subr.mxu0 0.0
      %4917 = vmatpush1.msra.mxu0 0.0
      %4918 = vmatprep.subr.mxu0 0.0
      %4919 = vmatpush1.msra.mxu0 0.0
      %4920 = vmatprep.subr.mxu0 0.0
      %4921 = vmatpush1.msra.mxu0 0.0
      %4922 = vmatprep.subr.mxu0 0.0
      %4923 = vmatpush1.msra.mxu0 0.0
      %4924 = vmatprep.subr.mxu0 0.0
      %4925 = vmatpush1.msra.mxu0 0.0
      %4926 = vmatprep.subr.mxu0 0.0
      %4927 = vmatpush1.msra.mxu0 0.0
      %4928 = vmatprep.subr.mxu0 0.0
      %4929 = vmatpush1.msra.mxu0 0.0
      %4930 = vmatprep.subr.mxu0 0.0
      %4931 = vmatpush1.msra.mxu0 0.0
      %4932 = vmatprep.subr.mxu0 0.0
      %4933 = vmatpush1.msra.mxu0 0.0
      %4934 = vmatprep.subr.mxu0 0.0
      %4935 = vmatpush1.msra.mxu0 0.0
      %4936 = vmatprep.subr.mxu0 0.0
      %4937 = vmatpush1.msra.mxu0 0.0
      %4938 = vmatprep.subr.mxu0 0.0
      %4939 = vmatpush1.msra.mxu0 0.0
      %4940 = vmatprep.subr.mxu0 0.0
      %4941 = vmatpush1.msra.mxu0 0.0
      %4942 = vmatprep.subr.mxu0 0.0
      %4943 = vmatpush1.msra.mxu0 0.0
      %4944 = vmatprep.subr.mxu0 0.0
      %4945 = vmatpush1.msra.mxu0 0.0
      %4946 = vmatprep.subr.mxu0 0.0
      %4947 = vmatpush1.msra.mxu0 %v4817
      %4948 = vmatprep.subr.mxu0 0.0
      %4949 = vmatpush2.msra.mxu0 0.0
      %4950 = vmatprep.subr.mxu0 0.0
      %4951 = vmatpush2.msra.mxu0 0.0
      %4952 = vmatprep.subr.mxu0 0.0
      %4953 = vmatpush2.msra.mxu0 0.0
      %4954 = vmatprep.subr.mxu0 0.0
      %4955 = vmatpush2.msra.mxu0 0.0
      %4956 = vmatprep.subr.mxu0 0.0
      %4957 = vmatpush2.msra.mxu0 0.0
      %4958 = vmatprep.subr.mxu0 0.0
      %4959 = vmatpush2.msra.mxu0 0.0
      %4960 = vmatprep.subr.mxu0 0.0
      %4961 = vmatpush2.msra.mxu0 0.0
      %4962 = vmatprep.subr.mxu0 0.0
      %4963 = vmatpush2.msra.mxu0 0.0
      %4964 = vmatprep.subr.mxu0 0.0
      %4965 = vmatpush2.msra.mxu0 0.0
      %4966 = vmatprep.subr.mxu0 0.0
      %4967 = vmatpush2.msra.mxu0 0.0
      %4968 = vmatprep.subr.mxu0 0.0
      %4969 = vmatpush2.msra.mxu0 0.0
      %4970 = vmatprep.subr.mxu0 0.0
      %4971 = vmatpush2.msra.mxu0 0.0
      %4972 = vmatprep.subr.mxu0 0.0
      %4973 = vmatpush2.msra.mxu0 0.0
      %4974 = vmatprep.subr.mxu0 0.0
      %4975 = vmatpush2.msra.mxu0 0.0
      %4976 = vmatprep.subr.mxu0 0.0
      %4977 = vmatpush2.msra.mxu0 0.0
      %4978 = vmatprep.subr.mxu0 0.0
      %4979 = vmatpush2.msra.mxu0 0.0
      %4980 = vmatprep.mubr.f32.mxu0 0.0
      %4981 = vmatmul.mubr.f32.gmra.mxu0 %v4911
      %v4982 = vpop.f32.mrf.mxu0
      %v4983 = vadd.f32 %v4902, %v4982
      %v4984 = vpop.f32.mrf.mxu0
      %4985 = vmatprep.mubr.f32.mxu0 0.0
      %4986 = vmatmul.mubr.f32.gmra.mxu0 %v4914
      %v4987 = vpop.f32.mrf.mxu0
      %v4988 = vadd.f32 %v4907, %v4987
      %v4989 = vpop.f32.mrf.mxu0
      %4990 = vdwg.mxu0
      %s4991 = scalar_lea.vmem %s77, 32
      %v4992 = vld [vmem:[%s4991] sm:$0xff]
      %v4993 = vld [vmem:[%s4991 + $0x8] sm:$0xff]
      %4994 = vrot.lane.b32.xlu0 %v4817, 112
      %v4995 = vpop.permute.xlu0 %4994
      %v4998 = vsel %vm1734, %v4992, 0
      %v5001 = vsel %vm1734, %v4993, 0
      %5003 = vmatprep.subr.mxu0 0.0
      %5004 = vmatpush1.msra.mxu0 0.0
      %5005 = vmatprep.subr.mxu0 0.0
      %5006 = vmatpush1.msra.mxu0 0.0
      %5007 = vmatprep.subr.mxu0 0.0
      %5008 = vmatpush1.msra.mxu0 0.0
      %5009 = vmatprep.subr.mxu0 0.0
      %5010 = vmatpush1.msra.mxu0 0.0
      %5011 = vmatprep.subr.mxu0 0.0
      %5012 = vmatpush1.msra.mxu0 0.0
      %5013 = vmatprep.subr.mxu0 0.0
      %5014 = vmatpush1.msra.mxu0 0.0
      %5015 = vmatprep.subr.mxu0 0.0
      %5016 = vmatpush1.msra.mxu0 0.0
      %5017 = vmatprep.subr.mxu0 0.0
      %5018 = vmatpush1.msra.mxu0 0.0
      %5019 = vmatprep.subr.mxu0 0.0
      %5020 = vmatpush1.msra.mxu0 0.0
      %5021 = vmatprep.subr.mxu0 0.0
      %5022 = vmatpush1.msra.mxu0 0.0
      %5023 = vmatprep.subr.mxu0 0.0
      %5024 = vmatpush1.msra.mxu0 0.0
      %5025 = vmatprep.subr.mxu0 0.0
      %5026 = vmatpush1.msra.mxu0 0.0
      %5027 = vmatprep.subr.mxu0 0.0
      %5028 = vmatpush1.msra.mxu0 0.0
      %5029 = vmatprep.subr.mxu0 0.0
      %5030 = vmatpush1.msra.mxu0 0.0
      %5031 = vmatprep.subr.mxu0 0.0
      %5032 = vmatpush1.msra.mxu0 0.0
      %5033 = vmatprep.subr.mxu0 0.0
      %5034 = vmatpush1.msra.mxu0 %v4995
      %5035 = vmatprep.subr.mxu0 0.0
      %5036 = vmatpush2.msra.mxu0 0.0
      %5037 = vmatprep.subr.mxu0 0.0
      %5038 = vmatpush2.msra.mxu0 0.0
      %5039 = vmatprep.subr.mxu0 0.0
      %5040 = vmatpush2.msra.mxu0 0.0
      %5041 = vmatprep.subr.mxu0 0.0
      %5042 = vmatpush2.msra.mxu0 0.0
      %5043 = vmatprep.subr.mxu0 0.0
      %5044 = vmatpush2.msra.mxu0 0.0
      %5045 = vmatprep.subr.mxu0 0.0
      %5046 = vmatpush2.msra.mxu0 0.0
      %5047 = vmatprep.subr.mxu0 0.0
      %5048 = vmatpush2.msra.mxu0 0.0
      %5049 = vmatprep.subr.mxu0 0.0
      %5050 = vmatpush2.msra.mxu0 0.0
      %5051 = vmatprep.subr.mxu0 0.0
      %5052 = vmatpush2.msra.mxu0 0.0
      %5053 = vmatprep.subr.mxu0 0.0
      %5054 = vmatpush2.msra.mxu0 0.0
      %5055 = vmatprep.subr.mxu0 0.0
      %5056 = vmatpush2.msra.mxu0 0.0
      %5057 = vmatprep.subr.mxu0 0.0
      %5058 = vmatpush2.msra.mxu0 0.0
      %5059 = vmatprep.subr.mxu0 0.0
      %5060 = vmatpush2.msra.mxu0 0.0
      %5061 = vmatprep.subr.mxu0 0.0
      %5062 = vmatpush2.msra.mxu0 0.0
      %5063 = vmatprep.subr.mxu0 0.0
      %5064 = vmatpush2.msra.mxu0 0.0
      %5065 = vmatprep.subr.mxu0 0.0
      %5066 = vmatpush2.msra.mxu0 0.0
      %5067 = vmatprep.mubr.f32.mxu0 0.0
      %5068 = vmatmul.mubr.f32.gmra.mxu0 %v4998
      %v5069 = vpop.f32.mrf.mxu0
      %v5070 = vadd.f32 0.0, %v5069
      %v5071 = vpop.f32.mrf.mxu0
      %5072 = vmatprep.mubr.f32.mxu0 0.0
      %5073 = vmatmul.mubr.f32.gmra.mxu0 %v5001
      %v5074 = vpop.f32.mrf.mxu0
      %v5075 = vadd.f32 0.0, %v5074
      %v5076 = vpop.f32.mrf.mxu0
      %5077 = vdwg.mxu0
      %v5078 = vadd.f32 %v4983, %v5070
      %v5079 = vadd.f32 %v4988, %v5075
      %s5080 = scalar_lea.vmem %s77, 48
      %v5081 = vld [vmem:[%s5080] sm:$0xff]
      %v5082 = vld [vmem:[%s5080 + $0x8] sm:$0xff]
      %5083 = vrot.lane.b32.xlu0 %v4817, 104
      %v5084 = vpop.permute.xlu0 %5083
      %v5087 = vsel %vm1734, %v5081, 0
      %v5090 = vsel %vm1734, %v5082, 0
      %5092 = vmatprep.subr.mxu0 0.0
      %5093 = vmatpush1.msra.mxu0 0.0
      %5094 = vmatprep.subr.mxu0 0.0
      %5095 = vmatpush1.msra.mxu0 0.0
      %5096 = vmatprep.subr.mxu0 0.0
      %5097 = vmatpush1.msra.mxu0 0.0
      %5098 = vmatprep.subr.mxu0 0.0
      %5099 = vmatpush1.msra.mxu0 0.0
      %5100 = vmatprep.subr.mxu0 0.0
      %5101 = vmatpush1.msra.mxu0 0.0
      %5102 = vmatprep.subr.mxu0 0.0
      %5103 = vmatpush1.msra.mxu0 0.0
      %5104 = vmatprep.subr.mxu0 0.0
      %5105 = vmatpush1.msra.mxu0 0.0
      %5106 = vmatprep.subr.mxu0 0.0
      %5107 = vmatpush1.msra.mxu0 0.0
      %5108 = vmatprep.subr.mxu0 0.0
      %5109 = vmatpush1.msra.mxu0 0.0
      %5110 = vmatprep.subr.mxu0 0.0
      %5111 = vmatpush1.msra.mxu0 0.0
      %5112 = vmatprep.subr.mxu0 0.0
      %5113 = vmatpush1.msra.mxu0 0.0
      %5114 = vmatprep.subr.mxu0 0.0
      %5115 = vmatpush1.msra.mxu0 0.0
      %5116 = vmatprep.subr.mxu0 0.0
      %5117 = vmatpush1.msra.mxu0 0.0
      %5118 = vmatprep.subr.mxu0 0.0
      %5119 = vmatpush1.msra.mxu0 0.0
      %5120 = vmatprep.subr.mxu0 0.0
      %5121 = vmatpush1.msra.mxu0 0.0
      %5122 = vmatprep.subr.mxu0 0.0
      %5123 = vmatpush1.msra.mxu0 %v5084
      %5124 = vmatprep.subr.mxu0 0.0
      %5125 = vmatpush2.msra.mxu0 0.0
      %5126 = vmatprep.subr.mxu0 0.0
      %5127 = vmatpush2.msra.mxu0 0.0
      %5128 = vmatprep.subr.mxu0 0.0
      %5129 = vmatpush2.msra.mxu0 0.0
      %5130 = vmatprep.subr.mxu0 0.0
      %5131 = vmatpush2.msra.mxu0 0.0
      %5132 = vmatprep.subr.mxu0 0.0
      %5133 = vmatpush2.msra.mxu0 0.0
      %5134 = vmatprep.subr.mxu0 0.0
      %5135 = vmatpush2.msra.mxu0 0.0
      %5136 = vmatprep.subr.mxu0 0.0
      %5137 = vmatpush2.msra.mxu0 0.0
      %5138 = vmatprep.subr.mxu0 0.0
      %5139 = vmatpush2.msra.mxu0 0.0
      %5140 = vmatprep.subr.mxu0 0.0
      %5141 = vmatpush2.msra.mxu0 0.0
      %5142 = vmatprep.subr.mxu0 0.0
      %5143 = vmatpush2.msra.mxu0 0.0
      %5144 = vmatprep.subr.mxu0 0.0
      %5145 = vmatpush2.msra.mxu0 0.0
      %5146 = vmatprep.subr.mxu0 0.0
      %5147 = vmatpush2.msra.mxu0 0.0
      %5148 = vmatprep.subr.mxu0 0.0
      %5149 = vmatpush2.msra.mxu0 0.0
      %5150 = vmatprep.subr.mxu0 0.0
      %5151 = vmatpush2.msra.mxu0 0.0
      %5152 = vmatprep.subr.mxu0 0.0
      %5153 = vmatpush2.msra.mxu0 0.0
      %5154 = vmatprep.subr.mxu0 0.0
      %5155 = vmatpush2.msra.mxu0 0.0
      %5156 = vmatprep.mubr.f32.mxu0 0.0
      %5157 = vmatmul.mubr.f32.gmra.mxu0 %v5087
      %v5158 = vpop.f32.mrf.mxu0
      %v5159 = vadd.f32 0.0, %v5158
      %v5160 = vpop.f32.mrf.mxu0
      %5161 = vmatprep.mubr.f32.mxu0 0.0
      %5162 = vmatmul.mubr.f32.gmra.mxu0 %v5090
      %v5163 = vpop.f32.mrf.mxu0
      %v5164 = vadd.f32 0.0, %v5163
      %v5165 = vpop.f32.mrf.mxu0
      %5166 = vdwg.mxu0
      %v5167 = vadd.f32 %v5078, %v5159
      %v5168 = vadd.f32 %v5079, %v5164
      %v5169 = vld [vmem:[%s81] sm:$0x1]
      %v5171 = vlaneseq
      %v5172 = vshrl.u32 %v5171, 7
      %v5173 = vsub.s32 0, %v5172
      %v5174 = vrot.slane %v5169, %v5173
      %v5176 = vadd.f32 %v5167, %v5174
      %v5177 = vadd.f32 %v5168, %v5174
      %5180 = vrot.lane.b32.xlu0 %v1830, 8
      %v5181 = vpop.permute.xlu0 %5180
      %5182 = vrot.lane.b32.xlu0 %v1831, 8
      %v5183 = vpop.permute.xlu0 %5182
      %v5186 = vsel %vm1734, %v5176, %v5181
      %v5187 = vsel %vm1734, %v5177, %v5183
      %5188 = vmatprep.subr.mxu0 0.0
      %5189 = vmatpush1.msra.mxu0 0.0
      %5190 = vmatprep.subr.mxu0 0.0
      %5191 = vmatpush1.msra.mxu0 0.0
      %5192 = vmatprep.subr.mxu0 0.0
      %5193 = vmatpush1.msra.mxu0 0.0
      %5194 = vmatprep.subr.mxu0 0.0
      %5195 = vmatpush1.msra.mxu0 0.0
      %5196 = vmatprep.subr.mxu0 0.0
      %5197 = vmatpush1.msra.mxu0 0.0
      %5198 = vmatprep.subr.mxu0 0.0
      %5199 = vmatpush1.msra.mxu0 0.0
      %5200 = vmatprep.subr.mxu0 0.0
      %5201 = vmatpush1.msra.mxu0 0.0
      %5202 = vmatprep.subr.mxu0 0.0
      %5203 = vmatpush1.msra.mxu0 0.0
      %5204 = vmatprep.subr.mxu0 0.0
      %5205 = vmatpush1.msra.mxu0 0.0
      %5206 = vmatprep.subr.mxu0 0.0
      %5207 = vmatpush1.msra.mxu0 0.0
      %5208 = vmatprep.subr.mxu0 0.0
      %5209 = vmatpush1.msra.mxu0 0.0
      %5210 = vmatprep.subr.mxu0 0.0
      %5211 = vmatpush1.msra.mxu0 0.0
      %5212 = vmatprep.subr.mxu0 0.0
      %5213 = vmatpush1.msra.mxu0 0.0
      %5214 = vmatprep.subr.mxu0 0.0
      %5215 = vmatpush1.msra.mxu0 0.0
      %5216 = vmatprep.subr.mxu0 0.0
      %5217 = vmatpush1.msra.mxu0 %v5187
      %5218 = vmatprep.subr.mxu0 0.0
      %5219 = vmatpush1.msra.mxu0 %v5186
      %5220 = vmatprep.subr.mxu0 0.0
      %5221 = vmatpush2.msra.mxu0 0.0
      %5222 = vmatprep.subr.mxu0 0.0
      %5223 = vmatpush2.msra.mxu0 0.0
      %5224 = vmatprep.subr.mxu0 0.0
      %5225 = vmatpush2.msra.mxu0 0.0
      %5226 = vmatprep.subr.mxu0 0.0
      %5227 = vmatpush2.msra.mxu0 0.0
      %5228 = vmatprep.subr.mxu0 0.0
      %5229 = vmatpush2.msra.mxu0 0.0
      %5230 = vmatprep.subr.mxu0 0.0
      %5231 = vmatpush2.msra.mxu0 0.0
      %5232 = vmatprep.subr.mxu0 0.0
      %5233 = vmatpush2.msra.mxu0 0.0
      %5234 = vmatprep.subr.mxu0 0.0
      %5235 = vmatpush2.msra.mxu0 0.0
      %5236 = vmatprep.subr.mxu0 0.0
      %5237 = vmatpush2.msra.mxu0 0.0
      %5238 = vmatprep.subr.mxu0 0.0
      %5239 = vmatpush2.msra.mxu0 0.0
      %5240 = vmatprep.subr.mxu0 0.0
      %5241 = vmatpush2.msra.mxu0 0.0
      %5242 = vmatprep.subr.mxu0 0.0
      %5243 = vmatpush2.msra.mxu0 0.0
      %5244 = vmatprep.subr.mxu0 0.0
      %5245 = vmatpush2.msra.mxu0 0.0
      %5246 = vmatprep.subr.mxu0 0.0
      %5247 = vmatpush2.msra.mxu0 0.0
      %5248 = vmatprep.subr.mxu0 0.0
      %5249 = vmatpush2.msra.mxu0 0.0
      %5250 = vmatprep.subr.mxu0 0.0
      %5251 = vmatpush2.msra.mxu0 0.0
      %5252 = vmatprep.mubr.f32.mxu0 0.0
      %5253 = vmatmul.mubr.f32.gmra.mxu0 %v1415
      %v5254 = vpop.f32.mrf.mxu0
      %v5255 = vadd.f32 0.0, %v5254
      %v5256 = vpop.f32.mrf.mxu0
      %5257 = vmatprep.mubr.f32.mxu0 0.0
      %5258 = vmatmul.mubr.f32.gmra.mxu0 %v1418
      %v5259 = vpop.f32.mrf.mxu0
      %v5260 = vadd.f32 0.0, %v5259
      %v5261 = vpop.f32.mrf.mxu0
      %5262 = vmatprep.mubr.f32.mxu0 0.0
      %5263 = vmatmul.mubr.f32.gmra.mxu0 %v1421
      %v5264 = vpop.f32.mrf.mxu0
      %v5265 = vadd.f32 0.0, %v5264
      %v5266 = vpop.f32.mrf.mxu0
      %5267 = vmatprep.mubr.f32.mxu0 0.0
      %5268 = vmatmul.mubr.f32.gmra.mxu0 %v1424
      %v5269 = vpop.f32.mrf.mxu0
      %v5270 = vadd.f32 0.0, %v5269
      %v5271 = vpop.f32.mrf.mxu0
      %5272 = vdwg.mxu0
      %5275 = vrot.lane.b32.xlu0 %v5255, 16
      %v5276 = vpop.permute.xlu0 %5275
      %5277 = vrot.lane.b32.xlu0 %v5260, 16
      %v5278 = vpop.permute.xlu0 %5277
      %5283 = vrot.lane.b32.xlu0 %v5265, 32
      %v5284 = vpop.permute.xlu0 %5283
      %5285 = vrot.lane.b32.xlu0 %v5270, 32
      %v5286 = vpop.permute.xlu0 %5285
      %v5289 = vsel %vm1413, %v5186, %v5276
      %v5290 = vsel %vm1413, %v5187, %v5278
      %v5291 = vsel %vm2197, %v5289, %v5284
      %v5292 = vsel %vm2197, %v5290, %v5286
      %v5293 = vld [vmem:[%s83] sm:$0xff]
      %v5294 = vld [vmem:[%s83 + $0x8] sm:$0xff]
      %v5295 = vld [vmem:[%s83 + $0x10] sm:$0xff]
      %v5296 = vld [vmem:[%s83 + $0x18] sm:$0xff]
      %v5297 = vld [vmem:[%s83 + $0x20] sm:$0xff]
      %v5298 = vld [vmem:[%s83 + $0x28] sm:$0xff]
      %v5299 = vld [vmem:[%s85] sm:$0x1]
      %v5301 = vlaneseq
      %v5302 = vshrl.u32 %v5301, 7
      %v5303 = vsub.s32 0, %v5302
      %v5304 = vrot.slane %v5299, %v5303
      %v5307 = vsel %vm2212, %v5291, 0
      %v5310 = vsel %vm2212, %v5292, 0
      %5312 = vmatprep.subr.mxu0 0.0
      %5313 = vmatpush1.msra.mxu0 0.0
      %5314 = vmatprep.subr.mxu0 0.0
      %5315 = vmatpush1.msra.mxu0 0.0
      %5316 = vmatprep.subr.mxu0 0.0
      %5317 = vmatpush1.msra.mxu0 0.0
      %5318 = vmatprep.subr.mxu0 0.0
      %5319 = vmatpush1.msra.mxu0 0.0
      %5320 = vmatprep.subr.mxu0 0.0
      %5321 = vmatpush1.msra.mxu0 0.0
      %5322 = vmatprep.subr.mxu0 0.0
      %5323 = vmatpush1.msra.mxu0 0.0
      %5324 = vmatprep.subr.mxu0 0.0
      %5325 = vmatpush1.msra.mxu0 0.0
      %5326 = vmatprep.subr.mxu0 0.0
      %5327 = vmatpush1.msra.mxu0 0.0
      %5328 = vmatprep.subr.mxu0 0.0
      %5329 = vmatpush1.msra.mxu0 0.0
      %5330 = vmatprep.subr.mxu0 0.0
      %5331 = vmatpush1.msra.mxu0 0.0
      %5332 = vmatprep.subr.mxu0 0.0
      %5333 = vmatpush1.msra.mxu0 %v5298
      %5334 = vmatprep.subr.mxu0 0.0
      %5335 = vmatpush1.msra.mxu0 %v5297
      %5336 = vmatprep.subr.mxu0 0.0
      %5337 = vmatpush1.msra.mxu0 %v5296
      %5338 = vmatprep.subr.mxu0 0.0
      %5339 = vmatpush1.msra.mxu0 %v5295
      %5340 = vmatprep.subr.mxu0 0.0
      %5341 = vmatpush1.msra.mxu0 %v5294
      %5342 = vmatprep.subr.mxu0 0.0
      %5343 = vmatpush1.msra.mxu0 %v5293
      %5344 = vmatprep.subr.mxu0 0.0
      %5345 = vmatpush2.msra.mxu0 0.0
      %5346 = vmatprep.subr.mxu0 0.0
      %5347 = vmatpush2.msra.mxu0 0.0
      %5348 = vmatprep.subr.mxu0 0.0
      %5349 = vmatpush2.msra.mxu0 0.0
      %5350 = vmatprep.subr.mxu0 0.0
      %5351 = vmatpush2.msra.mxu0 0.0
      %5352 = vmatprep.subr.mxu0 0.0
      %5353 = vmatpush2.msra.mxu0 0.0
      %5354 = vmatprep.subr.mxu0 0.0
      %5355 = vmatpush2.msra.mxu0 0.0
      %5356 = vmatprep.subr.mxu0 0.0
      %5357 = vmatpush2.msra.mxu0 0.0
      %5358 = vmatprep.subr.mxu0 0.0
      %5359 = vmatpush2.msra.mxu0 0.0
      %5360 = vmatprep.subr.mxu0 0.0
      %5361 = vmatpush2.msra.mxu0 0.0
      %5362 = vmatprep.subr.mxu0 0.0
      %5363 = vmatpush2.msra.mxu0 0.0
      %5364 = vmatprep.subr.mxu0 0.0
      %5365 = vmatpush2.msra.mxu0 0.0
      %5366 = vmatprep.subr.mxu0 0.0
      %5367 = vmatpush2.msra.mxu0 0.0
      %5368 = vmatprep.subr.mxu0 0.0
      %5369 = vmatpush2.msra.mxu0 0.0
      %5370 = vmatprep.subr.mxu0 0.0
      %5371 = vmatpush2.msra.mxu0 0.0
      %5372 = vmatprep.subr.mxu0 0.0
      %5373 = vmatpush2.msra.mxu0 0.0
      %5374 = vmatprep.subr.mxu0 0.0
      %5375 = vmatpush2.msra.mxu0 0.0
      %5376 = vmatprep.mubr.f32.mxu0 0.0
      %5377 = vmatmul.mubr.f32.gmra.mxu0 %v5307
      %v5378 = vpop.f32.mrf.mxu0
      %v5379 = vadd.f32 %v5304, %v5378
      %v5380 = vpop.f32.mrf.mxu0
      %5381 = vmatprep.mubr.f32.mxu0 0.0
      %5382 = vmatmul.mubr.f32.gmra.mxu0 %v5310
      %v5383 = vpop.f32.mrf.mxu0
      %v5384 = vadd.f32 %v5304, %v5383
      %v5385 = vpop.f32.mrf.mxu0
      %5386 = vdwg.mxu0
      %v5387 = vmax.f32 %v5379, 0.0
      %v5388 = vmax.f32 %v5384, 0.0
      %5389 = vmatprep.subr.mxu0 0.0
      %5390 = vmatpush1.msra.mxu0 0.0
      %5391 = vmatprep.subr.mxu0 0.0
      %5392 = vmatpush1.msra.mxu0 0.0
      %5393 = vmatprep.subr.mxu0 0.0
      %5394 = vmatpush1.msra.mxu0 0.0
      %5395 = vmatprep.subr.mxu0 0.0
      %5396 = vmatpush1.msra.mxu0 0.0
      %5397 = vmatprep.subr.mxu0 0.0
      %5398 = vmatpush1.msra.mxu0 0.0
      %5399 = vmatprep.subr.mxu0 0.0
      %5400 = vmatpush1.msra.mxu0 0.0
      %5401 = vmatprep.subr.mxu0 0.0
      %5402 = vmatpush1.msra.mxu0 0.0
      %5403 = vmatprep.subr.mxu0 0.0
      %5404 = vmatpush1.msra.mxu0 0.0
      %5405 = vmatprep.subr.mxu0 0.0
      %5406 = vmatpush1.msra.mxu0 0.0
      %5407 = vmatprep.subr.mxu0 0.0
      %5408 = vmatpush1.msra.mxu0 0.0
      %5409 = vmatprep.subr.mxu0 0.0
      %5410 = vmatpush1.msra.mxu0 0.0
      %5411 = vmatprep.subr.mxu0 0.0
      %5412 = vmatpush1.msra.mxu0 0.0
      %5413 = vmatprep.subr.mxu0 0.0
      %5414 = vmatpush1.msra.mxu0 0.0
      %5415 = vmatprep.subr.mxu0 0.0
      %5416 = vmatpush1.msra.mxu0 0.0
      %5417 = vmatprep.subr.mxu0 0.0
      %5418 = vmatpush1.msra.mxu0 %v5388
      %5419 = vmatprep.subr.mxu0 0.0
      %5420 = vmatpush1.msra.mxu0 %v5387
      %5421 = vmatprep.subr.mxu0 0.0
      %5422 = vmatpush2.msra.mxu0 0.0
      %5423 = vmatprep.subr.mxu0 0.0
      %5424 = vmatpush2.msra.mxu0 0.0
      %5425 = vmatprep.subr.mxu0 0.0
      %5426 = vmatpush2.msra.mxu0 0.0
      %5427 = vmatprep.subr.mxu0 0.0
      %5428 = vmatpush2.msra.mxu0 0.0
      %5429 = vmatprep.subr.mxu0 0.0
      %5430 = vmatpush2.msra.mxu0 0.0
      %5431 = vmatprep.subr.mxu0 0.0
      %5432 = vmatpush2.msra.mxu0 0.0
      %5433 = vmatprep.subr.mxu0 0.0
      %5434 = vmatpush2.msra.mxu0 0.0
      %5435 = vmatprep.subr.mxu0 0.0
      %5436 = vmatpush2.msra.mxu0 0.0
      %5437 = vmatprep.subr.mxu0 0.0
      %5438 = vmatpush2.msra.mxu0 0.0
      %5439 = vmatprep.subr.mxu0 0.0
      %5440 = vmatpush2.msra.mxu0 0.0
      %5441 = vmatprep.subr.mxu0 0.0
      %5442 = vmatpush2.msra.mxu0 0.0
      %5443 = vmatprep.subr.mxu0 0.0
      %5444 = vmatpush2.msra.mxu0 0.0
      %5445 = vmatprep.subr.mxu0 0.0
      %5446 = vmatpush2.msra.mxu0 0.0
      %5447 = vmatprep.subr.mxu0 0.0
      %5448 = vmatpush2.msra.mxu0 0.0
      %5449 = vmatprep.subr.mxu0 0.0
      %5450 = vmatpush2.msra.mxu0 0.0
      %5451 = vmatprep.subr.mxu0 0.0
      %5452 = vmatpush2.msra.mxu0 0.0
      %5453 = vmatprep.mubr.f32.mxu0 0.0
      %5454 = vmatmul.mubr.f32.gmra.mxu0 %v1415
      %v5455 = vpop.f32.mrf.mxu0
      %v5456 = vadd.f32 0.0, %v5455
      %v5457 = vpop.f32.mrf.mxu0
      %5458 = vmatprep.mubr.f32.mxu0 0.0
      %5459 = vmatmul.mubr.f32.gmra.mxu0 %v1418
      %v5460 = vpop.f32.mrf.mxu0
      %v5461 = vadd.f32 0.0, %v5460
      %v5462 = vpop.f32.mrf.mxu0
      %5463 = vmatprep.mubr.f32.mxu0 0.0
      %5464 = vmatmul.mubr.f32.gmra.mxu0 %v1421
      %v5465 = vpop.f32.mrf.mxu0
      %v5466 = vadd.f32 0.0, %v5465
      %v5467 = vpop.f32.mrf.mxu0
      %5468 = vmatprep.mubr.f32.mxu0 0.0
      %5469 = vmatmul.mubr.f32.gmra.mxu0 %v1424
      %v5470 = vpop.f32.mrf.mxu0
      %v5471 = vadd.f32 0.0, %v5470
      %v5472 = vpop.f32.mrf.mxu0
      %5473 = vdwg.mxu0
      %5476 = vrot.lane.b32.xlu0 %v5456, 8
      %v5477 = vpop.permute.xlu0 %5476
      %5478 = vrot.lane.b32.xlu0 %v5461, 8
      %v5479 = vpop.permute.xlu0 %5478
      %5484 = vrot.lane.b32.xlu0 %v5466, 16
      %v5485 = vpop.permute.xlu0 %5484
      %5486 = vrot.lane.b32.xlu0 %v5471, 16
      %v5487 = vpop.permute.xlu0 %5486
      %v5490 = vsel %vm1734, %v5387, %v5477
      %v5491 = vsel %vm1734, %v5388, %v5479
      %v5492 = vsel %vm1413, %v5490, %v5485
      %v5493 = vsel %vm1413, %v5491, %v5487
      %v5494 = vld [vmem:[%s87] sm:$0xff]
      %v5495 = vld [vmem:[%s87 + $0x8] sm:$0xff]
      %v5496 = vld [vmem:[%s87 + $0x10] sm:$0xff]
      %v5497 = vld [vmem:[%s89] sm:$0x1]
      %v5499 = vlaneseq
      %v5500 = vshrl.u32 %v5499, 7
      %v5501 = vsub.s32 0, %v5500
      %v5502 = vrot.slane %v5497, %v5501
      %v5505 = vsel %vm1530, %v5492, 0
      %v5508 = vsel %vm1530, %v5493, 0
      %5510 = vmatprep.subr.mxu0 0.0
      %5511 = vmatpush1.msra.mxu0 0.0
      %5512 = vmatprep.subr.mxu0 0.0
      %5513 = vmatpush1.msra.mxu0 0.0
      %5514 = vmatprep.subr.mxu0 0.0
      %5515 = vmatpush1.msra.mxu0 0.0
      %5516 = vmatprep.subr.mxu0 0.0
      %5517 = vmatpush1.msra.mxu0 0.0
      %5518 = vmatprep.subr.mxu0 0.0
      %5519 = vmatpush1.msra.mxu0 0.0
      %5520 = vmatprep.subr.mxu0 0.0
      %5521 = vmatpush1.msra.mxu0 0.0
      %5522 = vmatprep.subr.mxu0 0.0
      %5523 = vmatpush1.msra.mxu0 0.0
      %5524 = vmatprep.subr.mxu0 0.0
      %5525 = vmatpush1.msra.mxu0 0.0
      %5526 = vmatprep.subr.mxu0 0.0
      %5527 = vmatpush1.msra.mxu0 0.0
      %5528 = vmatprep.subr.mxu0 0.0
      %5529 = vmatpush1.msra.mxu0 0.0
      %5530 = vmatprep.subr.mxu0 0.0
      %5531 = vmatpush1.msra.mxu0 0.0
      %5532 = vmatprep.subr.mxu0 0.0
      %5533 = vmatpush1.msra.mxu0 0.0
      %5534 = vmatprep.subr.mxu0 0.0
      %5535 = vmatpush1.msra.mxu0 0.0
      %5536 = vmatprep.subr.mxu0 0.0
      %5537 = vmatpush1.msra.mxu0 %v5496
      %5538 = vmatprep.subr.mxu0 0.0
      %5539 = vmatpush1.msra.mxu0 %v5495
      %5540 = vmatprep.subr.mxu0 0.0
      %5541 = vmatpush1.msra.mxu0 %v5494
      %5542 = vmatprep.subr.mxu0 0.0
      %5543 = vmatpush2.msra.mxu0 0.0
      %5544 = vmatprep.subr.mxu0 0.0
      %5545 = vmatpush2.msra.mxu0 0.0
      %5546 = vmatprep.subr.mxu0 0.0
      %5547 = vmatpush2.msra.mxu0 0.0
      %5548 = vmatprep.subr.mxu0 0.0
      %5549 = vmatpush2.msra.mxu0 0.0
      %5550 = vmatprep.subr.mxu0 0.0
      %5551 = vmatpush2.msra.mxu0 0.0
      %5552 = vmatprep.subr.mxu0 0.0
      %5553 = vmatpush2.msra.mxu0 0.0
      %5554 = vmatprep.subr.mxu0 0.0
      %5555 = vmatpush2.msra.mxu0 0.0
      %5556 = vmatprep.subr.mxu0 0.0
      %5557 = vmatpush2.msra.mxu0 0.0
      %5558 = vmatprep.subr.mxu0 0.0
      %5559 = vmatpush2.msra.mxu0 0.0
      %5560 = vmatprep.subr.mxu0 0.0
      %5561 = vmatpush2.msra.mxu0 0.0
      %5562 = vmatprep.subr.mxu0 0.0
      %5563 = vmatpush2.msra.mxu0 0.0
      %5564 = vmatprep.subr.mxu0 0.0
      %5565 = vmatpush2.msra.mxu0 0.0
      %5566 = vmatprep.subr.mxu0 0.0
      %5567 = vmatpush2.msra.mxu0 0.0
      %5568 = vmatprep.subr.mxu0 0.0
      %5569 = vmatpush2.msra.mxu0 0.0
      %5570 = vmatprep.subr.mxu0 0.0
      %5571 = vmatpush2.msra.mxu0 0.0
      %5572 = vmatprep.subr.mxu0 0.0
      %5573 = vmatpush2.msra.mxu0 0.0
      %5574 = vmatprep.mubr.f32.mxu0 0.0
      %5575 = vmatmul.mubr.f32.gmra.mxu0 %v5505
      %v5576 = vpop.f32.mrf.mxu0
      %v5577 = vadd.f32 %v5502, %v5576
      %v5578 = vpop.f32.mrf.mxu0
      %5579 = vmatprep.mubr.f32.mxu0 0.0
      %5580 = vmatmul.mubr.f32.gmra.mxu0 %v5508
      %v5581 = vpop.f32.mrf.mxu0
      %v5582 = vadd.f32 %v5502, %v5581
      %v5583 = vpop.f32.mrf.mxu0
      %5584 = vdwg.mxu0
      %v5585 = vmax.f32 %v5577, 0.0
      %v5586 = vmax.f32 %v5582, 0.0
      %v5587 = vld [vmem:[%s91] sm:$0xff]
      %v5588 = vld [vmem:[%s93] sm:$0x1]
      %v5590 = vlaneseq
      %v5591 = vshrl.u32 %v5590, 7
      %v5592 = vsub.s32 0, %v5591
      %v5593 = vrot.slane %v5588, %v5592
      %v5596 = vsel %vm1734, %v5585, 0
      %v5599 = vsel %vm1734, %v5586, 0
      %5601 = vmatprep.subr.mxu0 0.0
      %5602 = vmatpush1.msra.mxu0 0.0
      %5603 = vmatprep.subr.mxu0 0.0
      %5604 = vmatpush1.msra.mxu0 0.0
      %5605 = vmatprep.subr.mxu0 0.0
      %5606 = vmatpush1.msra.mxu0 0.0
      %5607 = vmatprep.subr.mxu0 0.0
      %5608 = vmatpush1.msra.mxu0 0.0
      %5609 = vmatprep.subr.mxu0 0.0
      %5610 = vmatpush1.msra.mxu0 0.0
      %5611 = vmatprep.subr.mxu0 0.0
      %5612 = vmatpush1.msra.mxu0 0.0
      %5613 = vmatprep.subr.mxu0 0.0
      %5614 = vmatpush1.msra.mxu0 0.0
      %5615 = vmatprep.subr.mxu0 0.0
      %5616 = vmatpush1.msra.mxu0 0.0
      %5617 = vmatprep.subr.mxu0 0.0
      %5618 = vmatpush1.msra.mxu0 0.0
      %5619 = vmatprep.subr.mxu0 0.0
      %5620 = vmatpush1.msra.mxu0 0.0
      %5621 = vmatprep.subr.mxu0 0.0
      %5622 = vmatpush1.msra.mxu0 0.0
      %5623 = vmatprep.subr.mxu0 0.0
      %5624 = vmatpush1.msra.mxu0 0.0
      %5625 = vmatprep.subr.mxu0 0.0
      %5626 = vmatpush1.msra.mxu0 0.0
      %5627 = vmatprep.subr.mxu0 0.0
      %5628 = vmatpush1.msra.mxu0 0.0
      %5629 = vmatprep.subr.mxu0 0.0
      %5630 = vmatpush1.msra.mxu0 0.0
      %5631 = vmatprep.subr.mxu0 0.0
      %5632 = vmatpush1.msra.mxu0 %v5587
      %5633 = vmatprep.subr.mxu0 0.0
      %5634 = vmatpush2.msra.mxu0 0.0
      %5635 = vmatprep.subr.mxu0 0.0
      %5636 = vmatpush2.msra.mxu0 0.0
      %5637 = vmatprep.subr.mxu0 0.0
      %5638 = vmatpush2.msra.mxu0 0.0
      %5639 = vmatprep.subr.mxu0 0.0
      %5640 = vmatpush2.msra.mxu0 0.0
      %5641 = vmatprep.subr.mxu0 0.0
      %5642 = vmatpush2.msra.mxu0 0.0
      %5643 = vmatprep.subr.mxu0 0.0
      %5644 = vmatpush2.msra.mxu0 0.0
      %5645 = vmatprep.subr.mxu0 0.0
      %5646 = vmatpush2.msra.mxu0 0.0
      %5647 = vmatprep.subr.mxu0 0.0
      %5648 = vmatpush2.msra.mxu0 0.0
      %5649 = vmatprep.subr.mxu0 0.0
      %5650 = vmatpush2.msra.mxu0 0.0
      %5651 = vmatprep.subr.mxu0 0.0
      %5652 = vmatpush2.msra.mxu0 0.0
      %5653 = vmatprep.subr.mxu0 0.0
      %5654 = vmatpush2.msra.mxu0 0.0
      %5655 = vmatprep.subr.mxu0 0.0
      %5656 = vmatpush2.msra.mxu0 0.0
      %5657 = vmatprep.subr.mxu0 0.0
      %5658 = vmatpush2.msra.mxu0 0.0
      %5659 = vmatprep.subr.mxu0 0.0
      %5660 = vmatpush2.msra.mxu0 0.0
      %5661 = vmatprep.subr.mxu0 0.0
      %5662 = vmatpush2.msra.mxu0 0.0
      %5663 = vmatprep.subr.mxu0 0.0
      %5664 = vmatpush2.msra.mxu0 0.0
      %5665 = vmatprep.mubr.f32.mxu0 0.0
      %5666 = vmatmul.mubr.f32.gmra.mxu0 %v5596
      %v5667 = vpop.f32.mrf.mxu0
      %v5668 = vadd.f32 %v5593, %v5667
      %v5669 = vpop.f32.mrf.mxu0
      %5670 = vmatprep.mubr.f32.mxu0 0.0
      %5671 = vmatmul.mubr.f32.gmra.mxu0 %v5599
      %v5672 = vpop.f32.mrf.mxu0
      %v5673 = vadd.f32 %v5593, %v5672
      %v5674 = vpop.f32.mrf.mxu0
      %5675 = vdwg.mxu0
      %vm5676 = vcmask 48128
      %5677 = vst.msk [vmem:[%s1406] sm:$0xff] %vm5676, %v5668
      %5678 = vst.msk [vmem:[%s1406 + $0x8] sm:$0xff] %vm5676, %v5673
      %p5679 = scmp.lt.s32.totalorder %s106, 1
      %s5680 = scalar_select %p5679, %s106, 1
      %s5681 = smul.addr %s5680, 2
      %s5682 = smul.addr %s5681, 8
      %s5683 = scalar_lea.vmem %s95, %s5682
      // Predicated region
      $region209: #{dcrnn_single_forward.1} parent=207 // pred_check
        %p5684 = pneg %p1116
      $region210: #{dcrnn_single_forward.1} parent=207 // pred_check_branch
        %5686 = sbr.rel (%p5684) target = $region212
      $region211: #{dcrnn_single_forward.1} parent=207 // pred_region
        _
      $region212: #{dcrnn_single_forward.1} parent=207 // pred_fallthru
        _
    $region208: #{dcrnn_single_forward.1} parent=5 // pred_fallthru
      _
    %p5687 = scmp.le.s32.totalorder 2, %s101
    // Predicated region
    $region213: #{dcrnn_single_forward.1} parent=5 // pred_check
      %p5688 = pneg %p5687
    $region214: #{dcrnn_single_forward.1} parent=5 // pred_check_branch
      %5690 = sbr.rel (%p5688) target = $region216
    $region215: #{dcrnn_single_forward.1} parent=5 // pred_region
      %s5691 = ssub.s32 %s101, 2
      // Predicated region
      $region217: #{dcrnn_single_forward.1} parent=215 // pred_check
        %p5692 = pneg %p1122
      $region218: #{dcrnn_single_forward.1} parent=215 // pred_check_branch
        %5694 = sbr.rel (%p5692) target = $region220
      $region219: #{dcrnn_single_forward.1} parent=215 // pred_region
        %p5695 = scmp.lt.s32.totalorder %s107, 1
        %s5696 = scalar_select %p5695, %s107, 1
        %s5697 = smul.addr %s5696, 2
        %s5698 = smul.addr %s5697, 8
        %s5699 = scalar_lea.vmem %s95, %s5698
      $region220: #{dcrnn_single_forward.1} parent=215 // pred_fallthru
        _
    $region216: #{dcrnn_single_forward.1} parent=5 // pred_fallthru
      _
  $region6: #{dcrnn_single_forward.1} parent=0 // loop_footer
    %s105 = sadd.s32 1, %s101
  $region7: #{dcrnn_single_forward.1} parent=0 // loop_footer_branch
    %100 = sbr.rel target = $region3
  $region8: #{dcrnn_single_forward.1} parent=0 // loop_exit
    _

</llo_original>
